<compile_context>
chip_gen: v7x
topology: tpu7x:2x2x1
jax: 0.10.0
libtpu: 0.0.40
codegen_flags: <defaults>
</compile_context>

<pallas_src>
import numpy as np
import jax
import jax.numpy as jnp
from jax import lax
from jax.experimental import pallas as pl
from jax.experimental.pallas import tpu as pltpu

NEG_SLOPE = 0.01  # PyTorch nn.LeakyReLU(negative_slope=0.01)


# --------------------------------- kernel body ---------------------------------
def _zero_halos(pad_ref, p, ls):
    """Zero ONLY the 'same'-padding halo slices of a (BT, ls + K - 1, C) scratch.

    NOTE: correctness relies on nothing else ever writing into these halo rows
    (the interiors [:, p:p+ls, :] are fully overwritten every grid step).
    """
    bt, lp, c = pad_ref.shape
    pad_ref[:, :p, :] = jnp.zeros((bt, p, c), pad_ref.dtype)
    pad_ref[:, p + ls:, :] = jnp.zeros((bt, lp - p - ls, c), pad_ref.dtype)


def _conv_pool_mxu(pad_ref, w, b, ls, neg):
    """'same' Conv1d as ONE im2col MXU matmul -> bias -> LeakyReLU -> MaxPool1d(2, 2).

    pad_ref: (BT, ls + K - 1, Cin) zero-haloed scratch, already in the MXU operand dtype.
    w:       (K*Cin, Cout) im2col weights (tap-major, channel-minor rows).
    b:       (1, Cout) f32 bias.
    Returns  (BT, ls // 2, Cout) f32.
    """
    bt, _, cin = pad_ref.shape
    kc, cout = w.shape
    k_taps = kc // cin
    # Concatenate the K shifted tap windows along the channel (lane) axis so the MXU
    # contraction depth is K*Cin (96 / 192) instead of K separate depth-Cin pushes.
    lhs = jnp.concatenate([pad_ref[:, k:k + ls, :] for k in range(k_taps)], axis=-1)
    acc = jnp.dot(lhs.reshape(bt * ls, kc), w, preferred_element_type=jnp.float32)
    acc = acc + b                                         # (1, Cout) broadcast, f32
    y = jnp.where(acc > 0, acc, neg * acc)                # LeakyReLU(0.01), f32 epilogue
    y = jnp.max(y.reshape(bt * ls // 2, 2, cout), axis=1)  # MaxPool1d(2, 2)
    return y.reshape(bt, ls // 2, cout)


def fused_cnn_kernel(x_ref, w1_ref, b1_ref, w2_ref, b2_ref, w3_ref, b3_ref,
                     o_ref, pad1_ref, pad2_ref, pad3_ref):
    BT, L, _ = x_ref.shape
    K1, C1 = w1_ref.shape
    L2, L4 = L // 2, L // 4
    P1 = (K1 - 1) // 2
    P2 = (pad2_ref.shape[1] - L2) // 2
    P3 = (pad3_ref.shape[1] - L4) // 2
    neg = jnp.float32(NEG_SLOPE)

    # Zero only the tiny halo slices (cheap masked stores), every step: safe under any
    # TensorCore split of the parallel batch axis, and the interiors are always
    # overwritten below so no full-buffer memset is needed.
    _zero_halos(pad1_ref, P1, L)
    _zero_halos(pad2_ref, P2, L2)
    _zero_halos(pad3_ref, P3, L4)

    # ---- stage 1: Conv1d(1 -> 32, k=5, pad=2) as 5 broadcast VPU FMAs (f32) ----
    # TODO(synk): stage 1 uses 1-lane / 32-lane tiles; restructure lane-dense (pltpu.roll
    # taps) only if it ever shows up in profiles — it is <2% of the FLOPs.
    pad1_ref[:, P1:P1 + L, :] = x_ref[...]               # (BT, L, 1) interior
    w1 = w1_ref[...]                                     # (K1, C1) f32
    acc1 = jnp.zeros((BT * L, C1), jnp.float32)
    for k in range(K1):                                  # static unroll over taps
        tap = pad1_ref[:, k:k + L, :].reshape(BT * L, 1)
        acc1 = acc1 + tap * w1[k:k + 1, :]               # lane-broadcast FMA
    acc1 = acc1 + b1_ref[...]
    y1 = jnp.where(acc1 > 0, acc1, neg * acc1)           # LeakyReLU(0.01)
    y1 = jnp.max(y1.reshape(BT * L // 2, 2, C1), axis=1)  # MaxPool1d(2, 2)

    # ---- stage 2: Conv1d(32 -> 64, k=3, pad=1), single im2col MXU matmul ----
    # cast ONCE into the bf16 (matmul-dtype) scratch; tap reads need no further casts
    pad2_ref[:, P2:P2 + L2, :] = y1.reshape(BT, L2, C1).astype(pad2_ref.dtype)
    y2 = _conv_pool_mxu(pad2_ref, w2_ref[...], b2_ref[...], L2, neg)   # (BT, L/4, 64)

    # ---- stage 3: Conv1d(64 -> 128, k=3, pad=1), single im2col MXU matmul ----
    pad3_ref[:, P3:P3 + L4, :] = y2.astype(pad3_ref.dtype)
    y3 = _conv_pool_mxu(pad3_ref, w3_ref[...], b3_ref[...], L4, neg)   # (BT, L/8, 128)

    o_ref[...] = y3.astype(o_ref.dtype)                  # lane-dense 128-channel store


# ------------------------------ tiling / VMEM sizing ------------------------------
def _vmem_capacity_bytes():
    try:
        return int(pltpu.get_tpu_info().vmem_capacity_bytes)
    except Exception:
        return 64 << 20  # conservative default: v7x per-TensorCore VMEM


def _per_sample_vmem_bytes(l, mb, ob):
    """Rough per-batch-element VMEM bytes for one grid step (caps batch_tile)."""
    return int(
        2 * l * 4                                    # double-buffered input block (f32)
        + 2 * (l // 8) * 128 * ob                    # double-buffered output block
        + (l + 4) * 4                                # stage-1 halo scratch (f32)
        + (l // 2 + 2) * 32 * mb                     # stage-2 halo scratch
        + (l // 4 + 2) * 64 * mb                     # stage-3 halo scratch
        + l * 32 * 4 * 2                             # stage-1 acc + y1 (f32)
        + (l // 2) * (3 * 32 * mb + 2 * 64 * 4)      # stage-2 im2col lhs + acc/y2
        + (l // 4) * (3 * 64 * mb + 2 * 128 * 4)     # stage-3 im2col lhs + acc/y3
    )


def _default_batch_tile(n, l, mb, ob):
    """Largest batch tile that (a) fills the MXU M dim (stage-3 M = BT*L/4 >= 512) and
    (b) fits a per-generation VMEM budget; prefers an even grid for v7x's 2 TCs."""
    budget = int(0.6 * _vmem_capacity_bytes())
    max_bt = max(1, budget // max(1, _per_sample_vmem_bytes(l, mb, ob)))
    target_bt = pl.cdiv(2048, l)                     # BT * L/4 >= 512
    divisors = [d for d in range(1, n + 1) if n % d == 0 and d <= max_bt] or [1]
    meets = [d for d in divisors if d >= target_bt]
    if meets:
        bt = min(meets)                              # smallest tile that fills M
        even = [d for d in meets if (n // d) % 2 == 0]
        if (n // bt) % 2 == 1 and even:              # prefer an even grid if free
            bt = min(even)
    else:
        bt = max(divisors)                           # can't reach target; take biggest
    return bt


def _fused_forward(x_nl1, w1, b1, w2, b2, w3, b3, *, batch_tile, matmul_dtype, out_dtype):
    N, L, _ = x_nl1.shape
    K1, C1 = w1.shape
    C2, C3 = w2.shape[1], w3.shape[1]
    K2 = w2.shape[0] // C1
    K3 = w3.shape[0] // C2
    L8 = L // 8
    BT = batch_tile

    cap = _vmem_capacity_bytes()
    per = _per_sample_vmem_bytes(L, np.dtype(matmul_dtype).itemsize,
                                 np.dtype(out_dtype).itemsize)
    vmem_limit = min(int(0.9 * cap), max(32 << 20, int(1.5 * per * BT)))

    grid_spec = pltpu.PrefetchScalarGridSpec(
        num_scalar_prefetch=0,
        grid=(N // BT,),
        in_specs=[
            pl.BlockSpec((BT, L, 1), lambda i: (i, 0, 0)),
            pl.BlockSpec(w1.shape, lambda i: (0, 0)),
            pl.BlockSpec(b1.shape, lambda i: (0, 0)),
            pl.BlockSpec(w2.shape, lambda i: (0, 0)),
            pl.BlockSpec(b2.shape, lambda i: (0, 0)),
            pl.BlockSpec(w3.shape, lambda i: (0, 0)),
            pl.BlockSpec(b3.shape, lambda i: (0, 0)),
        ],
        out_specs=pl.BlockSpec((BT, L8, C3), lambda i: (i, 0, 0)),
        scratch_shapes=[
            pltpu.VMEM((BT, L + K1 - 1, 1), jnp.float32),          # stage-1 halo (f32)
            pltpu.VMEM((BT, L // 2 + K2 - 1, C1), matmul_dtype),   # stage-2 halo (bf16)
            pltpu.VMEM((BT, L // 4 + K3 - 1, C2), matmul_dtype),   # stage-3 halo (bf16)
        ],
    )
    return pl.pallas_call(
        fused_cnn_kernel,
        out_shape=jax.ShapeDtypeStruct((N, L8, C3), out_dtype),
        grid_spec=grid_spec,
        compiler_params=pltpu.CompilerParams(
            dimension_semantics=("parallel",),
            vmem_limit_bytes=vmem_limit,
        ),
    )(x_nl1, w1, b1, w2, b2, w3, b3)


# -------------------------------- params / wrapper --------------------------------
def init_params(key):
    """Deterministic synthetic params. Torch-layout conv weights: (Cout, Cin, K)."""
    ks = jax.random.split(key, 6)
    return {
        "w1_t": jax.random.normal(ks[0], (32, 1, 5), jnp.float32) * 0.1,
        "b1": jax.random.normal(ks[1], (32,), jnp.float32) * 0.1,
        "w2_t": jax.random.normal(ks[2], (64, 32, 3), jnp.float32) * 0.05,
        "b2": jax.random.normal(ks[3], (64,), jnp.float32) * 0.1,
        "w3_t": jax.random.normal(ks[4], (128, 64, 3), jnp.float32) * 0.05,
        "b3": jax.random.normal(ks[5], (128,), jnp.float32) * 0.1,
    }


def to_kernel_weights(p, matmul_dtype=jnp.bfloat16):
    """Torch layout (Cout, Cin, K) -> im2col layout (K*Cin, Cout); biases as (1, C).

    The (tap-major, channel-minor) row order MUST match the kernel's lane concat of
    the K shifted tap windows."""
    def im2col_w(w_t):
        co, ci, k = w_t.shape
        return jnp.transpose(w_t, (2, 1, 0)).reshape(k * ci, co)
    w1 = im2col_w(p["w1_t"])                        # (5, 32); Cin == 1, stays f32 (VPU path)
    w2 = im2col_w(p["w2_t"]).astype(matmul_dtype)   # (96, 64)
    w3 = im2col_w(p["w3_t"]).astype(matmul_dtype)   # (192, 128)
    b1 = p["b1"].reshape(1, -1)
    b2 = p["b2"].reshape(1, -1)
    b3 = p["b3"].reshape(1, -1)
    return w1, b1, w2, b2, w3, b3


def feature_extractor_forward(x_ncl, p, *, batch_tile=None, matmul_dtype=jnp.bfloat16,
                              out_dtype=jnp.float32, channel_major_flatten=True):
    """x_ncl: (N, 1, L) float32 (PyTorch NCL layout).  Returns (N, 128 * L//8)."""
    N, C, L = x_ncl.shape
    if C != 1:
        raise ValueError("FeatureExtractorCNN expects a single input channel")
    if L % 8 != 0:
        raise ValueError("L must be divisible by 8 (three MaxPool1d(2) stages)")
    mb = np.dtype(matmul_dtype).itemsize
    ob = np.dtype(out_dtype).itemsize
    if batch_tile is None:
        batch_tile = _default_batch_tile(N, L, mb, ob)
    if N % batch_tile != 0:
        raise ValueError("batch size must be divisible by batch_tile")

    w1, b1, w2, b2, w3, b3 = to_kernel_weights(p, matmul_dtype)
    x = x_ncl.reshape(N, L, 1)  # (N, 1, L) -> (N, L, 1): free reshape since C == 1

    feats = _fused_forward(x, w1, b1, w2, b2, w3, b3, batch_tile=batch_tile,
                           matmul_dtype=matmul_dtype, out_dtype=out_dtype)  # (N, L/8, 128)
    if not channel_major_flatten:
        return feats  # lane-dense (N, L/8, 128): preferred — fold the permute into the consumer

    # Match PyTorch's x.view(N, -1) on (N, C, L): channel-major flatten.  In a real
    # pipeline fold this permutation into the consumer's (SVM/FC) weights or jit it
    # together with the consumer; kept here only to preserve the module's exact layout.
    feats = jnp.transpose(feats, (0, 2, 1))              # (N, 128, L/8)
    return feats.reshape(N, -1)


# ----------------------- pure-JAX reference (for checking) -----------------------
def _ref_stage(x_ncl, w_t, b, pad):
    y = lax.conv_general_dilated(
        x_ncl, w_t, window_strides=(1,), padding=[(pad, pad)],
        dimension_numbers=("NCH", "OIH", "NCH"))
    y = y + b[None, :, None]
    y = jnp.where(y > 0, y, 0.01 * y)
    N, C, L = y.shape
    return jnp.max(y.reshape(N, C, L // 2, 2), axis=-1)


def reference_forward(x_ncl, p):
    x = _ref_stage(x_ncl, p["w1_t"], p["b1"], 2)
    x = _ref_stage(x, p["w2_t"], p["b2"], 1)
    x = _ref_stage(x, p["w3_t"], p["b3"], 1)
    return x.reshape(x.shape[0], -1)


if __name__ == "__main__":
    key = jax.random.PRNGKey(0)
    kp, kx = jax.random.split(key)
    params = init_params(kp)

    N, L = 8, 64                          # small demo shapes; L divisible by 8
    x = jax.random.normal(kx, (N, 1, L), jnp.float32)
    ref = reference_forward(x, params)

    # Default path: bf16 MXU operands (all generations), f32 accumulate/epilogue, f32 out.
    out = feature_extractor_forward(x, params)
    out = jax.block_until_ready(out)
    assert out.shape == (N, 128 * (L // 8)), out.shape
    np.testing.assert_allclose(np.asarray(out), np.asarray(ref), atol=5e-2, rtol=5e-2)

    # Bit-accurate check: f32 MXU operands.
    out_f32 = feature_extractor_forward(x, params, matmul_dtype=jnp.float32)
    out_f32 = jax.block_until_ready(out_f32)
    np.testing.assert_allclose(np.asarray(out_f32), np.asarray(ref), atol=1e-4, rtol=1e-4)

    # Optional bf16 feature store (halves HBM writeback and output VMEM).
    out_bf16 = feature_extractor_forward(x, params, out_dtype=jnp.bfloat16)
    out_bf16 = jax.block_until_ready(out_bf16)
    np.testing.assert_allclose(np.asarray(out_bf16, dtype=np.float32), np.asarray(ref),
                               atol=6e-2, rtol=6e-2)

    print("KERNEL_OK")
</pallas_src>

<mosaic_0001>
module attributes {stable_mosaic.version = 11 : i64} {
  func.func @fused_cnn_kernel(%arg0: i32, %arg1: memref<8x64x1xf32, #tpu.memory_space<vmem>>, %arg2: memref<5x32xf32, #tpu.memory_space<vmem>>, %arg3: memref<1x32xf32, #tpu.memory_space<vmem>>, %arg4: memref<96x64xbf16, #tpu.memory_space<vmem>>, %arg5: memref<1x64xf32, #tpu.memory_space<vmem>>, %arg6: memref<192x128xbf16, #tpu.memory_space<vmem>>, %arg7: memref<1x128xf32, #tpu.memory_space<vmem>>, %arg8: memref<8x8x128xf32, #tpu.memory_space<vmem>>, %arg9: memref<8x68x1xf32, #tpu.memory_space<vmem>>, %arg10: memref<8x34x32xbf16, #tpu.memory_space<vmem>>, %arg11: memref<8x18x64xbf16, #tpu.memory_space<vmem>>) attributes {dimension_semantics = [#tpu.dimension_semantics<parallel>], iteration_bounds = array<i64: 1>, scalar_prefetch = 0 : i64, scratch_operands = 3 : i64, tpu.core_type = #tpu.core_type<tc>, window_params = [{transform_indices = @transform_0, window_bounds = array<i64: 8, 64, 1>}, {pipeline_mode = #tpu.pipeline_mode<synchronous>, transform_indices = @transform_1, window_bounds = array<i64: 5, 32>}, {pipeline_mode = #tpu.pipeline_mode<synchronous>, transform_indices = @transform_2, window_bounds = array<i64: 1, 32>}, {pipeline_mode = #tpu.pipeline_mode<synchronous>, transform_indices = @transform_3, window_bounds = array<i64: 96, 64>}, {pipeline_mode = #tpu.pipeline_mode<synchronous>, transform_indices = @transform_4, window_bounds = array<i64: 1, 64>}, {pipeline_mode = #tpu.pipeline_mode<synchronous>, transform_indices = @transform_5, window_bounds = array<i64: 192, 128>}, {pipeline_mode = #tpu.pipeline_mode<synchronous>, transform_indices = @transform_6, window_bounds = array<i64: 1, 128>}, {transform_indices = @transform_7, window_bounds = array<i64: 8, 8, 128>}]} {
    %cst = arith.constant 0.000000e+00 : f32
    %0 = vector.broadcast %cst : f32 to vector<8x2x1xf32>
    %c0 = arith.constant 0 : index
    %c0_0 = arith.constant 0 : index
    %c0_1 = arith.constant 0 : index
    %1 = vector.load %arg9[%c0, %c0_0, %c0_1] : memref<8x68x1xf32, #tpu.memory_space<vmem>>, vector<8x2x1xf32>
    tpu.vector_store %arg9[%c0, %c0_0, %c0_1], %0 {strides = array<i32>} : memref<8x68x1xf32, #tpu.memory_space<vmem>>, vector<8x2x1xf32>,
    %cst_2 = arith.constant 0.000000e+00 : f32
    %2 = vector.broadcast %cst_2 : f32 to vector<8x2x1xf32>
    %c0_3 = arith.constant 0 : index
    %c66 = arith.constant 66 : index
    %c0_4 = arith.constant 0 : index
    %3 = vector.load %arg9[%c0_3, %c66, %c0_4] : memref<8x68x1xf32, #tpu.memory_space<vmem>>, vector<8x2x1xf32>
    tpu.vector_store %arg9[%c0_3, %c66, %c0_4], %2 {strides = array<i32>} : memref<8x68x1xf32, #tpu.memory_space<vmem>>, vector<8x2x1xf32>,
    %cst_5 = arith.constant 0.000000e+00 : bf16
    %4 = vector.broadcast %cst_5 : bf16 to vector<8x1x32xbf16>
    %c0_6 = arith.constant 0 : index
    %c0_7 = arith.constant 0 : index
    %c0_8 = arith.constant 0 : index
    %5 = vector.load %arg10[%c0_6, %c0_7, %c0_8] : memref<8x34x32xbf16, #tpu.memory_space<vmem>>, vector<8x1x32xbf16>
    tpu.vector_store %arg10[%c0_6, %c0_7, %c0_8], %4 {strides = array<i32>} : memref<8x34x32xbf16, #tpu.memory_space<vmem>>, vector<8x1x32xbf16>,
    %cst_9 = arith.constant 0.000000e+00 : bf16
    %6 = vector.broadcast %cst_9 : bf16 to vector<8x1x32xbf16>
    %c0_10 = arith.constant 0 : index
    %c33 = arith.constant 33 : index
    %c0_11 = arith.constant 0 : index
    %7 = vector.load %arg10[%c0_10, %c33, %c0_11] : memref<8x34x32xbf16, #tpu.memory_space<vmem>>, vector<8x1x32xbf16>
    tpu.vector_store %arg10[%c0_10, %c33, %c0_11], %6 {strides = array<i32>} : memref<8x34x32xbf16, #tpu.memory_space<vmem>>, vector<8x1x32xbf16>,
    %cst_12 = arith.constant 0.000000e+00 : bf16
    %8 = vector.broadcast %cst_12 : bf16 to vector<8x1x64xbf16>
    %c0_13 = arith.constant 0 : index
    %c0_14 = arith.constant 0 : index
    %c0_15 = arith.constant 0 : index
    %9 = vector.load %arg11[%c0_13, %c0_14, %c0_15] : memref<8x18x64xbf16, #tpu.memory_space<vmem>>, vector<8x1x64xbf16>
    tpu.vector_store %arg11[%c0_13, %c0_14, %c0_15], %8 {strides = array<i32>} : memref<8x18x64xbf16, #tpu.memory_space<vmem>>, vector<8x1x64xbf16>,
    %cst_16 = arith.constant 0.000000e+00 : bf16
    %10 = vector.broadcast %cst_16 : bf16 to vector<8x1x64xbf16>
    %c0_17 = arith.constant 0 : index
    %c17 = arith.constant 17 : index
    %c0_18 = arith.constant 0 : index
    %11 = vector.load %arg11[%c0_17, %c17, %c0_18] : memref<8x18x64xbf16, #tpu.memory_space<vmem>>, vector<8x1x64xbf16>
    tpu.vector_store %arg11[%c0_17, %c17, %c0_18], %10 {strides = array<i32>} : memref<8x18x64xbf16, #tpu.memory_space<vmem>>, vector<8x1x64xbf16>,
    %c0_19 = arith.constant 0 : index
    %c0_20 = arith.constant 0 : index
    %c0_21 = arith.constant 0 : index
    %12 = vector.load %arg1[%c0_19, %c0_20, %c0_21] : memref<8x64x1xf32, #tpu.memory_space<vmem>>, vector<8x64x1xf32>
    %c0_22 = arith.constant 0 : index
    %c2 = arith.constant 2 : index
    %c0_23 = arith.constant 0 : index
    %13 = vector.load %arg9[%c0_22, %c2, %c0_23] : memref<8x68x1xf32, #tpu.memory_space<vmem>>, vector<8x64x1xf32>
    tpu.vector_store %arg9[%c0_22, %c2, %c0_23], %12 {strides = array<i32>} : memref<8x68x1xf32, #tpu.memory_space<vmem>>, vector<8x64x1xf32>,
    %c0_24 = arith.constant 0 : index
    %c0_25 = arith.constant 0 : index
    %14 = vector.load %arg2[%c0_24, %c0_25] : memref<5x32xf32, #tpu.memory_space<vmem>>, vector<5x32xf32>
    %cst_26 = arith.constant 0.000000e+00 : f32
    %15 = vector.broadcast %cst_26 : f32 to vector<512x32xf32>
    %c0_27 = arith.constant 0 : index
    %c0_28 = arith.constant 0 : index
    %c0_29 = arith.constant 0 : index
    %16 = vector.load %arg9[%c0_27, %c0_28, %c0_29] : memref<8x68x1xf32, #tpu.memory_space<vmem>>, vector<8x64x1xf32>
    %17 = vector.shape_cast %16 : vector<8x64x1xf32> to vector<512x1xf32>
    %18 = vector.extract_strided_slice %14 {offsets = [0, 0], sizes = [1, 32], strides = [1, 1]} : vector<5x32xf32> to vector<1x32xf32>
    %19 = vector.broadcast %17 : vector<512x1xf32> to vector<512x32xf32>
    %20 = vector.broadcast %18 : vector<1x32xf32> to vector<512x32xf32>
    %21 = arith.mulf %19, %20 : vector<512x32xf32>
    %22 = arith.addf %15, %21 : vector<512x32xf32>
    %c0_30 = arith.constant 0 : index
    %c1 = arith.constant 1 : index
    %c0_31 = arith.constant 0 : index
    %23 = vector.load %arg9[%c0_30, %c1, %c0_31] : memref<8x68x1xf32, #tpu.memory_space<vmem>>, vector<8x64x1xf32>
    %24 = vector.shape_cast %23 : vector<8x64x1xf32> to vector<512x1xf32>
    %25 = vector.extract_strided_slice %14 {offsets = [1, 0], sizes = [1, 32], strides = [1, 1]} : vector<5x32xf32> to vector<1x32xf32>
    %26 = vector.broadcast %24 : vector<512x1xf32> to vector<512x32xf32>
    %27 = vector.broadcast %25 : vector<1x32xf32> to vector<512x32xf32>
    %28 = arith.mulf %26, %27 : vector<512x32xf32>
    %29 = arith.addf %22, %28 : vector<512x32xf32>
    %c0_32 = arith.constant 0 : index
    %c2_33 = arith.constant 2 : index
    %c0_34 = arith.constant 0 : index
    %30 = vector.load %arg9[%c0_32, %c2_33, %c0_34] : memref<8x68x1xf32, #tpu.memory_space<vmem>>, vector<8x64x1xf32>
    %31 = vector.shape_cast %30 : vector<8x64x1xf32> to vector<512x1xf32>
    %32 = vector.extract_strided_slice %14 {offsets = [2, 0], sizes = [1, 32], strides = [1, 1]} : vector<5x32xf32> to vector<1x32xf32>
    %33 = vector.broadcast %31 : vector<512x1xf32> to vector<512x32xf32>
    %34 = vector.broadcast %32 : vector<1x32xf32> to vector<512x32xf32>
    %35 = arith.mulf %33, %34 : vector<512x32xf32>
    %36 = arith.addf %29, %35 : vector<512x32xf32>
    %c0_35 = arith.constant 0 : index
    %c3 = arith.constant 3 : index
    %c0_36 = arith.constant 0 : index
    %37 = vector.load %arg9[%c0_35, %c3, %c0_36] : memref<8x68x1xf32, #tpu.memory_space<vmem>>, vector<8x64x1xf32>
    %38 = vector.shape_cast %37 : vector<8x64x1xf32> to vector<512x1xf32>
    %39 = vector.extract_strided_slice %14 {offsets = [3, 0], sizes = [1, 32], strides = [1, 1]} : vector<5x32xf32> to vector<1x32xf32>
    %40 = vector.broadcast %38 : vector<512x1xf32> to vector<512x32xf32>
    %41 = vector.broadcast %39 : vector<1x32xf32> to vector<512x32xf32>
    %42 = arith.mulf %40, %41 : vector<512x32xf32>
    %43 = arith.addf %36, %42 : vector<512x32xf32>
    %c0_37 = arith.constant 0 : index
    %c4 = arith.constant 4 : index
    %c0_38 = arith.constant 0 : index
    %44 = vector.load %arg9[%c0_37, %c4, %c0_38] : memref<8x68x1xf32, #tpu.memory_space<vmem>>, vector<8x64x1xf32>
    %45 = vector.shape_cast %44 : vector<8x64x1xf32> to vector<512x1xf32>
    %46 = vector.extract_strided_slice %14 {offsets = [4, 0], sizes = [1, 32], strides = [1, 1]} : vector<5x32xf32> to vector<1x32xf32>
    %47 = vector.broadcast %45 : vector<512x1xf32> to vector<512x32xf32>
    %48 = vector.broadcast %46 : vector<1x32xf32> to vector<512x32xf32>
    %49 = arith.mulf %47, %48 : vector<512x32xf32>
    %50 = arith.addf %43, %49 : vector<512x32xf32>
    %c0_39 = arith.constant 0 : index
    %c0_40 = arith.constant 0 : index
    %51 = vector.load %arg3[%c0_39, %c0_40] : memref<1x32xf32, #tpu.memory_space<vmem>>, vector<1x32xf32>
    %52 = vector.broadcast %51 : vector<1x32xf32> to vector<512x32xf32>
    %53 = arith.addf %50, %52 : vector<512x32xf32>
    %cst_41 = arith.constant 0.000000e+00 : f32
    %54 = vector.broadcast %cst_41 : f32 to vector<512x32xf32>
    %55 = arith.cmpf ogt, %53, %54 : vector<512x32xf32>
    %cst_42 = arith.constant 0.00999999977 : f32
    %56 = vector.broadcast %cst_42 : f32 to vector<512x32xf32>
    %57 = arith.mulf %56, %53 : vector<512x32xf32>
    %58 = arith.select %55, %53, %57 : vector<512x32xi1>, vector<512x32xf32>
    %59 = vector.shape_cast %58 : vector<512x32xf32> to vector<256x2x32xf32>
    %cst_43 = arith.constant dense<0xFF800000> : vector<256x32xf32>
    %60 = vector.multi_reduction <maximumf>, %59, %cst_43 [1] : vector<256x2x32xf32> to vector<256x32xf32>
    %61 = vector.shape_cast %60 : vector<256x32xf32> to vector<8x32x32xf32>
    %62 = arith.truncf %61 : vector<8x32x32xf32> to vector<8x32x32xbf16>
    %c0_44 = arith.constant 0 : index
    %c1_45 = arith.constant 1 : index
    %c0_46 = arith.constant 0 : index
    %63 = vector.load %arg10[%c0_44, %c1_45, %c0_46] : memref<8x34x32xbf16, #tpu.memory_space<vmem>>, vector<8x32x32xbf16>
    tpu.vector_store %arg10[%c0_44, %c1_45, %c0_46], %62 {strides = array<i32>} : memref<8x34x32xbf16, #tpu.memory_space<vmem>>, vector<8x32x32xbf16>,
    %c0_47 = arith.constant 0 : index
    %c0_48 = arith.constant 0 : index
    %64 = vector.load %arg4[%c0_47, %c0_48] : memref<96x64xbf16, #tpu.memory_space<vmem>>, vector<96x64xbf16>
    %c0_49 = arith.constant 0 : index
    %c0_50 = arith.constant 0 : index
    %65 = vector.load %arg5[%c0_49, %c0_50] : memref<1x64xf32, #tpu.memory_space<vmem>>, vector<1x64xf32>
    %c0_51 = arith.constant 0 : index
    %c0_52 = arith.constant 0 : index
    %c0_53 = arith.constant 0 : index
    %66 = vector.load %arg10[%c0_51, %c0_52, %c0_53] : memref<8x34x32xbf16, #tpu.memory_space<vmem>>, vector<8x32x32xbf16>
    %c0_54 = arith.constant 0 : index
    %c1_55 = arith.constant 1 : index
    %c0_56 = arith.constant 0 : index
    %67 = vector.load %arg10[%c0_54, %c1_55, %c0_56] : memref<8x34x32xbf16, #tpu.memory_space<vmem>>, vector<8x32x32xbf16>
    %c0_57 = arith.constant 0 : index
    %c2_58 = arith.constant 2 : index
    %c0_59 = arith.constant 0 : index
    %68 = vector.load %arg10[%c0_57, %c2_58, %c0_59] : memref<8x34x32xbf16, #tpu.memory_space<vmem>>, vector<8x32x32xbf16>
    %69 = tpu.concatenate %66, %67, %68 in 2 : vector<8x32x32xbf16>, vector<8x32x32xbf16>, vector<8x32x32xbf16> -> vector<8x32x96xbf16>
    %70 = vector.shape_cast %69 : vector<8x32x96xbf16> to vector<256x96xbf16>
    %cst_60 = arith.constant dense<0.000000e+00> : vector<256x64xf32>
    %71 = tpu.matmul %70, %64, %cst_60 {dimension_numbers = #tpu.dot_dimension_numbers<[1], [0], [0], [1], [0, 0, 1, 1], [], []>} : vector<256x96xbf16>, vector<96x64xbf16>, vector<256x64xf32> -> vector<256x64xf32>
    %72 = vector.broadcast %65 : vector<1x64xf32> to vector<256x64xf32>
    %73 = arith.addf %71, %72 : vector<256x64xf32>
    %cst_61 = arith.constant 0.000000e+00 : f32
    %74 = vector.broadcast %cst_61 : f32 to vector<256x64xf32>
    %75 = arith.cmpf ogt, %73, %74 : vector<256x64xf32>
    %cst_62 = arith.constant 0.00999999977 : f32
    %76 = vector.broadcast %cst_62 : f32 to vector<256x64xf32>
    %77 = arith.mulf %76, %73 : vector<256x64xf32>
    %78 = arith.select %75, %73, %77 : vector<256x64xi1>, vector<256x64xf32>
    %79 = vector.shape_cast %78 : vector<256x64xf32> to vector<128x2x64xf32>
    %cst_63 = arith.constant dense<0xFF800000> : vector<128x64xf32>
    %80 = vector.multi_reduction <maximumf>, %79, %cst_63 [1] : vector<128x2x64xf32> to vector<128x64xf32>
    %81 = vector.shape_cast %80 : vector<128x64xf32> to vector<8x16x64xf32>
    %82 = arith.truncf %81 : vector<8x16x64xf32> to vector<8x16x64xbf16>
    %c0_64 = arith.constant 0 : index
    %c1_65 = arith.constant 1 : index
    %c0_66 = arith.constant 0 : index
    %83 = vector.load %arg11[%c0_64, %c1_65, %c0_66] : memref<8x18x64xbf16, #tpu.memory_space<vmem>>, vector<8x16x64xbf16>
    tpu.vector_store %arg11[%c0_64, %c1_65, %c0_66], %82 {strides = array<i32>} : memref<8x18x64xbf16, #tpu.memory_space<vmem>>, vector<8x16x64xbf16>,
    %c0_67 = arith.constant 0 : index
    %c0_68 = arith.constant 0 : index
    %84 = vector.load %arg6[%c0_67, %c0_68] : memref<192x128xbf16, #tpu.memory_space<vmem>>, vector<192x128xbf16>
    %c0_69 = arith.constant 0 : index
    %c0_70 = arith.constant 0 : index
    %85 = vector.load %arg7[%c0_69, %c0_70] : memref<1x128xf32, #tpu.memory_space<vmem>>, vector<1x128xf32>
    %c0_71 = arith.constant 0 : index
    %c0_72 = arith.constant 0 : index
    %c0_73 = arith.constant 0 : index
    %86 = vector.load %arg11[%c0_71, %c0_72, %c0_73] : memref<8x18x64xbf16, #tpu.memory_space<vmem>>, vector<8x16x64xbf16>
    %c0_74 = arith.constant 0 : index
    %c1_75 = arith.constant 1 : index
    %c0_76 = arith.constant 0 : index
    %87 = vector.load %arg11[%c0_74, %c1_75, %c0_76] : memref<8x18x64xbf16, #tpu.memory_space<vmem>>, vector<8x16x64xbf16>
    %c0_77 = arith.constant 0 : index
    %c2_78 = arith.constant 2 : index
    %c0_79 = arith.constant 0 : index
    %88 = vector.load %arg11[%c0_77, %c2_78, %c0_79] : memref<8x18x64xbf16, #tpu.memory_space<vmem>>, vector<8x16x64xbf16>
    %89 = tpu.concatenate %86, %87, %88 in 2 : vector<8x16x64xbf16>, vector<8x16x64xbf16>, vector<8x16x64xbf16> -> vector<8x16x192xbf16>
    %90 = vector.shape_cast %89 : vector<8x16x192xbf16> to vector<128x192xbf16>
    %cst_80 = arith.constant dense<0.000000e+00> : vector<128x128xf32>
    %91 = tpu.matmul %90, %84, %cst_80 {dimension_numbers = #tpu.dot_dimension_numbers<[1], [0], [0], [1], [0, 0, 1, 1], [], []>} : vector<128x192xbf16>, vector<192x128xbf16>, vector<128x128xf32> -> vector<128x128xf32>
    %92 = vector.broadcast %85 : vector<1x128xf32> to vector<128x128xf32>
    %93 = arith.addf %91, %92 : vector<128x128xf32>
    %cst_81 = arith.constant 0.000000e+00 : f32
    %94 = vector.broadcast %cst_81 : f32 to vector<128x128xf32>
    %95 = arith.cmpf ogt, %93, %94 : vector<128x128xf32>
    %cst_82 = arith.constant 0.00999999977 : f32
    %96 = vector.broadcast %cst_82 : f32 to vector<128x128xf32>
    %97 = arith.mulf %96, %93 : vector<128x128xf32>
    %98 = arith.select %95, %93, %97 : vector<128x128xi1>, vector<128x128xf32>
    %99 = vector.shape_cast %98 : vector<128x128xf32> to vector<64x2x128xf32>
    %cst_83 = arith.constant dense<0xFF800000> : vector<64x128xf32>
    %100 = vector.multi_reduction <maximumf>, %99, %cst_83 [1] : vector<64x2x128xf32> to vector<64x128xf32>
    %101 = vector.shape_cast %100 : vector<64x128xf32> to vector<8x8x128xf32>
    %c0_84 = arith.constant 0 : index
    %c0_85 = arith.constant 0 : index
    %c0_86 = arith.constant 0 : index
    %102 = vector.load %arg8[%c0_84, %c0_85, %c0_86] : memref<8x8x128xf32, #tpu.memory_space<vmem>>, vector<8x8x128xf32>
    tpu.vector_store %arg8[%c0_84, %c0_85, %c0_86], %101 {strides = array<i32>} : memref<8x8x128xf32, #tpu.memory_space<vmem>>, vector<8x8x128xf32>,
    return
  }
  func.func @transform_0(%arg0: i32) -> (i32, i32, i32) {
    %c0_i32 = arith.constant 0 : i32
    %c0_i32_0 = arith.constant 0 : i32
    %c0_i32_1 = arith.constant 0 : i32
    return %arg0, %c0_i32, %c0_i32_0 : i32, i32, i32
  }
  func.func @transform_1(%arg0: i32) -> (i32, i32) {
    %c0_i32 = arith.constant 0 : i32
    %c0_i32_0 = arith.constant 0 : i32
    %c0_i32_1 = arith.constant 0 : i32
    return %c0_i32, %c0_i32_0 : i32, i32
  }
  func.func @transform_2(%arg0: i32) -> (i32, i32) {
    %c0_i32 = arith.constant 0 : i32
    %c0_i32_0 = arith.constant 0 : i32
    %c0_i32_1 = arith.constant 0 : i32
    return %c0_i32, %c0_i32_0 : i32, i32
  }
  func.func @transform_3(%arg0: i32) -> (i32, i32) {
    %c0_i32 = arith.constant 0 : i32
    %c0_i32_0 = arith.constant 0 : i32
    %c0_i32_1 = arith.constant 0 : i32
    return %c0_i32, %c0_i32_0 : i32, i32
  }
  func.func @transform_4(%arg0: i32) -> (i32, i32) {
    %c0_i32 = arith.constant 0 : i32
    %c0_i32_0 = arith.constant 0 : i32
    %c0_i32_1 = arith.constant 0 : i32
    return %c0_i32, %c0_i32_0 : i32, i32
  }
  func.func @transform_5(%arg0: i32) -> (i32, i32) {
    %c0_i32 = arith.constant 0 : i32
    %c0_i32_0 = arith.constant 0 : i32
    %c0_i32_1 = arith.constant 0 : i32
    return %c0_i32, %c0_i32_0 : i32, i32
  }
  func.func @transform_6(%arg0: i32) -> (i32, i32) {
    %c0_i32 = arith.constant 0 : i32
    %c0_i32_0 = arith.constant 0 : i32
    %c0_i32_1 = arith.constant 0 : i32
    return %c0_i32, %c0_i32_0 : i32, i32
  }
  func.func @transform_7(%arg0: i32) -> (i32, i32, i32) {
    %c0_i32 = arith.constant 0 : i32
    %c0_i32_0 = arith.constant 0 : i32
    %c0_i32_1 = arith.constant 0 : i32
    return %arg0, %c0_i32, %c0_i32_0 : i32, i32, i32
  }
}

</mosaic_0001>

<llo_original>
// kernel: tpu_custom_call.1
$region0: #{tpu_custom_call.1}
  #allocation0 [shape = 'u32[]', space=smem, size = 0x4, offset = 0x4, fixed_abs, tag = 'smem constant byte address 0x4 - core index']
  #allocation1 [shape = 'u32[144,128]{1,0:T(1,128)}', space=vmem, size = 0x12000, scoped, tag = 'internal scratch']
  #allocation2 [shape = 'f32[8,68,1]{2,1,0:T(8,128)}', space=vmem, size = 0x48000, scoped, tag = 'scratch operand']
  #allocation3 [shape = 'bf16[8,34,32]{2,1,0:T(8,128)(2,1)}', space=vmem, size = 0x14000, scoped, tag = 'scratch operand']
  #allocation4 [shape = 'bf16[8,18,64]{2,1,0:T(8,128)(2,1)}', space=vmem, size = 0xc000, scoped, tag = 'scratch operand']
  %s0 = inlined_call_operand.vmem [shape: f32[8,64,1], index: 0, kind: input, shape index: {}]
  %s1 = inlined_call_operand.vmem [shape: f32[5,32], index: 1, kind: input, shape index: {}]
  %s2 = inlined_call_operand.vmem [shape: f32[1,32], index: 2, kind: input, shape index: {}]
  %s3 = inlined_call_operand.vmem [shape: bf16[96,64], index: 3, kind: input, shape index: {}]
  %s4 = inlined_call_operand.vmem [shape: f32[1,64], index: 4, kind: input, shape index: {}]
  %s5 = inlined_call_operand.vmem [shape: bf16[192,128], index: 5, kind: input, shape index: {}]
  %s6 = inlined_call_operand.vmem [shape: f32[1,128], index: 6, kind: input, shape index: {}]
  %s7 = inlined_call_operand.hbm [shape: f32[8,8,128], index: 7, kind: output, shape index: {}]
  %s8 = sld [smem:[#allocation0]]
  $region38: #{tpu_custom_call.1} parent=0
    _
  %s10 = ssub.s32 1, %s8
  %s11 = scalar_select 0, %s10, %s8
  $region1: #{tpu_custom_call.1} parent=0
    #allocation5 [shape = 'u8[32768]{0}', space=vmem, size = 0x8000, scoped, tag = 'output window, operand 0, single buffered']
    #allocation6 [shape = 's32[1]{0}', space=sflag, size = 0x4, scoped, tag = 'scoped memory for tpu_custom_call.1']
    %12 = vsyncpa [#allocation6], 0
    // Predicated region
    $region2: #{tpu_custom_call.1} parent=1 // pred_check
      _
    $region3: #{tpu_custom_call.1} parent=1 // pred_check_branch
      %14 = sbr.rel (0) target = $region5
    $region4: #{tpu_custom_call.1} parent=1 // pred_region
      _
    $region5: #{tpu_custom_call.1} parent=1 // pred_fallthru
      _
    // Predicated region
    $region6: #{tpu_custom_call.1} parent=1 // pred_check
      _
    $region7: #{tpu_custom_call.1} parent=1 // pred_check_branch
      %16 = sbr.rel (0) target = $region9
    $region8: #{tpu_custom_call.1} parent=1 // pred_region
      _
    $region9: #{tpu_custom_call.1} parent=1 // pred_fallthru
      _
    // Predicated region
    $region10: #{tpu_custom_call.1} parent=1 // pred_check
      _
    $region11: #{tpu_custom_call.1} parent=1 // pred_check_branch
      %18 = sbr.rel (0) target = $region13
    $region12: #{tpu_custom_call.1} parent=1 // pred_region
      _
    $region13: #{tpu_custom_call.1} parent=1 // pred_fallthru
      _
    // Predicated region
    $region14: #{tpu_custom_call.1} parent=1 // pred_check
      _
    $region15: #{tpu_custom_call.1} parent=1 // pred_check_branch
      %20 = sbr.rel (0) target = $region17
    $region16: #{tpu_custom_call.1} parent=1 // pred_region
      _
    $region17: #{tpu_custom_call.1} parent=1 // pred_fallthru
      _
    // Predicated region
    $region18: #{tpu_custom_call.1} parent=1 // pred_check
      _
    $region19: #{tpu_custom_call.1} parent=1 // pred_check_branch
      %22 = sbr.rel (0) target = $region21
    $region20: #{tpu_custom_call.1} parent=1 // pred_region
      _
    $region21: #{tpu_custom_call.1} parent=1 // pred_fallthru
      _
    // Predicated region
    $region22: #{tpu_custom_call.1} parent=1 // pred_check
      _
    $region23: #{tpu_custom_call.1} parent=1 // pred_check_branch
      %24 = sbr.rel (0) target = $region25
    $region24: #{tpu_custom_call.1} parent=1 // pred_region
      _
    $region25: #{tpu_custom_call.1} parent=1 // pred_fallthru
      _
    // Predicated region
    $region26: #{tpu_custom_call.1} parent=1 // pred_check
      _
    $region27: #{tpu_custom_call.1} parent=1 // pred_check_branch
      %26 = sbr.rel (0) target = $region29
    $region28: #{tpu_custom_call.1} parent=1 // pred_region
      _
    $region29: #{tpu_custom_call.1} parent=1 // pred_fallthru
      _
    %vm28 = vcmask 1024
    %29 = vst.msk [vmem:[#allocation2] sm:$0x3] %vm28, 0.0
    %30 = vst.msk [vmem:[#allocation2 + $0x48] sm:$0x3] %vm28, 0.0
    %31 = vst.msk [vmem:[#allocation2 + $0x90] sm:$0x3] %vm28, 0.0
    %32 = vst.msk [vmem:[#allocation2 + $0xd8] sm:$0x3] %vm28, 0.0
    %33 = vst.msk [vmem:[#allocation2 + $0x120] sm:$0x3] %vm28, 0.0
    %34 = vst.msk [vmem:[#allocation2 + $0x168] sm:$0x3] %vm28, 0.0
    %35 = vst.msk [vmem:[#allocation2 + $0x1b0] sm:$0x3] %vm28, 0.0
    %36 = vst.msk [vmem:[#allocation2 + $0x1f8] sm:$0x3] %vm28, 0.0
    %37 = vst.msk [vmem:[#allocation2 + $0x42] sm:$0x3] %vm28, 0.0
    %38 = vst.msk [vmem:[#allocation2 + $0x8a] sm:$0x3] %vm28, 0.0
    %39 = vst.msk [vmem:[#allocation2 + $0xd2] sm:$0x3] %vm28, 0.0
    %40 = vst.msk [vmem:[#allocation2 + $0x11a] sm:$0x3] %vm28, 0.0
    %41 = vst.msk [vmem:[#allocation2 + $0x162] sm:$0x3] %vm28, 0.0
    %42 = vst.msk [vmem:[#allocation2 + $0x1aa] sm:$0x3] %vm28, 0.0
    %43 = vst.msk [vmem:[#allocation2 + $0x1f2] sm:$0x3] %vm28, 0.0
    %44 = vst.msk [vmem:[#allocation2 + $0x23a] sm:$0x3] %vm28, 0.0
    %vm45 = vcmask 253952
    %vm46 = vsmask.f32 256
    %vm47 = vmand %vm45, %vm46
    %v48 = vld [vmem:[#allocation3] sm:$0x1]
    %v49 = vsel %vm47, 0, %v48
    %50 = vst [vmem:[#allocation3] sm:$0x1] %v49
    %v51 = vld [vmem:[#allocation3 + $0x14] sm:$0x1]
    %v52 = vsel %vm47, 0, %v51
    %53 = vst [vmem:[#allocation3 + $0x14] sm:$0x1] %v52
    %v54 = vld [vmem:[#allocation3 + $0x28] sm:$0x1]
    %v55 = vsel %vm47, 0, %v54
    %56 = vst [vmem:[#allocation3 + $0x28] sm:$0x1] %v55
    %v57 = vld [vmem:[#allocation3 + $0x3c] sm:$0x1]
    %v58 = vsel %vm47, 0, %v57
    %59 = vst [vmem:[#allocation3 + $0x3c] sm:$0x1] %v58
    %v60 = vld [vmem:[#allocation3 + $0x50] sm:$0x1]
    %v61 = vsel %vm47, 0, %v60
    %62 = vst [vmem:[#allocation3 + $0x50] sm:$0x1] %v61
    %v63 = vld [vmem:[#allocation3 + $0x64] sm:$0x1]
    %v64 = vsel %vm47, 0, %v63
    %65 = vst [vmem:[#allocation3 + $0x64] sm:$0x1] %v64
    %v66 = vld [vmem:[#allocation3 + $0x78] sm:$0x1]
    %v67 = vsel %vm47, 0, %v66
    %68 = vst [vmem:[#allocation3 + $0x78] sm:$0x1] %v67
    %v69 = vld [vmem:[#allocation3 + $0x8c] sm:$0x1]
    %v70 = vsel %vm47, 0, %v69
    %71 = vst [vmem:[#allocation3 + $0x8c] sm:$0x1] %v70
    %vm72 = vsmask.f32 7938
    %vm73 = vmand %vm45, %vm72
    %v74 = vld [vmem:[#allocation3 + $0x10] sm:$0x1]
    %v75 = vsel %vm73, 0, %v74
    %76 = vst [vmem:[#allocation3 + $0x10] sm:$0x1] %v75
    %v77 = vld [vmem:[#allocation3 + $0x24] sm:$0x1]
    %v78 = vsel %vm73, 0, %v77
    %79 = vst [vmem:[#allocation3 + $0x24] sm:$0x1] %v78
    %v80 = vld [vmem:[#allocation3 + $0x38] sm:$0x1]
    %v81 = vsel %vm73, 0, %v80
    %82 = vst [vmem:[#allocation3 + $0x38] sm:$0x1] %v81
    %v83 = vld [vmem:[#allocation3 + $0x4c] sm:$0x1]
    %v84 = vsel %vm73, 0, %v83
    %85 = vst [vmem:[#allocation3 + $0x4c] sm:$0x1] %v84
    %v86 = vld [vmem:[#allocation3 + $0x60] sm:$0x1]
    %v87 = vsel %vm73, 0, %v86
    %88 = vst [vmem:[#allocation3 + $0x60] sm:$0x1] %v87
    %v89 = vld [vmem:[#allocation3 + $0x74] sm:$0x1]
    %v90 = vsel %vm73, 0, %v89
    %91 = vst [vmem:[#allocation3 + $0x74] sm:$0x1] %v90
    %v92 = vld [vmem:[#allocation3 + $0x88] sm:$0x1]
    %v93 = vsel %vm73, 0, %v92
    %94 = vst [vmem:[#allocation3 + $0x88] sm:$0x1] %v93
    %v95 = vld [vmem:[#allocation3 + $0x9c] sm:$0x1]
    %v96 = vsel %vm73, 0, %v95
    %97 = vst [vmem:[#allocation3 + $0x9c] sm:$0x1] %v96
    %vm98 = vcmask 516096
    %vm99 = vmand %vm98, %vm46
    %v100 = vld [vmem:[#allocation4] sm:$0x1]
    %v101 = vsel %vm99, 0, %v100
    %102 = vst [vmem:[#allocation4] sm:$0x1] %v101
    %v103 = vld [vmem:[#allocation4 + $0xc] sm:$0x1]
    %v104 = vsel %vm99, 0, %v103
    %105 = vst [vmem:[#allocation4 + $0xc] sm:$0x1] %v104
    %v106 = vld [vmem:[#allocation4 + $0x18] sm:$0x1]
    %v107 = vsel %vm99, 0, %v106
    %108 = vst [vmem:[#allocation4 + $0x18] sm:$0x1] %v107
    %v109 = vld [vmem:[#allocation4 + $0x24] sm:$0x1]
    %v110 = vsel %vm99, 0, %v109
    %111 = vst [vmem:[#allocation4 + $0x24] sm:$0x1] %v110
    %v112 = vld [vmem:[#allocation4 + $0x30] sm:$0x1]
    %v113 = vsel %vm99, 0, %v112
    %114 = vst [vmem:[#allocation4 + $0x30] sm:$0x1] %v113
    %v115 = vld [vmem:[#allocation4 + $0x3c] sm:$0x1]
    %v116 = vsel %vm99, 0, %v115
    %117 = vst [vmem:[#allocation4 + $0x3c] sm:$0x1] %v116
    %v118 = vld [vmem:[#allocation4 + $0x48] sm:$0x1]
    %v119 = vsel %vm99, 0, %v118
    %120 = vst [vmem:[#allocation4 + $0x48] sm:$0x1] %v119
    %v121 = vld [vmem:[#allocation4 + $0x54] sm:$0x1]
    %v122 = vsel %vm99, 0, %v121
    %123 = vst [vmem:[#allocation4 + $0x54] sm:$0x1] %v122
    %vm124 = vmand %vm98, %vm72
    %v125 = vld [vmem:[#allocation4 + $0x8] sm:$0x1]
    %v126 = vsel %vm124, 0, %v125
    %127 = vst [vmem:[#allocation4 + $0x8] sm:$0x1] %v126
    %v128 = vld [vmem:[#allocation4 + $0x14] sm:$0x1]
    %v129 = vsel %vm124, 0, %v128
    %130 = vst [vmem:[#allocation4 + $0x14] sm:$0x1] %v129
    %v131 = vld [vmem:[#allocation4 + $0x20] sm:$0x1]
    %v132 = vsel %vm124, 0, %v131
    %133 = vst [vmem:[#allocation4 + $0x20] sm:$0x1] %v132
    %v134 = vld [vmem:[#allocation4 + $0x2c] sm:$0x1]
    %v135 = vsel %vm124, 0, %v134
    %136 = vst [vmem:[#allocation4 + $0x2c] sm:$0x1] %v135
    %v137 = vld [vmem:[#allocation4 + $0x38] sm:$0x1]
    %v138 = vsel %vm124, 0, %v137
    %139 = vst [vmem:[#allocation4 + $0x38] sm:$0x1] %v138
    %v140 = vld [vmem:[#allocation4 + $0x44] sm:$0x1]
    %v141 = vsel %vm124, 0, %v140
    %142 = vst [vmem:[#allocation4 + $0x44] sm:$0x1] %v141
    %v143 = vld [vmem:[#allocation4 + $0x50] sm:$0x1]
    %v144 = vsel %vm124, 0, %v143
    %145 = vst [vmem:[#allocation4 + $0x50] sm:$0x1] %v144
    %v146 = vld [vmem:[#allocation4 + $0x5c] sm:$0x1]
    %v147 = vsel %vm124, 0, %v146
    %148 = vst [vmem:[#allocation4 + $0x5c] sm:$0x1] %v147
    %v149 = vld [vmem:[%s0] sm:$0xff]
    %v150 = vld [vmem:[%s0 + $0x8] sm:$0xff]
    %v151 = vld [vmem:[%s0 + $0x10] sm:$0xff]
    %v152 = vld [vmem:[%s0 + $0x18] sm:$0xff]
    %v153 = vld [vmem:[%s0 + $0x20] sm:$0xff]
    %v154 = vld [vmem:[%s0 + $0x28] sm:$0xff]
    %v155 = vld [vmem:[%s0 + $0x30] sm:$0xff]
    %v156 = vld [vmem:[%s0 + $0x38] sm:$0xff]
    %v157 = vld [vmem:[%s0 + $0x40] sm:$0xff]
    %v158 = vld [vmem:[%s0 + $0x48] sm:$0xff]
    %v159 = vld [vmem:[%s0 + $0x50] sm:$0xff]
    %v160 = vld [vmem:[%s0 + $0x58] sm:$0xff]
    %v161 = vld [vmem:[%s0 + $0x60] sm:$0xff]
    %v162 = vld [vmem:[%s0 + $0x68] sm:$0xff]
    %v163 = vld [vmem:[%s0 + $0x70] sm:$0xff]
    %v164 = vld [vmem:[%s0 + $0x78] sm:$0xff]
    %v165 = vld [vmem:[%s0 + $0x80] sm:$0xff]
    %v166 = vld [vmem:[%s0 + $0x88] sm:$0xff]
    %v167 = vld [vmem:[%s0 + $0x90] sm:$0xff]
    %v168 = vld [vmem:[%s0 + $0x98] sm:$0xff]
    %v169 = vld [vmem:[%s0 + $0xa0] sm:$0xff]
    %v170 = vld [vmem:[%s0 + $0xa8] sm:$0xff]
    %v171 = vld [vmem:[%s0 + $0xb0] sm:$0xff]
    %v172 = vld [vmem:[%s0 + $0xb8] sm:$0xff]
    %v173 = vld [vmem:[%s0 + $0xc0] sm:$0xff]
    %v174 = vld [vmem:[%s0 + $0xc8] sm:$0xff]
    %v175 = vld [vmem:[%s0 + $0xd0] sm:$0xff]
    %v176 = vld [vmem:[%s0 + $0xd8] sm:$0xff]
    %v177 = vld [vmem:[%s0 + $0xe0] sm:$0xff]
    %v178 = vld [vmem:[%s0 + $0xe8] sm:$0xff]
    %v179 = vld [vmem:[%s0 + $0xf0] sm:$0xff]
    %v180 = vld [vmem:[%s0 + $0xf8] sm:$0xff]
    %v181 = vld [vmem:[%s0 + $0x100] sm:$0xff]
    %v182 = vld [vmem:[%s0 + $0x108] sm:$0xff]
    %v183 = vld [vmem:[%s0 + $0x110] sm:$0xff]
    %v184 = vld [vmem:[%s0 + $0x118] sm:$0xff]
    %v185 = vld [vmem:[%s0 + $0x120] sm:$0xff]
    %v186 = vld [vmem:[%s0 + $0x128] sm:$0xff]
    %v187 = vld [vmem:[%s0 + $0x130] sm:$0xff]
    %v188 = vld [vmem:[%s0 + $0x138] sm:$0xff]
    %v189 = vld [vmem:[%s0 + $0x140] sm:$0xff]
    %v190 = vld [vmem:[%s0 + $0x148] sm:$0xff]
    %v191 = vld [vmem:[%s0 + $0x150] sm:$0xff]
    %v192 = vld [vmem:[%s0 + $0x158] sm:$0xff]
    %v193 = vld [vmem:[%s0 + $0x160] sm:$0xff]
    %v194 = vld [vmem:[%s0 + $0x168] sm:$0xff]
    %v195 = vld [vmem:[%s0 + $0x170] sm:$0xff]
    %v196 = vld [vmem:[%s0 + $0x178] sm:$0xff]
    %v197 = vld [vmem:[%s0 + $0x180] sm:$0xff]
    %v198 = vld [vmem:[%s0 + $0x188] sm:$0xff]
    %v199 = vld [vmem:[%s0 + $0x190] sm:$0xff]
    %v200 = vld [vmem:[%s0 + $0x198] sm:$0xff]
    %v201 = vld [vmem:[%s0 + $0x1a0] sm:$0xff]
    %v202 = vld [vmem:[%s0 + $0x1a8] sm:$0xff]
    %v203 = vld [vmem:[%s0 + $0x1b0] sm:$0xff]
    %v204 = vld [vmem:[%s0 + $0x1b8] sm:$0xff]
    %v205 = vld [vmem:[%s0 + $0x1c0] sm:$0xff]
    %v206 = vld [vmem:[%s0 + $0x1c8] sm:$0xff]
    %v207 = vld [vmem:[%s0 + $0x1d0] sm:$0xff]
    %v208 = vld [vmem:[%s0 + $0x1d8] sm:$0xff]
    %v209 = vld [vmem:[%s0 + $0x1e0] sm:$0xff]
    %v210 = vld [vmem:[%s0 + $0x1e8] sm:$0xff]
    %v211 = vld [vmem:[%s0 + $0x1f0] sm:$0xff]
    %v212 = vld [vmem:[%s0 + $0x1f8] sm:$0xff]
    %vm213 = vcmask 7168
    %214 = vst.msk [vmem:[#allocation2 + $0x2] sm:$0xff] %vm213, %v149
    %215 = vst.msk [vmem:[#allocation2 + $0xa] sm:$0xff] %vm213, %v150
    %216 = vst.msk [vmem:[#allocation2 + $0x12] sm:$0xff] %vm213, %v151
    %217 = vst.msk [vmem:[#allocation2 + $0x1a] sm:$0xff] %vm213, %v152
    %218 = vst.msk [vmem:[#allocation2 + $0x22] sm:$0xff] %vm213, %v153
    %219 = vst.msk [vmem:[#allocation2 + $0x2a] sm:$0xff] %vm213, %v154
    %220 = vst.msk [vmem:[#allocation2 + $0x32] sm:$0xff] %vm213, %v155
    %221 = vst.msk [vmem:[#allocation2 + $0x3a] sm:$0xff] %vm213, %v156
    %222 = vst.msk [vmem:[#allocation2 + $0x4a] sm:$0xff] %vm213, %v157
    %223 = vst.msk [vmem:[#allocation2 + $0x52] sm:$0xff] %vm213, %v158
    %224 = vst.msk [vmem:[#allocation2 + $0x5a] sm:$0xff] %vm213, %v159
    %225 = vst.msk [vmem:[#allocation2 + $0x62] sm:$0xff] %vm213, %v160
    %226 = vst.msk [vmem:[#allocation2 + $0x6a] sm:$0xff] %vm213, %v161
    %227 = vst.msk [vmem:[#allocation2 + $0x72] sm:$0xff] %vm213, %v162
    %228 = vst.msk [vmem:[#allocation2 + $0x7a] sm:$0xff] %vm213, %v163
    %229 = vst.msk [vmem:[#allocation2 + $0x82] sm:$0xff] %vm213, %v164
    %230 = vst.msk [vmem:[#allocation2 + $0x92] sm:$0xff] %vm213, %v165
    %231 = vst.msk [vmem:[#allocation2 + $0x9a] sm:$0xff] %vm213, %v166
    %232 = vst.msk [vmem:[#allocation2 + $0xa2] sm:$0xff] %vm213, %v167
    %233 = vst.msk [vmem:[#allocation2 + $0xaa] sm:$0xff] %vm213, %v168
    %234 = vst.msk [vmem:[#allocation2 + $0xb2] sm:$0xff] %vm213, %v169
    %235 = vst.msk [vmem:[#allocation2 + $0xba] sm:$0xff] %vm213, %v170
    %236 = vst.msk [vmem:[#allocation2 + $0xc2] sm:$0xff] %vm213, %v171
    %237 = vst.msk [vmem:[#allocation2 + $0xca] sm:$0xff] %vm213, %v172
    %238 = vst.msk [vmem:[#allocation2 + $0xda] sm:$0xff] %vm213, %v173
    %239 = vst.msk [vmem:[#allocation2 + $0xe2] sm:$0xff] %vm213, %v174
    %240 = vst.msk [vmem:[#allocation2 + $0xea] sm:$0xff] %vm213, %v175
    %241 = vst.msk [vmem:[#allocation2 + $0xf2] sm:$0xff] %vm213, %v176
    %242 = vst.msk [vmem:[#allocation2 + $0xfa] sm:$0xff] %vm213, %v177
    %243 = vst.msk [vmem:[#allocation2 + $0x102] sm:$0xff] %vm213, %v178
    %244 = vst.msk [vmem:[#allocation2 + $0x10a] sm:$0xff] %vm213, %v179
    %245 = vst.msk [vmem:[#allocation2 + $0x112] sm:$0xff] %vm213, %v180
    %246 = vst.msk [vmem:[#allocation2 + $0x122] sm:$0xff] %vm213, %v181
    %247 = vst.msk [vmem:[#allocation2 + $0x12a] sm:$0xff] %vm213, %v182
    %248 = vst.msk [vmem:[#allocation2 + $0x132] sm:$0xff] %vm213, %v183
    %249 = vst.msk [vmem:[#allocation2 + $0x13a] sm:$0xff] %vm213, %v184
    %250 = vst.msk [vmem:[#allocation2 + $0x142] sm:$0xff] %vm213, %v185
    %251 = vst.msk [vmem:[#allocation2 + $0x14a] sm:$0xff] %vm213, %v186
    %252 = vst.msk [vmem:[#allocation2 + $0x152] sm:$0xff] %vm213, %v187
    %253 = vst.msk [vmem:[#allocation2 + $0x15a] sm:$0xff] %vm213, %v188
    %254 = vst.msk [vmem:[#allocation2 + $0x16a] sm:$0xff] %vm213, %v189
    %255 = vst.msk [vmem:[#allocation2 + $0x172] sm:$0xff] %vm213, %v190
    %256 = vst.msk [vmem:[#allocation2 + $0x17a] sm:$0xff] %vm213, %v191
    %257 = vst.msk [vmem:[#allocation2 + $0x182] sm:$0xff] %vm213, %v192
    %258 = vst.msk [vmem:[#allocation2 + $0x18a] sm:$0xff] %vm213, %v193
    %259 = vst.msk [vmem:[#allocation2 + $0x192] sm:$0xff] %vm213, %v194
    %260 = vst.msk [vmem:[#allocation2 + $0x19a] sm:$0xff] %vm213, %v195
    %261 = vst.msk [vmem:[#allocation2 + $0x1a2] sm:$0xff] %vm213, %v196
    %262 = vst.msk [vmem:[#allocation2 + $0x1b2] sm:$0xff] %vm213, %v197
    %263 = vst.msk [vmem:[#allocation2 + $0x1ba] sm:$0xff] %vm213, %v198
    %264 = vst.msk [vmem:[#allocation2 + $0x1c2] sm:$0xff] %vm213, %v199
    %265 = vst.msk [vmem:[#allocation2 + $0x1ca] sm:$0xff] %vm213, %v200
    %266 = vst.msk [vmem:[#allocation2 + $0x1d2] sm:$0xff] %vm213, %v201
    %267 = vst.msk [vmem:[#allocation2 + $0x1da] sm:$0xff] %vm213, %v202
    %268 = vst.msk [vmem:[#allocation2 + $0x1e2] sm:$0xff] %vm213, %v203
    %269 = vst.msk [vmem:[#allocation2 + $0x1ea] sm:$0xff] %vm213, %v204
    %270 = vst.msk [vmem:[#allocation2 + $0x1fa] sm:$0xff] %vm213, %v205
    %271 = vst.msk [vmem:[#allocation2 + $0x202] sm:$0xff] %vm213, %v206
    %272 = vst.msk [vmem:[#allocation2 + $0x20a] sm:$0xff] %vm213, %v207
    %273 = vst.msk [vmem:[#allocation2 + $0x212] sm:$0xff] %vm213, %v208
    %274 = vst.msk [vmem:[#allocation2 + $0x21a] sm:$0xff] %vm213, %v209
    %275 = vst.msk [vmem:[#allocation2 + $0x222] sm:$0xff] %vm213, %v210
    %276 = vst.msk [vmem:[#allocation2 + $0x22a] sm:$0xff] %vm213, %v211
    %277 = vst.msk [vmem:[#allocation2 + $0x232] sm:$0xff] %vm213, %v212
    %v278 = vld [vmem:[%s1] sm:$0x1f]
    %v279 = vld [vmem:[#allocation2] sm:$0xff]
    %v280 = vld [vmem:[#allocation2 + $0x8] sm:$0xff]
    %v281 = vld [vmem:[#allocation2 + $0x10] sm:$0xff]
    %v282 = vld [vmem:[#allocation2 + $0x18] sm:$0xff]
    %v283 = vld [vmem:[#allocation2 + $0x20] sm:$0xff]
    %v284 = vld [vmem:[#allocation2 + $0x28] sm:$0xff]
    %v285 = vld [vmem:[#allocation2 + $0x30] sm:$0xff]
    %v286 = vld [vmem:[#allocation2 + $0x38] sm:$0xff]
    %v287 = vld [vmem:[#allocation2 + $0x48] sm:$0xff]
    %v288 = vld [vmem:[#allocation2 + $0x50] sm:$0xff]
    %v289 = vld [vmem:[#allocation2 + $0x58] sm:$0xff]
    %v290 = vld [vmem:[#allocation2 + $0x60] sm:$0xff]
    %v291 = vld [vmem:[#allocation2 + $0x68] sm:$0xff]
    %v292 = vld [vmem:[#allocation2 + $0x70] sm:$0xff]
    %v293 = vld [vmem:[#allocation2 + $0x78] sm:$0xff]
    %v294 = vld [vmem:[#allocation2 + $0x80] sm:$0xff]
    %v295 = vld [vmem:[#allocation2 + $0x90] sm:$0xff]
    %v296 = vld [vmem:[#allocation2 + $0x98] sm:$0xff]
    %v297 = vld [vmem:[#allocation2 + $0xa0] sm:$0xff]
    %v298 = vld [vmem:[#allocation2 + $0xa8] sm:$0xff]
    %v299 = vld [vmem:[#allocation2 + $0xb0] sm:$0xff]
    %v300 = vld [vmem:[#allocation2 + $0xb8] sm:$0xff]
    %v301 = vld [vmem:[#allocation2 + $0xc0] sm:$0xff]
    %v302 = vld [vmem:[#allocation2 + $0xc8] sm:$0xff]
    %v303 = vld [vmem:[#allocation2 + $0xd8] sm:$0xff]
    %v304 = vld [vmem:[#allocation2 + $0xe0] sm:$0xff]
    %v305 = vld [vmem:[#allocation2 + $0xe8] sm:$0xff]
    %v306 = vld [vmem:[#allocation2 + $0xf0] sm:$0xff]
    %v307 = vld [vmem:[#allocation2 + $0xf8] sm:$0xff]
    %v308 = vld [vmem:[#allocation2 + $0x100] sm:$0xff]
    %v309 = vld [vmem:[#allocation2 + $0x108] sm:$0xff]
    %v310 = vld [vmem:[#allocation2 + $0x110] sm:$0xff]
    %v311 = vld [vmem:[#allocation2 + $0x120] sm:$0xff]
    %v312 = vld [vmem:[#allocation2 + $0x128] sm:$0xff]
    %v313 = vld [vmem:[#allocation2 + $0x130] sm:$0xff]
    %v314 = vld [vmem:[#allocation2 + $0x138] sm:$0xff]
    %v315 = vld [vmem:[#allocation2 + $0x140] sm:$0xff]
    %v316 = vld [vmem:[#allocation2 + $0x148] sm:$0xff]
    %v317 = vld [vmem:[#allocation2 + $0x150] sm:$0xff]
    %v318 = vld [vmem:[#allocation2 + $0x158] sm:$0xff]
    %v319 = vld [vmem:[#allocation2 + $0x168] sm:$0xff]
    %v320 = vld [vmem:[#allocation2 + $0x170] sm:$0xff]
    %v321 = vld [vmem:[#allocation2 + $0x178] sm:$0xff]
    %v322 = vld [vmem:[#allocation2 + $0x180] sm:$0xff]
    %v323 = vld [vmem:[#allocation2 + $0x188] sm:$0xff]
    %v324 = vld [vmem:[#allocation2 + $0x190] sm:$0xff]
    %v325 = vld [vmem:[#allocation2 + $0x198] sm:$0xff]
    %v326 = vld [vmem:[#allocation2 + $0x1a0] sm:$0xff]
    %v327 = vld [vmem:[#allocation2 + $0x1b0] sm:$0xff]
    %v328 = vld [vmem:[#allocation2 + $0x1b8] sm:$0xff]
    %v329 = vld [vmem:[#allocation2 + $0x1c0] sm:$0xff]
    %v330 = vld [vmem:[#allocation2 + $0x1c8] sm:$0xff]
    %v331 = vld [vmem:[#allocation2 + $0x1d0] sm:$0xff]
    %v332 = vld [vmem:[#allocation2 + $0x1d8] sm:$0xff]
    %v333 = vld [vmem:[#allocation2 + $0x1e0] sm:$0xff]
    %v334 = vld [vmem:[#allocation2 + $0x1e8] sm:$0xff]
    %v335 = vld [vmem:[#allocation2 + $0x1f8] sm:$0xff]
    %v336 = vld [vmem:[#allocation2 + $0x200] sm:$0xff]
    %v337 = vld [vmem:[#allocation2 + $0x208] sm:$0xff]
    %v338 = vld [vmem:[#allocation2 + $0x210] sm:$0xff]
    %v339 = vld [vmem:[#allocation2 + $0x218] sm:$0xff]
    %v340 = vld [vmem:[#allocation2 + $0x220] sm:$0xff]
    %v341 = vld [vmem:[#allocation2 + $0x228] sm:$0xff]
    %v342 = vld [vmem:[#allocation2 + $0x230] sm:$0xff]
    %344 = vset.pattern.permute.xlu0 0
    %345 = vperm.xlu0 %344, %v279
    %v346 = vpop.permute.xlu0 %345
    %349 = vset.pattern.permute.xlu0 0
    %350 = vperm.xlu0 %349, %v280
    %v351 = vpop.permute.xlu0 %350
    %354 = vset.pattern.permute.xlu0 0
    %355 = vperm.xlu0 %354, %v281
    %v356 = vpop.permute.xlu0 %355
    %359 = vset.pattern.permute.xlu0 0
    %360 = vperm.xlu0 %359, %v282
    %v361 = vpop.permute.xlu0 %360
    %364 = vset.pattern.permute.xlu0 0
    %365 = vperm.xlu0 %364, %v283
    %v366 = vpop.permute.xlu0 %365
    %369 = vset.pattern.permute.xlu0 0
    %370 = vperm.xlu0 %369, %v284
    %v371 = vpop.permute.xlu0 %370
    %374 = vset.pattern.permute.xlu0 0
    %375 = vperm.xlu0 %374, %v285
    %v376 = vpop.permute.xlu0 %375
    %379 = vset.pattern.permute.xlu0 0
    %380 = vperm.xlu0 %379, %v286
    %v381 = vpop.permute.xlu0 %380
    %384 = vset.pattern.permute.xlu0 0
    %385 = vperm.xlu0 %384, %v287
    %v386 = vpop.permute.xlu0 %385
    %389 = vset.pattern.permute.xlu0 0
    %390 = vperm.xlu0 %389, %v288
    %v391 = vpop.permute.xlu0 %390
    %394 = vset.pattern.permute.xlu0 0
    %395 = vperm.xlu0 %394, %v289
    %v396 = vpop.permute.xlu0 %395
    %399 = vset.pattern.permute.xlu0 0
    %400 = vperm.xlu0 %399, %v290
    %v401 = vpop.permute.xlu0 %400
    %404 = vset.pattern.permute.xlu0 0
    %405 = vperm.xlu0 %404, %v291
    %v406 = vpop.permute.xlu0 %405
    %409 = vset.pattern.permute.xlu0 0
    %410 = vperm.xlu0 %409, %v292
    %v411 = vpop.permute.xlu0 %410
    %414 = vset.pattern.permute.xlu0 0
    %415 = vperm.xlu0 %414, %v293
    %v416 = vpop.permute.xlu0 %415
    %419 = vset.pattern.permute.xlu0 0
    %420 = vperm.xlu0 %419, %v294
    %v421 = vpop.permute.xlu0 %420
    %424 = vset.pattern.permute.xlu0 0
    %425 = vperm.xlu0 %424, %v295
    %v426 = vpop.permute.xlu0 %425
    %429 = vset.pattern.permute.xlu0 0
    %430 = vperm.xlu0 %429, %v296
    %v431 = vpop.permute.xlu0 %430
    %434 = vset.pattern.permute.xlu0 0
    %435 = vperm.xlu0 %434, %v297
    %v436 = vpop.permute.xlu0 %435
    %439 = vset.pattern.permute.xlu0 0
    %440 = vperm.xlu0 %439, %v298
    %v441 = vpop.permute.xlu0 %440
    %444 = vset.pattern.permute.xlu0 0
    %445 = vperm.xlu0 %444, %v299
    %v446 = vpop.permute.xlu0 %445
    %449 = vset.pattern.permute.xlu0 0
    %450 = vperm.xlu0 %449, %v300
    %v451 = vpop.permute.xlu0 %450
    %454 = vset.pattern.permute.xlu0 0
    %455 = vperm.xlu0 %454, %v301
    %v456 = vpop.permute.xlu0 %455
    %459 = vset.pattern.permute.xlu0 0
    %460 = vperm.xlu0 %459, %v302
    %v461 = vpop.permute.xlu0 %460
    %464 = vset.pattern.permute.xlu0 0
    %465 = vperm.xlu0 %464, %v303
    %v466 = vpop.permute.xlu0 %465
    %469 = vset.pattern.permute.xlu0 0
    %470 = vperm.xlu0 %469, %v304
    %v471 = vpop.permute.xlu0 %470
    %474 = vset.pattern.permute.xlu0 0
    %475 = vperm.xlu0 %474, %v305
    %v476 = vpop.permute.xlu0 %475
    %479 = vset.pattern.permute.xlu0 0
    %480 = vperm.xlu0 %479, %v306
    %v481 = vpop.permute.xlu0 %480
    %484 = vset.pattern.permute.xlu0 0
    %485 = vperm.xlu0 %484, %v307
    %v486 = vpop.permute.xlu0 %485
    %489 = vset.pattern.permute.xlu0 0
    %490 = vperm.xlu0 %489, %v308
    %v491 = vpop.permute.xlu0 %490
    %494 = vset.pattern.permute.xlu0 0
    %495 = vperm.xlu0 %494, %v309
    %v496 = vpop.permute.xlu0 %495
    %499 = vset.pattern.permute.xlu0 0
    %500 = vperm.xlu0 %499, %v310
    %v501 = vpop.permute.xlu0 %500
    %504 = vset.pattern.permute.xlu0 0
    %505 = vperm.xlu0 %504, %v311
    %v506 = vpop.permute.xlu0 %505
    %509 = vset.pattern.permute.xlu0 0
    %510 = vperm.xlu0 %509, %v312
    %v511 = vpop.permute.xlu0 %510
    %514 = vset.pattern.permute.xlu0 0
    %515 = vperm.xlu0 %514, %v313
    %v516 = vpop.permute.xlu0 %515
    %519 = vset.pattern.permute.xlu0 0
    %520 = vperm.xlu0 %519, %v314
    %v521 = vpop.permute.xlu0 %520
    %524 = vset.pattern.permute.xlu0 0
    %525 = vperm.xlu0 %524, %v315
    %v526 = vpop.permute.xlu0 %525
    %529 = vset.pattern.permute.xlu0 0
    %530 = vperm.xlu0 %529, %v316
    %v531 = vpop.permute.xlu0 %530
    %534 = vset.pattern.permute.xlu0 0
    %535 = vperm.xlu0 %534, %v317
    %v536 = vpop.permute.xlu0 %535
    %539 = vset.pattern.permute.xlu0 0
    %540 = vperm.xlu0 %539, %v318
    %v541 = vpop.permute.xlu0 %540
    %544 = vset.pattern.permute.xlu0 0
    %545 = vperm.xlu0 %544, %v319
    %v546 = vpop.permute.xlu0 %545
    %549 = vset.pattern.permute.xlu0 0
    %550 = vperm.xlu0 %549, %v320
    %v551 = vpop.permute.xlu0 %550
    %554 = vset.pattern.permute.xlu0 0
    %555 = vperm.xlu0 %554, %v321
    %v556 = vpop.permute.xlu0 %555
    %559 = vset.pattern.permute.xlu0 0
    %560 = vperm.xlu0 %559, %v322
    %v561 = vpop.permute.xlu0 %560
    %564 = vset.pattern.permute.xlu0 0
    %565 = vperm.xlu0 %564, %v323
    %v566 = vpop.permute.xlu0 %565
    %569 = vset.pattern.permute.xlu0 0
    %570 = vperm.xlu0 %569, %v324
    %v571 = vpop.permute.xlu0 %570
    %574 = vset.pattern.permute.xlu0 0
    %575 = vperm.xlu0 %574, %v325
    %v576 = vpop.permute.xlu0 %575
    %579 = vset.pattern.permute.xlu0 0
    %580 = vperm.xlu0 %579, %v326
    %v581 = vpop.permute.xlu0 %580
    %584 = vset.pattern.permute.xlu0 0
    %585 = vperm.xlu0 %584, %v327
    %v586 = vpop.permute.xlu0 %585
    %589 = vset.pattern.permute.xlu0 0
    %590 = vperm.xlu0 %589, %v328
    %v591 = vpop.permute.xlu0 %590
    %594 = vset.pattern.permute.xlu0 0
    %595 = vperm.xlu0 %594, %v329
    %v596 = vpop.permute.xlu0 %595
    %599 = vset.pattern.permute.xlu0 0
    %600 = vperm.xlu0 %599, %v330
    %v601 = vpop.permute.xlu0 %600
    %604 = vset.pattern.permute.xlu0 0
    %605 = vperm.xlu0 %604, %v331
    %v606 = vpop.permute.xlu0 %605
    %609 = vset.pattern.permute.xlu0 0
    %610 = vperm.xlu0 %609, %v332
    %v611 = vpop.permute.xlu0 %610
    %614 = vset.pattern.permute.xlu0 0
    %615 = vperm.xlu0 %614, %v333
    %v616 = vpop.permute.xlu0 %615
    %619 = vset.pattern.permute.xlu0 0
    %620 = vperm.xlu0 %619, %v334
    %v621 = vpop.permute.xlu0 %620
    %624 = vset.pattern.permute.xlu0 0
    %625 = vperm.xlu0 %624, %v335
    %v626 = vpop.permute.xlu0 %625
    %629 = vset.pattern.permute.xlu0 0
    %630 = vperm.xlu0 %629, %v336
    %v631 = vpop.permute.xlu0 %630
    %634 = vset.pattern.permute.xlu0 0
    %635 = vperm.xlu0 %634, %v337
    %v636 = vpop.permute.xlu0 %635
    %639 = vset.pattern.permute.xlu0 0
    %640 = vperm.xlu0 %639, %v338
    %v641 = vpop.permute.xlu0 %640
    %644 = vset.pattern.permute.xlu0 0
    %645 = vperm.xlu0 %644, %v339
    %v646 = vpop.permute.xlu0 %645
    %649 = vset.pattern.permute.xlu0 0
    %650 = vperm.xlu0 %649, %v340
    %v651 = vpop.permute.xlu0 %650
    %654 = vset.pattern.permute.xlu0 0
    %655 = vperm.xlu0 %654, %v341
    %v656 = vpop.permute.xlu0 %655
    %659 = vset.pattern.permute.xlu0 0
    %660 = vperm.xlu0 %659, %v342
    %v661 = vpop.permute.xlu0 %660
    %v663 = vlaneseq
    %v664 = vshrl.u32 %v663, 7
    %v665 = vsub.s32 0, %v664
    %v666 = vrot.slane %v278, %v665
    %v667 = vmul.f32 %v346, %v666
    %v668 = vmul.f32 %v351, %v666
    %v669 = vmul.f32 %v356, %v666
    %v670 = vmul.f32 %v361, %v666
    %v671 = vmul.f32 %v366, %v666
    %v672 = vmul.f32 %v371, %v666
    %v673 = vmul.f32 %v376, %v666
    %v674 = vmul.f32 %v381, %v666
    %v675 = vmul.f32 %v386, %v666
    %v676 = vmul.f32 %v391, %v666
    %v677 = vmul.f32 %v396, %v666
    %v678 = vmul.f32 %v401, %v666
    %v679 = vmul.f32 %v406, %v666
    %v680 = vmul.f32 %v411, %v666
    %v681 = vmul.f32 %v416, %v666
    %v682 = vmul.f32 %v421, %v666
    %v683 = vmul.f32 %v426, %v666
    %v684 = vmul.f32 %v431, %v666
    %v685 = vmul.f32 %v436, %v666
    %v686 = vmul.f32 %v441, %v666
    %v687 = vmul.f32 %v446, %v666
    %v688 = vmul.f32 %v451, %v666
    %v689 = vmul.f32 %v456, %v666
    %v690 = vmul.f32 %v461, %v666
    %v691 = vmul.f32 %v466, %v666
    %v692 = vmul.f32 %v471, %v666
    %v693 = vmul.f32 %v476, %v666
    %v694 = vmul.f32 %v481, %v666
    %v695 = vmul.f32 %v486, %v666
    %v696 = vmul.f32 %v491, %v666
    %v697 = vmul.f32 %v496, %v666
    %v698 = vmul.f32 %v501, %v666
    %v699 = vmul.f32 %v506, %v666
    %v700 = vmul.f32 %v511, %v666
    %v701 = vmul.f32 %v516, %v666
    %v702 = vmul.f32 %v521, %v666
    %v703 = vmul.f32 %v526, %v666
    %v704 = vmul.f32 %v531, %v666
    %v705 = vmul.f32 %v536, %v666
    %v706 = vmul.f32 %v541, %v666
    %v707 = vmul.f32 %v546, %v666
    %v708 = vmul.f32 %v551, %v666
    %v709 = vmul.f32 %v556, %v666
    %v710 = vmul.f32 %v561, %v666
    %v711 = vmul.f32 %v566, %v666
    %v712 = vmul.f32 %v571, %v666
    %v713 = vmul.f32 %v576, %v666
    %v714 = vmul.f32 %v581, %v666
    %v715 = vmul.f32 %v586, %v666
    %v716 = vmul.f32 %v591, %v666
    %v717 = vmul.f32 %v596, %v666
    %v718 = vmul.f32 %v601, %v666
    %v719 = vmul.f32 %v606, %v666
    %v720 = vmul.f32 %v611, %v666
    %v721 = vmul.f32 %v616, %v666
    %v722 = vmul.f32 %v621, %v666
    %v723 = vmul.f32 %v626, %v666
    %v724 = vmul.f32 %v631, %v666
    %v725 = vmul.f32 %v636, %v666
    %v726 = vmul.f32 %v641, %v666
    %v727 = vmul.f32 %v646, %v666
    %v728 = vmul.f32 %v651, %v666
    %v729 = vmul.f32 %v656, %v666
    %v730 = vmul.f32 %v661, %v666
    %v731 = vadd.f32 %v667, 0.0
    %v732 = vadd.f32 %v668, 0.0
    %v733 = vadd.f32 %v669, 0.0
    %v734 = vadd.f32 %v670, 0.0
    %v735 = vadd.f32 %v671, 0.0
    %v736 = vadd.f32 %v672, 0.0
    %v737 = vadd.f32 %v673, 0.0
    %v738 = vadd.f32 %v674, 0.0
    %v739 = vadd.f32 %v675, 0.0
    %v740 = vadd.f32 %v676, 0.0
    %v741 = vadd.f32 %v677, 0.0
    %v742 = vadd.f32 %v678, 0.0
    %v743 = vadd.f32 %v679, 0.0
    %v744 = vadd.f32 %v680, 0.0
    %v745 = vadd.f32 %v681, 0.0
    %v746 = vadd.f32 %v682, 0.0
    %v747 = vadd.f32 %v683, 0.0
    %v748 = vadd.f32 %v684, 0.0
    %v749 = vadd.f32 %v685, 0.0
    %v750 = vadd.f32 %v686, 0.0
    %v751 = vadd.f32 %v687, 0.0
    %v752 = vadd.f32 %v688, 0.0
    %v753 = vadd.f32 %v689, 0.0
    %v754 = vadd.f32 %v690, 0.0
    %v755 = vadd.f32 %v691, 0.0
    %v756 = vadd.f32 %v692, 0.0
    %v757 = vadd.f32 %v693, 0.0
    %v758 = vadd.f32 %v694, 0.0
    %v759 = vadd.f32 %v695, 0.0
    %v760 = vadd.f32 %v696, 0.0
    %v761 = vadd.f32 %v697, 0.0
    %v762 = vadd.f32 %v698, 0.0
    %v763 = vadd.f32 %v699, 0.0
    %v764 = vadd.f32 %v700, 0.0
    %v765 = vadd.f32 %v701, 0.0
    %v766 = vadd.f32 %v702, 0.0
    %v767 = vadd.f32 %v703, 0.0
    %v768 = vadd.f32 %v704, 0.0
    %v769 = vadd.f32 %v705, 0.0
    %v770 = vadd.f32 %v706, 0.0
    %v771 = vadd.f32 %v707, 0.0
    %v772 = vadd.f32 %v708, 0.0
    %v773 = vadd.f32 %v709, 0.0
    %v774 = vadd.f32 %v710, 0.0
    %v775 = vadd.f32 %v711, 0.0
    %v776 = vadd.f32 %v712, 0.0
    %v777 = vadd.f32 %v713, 0.0
    %v778 = vadd.f32 %v714, 0.0
    %v779 = vadd.f32 %v715, 0.0
    %v780 = vadd.f32 %v716, 0.0
    %v781 = vadd.f32 %v717, 0.0
    %v782 = vadd.f32 %v718, 0.0
    %v783 = vadd.f32 %v719, 0.0
    %v784 = vadd.f32 %v720, 0.0
    %v785 = vadd.f32 %v721, 0.0
    %v786 = vadd.f32 %v722, 0.0
    %v787 = vadd.f32 %v723, 0.0
    %v788 = vadd.f32 %v724, 0.0
    %v789 = vadd.f32 %v725, 0.0
    %v790 = vadd.f32 %v726, 0.0
    %v791 = vadd.f32 %v727, 0.0
    %v792 = vadd.f32 %v728, 0.0
    %v793 = vadd.f32 %v729, 0.0
    %v794 = vadd.f32 %v730, 0.0
    %v795 = vld [vmem:[#allocation2 + $0x1] sm:$0xff]
    %v796 = vld [vmem:[#allocation2 + $0x9] sm:$0xff]
    %v797 = vld [vmem:[#allocation2 + $0x11] sm:$0xff]
    %v798 = vld [vmem:[#allocation2 + $0x19] sm:$0xff]
    %v799 = vld [vmem:[#allocation2 + $0x21] sm:$0xff]
    %v800 = vld [vmem:[#allocation2 + $0x29] sm:$0xff]
    %v801 = vld [vmem:[#allocation2 + $0x31] sm:$0xff]
    %v802 = vld [vmem:[#allocation2 + $0x39] sm:$0xff]
    %v803 = vld [vmem:[#allocation2 + $0x49] sm:$0xff]
    %v804 = vld [vmem:[#allocation2 + $0x51] sm:$0xff]
    %v805 = vld [vmem:[#allocation2 + $0x59] sm:$0xff]
    %v806 = vld [vmem:[#allocation2 + $0x61] sm:$0xff]
    %v807 = vld [vmem:[#allocation2 + $0x69] sm:$0xff]
    %v808 = vld [vmem:[#allocation2 + $0x71] sm:$0xff]
    %v809 = vld [vmem:[#allocation2 + $0x79] sm:$0xff]
    %v810 = vld [vmem:[#allocation2 + $0x81] sm:$0xff]
    %v811 = vld [vmem:[#allocation2 + $0x91] sm:$0xff]
    %v812 = vld [vmem:[#allocation2 + $0x99] sm:$0xff]
    %v813 = vld [vmem:[#allocation2 + $0xa1] sm:$0xff]
    %v814 = vld [vmem:[#allocation2 + $0xa9] sm:$0xff]
    %v815 = vld [vmem:[#allocation2 + $0xb1] sm:$0xff]
    %v816 = vld [vmem:[#allocation2 + $0xb9] sm:$0xff]
    %v817 = vld [vmem:[#allocation2 + $0xc1] sm:$0xff]
    %v818 = vld [vmem:[#allocation2 + $0xc9] sm:$0xff]
    %v819 = vld [vmem:[#allocation2 + $0xd9] sm:$0xff]
    %v820 = vld [vmem:[#allocation2 + $0xe1] sm:$0xff]
    %v821 = vld [vmem:[#allocation2 + $0xe9] sm:$0xff]
    %v822 = vld [vmem:[#allocation2 + $0xf1] sm:$0xff]
    %v823 = vld [vmem:[#allocation2 + $0xf9] sm:$0xff]
    %v824 = vld [vmem:[#allocation2 + $0x101] sm:$0xff]
    %v825 = vld [vmem:[#allocation2 + $0x109] sm:$0xff]
    %v826 = vld [vmem:[#allocation2 + $0x111] sm:$0xff]
    %v827 = vld [vmem:[#allocation2 + $0x121] sm:$0xff]
    %v828 = vld [vmem:[#allocation2 + $0x129] sm:$0xff]
    %v829 = vld [vmem:[#allocation2 + $0x131] sm:$0xff]
    %v830 = vld [vmem:[#allocation2 + $0x139] sm:$0xff]
    %v831 = vld [vmem:[#allocation2 + $0x141] sm:$0xff]
    %v832 = vld [vmem:[#allocation2 + $0x149] sm:$0xff]
    %v833 = vld [vmem:[#allocation2 + $0x151] sm:$0xff]
    %v834 = vld [vmem:[#allocation2 + $0x159] sm:$0xff]
    %v835 = vld [vmem:[#allocation2 + $0x169] sm:$0xff]
    %v836 = vld [vmem:[#allocation2 + $0x171] sm:$0xff]
    %v837 = vld [vmem:[#allocation2 + $0x179] sm:$0xff]
    %v838 = vld [vmem:[#allocation2 + $0x181] sm:$0xff]
    %v839 = vld [vmem:[#allocation2 + $0x189] sm:$0xff]
    %v840 = vld [vmem:[#allocation2 + $0x191] sm:$0xff]
    %v841 = vld [vmem:[#allocation2 + $0x199] sm:$0xff]
    %v842 = vld [vmem:[#allocation2 + $0x1a1] sm:$0xff]
    %v843 = vld [vmem:[#allocation2 + $0x1b1] sm:$0xff]
    %v844 = vld [vmem:[#allocation2 + $0x1b9] sm:$0xff]
    %v845 = vld [vmem:[#allocation2 + $0x1c1] sm:$0xff]
    %v846 = vld [vmem:[#allocation2 + $0x1c9] sm:$0xff]
    %v847 = vld [vmem:[#allocation2 + $0x1d1] sm:$0xff]
    %v848 = vld [vmem:[#allocation2 + $0x1d9] sm:$0xff]
    %v849 = vld [vmem:[#allocation2 + $0x1e1] sm:$0xff]
    %v850 = vld [vmem:[#allocation2 + $0x1e9] sm:$0xff]
    %v851 = vld [vmem:[#allocation2 + $0x1f9] sm:$0xff]
    %v852 = vld [vmem:[#allocation2 + $0x201] sm:$0xff]
    %v853 = vld [vmem:[#allocation2 + $0x209] sm:$0xff]
    %v854 = vld [vmem:[#allocation2 + $0x211] sm:$0xff]
    %v855 = vld [vmem:[#allocation2 + $0x219] sm:$0xff]
    %v856 = vld [vmem:[#allocation2 + $0x221] sm:$0xff]
    %v857 = vld [vmem:[#allocation2 + $0x229] sm:$0xff]
    %v858 = vld [vmem:[#allocation2 + $0x231] sm:$0xff]
    %860 = vset.pattern.permute.xlu0 0
    %861 = vperm.xlu0 %860, %v795
    %v862 = vpop.permute.xlu0 %861
    %865 = vset.pattern.permute.xlu0 0
    %866 = vperm.xlu0 %865, %v796
    %v867 = vpop.permute.xlu0 %866
    %870 = vset.pattern.permute.xlu0 0
    %871 = vperm.xlu0 %870, %v797
    %v872 = vpop.permute.xlu0 %871
    %875 = vset.pattern.permute.xlu0 0
    %876 = vperm.xlu0 %875, %v798
    %v877 = vpop.permute.xlu0 %876
    %880 = vset.pattern.permute.xlu0 0
    %881 = vperm.xlu0 %880, %v799
    %v882 = vpop.permute.xlu0 %881
    %885 = vset.pattern.permute.xlu0 0
    %886 = vperm.xlu0 %885, %v800
    %v887 = vpop.permute.xlu0 %886
    %890 = vset.pattern.permute.xlu0 0
    %891 = vperm.xlu0 %890, %v801
    %v892 = vpop.permute.xlu0 %891
    %895 = vset.pattern.permute.xlu0 0
    %896 = vperm.xlu0 %895, %v802
    %v897 = vpop.permute.xlu0 %896
    %900 = vset.pattern.permute.xlu0 0
    %901 = vperm.xlu0 %900, %v803
    %v902 = vpop.permute.xlu0 %901
    %905 = vset.pattern.permute.xlu0 0
    %906 = vperm.xlu0 %905, %v804
    %v907 = vpop.permute.xlu0 %906
    %910 = vset.pattern.permute.xlu0 0
    %911 = vperm.xlu0 %910, %v805
    %v912 = vpop.permute.xlu0 %911
    %915 = vset.pattern.permute.xlu0 0
    %916 = vperm.xlu0 %915, %v806
    %v917 = vpop.permute.xlu0 %916
    %920 = vset.pattern.permute.xlu0 0
    %921 = vperm.xlu0 %920, %v807
    %v922 = vpop.permute.xlu0 %921
    %925 = vset.pattern.permute.xlu0 0
    %926 = vperm.xlu0 %925, %v808
    %v927 = vpop.permute.xlu0 %926
    %930 = vset.pattern.permute.xlu0 0
    %931 = vperm.xlu0 %930, %v809
    %v932 = vpop.permute.xlu0 %931
    %935 = vset.pattern.permute.xlu0 0
    %936 = vperm.xlu0 %935, %v810
    %v937 = vpop.permute.xlu0 %936
    %940 = vset.pattern.permute.xlu0 0
    %941 = vperm.xlu0 %940, %v811
    %v942 = vpop.permute.xlu0 %941
    %945 = vset.pattern.permute.xlu0 0
    %946 = vperm.xlu0 %945, %v812
    %v947 = vpop.permute.xlu0 %946
    %950 = vset.pattern.permute.xlu0 0
    %951 = vperm.xlu0 %950, %v813
    %v952 = vpop.permute.xlu0 %951
    %955 = vset.pattern.permute.xlu0 0
    %956 = vperm.xlu0 %955, %v814
    %v957 = vpop.permute.xlu0 %956
    %960 = vset.pattern.permute.xlu0 0
    %961 = vperm.xlu0 %960, %v815
    %v962 = vpop.permute.xlu0 %961
    %965 = vset.pattern.permute.xlu0 0
    %966 = vperm.xlu0 %965, %v816
    %v967 = vpop.permute.xlu0 %966
    %970 = vset.pattern.permute.xlu0 0
    %971 = vperm.xlu0 %970, %v817
    %v972 = vpop.permute.xlu0 %971
    %975 = vset.pattern.permute.xlu0 0
    %976 = vperm.xlu0 %975, %v818
    %v977 = vpop.permute.xlu0 %976
    %980 = vset.pattern.permute.xlu0 0
    %981 = vperm.xlu0 %980, %v819
    %v982 = vpop.permute.xlu0 %981
    %985 = vset.pattern.permute.xlu0 0
    %986 = vperm.xlu0 %985, %v820
    %v987 = vpop.permute.xlu0 %986
    %990 = vset.pattern.permute.xlu0 0
    %991 = vperm.xlu0 %990, %v821
    %v992 = vpop.permute.xlu0 %991
    %995 = vset.pattern.permute.xlu0 0
    %996 = vperm.xlu0 %995, %v822
    %v997 = vpop.permute.xlu0 %996
    %1000 = vset.pattern.permute.xlu0 0
    %1001 = vperm.xlu0 %1000, %v823
    %v1002 = vpop.permute.xlu0 %1001
    %1005 = vset.pattern.permute.xlu0 0
    %1006 = vperm.xlu0 %1005, %v824
    %v1007 = vpop.permute.xlu0 %1006
    %1010 = vset.pattern.permute.xlu0 0
    %1011 = vperm.xlu0 %1010, %v825
    %v1012 = vpop.permute.xlu0 %1011
    %1015 = vset.pattern.permute.xlu0 0
    %1016 = vperm.xlu0 %1015, %v826
    %v1017 = vpop.permute.xlu0 %1016
    %1020 = vset.pattern.permute.xlu0 0
    %1021 = vperm.xlu0 %1020, %v827
    %v1022 = vpop.permute.xlu0 %1021
    %1025 = vset.pattern.permute.xlu0 0
    %1026 = vperm.xlu0 %1025, %v828
    %v1027 = vpop.permute.xlu0 %1026
    %1030 = vset.pattern.permute.xlu0 0
    %1031 = vperm.xlu0 %1030, %v829
    %v1032 = vpop.permute.xlu0 %1031
    %1035 = vset.pattern.permute.xlu0 0
    %1036 = vperm.xlu0 %1035, %v830
    %v1037 = vpop.permute.xlu0 %1036
    %1040 = vset.pattern.permute.xlu0 0
    %1041 = vperm.xlu0 %1040, %v831
    %v1042 = vpop.permute.xlu0 %1041
    %1045 = vset.pattern.permute.xlu0 0
    %1046 = vperm.xlu0 %1045, %v832
    %v1047 = vpop.permute.xlu0 %1046
    %1050 = vset.pattern.permute.xlu0 0
    %1051 = vperm.xlu0 %1050, %v833
    %v1052 = vpop.permute.xlu0 %1051
    %1055 = vset.pattern.permute.xlu0 0
    %1056 = vperm.xlu0 %1055, %v834
    %v1057 = vpop.permute.xlu0 %1056
    %1060 = vset.pattern.permute.xlu0 0
    %1061 = vperm.xlu0 %1060, %v835
    %v1062 = vpop.permute.xlu0 %1061
    %1065 = vset.pattern.permute.xlu0 0
    %1066 = vperm.xlu0 %1065, %v836
    %v1067 = vpop.permute.xlu0 %1066
    %1070 = vset.pattern.permute.xlu0 0
    %1071 = vperm.xlu0 %1070, %v837
    %v1072 = vpop.permute.xlu0 %1071
    %1075 = vset.pattern.permute.xlu0 0
    %1076 = vperm.xlu0 %1075, %v838
    %v1077 = vpop.permute.xlu0 %1076
    %1080 = vset.pattern.permute.xlu0 0
    %1081 = vperm.xlu0 %1080, %v839
    %v1082 = vpop.permute.xlu0 %1081
    %1085 = vset.pattern.permute.xlu0 0
    %1086 = vperm.xlu0 %1085, %v840
    %v1087 = vpop.permute.xlu0 %1086
    %1090 = vset.pattern.permute.xlu0 0
    %1091 = vperm.xlu0 %1090, %v841
    %v1092 = vpop.permute.xlu0 %1091
    %1095 = vset.pattern.permute.xlu0 0
    %1096 = vperm.xlu0 %1095, %v842
    %v1097 = vpop.permute.xlu0 %1096
    %1100 = vset.pattern.permute.xlu0 0
    %1101 = vperm.xlu0 %1100, %v843
    %v1102 = vpop.permute.xlu0 %1101
    %1105 = vset.pattern.permute.xlu0 0
    %1106 = vperm.xlu0 %1105, %v844
    %v1107 = vpop.permute.xlu0 %1106
    %1110 = vset.pattern.permute.xlu0 0
    %1111 = vperm.xlu0 %1110, %v845
    %v1112 = vpop.permute.xlu0 %1111
    %1115 = vset.pattern.permute.xlu0 0
    %1116 = vperm.xlu0 %1115, %v846
    %v1117 = vpop.permute.xlu0 %1116
    %1120 = vset.pattern.permute.xlu0 0
    %1121 = vperm.xlu0 %1120, %v847
    %v1122 = vpop.permute.xlu0 %1121
    %1125 = vset.pattern.permute.xlu0 0
    %1126 = vperm.xlu0 %1125, %v848
    %v1127 = vpop.permute.xlu0 %1126
    %1130 = vset.pattern.permute.xlu0 0
    %1131 = vperm.xlu0 %1130, %v849
    %v1132 = vpop.permute.xlu0 %1131
    %1135 = vset.pattern.permute.xlu0 0
    %1136 = vperm.xlu0 %1135, %v850
    %v1137 = vpop.permute.xlu0 %1136
    %1140 = vset.pattern.permute.xlu0 0
    %1141 = vperm.xlu0 %1140, %v851
    %v1142 = vpop.permute.xlu0 %1141
    %1145 = vset.pattern.permute.xlu0 0
    %1146 = vperm.xlu0 %1145, %v852
    %v1147 = vpop.permute.xlu0 %1146
    %1150 = vset.pattern.permute.xlu0 0
    %1151 = vperm.xlu0 %1150, %v853
    %v1152 = vpop.permute.xlu0 %1151
    %1155 = vset.pattern.permute.xlu0 0
    %1156 = vperm.xlu0 %1155, %v854
    %v1157 = vpop.permute.xlu0 %1156
    %1160 = vset.pattern.permute.xlu0 0
    %1161 = vperm.xlu0 %1160, %v855
    %v1162 = vpop.permute.xlu0 %1161
    %1165 = vset.pattern.permute.xlu0 0
    %1166 = vperm.xlu0 %1165, %v856
    %v1167 = vpop.permute.xlu0 %1166
    %1170 = vset.pattern.permute.xlu0 0
    %1171 = vperm.xlu0 %1170, %v857
    %v1172 = vpop.permute.xlu0 %1171
    %1175 = vset.pattern.permute.xlu0 0
    %1176 = vperm.xlu0 %1175, %v858
    %v1177 = vpop.permute.xlu0 %1176
    %v1179 = vlaneseq
    %v1180 = vshrl.u32 %v1179, 7
    %v1181 = vsub.s32 1, %v1180
    %v1182 = vrot.slane %v278, %v1181
    %v1183 = vmul.f32 %v862, %v1182
    %v1184 = vmul.f32 %v867, %v1182
    %v1185 = vmul.f32 %v872, %v1182
    %v1186 = vmul.f32 %v877, %v1182
    %v1187 = vmul.f32 %v882, %v1182
    %v1188 = vmul.f32 %v887, %v1182
    %v1189 = vmul.f32 %v892, %v1182
    %v1190 = vmul.f32 %v897, %v1182
    %v1191 = vmul.f32 %v902, %v1182
    %v1192 = vmul.f32 %v907, %v1182
    %v1193 = vmul.f32 %v912, %v1182
    %v1194 = vmul.f32 %v917, %v1182
    %v1195 = vmul.f32 %v922, %v1182
    %v1196 = vmul.f32 %v927, %v1182
    %v1197 = vmul.f32 %v932, %v1182
    %v1198 = vmul.f32 %v937, %v1182
    %v1199 = vmul.f32 %v942, %v1182
    %v1200 = vmul.f32 %v947, %v1182
    %v1201 = vmul.f32 %v952, %v1182
    %v1202 = vmul.f32 %v957, %v1182
    %v1203 = vmul.f32 %v962, %v1182
    %v1204 = vmul.f32 %v967, %v1182
    %v1205 = vmul.f32 %v972, %v1182
    %v1206 = vmul.f32 %v977, %v1182
    %v1207 = vmul.f32 %v982, %v1182
    %v1208 = vmul.f32 %v987, %v1182
    %v1209 = vmul.f32 %v992, %v1182
    %v1210 = vmul.f32 %v997, %v1182
    %v1211 = vmul.f32 %v1002, %v1182
    %v1212 = vmul.f32 %v1007, %v1182
    %v1213 = vmul.f32 %v1012, %v1182
    %v1214 = vmul.f32 %v1017, %v1182
    %v1215 = vmul.f32 %v1022, %v1182
    %v1216 = vmul.f32 %v1027, %v1182
    %v1217 = vmul.f32 %v1032, %v1182
    %v1218 = vmul.f32 %v1037, %v1182
    %v1219 = vmul.f32 %v1042, %v1182
    %v1220 = vmul.f32 %v1047, %v1182
    %v1221 = vmul.f32 %v1052, %v1182
    %v1222 = vmul.f32 %v1057, %v1182
    %v1223 = vmul.f32 %v1062, %v1182
    %v1224 = vmul.f32 %v1067, %v1182
    %v1225 = vmul.f32 %v1072, %v1182
    %v1226 = vmul.f32 %v1077, %v1182
    %v1227 = vmul.f32 %v1082, %v1182
    %v1228 = vmul.f32 %v1087, %v1182
    %v1229 = vmul.f32 %v1092, %v1182
    %v1230 = vmul.f32 %v1097, %v1182
    %v1231 = vmul.f32 %v1102, %v1182
    %v1232 = vmul.f32 %v1107, %v1182
    %v1233 = vmul.f32 %v1112, %v1182
    %v1234 = vmul.f32 %v1117, %v1182
    %v1235 = vmul.f32 %v1122, %v1182
    %v1236 = vmul.f32 %v1127, %v1182
    %v1237 = vmul.f32 %v1132, %v1182
    %v1238 = vmul.f32 %v1137, %v1182
    %v1239 = vmul.f32 %v1142, %v1182
    %v1240 = vmul.f32 %v1147, %v1182
    %v1241 = vmul.f32 %v1152, %v1182
    %v1242 = vmul.f32 %v1157, %v1182
    %v1243 = vmul.f32 %v1162, %v1182
    %v1244 = vmul.f32 %v1167, %v1182
    %v1245 = vmul.f32 %v1172, %v1182
    %v1246 = vmul.f32 %v1177, %v1182
    %v1247 = vadd.f32 %v731, %v1183
    %v1248 = vadd.f32 %v732, %v1184
    %v1249 = vadd.f32 %v733, %v1185
    %v1250 = vadd.f32 %v734, %v1186
    %v1251 = vadd.f32 %v735, %v1187
    %v1252 = vadd.f32 %v736, %v1188
    %v1253 = vadd.f32 %v737, %v1189
    %v1254 = vadd.f32 %v738, %v1190
    %v1255 = vadd.f32 %v739, %v1191
    %v1256 = vadd.f32 %v740, %v1192
    %v1257 = vadd.f32 %v741, %v1193
    %v1258 = vadd.f32 %v742, %v1194
    %v1259 = vadd.f32 %v743, %v1195
    %v1260 = vadd.f32 %v744, %v1196
    %v1261 = vadd.f32 %v745, %v1197
    %v1262 = vadd.f32 %v746, %v1198
    %v1263 = vadd.f32 %v747, %v1199
    %v1264 = vadd.f32 %v748, %v1200
    %v1265 = vadd.f32 %v749, %v1201
    %v1266 = vadd.f32 %v750, %v1202
    %v1267 = vadd.f32 %v751, %v1203
    %v1268 = vadd.f32 %v752, %v1204
    %v1269 = vadd.f32 %v753, %v1205
    %v1270 = vadd.f32 %v754, %v1206
    %v1271 = vadd.f32 %v755, %v1207
    %v1272 = vadd.f32 %v756, %v1208
    %v1273 = vadd.f32 %v757, %v1209
    %v1274 = vadd.f32 %v758, %v1210
    %v1275 = vadd.f32 %v759, %v1211
    %v1276 = vadd.f32 %v760, %v1212
    %v1277 = vadd.f32 %v761, %v1213
    %v1278 = vadd.f32 %v762, %v1214
    %v1279 = vadd.f32 %v763, %v1215
    %v1280 = vadd.f32 %v764, %v1216
    %v1281 = vadd.f32 %v765, %v1217
    %v1282 = vadd.f32 %v766, %v1218
    %v1283 = vadd.f32 %v767, %v1219
    %v1284 = vadd.f32 %v768, %v1220
    %v1285 = vadd.f32 %v769, %v1221
    %v1286 = vadd.f32 %v770, %v1222
    %v1287 = vadd.f32 %v771, %v1223
    %v1288 = vadd.f32 %v772, %v1224
    %v1289 = vadd.f32 %v773, %v1225
    %v1290 = vadd.f32 %v774, %v1226
    %v1291 = vadd.f32 %v775, %v1227
    %v1292 = vadd.f32 %v776, %v1228
    %v1293 = vadd.f32 %v777, %v1229
    %v1294 = vadd.f32 %v778, %v1230
    %v1295 = vadd.f32 %v779, %v1231
    %v1296 = vadd.f32 %v780, %v1232
    %v1297 = vadd.f32 %v781, %v1233
    %v1298 = vadd.f32 %v782, %v1234
    %v1299 = vadd.f32 %v783, %v1235
    %v1300 = vadd.f32 %v784, %v1236
    %v1301 = vadd.f32 %v785, %v1237
    %v1302 = vadd.f32 %v786, %v1238
    %v1303 = vadd.f32 %v787, %v1239
    %v1304 = vadd.f32 %v788, %v1240
    %v1305 = vadd.f32 %v789, %v1241
    %v1306 = vadd.f32 %v790, %v1242
    %v1307 = vadd.f32 %v791, %v1243
    %v1308 = vadd.f32 %v792, %v1244
    %v1309 = vadd.f32 %v793, %v1245
    %v1310 = vadd.f32 %v794, %v1246
    %v1311 = vld [vmem:[#allocation2 + $0x2] sm:$0xff]
    %v1312 = vld [vmem:[#allocation2 + $0xa] sm:$0xff]
    %v1313 = vld [vmem:[#allocation2 + $0x12] sm:$0xff]
    %v1314 = vld [vmem:[#allocation2 + $0x1a] sm:$0xff]
    %v1315 = vld [vmem:[#allocation2 + $0x22] sm:$0xff]
    %v1316 = vld [vmem:[#allocation2 + $0x2a] sm:$0xff]
    %v1317 = vld [vmem:[#allocation2 + $0x32] sm:$0xff]
    %v1318 = vld [vmem:[#allocation2 + $0x3a] sm:$0xff]
    %v1319 = vld [vmem:[#allocation2 + $0x4a] sm:$0xff]
    %v1320 = vld [vmem:[#allocation2 + $0x52] sm:$0xff]
    %v1321 = vld [vmem:[#allocation2 + $0x5a] sm:$0xff]
    %v1322 = vld [vmem:[#allocation2 + $0x62] sm:$0xff]
    %v1323 = vld [vmem:[#allocation2 + $0x6a] sm:$0xff]
    %v1324 = vld [vmem:[#allocation2 + $0x72] sm:$0xff]
    %v1325 = vld [vmem:[#allocation2 + $0x7a] sm:$0xff]
    %v1326 = vld [vmem:[#allocation2 + $0x82] sm:$0xff]
    %v1327 = vld [vmem:[#allocation2 + $0x92] sm:$0xff]
    %v1328 = vld [vmem:[#allocation2 + $0x9a] sm:$0xff]
    %v1329 = vld [vmem:[#allocation2 + $0xa2] sm:$0xff]
    %v1330 = vld [vmem:[#allocation2 + $0xaa] sm:$0xff]
    %v1331 = vld [vmem:[#allocation2 + $0xb2] sm:$0xff]
    %v1332 = vld [vmem:[#allocation2 + $0xba] sm:$0xff]
    %v1333 = vld [vmem:[#allocation2 + $0xc2] sm:$0xff]
    %v1334 = vld [vmem:[#allocation2 + $0xca] sm:$0xff]
    %v1335 = vld [vmem:[#allocation2 + $0xda] sm:$0xff]
    %v1336 = vld [vmem:[#allocation2 + $0xe2] sm:$0xff]
    %v1337 = vld [vmem:[#allocation2 + $0xea] sm:$0xff]
    %v1338 = vld [vmem:[#allocation2 + $0xf2] sm:$0xff]
    %v1339 = vld [vmem:[#allocation2 + $0xfa] sm:$0xff]
    %v1340 = vld [vmem:[#allocation2 + $0x102] sm:$0xff]
    %v1341 = vld [vmem:[#allocation2 + $0x10a] sm:$0xff]
    %v1342 = vld [vmem:[#allocation2 + $0x112] sm:$0xff]
    %v1343 = vld [vmem:[#allocation2 + $0x122] sm:$0xff]
    %v1344 = vld [vmem:[#allocation2 + $0x12a] sm:$0xff]
    %v1345 = vld [vmem:[#allocation2 + $0x132] sm:$0xff]
    %v1346 = vld [vmem:[#allocation2 + $0x13a] sm:$0xff]
    %v1347 = vld [vmem:[#allocation2 + $0x142] sm:$0xff]
    %v1348 = vld [vmem:[#allocation2 + $0x14a] sm:$0xff]
    %v1349 = vld [vmem:[#allocation2 + $0x152] sm:$0xff]
    %v1350 = vld [vmem:[#allocation2 + $0x15a] sm:$0xff]
    %v1351 = vld [vmem:[#allocation2 + $0x16a] sm:$0xff]
    %v1352 = vld [vmem:[#allocation2 + $0x172] sm:$0xff]
    %v1353 = vld [vmem:[#allocation2 + $0x17a] sm:$0xff]
    %v1354 = vld [vmem:[#allocation2 + $0x182] sm:$0xff]
    %v1355 = vld [vmem:[#allocation2 + $0x18a] sm:$0xff]
    %v1356 = vld [vmem:[#allocation2 + $0x192] sm:$0xff]
    %v1357 = vld [vmem:[#allocation2 + $0x19a] sm:$0xff]
    %v1358 = vld [vmem:[#allocation2 + $0x1a2] sm:$0xff]
    %v1359 = vld [vmem:[#allocation2 + $0x1b2] sm:$0xff]
    %v1360 = vld [vmem:[#allocation2 + $0x1ba] sm:$0xff]
    %v1361 = vld [vmem:[#allocation2 + $0x1c2] sm:$0xff]
    %v1362 = vld [vmem:[#allocation2 + $0x1ca] sm:$0xff]
    %v1363 = vld [vmem:[#allocation2 + $0x1d2] sm:$0xff]
    %v1364 = vld [vmem:[#allocation2 + $0x1da] sm:$0xff]
    %v1365 = vld [vmem:[#allocation2 + $0x1e2] sm:$0xff]
    %v1366 = vld [vmem:[#allocation2 + $0x1ea] sm:$0xff]
    %v1367 = vld [vmem:[#allocation2 + $0x1fa] sm:$0xff]
    %v1368 = vld [vmem:[#allocation2 + $0x202] sm:$0xff]
    %v1369 = vld [vmem:[#allocation2 + $0x20a] sm:$0xff]
    %v1370 = vld [vmem:[#allocation2 + $0x212] sm:$0xff]
    %v1371 = vld [vmem:[#allocation2 + $0x21a] sm:$0xff]
    %v1372 = vld [vmem:[#allocation2 + $0x222] sm:$0xff]
    %v1373 = vld [vmem:[#allocation2 + $0x22a] sm:$0xff]
    %v1374 = vld [vmem:[#allocation2 + $0x232] sm:$0xff]
    %1376 = vset.pattern.permute.xlu0 0
    %1377 = vperm.xlu0 %1376, %v1311
    %v1378 = vpop.permute.xlu0 %1377
    %1381 = vset.pattern.permute.xlu0 0
    %1382 = vperm.xlu0 %1381, %v1312
    %v1383 = vpop.permute.xlu0 %1382
    %1386 = vset.pattern.permute.xlu0 0
    %1387 = vperm.xlu0 %1386, %v1313
    %v1388 = vpop.permute.xlu0 %1387
    %1391 = vset.pattern.permute.xlu0 0
    %1392 = vperm.xlu0 %1391, %v1314
    %v1393 = vpop.permute.xlu0 %1392
    %1396 = vset.pattern.permute.xlu0 0
    %1397 = vperm.xlu0 %1396, %v1315
    %v1398 = vpop.permute.xlu0 %1397
    %1401 = vset.pattern.permute.xlu0 0
    %1402 = vperm.xlu0 %1401, %v1316
    %v1403 = vpop.permute.xlu0 %1402
    %1406 = vset.pattern.permute.xlu0 0
    %1407 = vperm.xlu0 %1406, %v1317
    %v1408 = vpop.permute.xlu0 %1407
    %1411 = vset.pattern.permute.xlu0 0
    %1412 = vperm.xlu0 %1411, %v1318
    %v1413 = vpop.permute.xlu0 %1412
    %1416 = vset.pattern.permute.xlu0 0
    %1417 = vperm.xlu0 %1416, %v1319
    %v1418 = vpop.permute.xlu0 %1417
    %1421 = vset.pattern.permute.xlu0 0
    %1422 = vperm.xlu0 %1421, %v1320
    %v1423 = vpop.permute.xlu0 %1422
    %1426 = vset.pattern.permute.xlu0 0
    %1427 = vperm.xlu0 %1426, %v1321
    %v1428 = vpop.permute.xlu0 %1427
    %1431 = vset.pattern.permute.xlu0 0
    %1432 = vperm.xlu0 %1431, %v1322
    %v1433 = vpop.permute.xlu0 %1432
    %1436 = vset.pattern.permute.xlu0 0
    %1437 = vperm.xlu0 %1436, %v1323
    %v1438 = vpop.permute.xlu0 %1437
    %1441 = vset.pattern.permute.xlu0 0
    %1442 = vperm.xlu0 %1441, %v1324
    %v1443 = vpop.permute.xlu0 %1442
    %1446 = vset.pattern.permute.xlu0 0
    %1447 = vperm.xlu0 %1446, %v1325
    %v1448 = vpop.permute.xlu0 %1447
    %1451 = vset.pattern.permute.xlu0 0
    %1452 = vperm.xlu0 %1451, %v1326
    %v1453 = vpop.permute.xlu0 %1452
    %1456 = vset.pattern.permute.xlu0 0
    %1457 = vperm.xlu0 %1456, %v1327
    %v1458 = vpop.permute.xlu0 %1457
    %1461 = vset.pattern.permute.xlu0 0
    %1462 = vperm.xlu0 %1461, %v1328
    %v1463 = vpop.permute.xlu0 %1462
    %1466 = vset.pattern.permute.xlu0 0
    %1467 = vperm.xlu0 %1466, %v1329
    %v1468 = vpop.permute.xlu0 %1467
    %1471 = vset.pattern.permute.xlu0 0
    %1472 = vperm.xlu0 %1471, %v1330
    %v1473 = vpop.permute.xlu0 %1472
    %1476 = vset.pattern.permute.xlu0 0
    %1477 = vperm.xlu0 %1476, %v1331
    %v1478 = vpop.permute.xlu0 %1477
    %1481 = vset.pattern.permute.xlu0 0
    %1482 = vperm.xlu0 %1481, %v1332
    %v1483 = vpop.permute.xlu0 %1482
    %1486 = vset.pattern.permute.xlu0 0
    %1487 = vperm.xlu0 %1486, %v1333
    %v1488 = vpop.permute.xlu0 %1487
    %1491 = vset.pattern.permute.xlu0 0
    %1492 = vperm.xlu0 %1491, %v1334
    %v1493 = vpop.permute.xlu0 %1492
    %1496 = vset.pattern.permute.xlu0 0
    %1497 = vperm.xlu0 %1496, %v1335
    %v1498 = vpop.permute.xlu0 %1497
    %1501 = vset.pattern.permute.xlu0 0
    %1502 = vperm.xlu0 %1501, %v1336
    %v1503 = vpop.permute.xlu0 %1502
    %1506 = vset.pattern.permute.xlu0 0
    %1507 = vperm.xlu0 %1506, %v1337
    %v1508 = vpop.permute.xlu0 %1507
    %1511 = vset.pattern.permute.xlu0 0
    %1512 = vperm.xlu0 %1511, %v1338
    %v1513 = vpop.permute.xlu0 %1512
    %1516 = vset.pattern.permute.xlu0 0
    %1517 = vperm.xlu0 %1516, %v1339
    %v1518 = vpop.permute.xlu0 %1517
    %1521 = vset.pattern.permute.xlu0 0
    %1522 = vperm.xlu0 %1521, %v1340
    %v1523 = vpop.permute.xlu0 %1522
    %1526 = vset.pattern.permute.xlu0 0
    %1527 = vperm.xlu0 %1526, %v1341
    %v1528 = vpop.permute.xlu0 %1527
    %1531 = vset.pattern.permute.xlu0 0
    %1532 = vperm.xlu0 %1531, %v1342
    %v1533 = vpop.permute.xlu0 %1532
    %1536 = vset.pattern.permute.xlu0 0
    %1537 = vperm.xlu0 %1536, %v1343
    %v1538 = vpop.permute.xlu0 %1537
    %1541 = vset.pattern.permute.xlu0 0
    %1542 = vperm.xlu0 %1541, %v1344
    %v1543 = vpop.permute.xlu0 %1542
    %1546 = vset.pattern.permute.xlu0 0
    %1547 = vperm.xlu0 %1546, %v1345
    %v1548 = vpop.permute.xlu0 %1547
    %1551 = vset.pattern.permute.xlu0 0
    %1552 = vperm.xlu0 %1551, %v1346
    %v1553 = vpop.permute.xlu0 %1552
    %1556 = vset.pattern.permute.xlu0 0
    %1557 = vperm.xlu0 %1556, %v1347
    %v1558 = vpop.permute.xlu0 %1557
    %1561 = vset.pattern.permute.xlu0 0
    %1562 = vperm.xlu0 %1561, %v1348
    %v1563 = vpop.permute.xlu0 %1562
    %1566 = vset.pattern.permute.xlu0 0
    %1567 = vperm.xlu0 %1566, %v1349
    %v1568 = vpop.permute.xlu0 %1567
    %1571 = vset.pattern.permute.xlu0 0
    %1572 = vperm.xlu0 %1571, %v1350
    %v1573 = vpop.permute.xlu0 %1572
    %1576 = vset.pattern.permute.xlu0 0
    %1577 = vperm.xlu0 %1576, %v1351
    %v1578 = vpop.permute.xlu0 %1577
    %1581 = vset.pattern.permute.xlu0 0
    %1582 = vperm.xlu0 %1581, %v1352
    %v1583 = vpop.permute.xlu0 %1582
    %1586 = vset.pattern.permute.xlu0 0
    %1587 = vperm.xlu0 %1586, %v1353
    %v1588 = vpop.permute.xlu0 %1587
    %1591 = vset.pattern.permute.xlu0 0
    %1592 = vperm.xlu0 %1591, %v1354
    %v1593 = vpop.permute.xlu0 %1592
    %1596 = vset.pattern.permute.xlu0 0
    %1597 = vperm.xlu0 %1596, %v1355
    %v1598 = vpop.permute.xlu0 %1597
    %1601 = vset.pattern.permute.xlu0 0
    %1602 = vperm.xlu0 %1601, %v1356
    %v1603 = vpop.permute.xlu0 %1602
    %1606 = vset.pattern.permute.xlu0 0
    %1607 = vperm.xlu0 %1606, %v1357
    %v1608 = vpop.permute.xlu0 %1607
    %1611 = vset.pattern.permute.xlu0 0
    %1612 = vperm.xlu0 %1611, %v1358
    %v1613 = vpop.permute.xlu0 %1612
    %1616 = vset.pattern.permute.xlu0 0
    %1617 = vperm.xlu0 %1616, %v1359
    %v1618 = vpop.permute.xlu0 %1617
    %1621 = vset.pattern.permute.xlu0 0
    %1622 = vperm.xlu0 %1621, %v1360
    %v1623 = vpop.permute.xlu0 %1622
    %1626 = vset.pattern.permute.xlu0 0
    %1627 = vperm.xlu0 %1626, %v1361
    %v1628 = vpop.permute.xlu0 %1627
    %1631 = vset.pattern.permute.xlu0 0
    %1632 = vperm.xlu0 %1631, %v1362
    %v1633 = vpop.permute.xlu0 %1632
    %1636 = vset.pattern.permute.xlu0 0
    %1637 = vperm.xlu0 %1636, %v1363
    %v1638 = vpop.permute.xlu0 %1637
    %1641 = vset.pattern.permute.xlu0 0
    %1642 = vperm.xlu0 %1641, %v1364
    %v1643 = vpop.permute.xlu0 %1642
    %1646 = vset.pattern.permute.xlu0 0
    %1647 = vperm.xlu0 %1646, %v1365
    %v1648 = vpop.permute.xlu0 %1647
    %1651 = vset.pattern.permute.xlu0 0
    %1652 = vperm.xlu0 %1651, %v1366
    %v1653 = vpop.permute.xlu0 %1652
    %1656 = vset.pattern.permute.xlu0 0
    %1657 = vperm.xlu0 %1656, %v1367
    %v1658 = vpop.permute.xlu0 %1657
    %1661 = vset.pattern.permute.xlu0 0
    %1662 = vperm.xlu0 %1661, %v1368
    %v1663 = vpop.permute.xlu0 %1662
    %1666 = vset.pattern.permute.xlu0 0
    %1667 = vperm.xlu0 %1666, %v1369
    %v1668 = vpop.permute.xlu0 %1667
    %1671 = vset.pattern.permute.xlu0 0
    %1672 = vperm.xlu0 %1671, %v1370
    %v1673 = vpop.permute.xlu0 %1672
    %1676 = vset.pattern.permute.xlu0 0
    %1677 = vperm.xlu0 %1676, %v1371
    %v1678 = vpop.permute.xlu0 %1677
    %1681 = vset.pattern.permute.xlu0 0
    %1682 = vperm.xlu0 %1681, %v1372
    %v1683 = vpop.permute.xlu0 %1682
    %1686 = vset.pattern.permute.xlu0 0
    %1687 = vperm.xlu0 %1686, %v1373
    %v1688 = vpop.permute.xlu0 %1687
    %1691 = vset.pattern.permute.xlu0 0
    %1692 = vperm.xlu0 %1691, %v1374
    %v1693 = vpop.permute.xlu0 %1692
    %v1695 = vlaneseq
    %v1696 = vshrl.u32 %v1695, 7
    %v1697 = vsub.s32 2, %v1696
    %v1698 = vrot.slane %v278, %v1697
    %v1699 = vmul.f32 %v1378, %v1698
    %v1700 = vmul.f32 %v1383, %v1698
    %v1701 = vmul.f32 %v1388, %v1698
    %v1702 = vmul.f32 %v1393, %v1698
    %v1703 = vmul.f32 %v1398, %v1698
    %v1704 = vmul.f32 %v1403, %v1698
    %v1705 = vmul.f32 %v1408, %v1698
    %v1706 = vmul.f32 %v1413, %v1698
    %v1707 = vmul.f32 %v1418, %v1698
    %v1708 = vmul.f32 %v1423, %v1698
    %v1709 = vmul.f32 %v1428, %v1698
    %v1710 = vmul.f32 %v1433, %v1698
    %v1711 = vmul.f32 %v1438, %v1698
    %v1712 = vmul.f32 %v1443, %v1698
    %v1713 = vmul.f32 %v1448, %v1698
    %v1714 = vmul.f32 %v1453, %v1698
    %v1715 = vmul.f32 %v1458, %v1698
    %v1716 = vmul.f32 %v1463, %v1698
    %v1717 = vmul.f32 %v1468, %v1698
    %v1718 = vmul.f32 %v1473, %v1698
    %v1719 = vmul.f32 %v1478, %v1698
    %v1720 = vmul.f32 %v1483, %v1698
    %v1721 = vmul.f32 %v1488, %v1698
    %v1722 = vmul.f32 %v1493, %v1698
    %v1723 = vmul.f32 %v1498, %v1698
    %v1724 = vmul.f32 %v1503, %v1698
    %v1725 = vmul.f32 %v1508, %v1698
    %v1726 = vmul.f32 %v1513, %v1698
    %v1727 = vmul.f32 %v1518, %v1698
    %v1728 = vmul.f32 %v1523, %v1698
    %v1729 = vmul.f32 %v1528, %v1698
    %v1730 = vmul.f32 %v1533, %v1698
    %v1731 = vmul.f32 %v1538, %v1698
    %v1732 = vmul.f32 %v1543, %v1698
    %v1733 = vmul.f32 %v1548, %v1698
    %v1734 = vmul.f32 %v1553, %v1698
    %v1735 = vmul.f32 %v1558, %v1698
    %v1736 = vmul.f32 %v1563, %v1698
    %v1737 = vmul.f32 %v1568, %v1698
    %v1738 = vmul.f32 %v1573, %v1698
    %v1739 = vmul.f32 %v1578, %v1698
    %v1740 = vmul.f32 %v1583, %v1698
    %v1741 = vmul.f32 %v1588, %v1698
    %v1742 = vmul.f32 %v1593, %v1698
    %v1743 = vmul.f32 %v1598, %v1698
    %v1744 = vmul.f32 %v1603, %v1698
    %v1745 = vmul.f32 %v1608, %v1698
    %v1746 = vmul.f32 %v1613, %v1698
    %v1747 = vmul.f32 %v1618, %v1698
    %v1748 = vmul.f32 %v1623, %v1698
    %v1749 = vmul.f32 %v1628, %v1698
    %v1750 = vmul.f32 %v1633, %v1698
    %v1751 = vmul.f32 %v1638, %v1698
    %v1752 = vmul.f32 %v1643, %v1698
    %v1753 = vmul.f32 %v1648, %v1698
    %v1754 = vmul.f32 %v1653, %v1698
    %v1755 = vmul.f32 %v1658, %v1698
    %v1756 = vmul.f32 %v1663, %v1698
    %v1757 = vmul.f32 %v1668, %v1698
    %v1758 = vmul.f32 %v1673, %v1698
    %v1759 = vmul.f32 %v1678, %v1698
    %v1760 = vmul.f32 %v1683, %v1698
    %v1761 = vmul.f32 %v1688, %v1698
    %v1762 = vmul.f32 %v1693, %v1698
    %v1763 = vadd.f32 %v1247, %v1699
    %v1764 = vadd.f32 %v1248, %v1700
    %v1765 = vadd.f32 %v1249, %v1701
    %v1766 = vadd.f32 %v1250, %v1702
    %v1767 = vadd.f32 %v1251, %v1703
    %v1768 = vadd.f32 %v1252, %v1704
    %v1769 = vadd.f32 %v1253, %v1705
    %v1770 = vadd.f32 %v1254, %v1706
    %v1771 = vadd.f32 %v1255, %v1707
    %v1772 = vadd.f32 %v1256, %v1708
    %v1773 = vadd.f32 %v1257, %v1709
    %v1774 = vadd.f32 %v1258, %v1710
    %v1775 = vadd.f32 %v1259, %v1711
    %v1776 = vadd.f32 %v1260, %v1712
    %v1777 = vadd.f32 %v1261, %v1713
    %v1778 = vadd.f32 %v1262, %v1714
    %v1779 = vadd.f32 %v1263, %v1715
    %v1780 = vadd.f32 %v1264, %v1716
    %v1781 = vadd.f32 %v1265, %v1717
    %v1782 = vadd.f32 %v1266, %v1718
    %v1783 = vadd.f32 %v1267, %v1719
    %v1784 = vadd.f32 %v1268, %v1720
    %v1785 = vadd.f32 %v1269, %v1721
    %v1786 = vadd.f32 %v1270, %v1722
    %v1787 = vadd.f32 %v1271, %v1723
    %v1788 = vadd.f32 %v1272, %v1724
    %v1789 = vadd.f32 %v1273, %v1725
    %v1790 = vadd.f32 %v1274, %v1726
    %v1791 = vadd.f32 %v1275, %v1727
    %v1792 = vadd.f32 %v1276, %v1728
    %v1793 = vadd.f32 %v1277, %v1729
    %v1794 = vadd.f32 %v1278, %v1730
    %v1795 = vadd.f32 %v1279, %v1731
    %v1796 = vadd.f32 %v1280, %v1732
    %v1797 = vadd.f32 %v1281, %v1733
    %v1798 = vadd.f32 %v1282, %v1734
    %v1799 = vadd.f32 %v1283, %v1735
    %v1800 = vadd.f32 %v1284, %v1736
    %v1801 = vadd.f32 %v1285, %v1737
    %v1802 = vadd.f32 %v1286, %v1738
    %v1803 = vadd.f32 %v1287, %v1739
    %v1804 = vadd.f32 %v1288, %v1740
    %v1805 = vadd.f32 %v1289, %v1741
    %v1806 = vadd.f32 %v1290, %v1742
    %v1807 = vadd.f32 %v1291, %v1743
    %v1808 = vadd.f32 %v1292, %v1744
    %v1809 = vadd.f32 %v1293, %v1745
    %v1810 = vadd.f32 %v1294, %v1746
    %v1811 = vadd.f32 %v1295, %v1747
    %v1812 = vadd.f32 %v1296, %v1748
    %v1813 = vadd.f32 %v1297, %v1749
    %v1814 = vadd.f32 %v1298, %v1750
    %v1815 = vadd.f32 %v1299, %v1751
    %v1816 = vadd.f32 %v1300, %v1752
    %v1817 = vadd.f32 %v1301, %v1753
    %v1818 = vadd.f32 %v1302, %v1754
    %v1819 = vadd.f32 %v1303, %v1755
    %v1820 = vadd.f32 %v1304, %v1756
    %v1821 = vadd.f32 %v1305, %v1757
    %v1822 = vadd.f32 %v1306, %v1758
    %v1823 = vadd.f32 %v1307, %v1759
    %v1824 = vadd.f32 %v1308, %v1760
    %v1825 = vadd.f32 %v1309, %v1761
    %v1826 = vadd.f32 %v1310, %v1762
    %v1827 = vld [vmem:[#allocation2 + $0x3] sm:$0xff]
    %v1828 = vld [vmem:[#allocation2 + $0xb] sm:$0xff]
    %v1829 = vld [vmem:[#allocation2 + $0x13] sm:$0xff]
    %v1830 = vld [vmem:[#allocation2 + $0x1b] sm:$0xff]
    %v1831 = vld [vmem:[#allocation2 + $0x23] sm:$0xff]
    %v1832 = vld [vmem:[#allocation2 + $0x2b] sm:$0xff]
    %v1833 = vld [vmem:[#allocation2 + $0x33] sm:$0xff]
    %v1834 = vld [vmem:[#allocation2 + $0x3b] sm:$0xff]
    %v1835 = vld [vmem:[#allocation2 + $0x4b] sm:$0xff]
    %v1836 = vld [vmem:[#allocation2 + $0x53] sm:$0xff]
    %v1837 = vld [vmem:[#allocation2 + $0x5b] sm:$0xff]
    %v1838 = vld [vmem:[#allocation2 + $0x63] sm:$0xff]
    %v1839 = vld [vmem:[#allocation2 + $0x6b] sm:$0xff]
    %v1840 = vld [vmem:[#allocation2 + $0x73] sm:$0xff]
    %v1841 = vld [vmem:[#allocation2 + $0x7b] sm:$0xff]
    %v1842 = vld [vmem:[#allocation2 + $0x83] sm:$0xff]
    %v1843 = vld [vmem:[#allocation2 + $0x93] sm:$0xff]
    %v1844 = vld [vmem:[#allocation2 + $0x9b] sm:$0xff]
    %v1845 = vld [vmem:[#allocation2 + $0xa3] sm:$0xff]
    %v1846 = vld [vmem:[#allocation2 + $0xab] sm:$0xff]
    %v1847 = vld [vmem:[#allocation2 + $0xb3] sm:$0xff]
    %v1848 = vld [vmem:[#allocation2 + $0xbb] sm:$0xff]
    %v1849 = vld [vmem:[#allocation2 + $0xc3] sm:$0xff]
    %v1850 = vld [vmem:[#allocation2 + $0xcb] sm:$0xff]
    %v1851 = vld [vmem:[#allocation2 + $0xdb] sm:$0xff]
    %v1852 = vld [vmem:[#allocation2 + $0xe3] sm:$0xff]
    %v1853 = vld [vmem:[#allocation2 + $0xeb] sm:$0xff]
    %v1854 = vld [vmem:[#allocation2 + $0xf3] sm:$0xff]
    %v1855 = vld [vmem:[#allocation2 + $0xfb] sm:$0xff]
    %v1856 = vld [vmem:[#allocation2 + $0x103] sm:$0xff]
    %v1857 = vld [vmem:[#allocation2 + $0x10b] sm:$0xff]
    %v1858 = vld [vmem:[#allocation2 + $0x113] sm:$0xff]
    %v1859 = vld [vmem:[#allocation2 + $0x123] sm:$0xff]
    %v1860 = vld [vmem:[#allocation2 + $0x12b] sm:$0xff]
    %v1861 = vld [vmem:[#allocation2 + $0x133] sm:$0xff]
    %v1862 = vld [vmem:[#allocation2 + $0x13b] sm:$0xff]
    %v1863 = vld [vmem:[#allocation2 + $0x143] sm:$0xff]
    %v1864 = vld [vmem:[#allocation2 + $0x14b] sm:$0xff]
    %v1865 = vld [vmem:[#allocation2 + $0x153] sm:$0xff]
    %v1866 = vld [vmem:[#allocation2 + $0x15b] sm:$0xff]
    %v1867 = vld [vmem:[#allocation2 + $0x16b] sm:$0xff]
    %v1868 = vld [vmem:[#allocation2 + $0x173] sm:$0xff]
    %v1869 = vld [vmem:[#allocation2 + $0x17b] sm:$0xff]
    %v1870 = vld [vmem:[#allocation2 + $0x183] sm:$0xff]
    %v1871 = vld [vmem:[#allocation2 + $0x18b] sm:$0xff]
    %v1872 = vld [vmem:[#allocation2 + $0x193] sm:$0xff]
    %v1873 = vld [vmem:[#allocation2 + $0x19b] sm:$0xff]
    %v1874 = vld [vmem:[#allocation2 + $0x1a3] sm:$0xff]
    %v1875 = vld [vmem:[#allocation2 + $0x1b3] sm:$0xff]
    %v1876 = vld [vmem:[#allocation2 + $0x1bb] sm:$0xff]
    %v1877 = vld [vmem:[#allocation2 + $0x1c3] sm:$0xff]
    %v1878 = vld [vmem:[#allocation2 + $0x1cb] sm:$0xff]
    %v1879 = vld [vmem:[#allocation2 + $0x1d3] sm:$0xff]
    %v1880 = vld [vmem:[#allocation2 + $0x1db] sm:$0xff]
    %v1881 = vld [vmem:[#allocation2 + $0x1e3] sm:$0xff]
    %v1882 = vld [vmem:[#allocation2 + $0x1eb] sm:$0xff]
    %v1883 = vld [vmem:[#allocation2 + $0x1fb] sm:$0xff]
    %v1884 = vld [vmem:[#allocation2 + $0x203] sm:$0xff]
    %v1885 = vld [vmem:[#allocation2 + $0x20b] sm:$0xff]
    %v1886 = vld [vmem:[#allocation2 + $0x213] sm:$0xff]
    %v1887 = vld [vmem:[#allocation2 + $0x21b] sm:$0xff]
    %v1888 = vld [vmem:[#allocation2 + $0x223] sm:$0xff]
    %v1889 = vld [vmem:[#allocation2 + $0x22b] sm:$0xff]
    %v1890 = vld [vmem:[#allocation2 + $0x233] sm:$0xff]
    %1892 = vset.pattern.permute.xlu0 0
    %1893 = vperm.xlu0 %1892, %v1827
    %v1894 = vpop.permute.xlu0 %1893
    %1897 = vset.pattern.permute.xlu0 0
    %1898 = vperm.xlu0 %1897, %v1828
    %v1899 = vpop.permute.xlu0 %1898
    %1902 = vset.pattern.permute.xlu0 0
    %1903 = vperm.xlu0 %1902, %v1829
    %v1904 = vpop.permute.xlu0 %1903
    %1907 = vset.pattern.permute.xlu0 0
    %1908 = vperm.xlu0 %1907, %v1830
    %v1909 = vpop.permute.xlu0 %1908
    %1912 = vset.pattern.permute.xlu0 0
    %1913 = vperm.xlu0 %1912, %v1831
    %v1914 = vpop.permute.xlu0 %1913
    %1917 = vset.pattern.permute.xlu0 0
    %1918 = vperm.xlu0 %1917, %v1832
    %v1919 = vpop.permute.xlu0 %1918
    %1922 = vset.pattern.permute.xlu0 0
    %1923 = vperm.xlu0 %1922, %v1833
    %v1924 = vpop.permute.xlu0 %1923
    %1927 = vset.pattern.permute.xlu0 0
    %1928 = vperm.xlu0 %1927, %v1834
    %v1929 = vpop.permute.xlu0 %1928
    %1932 = vset.pattern.permute.xlu0 0
    %1933 = vperm.xlu0 %1932, %v1835
    %v1934 = vpop.permute.xlu0 %1933
    %1937 = vset.pattern.permute.xlu0 0
    %1938 = vperm.xlu0 %1937, %v1836
    %v1939 = vpop.permute.xlu0 %1938
    %1942 = vset.pattern.permute.xlu0 0
    %1943 = vperm.xlu0 %1942, %v1837
    %v1944 = vpop.permute.xlu0 %1943
    %1947 = vset.pattern.permute.xlu0 0
    %1948 = vperm.xlu0 %1947, %v1838
    %v1949 = vpop.permute.xlu0 %1948
    %1952 = vset.pattern.permute.xlu0 0
    %1953 = vperm.xlu0 %1952, %v1839
    %v1954 = vpop.permute.xlu0 %1953
    %1957 = vset.pattern.permute.xlu0 0
    %1958 = vperm.xlu0 %1957, %v1840
    %v1959 = vpop.permute.xlu0 %1958
    %1962 = vset.pattern.permute.xlu0 0
    %1963 = vperm.xlu0 %1962, %v1841
    %v1964 = vpop.permute.xlu0 %1963
    %1967 = vset.pattern.permute.xlu0 0
    %1968 = vperm.xlu0 %1967, %v1842
    %v1969 = vpop.permute.xlu0 %1968
    %1972 = vset.pattern.permute.xlu0 0
    %1973 = vperm.xlu0 %1972, %v1843
    %v1974 = vpop.permute.xlu0 %1973
    %1977 = vset.pattern.permute.xlu0 0
    %1978 = vperm.xlu0 %1977, %v1844
    %v1979 = vpop.permute.xlu0 %1978
    %1982 = vset.pattern.permute.xlu0 0
    %1983 = vperm.xlu0 %1982, %v1845
    %v1984 = vpop.permute.xlu0 %1983
    %1987 = vset.pattern.permute.xlu0 0
    %1988 = vperm.xlu0 %1987, %v1846
    %v1989 = vpop.permute.xlu0 %1988
    %1992 = vset.pattern.permute.xlu0 0
    %1993 = vperm.xlu0 %1992, %v1847
    %v1994 = vpop.permute.xlu0 %1993
    %1997 = vset.pattern.permute.xlu0 0
    %1998 = vperm.xlu0 %1997, %v1848
    %v1999 = vpop.permute.xlu0 %1998
    %2002 = vset.pattern.permute.xlu0 0
    %2003 = vperm.xlu0 %2002, %v1849
    %v2004 = vpop.permute.xlu0 %2003
    %2007 = vset.pattern.permute.xlu0 0
    %2008 = vperm.xlu0 %2007, %v1850
    %v2009 = vpop.permute.xlu0 %2008
    %2012 = vset.pattern.permute.xlu0 0
    %2013 = vperm.xlu0 %2012, %v1851
    %v2014 = vpop.permute.xlu0 %2013
    %2017 = vset.pattern.permute.xlu0 0
    %2018 = vperm.xlu0 %2017, %v1852
    %v2019 = vpop.permute.xlu0 %2018
    %2022 = vset.pattern.permute.xlu0 0
    %2023 = vperm.xlu0 %2022, %v1853
    %v2024 = vpop.permute.xlu0 %2023
    %2027 = vset.pattern.permute.xlu0 0
    %2028 = vperm.xlu0 %2027, %v1854
    %v2029 = vpop.permute.xlu0 %2028
    %2032 = vset.pattern.permute.xlu0 0
    %2033 = vperm.xlu0 %2032, %v1855
    %v2034 = vpop.permute.xlu0 %2033
    %2037 = vset.pattern.permute.xlu0 0
    %2038 = vperm.xlu0 %2037, %v1856
    %v2039 = vpop.permute.xlu0 %2038
    %2042 = vset.pattern.permute.xlu0 0
    %2043 = vperm.xlu0 %2042, %v1857
    %v2044 = vpop.permute.xlu0 %2043
    %2047 = vset.pattern.permute.xlu0 0
    %2048 = vperm.xlu0 %2047, %v1858
    %v2049 = vpop.permute.xlu0 %2048
    %2052 = vset.pattern.permute.xlu0 0
    %2053 = vperm.xlu0 %2052, %v1859
    %v2054 = vpop.permute.xlu0 %2053
    %2057 = vset.pattern.permute.xlu0 0
    %2058 = vperm.xlu0 %2057, %v1860
    %v2059 = vpop.permute.xlu0 %2058
    %2062 = vset.pattern.permute.xlu0 0
    %2063 = vperm.xlu0 %2062, %v1861
    %v2064 = vpop.permute.xlu0 %2063
    %2067 = vset.pattern.permute.xlu0 0
    %2068 = vperm.xlu0 %2067, %v1862
    %v2069 = vpop.permute.xlu0 %2068
    %2072 = vset.pattern.permute.xlu0 0
    %2073 = vperm.xlu0 %2072, %v1863
    %v2074 = vpop.permute.xlu0 %2073
    %2077 = vset.pattern.permute.xlu0 0
    %2078 = vperm.xlu0 %2077, %v1864
    %v2079 = vpop.permute.xlu0 %2078
    %2082 = vset.pattern.permute.xlu0 0
    %2083 = vperm.xlu0 %2082, %v1865
    %v2084 = vpop.permute.xlu0 %2083
    %2087 = vset.pattern.permute.xlu0 0
    %2088 = vperm.xlu0 %2087, %v1866
    %v2089 = vpop.permute.xlu0 %2088
    %2092 = vset.pattern.permute.xlu0 0
    %2093 = vperm.xlu0 %2092, %v1867
    %v2094 = vpop.permute.xlu0 %2093
    %2097 = vset.pattern.permute.xlu0 0
    %2098 = vperm.xlu0 %2097, %v1868
    %v2099 = vpop.permute.xlu0 %2098
    %2102 = vset.pattern.permute.xlu0 0
    %2103 = vperm.xlu0 %2102, %v1869
    %v2104 = vpop.permute.xlu0 %2103
    %2107 = vset.pattern.permute.xlu0 0
    %2108 = vperm.xlu0 %2107, %v1870
    %v2109 = vpop.permute.xlu0 %2108
    %2112 = vset.pattern.permute.xlu0 0
    %2113 = vperm.xlu0 %2112, %v1871
    %v2114 = vpop.permute.xlu0 %2113
    %2117 = vset.pattern.permute.xlu0 0
    %2118 = vperm.xlu0 %2117, %v1872
    %v2119 = vpop.permute.xlu0 %2118
    %2122 = vset.pattern.permute.xlu0 0
    %2123 = vperm.xlu0 %2122, %v1873
    %v2124 = vpop.permute.xlu0 %2123
    %2127 = vset.pattern.permute.xlu0 0
    %2128 = vperm.xlu0 %2127, %v1874
    %v2129 = vpop.permute.xlu0 %2128
    %2132 = vset.pattern.permute.xlu0 0
    %2133 = vperm.xlu0 %2132, %v1875
    %v2134 = vpop.permute.xlu0 %2133
    %2137 = vset.pattern.permute.xlu0 0
    %2138 = vperm.xlu0 %2137, %v1876
    %v2139 = vpop.permute.xlu0 %2138
    %2142 = vset.pattern.permute.xlu0 0
    %2143 = vperm.xlu0 %2142, %v1877
    %v2144 = vpop.permute.xlu0 %2143
    %2147 = vset.pattern.permute.xlu0 0
    %2148 = vperm.xlu0 %2147, %v1878
    %v2149 = vpop.permute.xlu0 %2148
    %2152 = vset.pattern.permute.xlu0 0
    %2153 = vperm.xlu0 %2152, %v1879
    %v2154 = vpop.permute.xlu0 %2153
    %2157 = vset.pattern.permute.xlu0 0
    %2158 = vperm.xlu0 %2157, %v1880
    %v2159 = vpop.permute.xlu0 %2158
    %2162 = vset.pattern.permute.xlu0 0
    %2163 = vperm.xlu0 %2162, %v1881
    %v2164 = vpop.permute.xlu0 %2163
    %2167 = vset.pattern.permute.xlu0 0
    %2168 = vperm.xlu0 %2167, %v1882
    %v2169 = vpop.permute.xlu0 %2168
    %2172 = vset.pattern.permute.xlu0 0
    %2173 = vperm.xlu0 %2172, %v1883
    %v2174 = vpop.permute.xlu0 %2173
    %2177 = vset.pattern.permute.xlu0 0
    %2178 = vperm.xlu0 %2177, %v1884
    %v2179 = vpop.permute.xlu0 %2178
    %2182 = vset.pattern.permute.xlu0 0
    %2183 = vperm.xlu0 %2182, %v1885
    %v2184 = vpop.permute.xlu0 %2183
    %2187 = vset.pattern.permute.xlu0 0
    %2188 = vperm.xlu0 %2187, %v1886
    %v2189 = vpop.permute.xlu0 %2188
    %2192 = vset.pattern.permute.xlu0 0
    %2193 = vperm.xlu0 %2192, %v1887
    %v2194 = vpop.permute.xlu0 %2193
    %2197 = vset.pattern.permute.xlu0 0
    %2198 = vperm.xlu0 %2197, %v1888
    %v2199 = vpop.permute.xlu0 %2198
    %2202 = vset.pattern.permute.xlu0 0
    %2203 = vperm.xlu0 %2202, %v1889
    %v2204 = vpop.permute.xlu0 %2203
    %2207 = vset.pattern.permute.xlu0 0
    %2208 = vperm.xlu0 %2207, %v1890
    %v2209 = vpop.permute.xlu0 %2208
    %v2211 = vlaneseq
    %v2212 = vshrl.u32 %v2211, 7
    %v2213 = vsub.s32 3, %v2212
    %v2214 = vrot.slane %v278, %v2213
    %v2215 = vmul.f32 %v1894, %v2214
    %v2216 = vmul.f32 %v1899, %v2214
    %v2217 = vmul.f32 %v1904, %v2214
    %v2218 = vmul.f32 %v1909, %v2214
    %v2219 = vmul.f32 %v1914, %v2214
    %v2220 = vmul.f32 %v1919, %v2214
    %v2221 = vmul.f32 %v1924, %v2214
    %v2222 = vmul.f32 %v1929, %v2214
    %v2223 = vmul.f32 %v1934, %v2214
    %v2224 = vmul.f32 %v1939, %v2214
    %v2225 = vmul.f32 %v1944, %v2214
    %v2226 = vmul.f32 %v1949, %v2214
    %v2227 = vmul.f32 %v1954, %v2214
    %v2228 = vmul.f32 %v1959, %v2214
    %v2229 = vmul.f32 %v1964, %v2214
    %v2230 = vmul.f32 %v1969, %v2214
    %v2231 = vmul.f32 %v1974, %v2214
    %v2232 = vmul.f32 %v1979, %v2214
    %v2233 = vmul.f32 %v1984, %v2214
    %v2234 = vmul.f32 %v1989, %v2214
    %v2235 = vmul.f32 %v1994, %v2214
    %v2236 = vmul.f32 %v1999, %v2214
    %v2237 = vmul.f32 %v2004, %v2214
    %v2238 = vmul.f32 %v2009, %v2214
    %v2239 = vmul.f32 %v2014, %v2214
    %v2240 = vmul.f32 %v2019, %v2214
    %v2241 = vmul.f32 %v2024, %v2214
    %v2242 = vmul.f32 %v2029, %v2214
    %v2243 = vmul.f32 %v2034, %v2214
    %v2244 = vmul.f32 %v2039, %v2214
    %v2245 = vmul.f32 %v2044, %v2214
    %v2246 = vmul.f32 %v2049, %v2214
    %v2247 = vmul.f32 %v2054, %v2214
    %v2248 = vmul.f32 %v2059, %v2214
    %v2249 = vmul.f32 %v2064, %v2214
    %v2250 = vmul.f32 %v2069, %v2214
    %v2251 = vmul.f32 %v2074, %v2214
    %v2252 = vmul.f32 %v2079, %v2214
    %v2253 = vmul.f32 %v2084, %v2214
    %v2254 = vmul.f32 %v2089, %v2214
    %v2255 = vmul.f32 %v2094, %v2214
    %v2256 = vmul.f32 %v2099, %v2214
    %v2257 = vmul.f32 %v2104, %v2214
    %v2258 = vmul.f32 %v2109, %v2214
    %v2259 = vmul.f32 %v2114, %v2214
    %v2260 = vmul.f32 %v2119, %v2214
    %v2261 = vmul.f32 %v2124, %v2214
    %v2262 = vmul.f32 %v2129, %v2214
    %v2263 = vmul.f32 %v2134, %v2214
    %v2264 = vmul.f32 %v2139, %v2214
    %v2265 = vmul.f32 %v2144, %v2214
    %v2266 = vmul.f32 %v2149, %v2214
    %v2267 = vmul.f32 %v2154, %v2214
    %v2268 = vmul.f32 %v2159, %v2214
    %v2269 = vmul.f32 %v2164, %v2214
    %v2270 = vmul.f32 %v2169, %v2214
    %v2271 = vmul.f32 %v2174, %v2214
    %v2272 = vmul.f32 %v2179, %v2214
    %v2273 = vmul.f32 %v2184, %v2214
    %v2274 = vmul.f32 %v2189, %v2214
    %v2275 = vmul.f32 %v2194, %v2214
    %v2276 = vmul.f32 %v2199, %v2214
    %v2277 = vmul.f32 %v2204, %v2214
    %v2278 = vmul.f32 %v2209, %v2214
    %v2279 = vadd.f32 %v1763, %v2215
    %v2280 = vadd.f32 %v1764, %v2216
    %v2281 = vadd.f32 %v1765, %v2217
    %v2282 = vadd.f32 %v1766, %v2218
    %v2283 = vadd.f32 %v1767, %v2219
    %v2284 = vadd.f32 %v1768, %v2220
    %v2285 = vadd.f32 %v1769, %v2221
    %v2286 = vadd.f32 %v1770, %v2222
    %v2287 = vadd.f32 %v1771, %v2223
    %v2288 = vadd.f32 %v1772, %v2224
    %v2289 = vadd.f32 %v1773, %v2225
    %v2290 = vadd.f32 %v1774, %v2226
    %v2291 = vadd.f32 %v1775, %v2227
    %v2292 = vadd.f32 %v1776, %v2228
    %v2293 = vadd.f32 %v1777, %v2229
    %v2294 = vadd.f32 %v1778, %v2230
    %v2295 = vadd.f32 %v1779, %v2231
    %v2296 = vadd.f32 %v1780, %v2232
    %v2297 = vadd.f32 %v1781, %v2233
    %v2298 = vadd.f32 %v1782, %v2234
    %v2299 = vadd.f32 %v1783, %v2235
    %v2300 = vadd.f32 %v1784, %v2236
    %v2301 = vadd.f32 %v1785, %v2237
    %v2302 = vadd.f32 %v1786, %v2238
    %v2303 = vadd.f32 %v1787, %v2239
    %v2304 = vadd.f32 %v1788, %v2240
    %v2305 = vadd.f32 %v1789, %v2241
    %v2306 = vadd.f32 %v1790, %v2242
    %v2307 = vadd.f32 %v1791, %v2243
    %v2308 = vadd.f32 %v1792, %v2244
    %v2309 = vadd.f32 %v1793, %v2245
    %v2310 = vadd.f32 %v1794, %v2246
    %v2311 = vadd.f32 %v1795, %v2247
    %v2312 = vadd.f32 %v1796, %v2248
    %v2313 = vadd.f32 %v1797, %v2249
    %v2314 = vadd.f32 %v1798, %v2250
    %v2315 = vadd.f32 %v1799, %v2251
    %v2316 = vadd.f32 %v1800, %v2252
    %v2317 = vadd.f32 %v1801, %v2253
    %v2318 = vadd.f32 %v1802, %v2254
    %v2319 = vadd.f32 %v1803, %v2255
    %v2320 = vadd.f32 %v1804, %v2256
    %v2321 = vadd.f32 %v1805, %v2257
    %v2322 = vadd.f32 %v1806, %v2258
    %v2323 = vadd.f32 %v1807, %v2259
    %v2324 = vadd.f32 %v1808, %v2260
    %v2325 = vadd.f32 %v1809, %v2261
    %v2326 = vadd.f32 %v1810, %v2262
    %v2327 = vadd.f32 %v1811, %v2263
    %v2328 = vadd.f32 %v1812, %v2264
    %v2329 = vadd.f32 %v1813, %v2265
    %v2330 = vadd.f32 %v1814, %v2266
    %v2331 = vadd.f32 %v1815, %v2267
    %v2332 = vadd.f32 %v1816, %v2268
    %v2333 = vadd.f32 %v1817, %v2269
    %v2334 = vadd.f32 %v1818, %v2270
    %v2335 = vadd.f32 %v1819, %v2271
    %v2336 = vadd.f32 %v1820, %v2272
    %v2337 = vadd.f32 %v1821, %v2273
    %v2338 = vadd.f32 %v1822, %v2274
    %v2339 = vadd.f32 %v1823, %v2275
    %v2340 = vadd.f32 %v1824, %v2276
    %v2341 = vadd.f32 %v1825, %v2277
    %v2342 = vadd.f32 %v1826, %v2278
    %v2343 = vld [vmem:[#allocation2 + $0x4] sm:$0xff]
    %v2344 = vld [vmem:[#allocation2 + $0xc] sm:$0xff]
    %v2345 = vld [vmem:[#allocation2 + $0x14] sm:$0xff]
    %v2346 = vld [vmem:[#allocation2 + $0x1c] sm:$0xff]
    %v2347 = vld [vmem:[#allocation2 + $0x24] sm:$0xff]
    %v2348 = vld [vmem:[#allocation2 + $0x2c] sm:$0xff]
    %v2349 = vld [vmem:[#allocation2 + $0x34] sm:$0xff]
    %v2350 = vld [vmem:[#allocation2 + $0x3c] sm:$0xff]
    %v2351 = vld [vmem:[#allocation2 + $0x4c] sm:$0xff]
    %v2352 = vld [vmem:[#allocation2 + $0x54] sm:$0xff]
    %v2353 = vld [vmem:[#allocation2 + $0x5c] sm:$0xff]
    %v2354 = vld [vmem:[#allocation2 + $0x64] sm:$0xff]
    %v2355 = vld [vmem:[#allocation2 + $0x6c] sm:$0xff]
    %v2356 = vld [vmem:[#allocation2 + $0x74] sm:$0xff]
    %v2357 = vld [vmem:[#allocation2 + $0x7c] sm:$0xff]
    %v2358 = vld [vmem:[#allocation2 + $0x84] sm:$0xff]
    %v2359 = vld [vmem:[#allocation2 + $0x94] sm:$0xff]
    %v2360 = vld [vmem:[#allocation2 + $0x9c] sm:$0xff]
    %v2361 = vld [vmem:[#allocation2 + $0xa4] sm:$0xff]
    %v2362 = vld [vmem:[#allocation2 + $0xac] sm:$0xff]
    %v2363 = vld [vmem:[#allocation2 + $0xb4] sm:$0xff]
    %v2364 = vld [vmem:[#allocation2 + $0xbc] sm:$0xff]
    %v2365 = vld [vmem:[#allocation2 + $0xc4] sm:$0xff]
    %v2366 = vld [vmem:[#allocation2 + $0xcc] sm:$0xff]
    %v2367 = vld [vmem:[#allocation2 + $0xdc] sm:$0xff]
    %v2368 = vld [vmem:[#allocation2 + $0xe4] sm:$0xff]
    %v2369 = vld [vmem:[#allocation2 + $0xec] sm:$0xff]
    %v2370 = vld [vmem:[#allocation2 + $0xf4] sm:$0xff]
    %v2371 = vld [vmem:[#allocation2 + $0xfc] sm:$0xff]
    %v2372 = vld [vmem:[#allocation2 + $0x104] sm:$0xff]
    %v2373 = vld [vmem:[#allocation2 + $0x10c] sm:$0xff]
    %v2374 = vld [vmem:[#allocation2 + $0x114] sm:$0xff]
    %v2375 = vld [vmem:[#allocation2 + $0x124] sm:$0xff]
    %v2376 = vld [vmem:[#allocation2 + $0x12c] sm:$0xff]
    %v2377 = vld [vmem:[#allocation2 + $0x134] sm:$0xff]
    %v2378 = vld [vmem:[#allocation2 + $0x13c] sm:$0xff]
    %v2379 = vld [vmem:[#allocation2 + $0x144] sm:$0xff]
    %v2380 = vld [vmem:[#allocation2 + $0x14c] sm:$0xff]
    %v2381 = vld [vmem:[#allocation2 + $0x154] sm:$0xff]
    %v2382 = vld [vmem:[#allocation2 + $0x15c] sm:$0xff]
    %v2383 = vld [vmem:[#allocation2 + $0x16c] sm:$0xff]
    %v2384 = vld [vmem:[#allocation2 + $0x174] sm:$0xff]
    %v2385 = vld [vmem:[#allocation2 + $0x17c] sm:$0xff]
    %v2386 = vld [vmem:[#allocation2 + $0x184] sm:$0xff]
    %v2387 = vld [vmem:[#allocation2 + $0x18c] sm:$0xff]
    %v2388 = vld [vmem:[#allocation2 + $0x194] sm:$0xff]
    %v2389 = vld [vmem:[#allocation2 + $0x19c] sm:$0xff]
    %v2390 = vld [vmem:[#allocation2 + $0x1a4] sm:$0xff]
    %v2391 = vld [vmem:[#allocation2 + $0x1b4] sm:$0xff]
    %v2392 = vld [vmem:[#allocation2 + $0x1bc] sm:$0xff]
    %v2393 = vld [vmem:[#allocation2 + $0x1c4] sm:$0xff]
    %v2394 = vld [vmem:[#allocation2 + $0x1cc] sm:$0xff]
    %v2395 = vld [vmem:[#allocation2 + $0x1d4] sm:$0xff]
    %v2396 = vld [vmem:[#allocation2 + $0x1dc] sm:$0xff]
    %v2397 = vld [vmem:[#allocation2 + $0x1e4] sm:$0xff]
    %v2398 = vld [vmem:[#allocation2 + $0x1ec] sm:$0xff]
    %v2399 = vld [vmem:[#allocation2 + $0x1fc] sm:$0xff]
    %v2400 = vld [vmem:[#allocation2 + $0x204] sm:$0xff]
    %v2401 = vld [vmem:[#allocation2 + $0x20c] sm:$0xff]
    %v2402 = vld [vmem:[#allocation2 + $0x214] sm:$0xff]
    %v2403 = vld [vmem:[#allocation2 + $0x21c] sm:$0xff]
    %v2404 = vld [vmem:[#allocation2 + $0x224] sm:$0xff]
    %v2405 = vld [vmem:[#allocation2 + $0x22c] sm:$0xff]
    %v2406 = vld [vmem:[#allocation2 + $0x234] sm:$0xff]
    %2408 = vset.pattern.permute.xlu0 0
    %2409 = vperm.xlu0 %2408, %v2343
    %v2410 = vpop.permute.xlu0 %2409
    %2413 = vset.pattern.permute.xlu0 0
    %2414 = vperm.xlu0 %2413, %v2344
    %v2415 = vpop.permute.xlu0 %2414
    %2418 = vset.pattern.permute.xlu0 0
    %2419 = vperm.xlu0 %2418, %v2345
    %v2420 = vpop.permute.xlu0 %2419
    %2423 = vset.pattern.permute.xlu0 0
    %2424 = vperm.xlu0 %2423, %v2346
    %v2425 = vpop.permute.xlu0 %2424
    %2428 = vset.pattern.permute.xlu0 0
    %2429 = vperm.xlu0 %2428, %v2347
    %v2430 = vpop.permute.xlu0 %2429
    %2433 = vset.pattern.permute.xlu0 0
    %2434 = vperm.xlu0 %2433, %v2348
    %v2435 = vpop.permute.xlu0 %2434
    %2438 = vset.pattern.permute.xlu0 0
    %2439 = vperm.xlu0 %2438, %v2349
    %v2440 = vpop.permute.xlu0 %2439
    %2443 = vset.pattern.permute.xlu0 0
    %2444 = vperm.xlu0 %2443, %v2350
    %v2445 = vpop.permute.xlu0 %2444
    %2448 = vset.pattern.permute.xlu0 0
    %2449 = vperm.xlu0 %2448, %v2351
    %v2450 = vpop.permute.xlu0 %2449
    %2453 = vset.pattern.permute.xlu0 0
    %2454 = vperm.xlu0 %2453, %v2352
    %v2455 = vpop.permute.xlu0 %2454
    %2458 = vset.pattern.permute.xlu0 0
    %2459 = vperm.xlu0 %2458, %v2353
    %v2460 = vpop.permute.xlu0 %2459
    %2463 = vset.pattern.permute.xlu0 0
    %2464 = vperm.xlu0 %2463, %v2354
    %v2465 = vpop.permute.xlu0 %2464
    %2468 = vset.pattern.permute.xlu0 0
    %2469 = vperm.xlu0 %2468, %v2355
    %v2470 = vpop.permute.xlu0 %2469
    %2473 = vset.pattern.permute.xlu0 0
    %2474 = vperm.xlu0 %2473, %v2356
    %v2475 = vpop.permute.xlu0 %2474
    %2478 = vset.pattern.permute.xlu0 0
    %2479 = vperm.xlu0 %2478, %v2357
    %v2480 = vpop.permute.xlu0 %2479
    %2483 = vset.pattern.permute.xlu0 0
    %2484 = vperm.xlu0 %2483, %v2358
    %v2485 = vpop.permute.xlu0 %2484
    %2488 = vset.pattern.permute.xlu0 0
    %2489 = vperm.xlu0 %2488, %v2359
    %v2490 = vpop.permute.xlu0 %2489
    %2493 = vset.pattern.permute.xlu0 0
    %2494 = vperm.xlu0 %2493, %v2360
    %v2495 = vpop.permute.xlu0 %2494
    %2498 = vset.pattern.permute.xlu0 0
    %2499 = vperm.xlu0 %2498, %v2361
    %v2500 = vpop.permute.xlu0 %2499
    %2503 = vset.pattern.permute.xlu0 0
    %2504 = vperm.xlu0 %2503, %v2362
    %v2505 = vpop.permute.xlu0 %2504
    %2508 = vset.pattern.permute.xlu0 0
    %2509 = vperm.xlu0 %2508, %v2363
    %v2510 = vpop.permute.xlu0 %2509
    %2513 = vset.pattern.permute.xlu0 0
    %2514 = vperm.xlu0 %2513, %v2364
    %v2515 = vpop.permute.xlu0 %2514
    %2518 = vset.pattern.permute.xlu0 0
    %2519 = vperm.xlu0 %2518, %v2365
    %v2520 = vpop.permute.xlu0 %2519
    %2523 = vset.pattern.permute.xlu0 0
    %2524 = vperm.xlu0 %2523, %v2366
    %v2525 = vpop.permute.xlu0 %2524
    %2528 = vset.pattern.permute.xlu0 0
    %2529 = vperm.xlu0 %2528, %v2367
    %v2530 = vpop.permute.xlu0 %2529
    %2533 = vset.pattern.permute.xlu0 0
    %2534 = vperm.xlu0 %2533, %v2368
    %v2535 = vpop.permute.xlu0 %2534
    %2538 = vset.pattern.permute.xlu0 0
    %2539 = vperm.xlu0 %2538, %v2369
    %v2540 = vpop.permute.xlu0 %2539
    %2543 = vset.pattern.permute.xlu0 0
    %2544 = vperm.xlu0 %2543, %v2370
    %v2545 = vpop.permute.xlu0 %2544
    %2548 = vset.pattern.permute.xlu0 0
    %2549 = vperm.xlu0 %2548, %v2371
    %v2550 = vpop.permute.xlu0 %2549
    %2553 = vset.pattern.permute.xlu0 0
    %2554 = vperm.xlu0 %2553, %v2372
    %v2555 = vpop.permute.xlu0 %2554
    %2558 = vset.pattern.permute.xlu0 0
    %2559 = vperm.xlu0 %2558, %v2373
    %v2560 = vpop.permute.xlu0 %2559
    %2563 = vset.pattern.permute.xlu0 0
    %2564 = vperm.xlu0 %2563, %v2374
    %v2565 = vpop.permute.xlu0 %2564
    %2568 = vset.pattern.permute.xlu0 0
    %2569 = vperm.xlu0 %2568, %v2375
    %v2570 = vpop.permute.xlu0 %2569
    %2573 = vset.pattern.permute.xlu0 0
    %2574 = vperm.xlu0 %2573, %v2376
    %v2575 = vpop.permute.xlu0 %2574
    %2578 = vset.pattern.permute.xlu0 0
    %2579 = vperm.xlu0 %2578, %v2377
    %v2580 = vpop.permute.xlu0 %2579
    %2583 = vset.pattern.permute.xlu0 0
    %2584 = vperm.xlu0 %2583, %v2378
    %v2585 = vpop.permute.xlu0 %2584
    %2588 = vset.pattern.permute.xlu0 0
    %2589 = vperm.xlu0 %2588, %v2379
    %v2590 = vpop.permute.xlu0 %2589
    %2593 = vset.pattern.permute.xlu0 0
    %2594 = vperm.xlu0 %2593, %v2380
    %v2595 = vpop.permute.xlu0 %2594
    %2598 = vset.pattern.permute.xlu0 0
    %2599 = vperm.xlu0 %2598, %v2381
    %v2600 = vpop.permute.xlu0 %2599
    %2603 = vset.pattern.permute.xlu0 0
    %2604 = vperm.xlu0 %2603, %v2382
    %v2605 = vpop.permute.xlu0 %2604
    %2608 = vset.pattern.permute.xlu0 0
    %2609 = vperm.xlu0 %2608, %v2383
    %v2610 = vpop.permute.xlu0 %2609
    %2613 = vset.pattern.permute.xlu0 0
    %2614 = vperm.xlu0 %2613, %v2384
    %v2615 = vpop.permute.xlu0 %2614
    %2618 = vset.pattern.permute.xlu0 0
    %2619 = vperm.xlu0 %2618, %v2385
    %v2620 = vpop.permute.xlu0 %2619
    %2623 = vset.pattern.permute.xlu0 0
    %2624 = vperm.xlu0 %2623, %v2386
    %v2625 = vpop.permute.xlu0 %2624
    %2628 = vset.pattern.permute.xlu0 0
    %2629 = vperm.xlu0 %2628, %v2387
    %v2630 = vpop.permute.xlu0 %2629
    %2633 = vset.pattern.permute.xlu0 0
    %2634 = vperm.xlu0 %2633, %v2388
    %v2635 = vpop.permute.xlu0 %2634
    %2638 = vset.pattern.permute.xlu0 0
    %2639 = vperm.xlu0 %2638, %v2389
    %v2640 = vpop.permute.xlu0 %2639
    %2643 = vset.pattern.permute.xlu0 0
    %2644 = vperm.xlu0 %2643, %v2390
    %v2645 = vpop.permute.xlu0 %2644
    %2648 = vset.pattern.permute.xlu0 0
    %2649 = vperm.xlu0 %2648, %v2391
    %v2650 = vpop.permute.xlu0 %2649
    %2653 = vset.pattern.permute.xlu0 0
    %2654 = vperm.xlu0 %2653, %v2392
    %v2655 = vpop.permute.xlu0 %2654
    %2658 = vset.pattern.permute.xlu0 0
    %2659 = vperm.xlu0 %2658, %v2393
    %v2660 = vpop.permute.xlu0 %2659
    %2663 = vset.pattern.permute.xlu0 0
    %2664 = vperm.xlu0 %2663, %v2394
    %v2665 = vpop.permute.xlu0 %2664
    %2668 = vset.pattern.permute.xlu0 0
    %2669 = vperm.xlu0 %2668, %v2395
    %v2670 = vpop.permute.xlu0 %2669
    %2673 = vset.pattern.permute.xlu0 0
    %2674 = vperm.xlu0 %2673, %v2396
    %v2675 = vpop.permute.xlu0 %2674
    %2678 = vset.pattern.permute.xlu0 0
    %2679 = vperm.xlu0 %2678, %v2397
    %v2680 = vpop.permute.xlu0 %2679
    %2683 = vset.pattern.permute.xlu0 0
    %2684 = vperm.xlu0 %2683, %v2398
    %v2685 = vpop.permute.xlu0 %2684
    %2688 = vset.pattern.permute.xlu0 0
    %2689 = vperm.xlu0 %2688, %v2399
    %v2690 = vpop.permute.xlu0 %2689
    %2693 = vset.pattern.permute.xlu0 0
    %2694 = vperm.xlu0 %2693, %v2400
    %v2695 = vpop.permute.xlu0 %2694
    %2698 = vset.pattern.permute.xlu0 0
    %2699 = vperm.xlu0 %2698, %v2401
    %v2700 = vpop.permute.xlu0 %2699
    %2703 = vset.pattern.permute.xlu0 0
    %2704 = vperm.xlu0 %2703, %v2402
    %v2705 = vpop.permute.xlu0 %2704
    %2708 = vset.pattern.permute.xlu0 0
    %2709 = vperm.xlu0 %2708, %v2403
    %v2710 = vpop.permute.xlu0 %2709
    %2713 = vset.pattern.permute.xlu0 0
    %2714 = vperm.xlu0 %2713, %v2404
    %v2715 = vpop.permute.xlu0 %2714
    %2718 = vset.pattern.permute.xlu0 0
    %2719 = vperm.xlu0 %2718, %v2405
    %v2720 = vpop.permute.xlu0 %2719
    %2723 = vset.pattern.permute.xlu0 0
    %2724 = vperm.xlu0 %2723, %v2406
    %v2725 = vpop.permute.xlu0 %2724
    %v2727 = vlaneseq
    %v2728 = vshrl.u32 %v2727, 7
    %v2729 = vsub.s32 4, %v2728
    %v2730 = vrot.slane %v278, %v2729
    %v2731 = vmul.f32 %v2410, %v2730
    %v2732 = vmul.f32 %v2415, %v2730
    %v2733 = vmul.f32 %v2420, %v2730
    %v2734 = vmul.f32 %v2425, %v2730
    %v2735 = vmul.f32 %v2430, %v2730
    %v2736 = vmul.f32 %v2435, %v2730
    %v2737 = vmul.f32 %v2440, %v2730
    %v2738 = vmul.f32 %v2445, %v2730
    %v2739 = vmul.f32 %v2450, %v2730
    %v2740 = vmul.f32 %v2455, %v2730
    %v2741 = vmul.f32 %v2460, %v2730
    %v2742 = vmul.f32 %v2465, %v2730
    %v2743 = vmul.f32 %v2470, %v2730
    %v2744 = vmul.f32 %v2475, %v2730
    %v2745 = vmul.f32 %v2480, %v2730
    %v2746 = vmul.f32 %v2485, %v2730
    %v2747 = vmul.f32 %v2490, %v2730
    %v2748 = vmul.f32 %v2495, %v2730
    %v2749 = vmul.f32 %v2500, %v2730
    %v2750 = vmul.f32 %v2505, %v2730
    %v2751 = vmul.f32 %v2510, %v2730
    %v2752 = vmul.f32 %v2515, %v2730
    %v2753 = vmul.f32 %v2520, %v2730
    %v2754 = vmul.f32 %v2525, %v2730
    %v2755 = vmul.f32 %v2530, %v2730
    %v2756 = vmul.f32 %v2535, %v2730
    %v2757 = vmul.f32 %v2540, %v2730
    %v2758 = vmul.f32 %v2545, %v2730
    %v2759 = vmul.f32 %v2550, %v2730
    %v2760 = vmul.f32 %v2555, %v2730
    %v2761 = vmul.f32 %v2560, %v2730
    %v2762 = vmul.f32 %v2565, %v2730
    %v2763 = vmul.f32 %v2570, %v2730
    %v2764 = vmul.f32 %v2575, %v2730
    %v2765 = vmul.f32 %v2580, %v2730
    %v2766 = vmul.f32 %v2585, %v2730
    %v2767 = vmul.f32 %v2590, %v2730
    %v2768 = vmul.f32 %v2595, %v2730
    %v2769 = vmul.f32 %v2600, %v2730
    %v2770 = vmul.f32 %v2605, %v2730
    %v2771 = vmul.f32 %v2610, %v2730
    %v2772 = vmul.f32 %v2615, %v2730
    %v2773 = vmul.f32 %v2620, %v2730
    %v2774 = vmul.f32 %v2625, %v2730
    %v2775 = vmul.f32 %v2630, %v2730
    %v2776 = vmul.f32 %v2635, %v2730
    %v2777 = vmul.f32 %v2640, %v2730
    %v2778 = vmul.f32 %v2645, %v2730
    %v2779 = vmul.f32 %v2650, %v2730
    %v2780 = vmul.f32 %v2655, %v2730
    %v2781 = vmul.f32 %v2660, %v2730
    %v2782 = vmul.f32 %v2665, %v2730
    %v2783 = vmul.f32 %v2670, %v2730
    %v2784 = vmul.f32 %v2675, %v2730
    %v2785 = vmul.f32 %v2680, %v2730
    %v2786 = vmul.f32 %v2685, %v2730
    %v2787 = vmul.f32 %v2690, %v2730
    %v2788 = vmul.f32 %v2695, %v2730
    %v2789 = vmul.f32 %v2700, %v2730
    %v2790 = vmul.f32 %v2705, %v2730
    %v2791 = vmul.f32 %v2710, %v2730
    %v2792 = vmul.f32 %v2715, %v2730
    %v2793 = vmul.f32 %v2720, %v2730
    %v2794 = vmul.f32 %v2725, %v2730
    %v2795 = vadd.f32 %v2279, %v2731
    %v2796 = vadd.f32 %v2280, %v2732
    %v2797 = vadd.f32 %v2281, %v2733
    %v2798 = vadd.f32 %v2282, %v2734
    %v2799 = vadd.f32 %v2283, %v2735
    %v2800 = vadd.f32 %v2284, %v2736
    %v2801 = vadd.f32 %v2285, %v2737
    %v2802 = vadd.f32 %v2286, %v2738
    %v2803 = vadd.f32 %v2287, %v2739
    %v2804 = vadd.f32 %v2288, %v2740
    %v2805 = vadd.f32 %v2289, %v2741
    %v2806 = vadd.f32 %v2290, %v2742
    %v2807 = vadd.f32 %v2291, %v2743
    %v2808 = vadd.f32 %v2292, %v2744
    %v2809 = vadd.f32 %v2293, %v2745
    %v2810 = vadd.f32 %v2294, %v2746
    %v2811 = vadd.f32 %v2295, %v2747
    %v2812 = vadd.f32 %v2296, %v2748
    %v2813 = vadd.f32 %v2297, %v2749
    %v2814 = vadd.f32 %v2298, %v2750
    %v2815 = vadd.f32 %v2299, %v2751
    %v2816 = vadd.f32 %v2300, %v2752
    %v2817 = vadd.f32 %v2301, %v2753
    %v2818 = vadd.f32 %v2302, %v2754
    %v2819 = vadd.f32 %v2303, %v2755
    %v2820 = vadd.f32 %v2304, %v2756
    %v2821 = vadd.f32 %v2305, %v2757
    %v2822 = vadd.f32 %v2306, %v2758
    %v2823 = vadd.f32 %v2307, %v2759
    %v2824 = vadd.f32 %v2308, %v2760
    %v2825 = vadd.f32 %v2309, %v2761
    %v2826 = vadd.f32 %v2310, %v2762
    %v2827 = vadd.f32 %v2311, %v2763
    %v2828 = vadd.f32 %v2312, %v2764
    %v2829 = vadd.f32 %v2313, %v2765
    %v2830 = vadd.f32 %v2314, %v2766
    %v2831 = vadd.f32 %v2315, %v2767
    %v2832 = vadd.f32 %v2316, %v2768
    %v2833 = vadd.f32 %v2317, %v2769
    %v2834 = vadd.f32 %v2318, %v2770
    %v2835 = vadd.f32 %v2319, %v2771
    %v2836 = vadd.f32 %v2320, %v2772
    %v2837 = vadd.f32 %v2321, %v2773
    %v2838 = vadd.f32 %v2322, %v2774
    %v2839 = vadd.f32 %v2323, %v2775
    %v2840 = vadd.f32 %v2324, %v2776
    %v2841 = vadd.f32 %v2325, %v2777
    %v2842 = vadd.f32 %v2326, %v2778
    %v2843 = vadd.f32 %v2327, %v2779
    %v2844 = vadd.f32 %v2328, %v2780
    %v2845 = vadd.f32 %v2329, %v2781
    %v2846 = vadd.f32 %v2330, %v2782
    %v2847 = vadd.f32 %v2331, %v2783
    %v2848 = vadd.f32 %v2332, %v2784
    %v2849 = vadd.f32 %v2333, %v2785
    %v2850 = vadd.f32 %v2334, %v2786
    %v2851 = vadd.f32 %v2335, %v2787
    %v2852 = vadd.f32 %v2336, %v2788
    %v2853 = vadd.f32 %v2337, %v2789
    %v2854 = vadd.f32 %v2338, %v2790
    %v2855 = vadd.f32 %v2339, %v2791
    %v2856 = vadd.f32 %v2340, %v2792
    %v2857 = vadd.f32 %v2341, %v2793
    %v2858 = vadd.f32 %v2342, %v2794
    %v2859 = vld [vmem:[%s2] sm:$0x1]
    %v2861 = vlaneseq
    %v2862 = vshrl.u32 %v2861, 7
    %v2863 = vsub.s32 0, %v2862
    %v2864 = vrot.slane %v2859, %v2863
    %v2866 = vadd.f32 %v2795, %v2864
    %v2867 = vadd.f32 %v2796, %v2864
    %v2868 = vadd.f32 %v2797, %v2864
    %v2869 = vadd.f32 %v2798, %v2864
    %v2870 = vadd.f32 %v2799, %v2864
    %v2871 = vadd.f32 %v2800, %v2864
    %v2872 = vadd.f32 %v2801, %v2864
    %v2873 = vadd.f32 %v2802, %v2864
    %v2874 = vadd.f32 %v2803, %v2864
    %v2875 = vadd.f32 %v2804, %v2864
    %v2876 = vadd.f32 %v2805, %v2864
    %v2877 = vadd.f32 %v2806, %v2864
    %v2878 = vadd.f32 %v2807, %v2864
    %v2879 = vadd.f32 %v2808, %v2864
    %v2880 = vadd.f32 %v2809, %v2864
    %v2881 = vadd.f32 %v2810, %v2864
    %v2882 = vadd.f32 %v2811, %v2864
    %v2883 = vadd.f32 %v2812, %v2864
    %v2884 = vadd.f32 %v2813, %v2864
    %v2885 = vadd.f32 %v2814, %v2864
    %v2886 = vadd.f32 %v2815, %v2864
    %v2887 = vadd.f32 %v2816, %v2864
    %v2888 = vadd.f32 %v2817, %v2864
    %v2889 = vadd.f32 %v2818, %v2864
    %v2890 = vadd.f32 %v2819, %v2864
    %v2891 = vadd.f32 %v2820, %v2864
    %v2892 = vadd.f32 %v2821, %v2864
    %v2893 = vadd.f32 %v2822, %v2864
    %v2894 = vadd.f32 %v2823, %v2864
    %v2895 = vadd.f32 %v2824, %v2864
    %v2896 = vadd.f32 %v2825, %v2864
    %v2897 = vadd.f32 %v2826, %v2864
    %v2898 = vadd.f32 %v2827, %v2864
    %v2899 = vadd.f32 %v2828, %v2864
    %v2900 = vadd.f32 %v2829, %v2864
    %v2901 = vadd.f32 %v2830, %v2864
    %v2902 = vadd.f32 %v2831, %v2864
    %v2903 = vadd.f32 %v2832, %v2864
    %v2904 = vadd.f32 %v2833, %v2864
    %v2905 = vadd.f32 %v2834, %v2864
    %v2906 = vadd.f32 %v2835, %v2864
    %v2907 = vadd.f32 %v2836, %v2864
    %v2908 = vadd.f32 %v2837, %v2864
    %v2909 = vadd.f32 %v2838, %v2864
    %v2910 = vadd.f32 %v2839, %v2864
    %v2911 = vadd.f32 %v2840, %v2864
    %v2912 = vadd.f32 %v2841, %v2864
    %v2913 = vadd.f32 %v2842, %v2864
    %v2914 = vadd.f32 %v2843, %v2864
    %v2915 = vadd.f32 %v2844, %v2864
    %v2916 = vadd.f32 %v2845, %v2864
    %v2917 = vadd.f32 %v2846, %v2864
    %v2918 = vadd.f32 %v2847, %v2864
    %v2919 = vadd.f32 %v2848, %v2864
    %v2920 = vadd.f32 %v2849, %v2864
    %v2921 = vadd.f32 %v2850, %v2864
    %v2922 = vadd.f32 %v2851, %v2864
    %v2923 = vadd.f32 %v2852, %v2864
    %v2924 = vadd.f32 %v2853, %v2864
    %v2925 = vadd.f32 %v2854, %v2864
    %v2926 = vadd.f32 %v2855, %v2864
    %v2927 = vadd.f32 %v2856, %v2864
    %v2928 = vadd.f32 %v2857, %v2864
    %v2929 = vadd.f32 %v2858, %v2864
    %vm2930 = vcmp.gt.f32.partialorder %v2866, 0.0
    %vm2931 = vcmp.gt.f32.partialorder %v2867, 0.0
    %vm2932 = vcmp.gt.f32.partialorder %v2868, 0.0
    %vm2933 = vcmp.gt.f32.partialorder %v2869, 0.0
    %vm2934 = vcmp.gt.f32.partialorder %v2870, 0.0
    %vm2935 = vcmp.gt.f32.partialorder %v2871, 0.0
    %vm2936 = vcmp.gt.f32.partialorder %v2872, 0.0
    %vm2937 = vcmp.gt.f32.partialorder %v2873, 0.0
    %vm2938 = vcmp.gt.f32.partialorder %v2874, 0.0
    %vm2939 = vcmp.gt.f32.partialorder %v2875, 0.0
    %vm2940 = vcmp.gt.f32.partialorder %v2876, 0.0
    %vm2941 = vcmp.gt.f32.partialorder %v2877, 0.0
    %vm2942 = vcmp.gt.f32.partialorder %v2878, 0.0
    %vm2943 = vcmp.gt.f32.partialorder %v2879, 0.0
    %vm2944 = vcmp.gt.f32.partialorder %v2880, 0.0
    %vm2945 = vcmp.gt.f32.partialorder %v2881, 0.0
    %vm2946 = vcmp.gt.f32.partialorder %v2882, 0.0
    %vm2947 = vcmp.gt.f32.partialorder %v2883, 0.0
    %vm2948 = vcmp.gt.f32.partialorder %v2884, 0.0
    %vm2949 = vcmp.gt.f32.partialorder %v2885, 0.0
    %vm2950 = vcmp.gt.f32.partialorder %v2886, 0.0
    %vm2951 = vcmp.gt.f32.partialorder %v2887, 0.0
    %vm2952 = vcmp.gt.f32.partialorder %v2888, 0.0
    %vm2953 = vcmp.gt.f32.partialorder %v2889, 0.0
    %vm2954 = vcmp.gt.f32.partialorder %v2890, 0.0
    %vm2955 = vcmp.gt.f32.partialorder %v2891, 0.0
    %vm2956 = vcmp.gt.f32.partialorder %v2892, 0.0
    %vm2957 = vcmp.gt.f32.partialorder %v2893, 0.0
    %vm2958 = vcmp.gt.f32.partialorder %v2894, 0.0
    %vm2959 = vcmp.gt.f32.partialorder %v2895, 0.0
    %vm2960 = vcmp.gt.f32.partialorder %v2896, 0.0
    %vm2961 = vcmp.gt.f32.partialorder %v2897, 0.0
    %vm2962 = vcmp.gt.f32.partialorder %v2898, 0.0
    %vm2963 = vcmp.gt.f32.partialorder %v2899, 0.0
    %vm2964 = vcmp.gt.f32.partialorder %v2900, 0.0
    %vm2965 = vcmp.gt.f32.partialorder %v2901, 0.0
    %vm2966 = vcmp.gt.f32.partialorder %v2902, 0.0
    %vm2967 = vcmp.gt.f32.partialorder %v2903, 0.0
    %vm2968 = vcmp.gt.f32.partialorder %v2904, 0.0
    %vm2969 = vcmp.gt.f32.partialorder %v2905, 0.0
    %vm2970 = vcmp.gt.f32.partialorder %v2906, 0.0
    %vm2971 = vcmp.gt.f32.partialorder %v2907, 0.0
    %vm2972 = vcmp.gt.f32.partialorder %v2908, 0.0
    %vm2973 = vcmp.gt.f32.partialorder %v2909, 0.0
    %vm2974 = vcmp.gt.f32.partialorder %v2910, 0.0
    %vm2975 = vcmp.gt.f32.partialorder %v2911, 0.0
    %vm2976 = vcmp.gt.f32.partialorder %v2912, 0.0
    %vm2977 = vcmp.gt.f32.partialorder %v2913, 0.0
    %vm2978 = vcmp.gt.f32.partialorder %v2914, 0.0
    %vm2979 = vcmp.gt.f32.partialorder %v2915, 0.0
    %vm2980 = vcmp.gt.f32.partialorder %v2916, 0.0
    %vm2981 = vcmp.gt.f32.partialorder %v2917, 0.0
    %vm2982 = vcmp.gt.f32.partialorder %v2918, 0.0
    %vm2983 = vcmp.gt.f32.partialorder %v2919, 0.0
    %vm2984 = vcmp.gt.f32.partialorder %v2920, 0.0
    %vm2985 = vcmp.gt.f32.partialorder %v2921, 0.0
    %vm2986 = vcmp.gt.f32.partialorder %v2922, 0.0
    %vm2987 = vcmp.gt.f32.partialorder %v2923, 0.0
    %vm2988 = vcmp.gt.f32.partialorder %v2924, 0.0
    %vm2989 = vcmp.gt.f32.partialorder %v2925, 0.0
    %vm2990 = vcmp.gt.f32.partialorder %v2926, 0.0
    %vm2991 = vcmp.gt.f32.partialorder %v2927, 0.0
    %vm2992 = vcmp.gt.f32.partialorder %v2928, 0.0
    %vm2993 = vcmp.gt.f32.partialorder %v2929, 0.0
    %v2994 = vmul.f32 %v2866, 0.01
    %v2995 = vmul.f32 %v2867, 0.01
    %v2996 = vmul.f32 %v2868, 0.01
    %v2997 = vmul.f32 %v2869, 0.01
    %v2998 = vmul.f32 %v2870, 0.01
    %v2999 = vmul.f32 %v2871, 0.01
    %v3000 = vmul.f32 %v2872, 0.01
    %v3001 = vmul.f32 %v2873, 0.01
    %v3002 = vmul.f32 %v2874, 0.01
    %v3003 = vmul.f32 %v2875, 0.01
    %v3004 = vmul.f32 %v2876, 0.01
    %v3005 = vmul.f32 %v2877, 0.01
    %v3006 = vmul.f32 %v2878, 0.01
    %v3007 = vmul.f32 %v2879, 0.01
    %v3008 = vmul.f32 %v2880, 0.01
    %v3009 = vmul.f32 %v2881, 0.01
    %v3010 = vmul.f32 %v2882, 0.01
    %v3011 = vmul.f32 %v2883, 0.01
    %v3012 = vmul.f32 %v2884, 0.01
    %v3013 = vmul.f32 %v2885, 0.01
    %v3014 = vmul.f32 %v2886, 0.01
    %v3015 = vmul.f32 %v2887, 0.01
    %v3016 = vmul.f32 %v2888, 0.01
    %v3017 = vmul.f32 %v2889, 0.01
    %v3018 = vmul.f32 %v2890, 0.01
    %v3019 = vmul.f32 %v2891, 0.01
    %v3020 = vmul.f32 %v2892, 0.01
    %v3021 = vmul.f32 %v2893, 0.01
    %v3022 = vmul.f32 %v2894, 0.01
    %v3023 = vmul.f32 %v2895, 0.01
    %v3024 = vmul.f32 %v2896, 0.01
    %v3025 = vmul.f32 %v2897, 0.01
    %v3026 = vmul.f32 %v2898, 0.01
    %v3027 = vmul.f32 %v2899, 0.01
    %v3028 = vmul.f32 %v2900, 0.01
    %v3029 = vmul.f32 %v2901, 0.01
    %v3030 = vmul.f32 %v2902, 0.01
    %v3031 = vmul.f32 %v2903, 0.01
    %v3032 = vmul.f32 %v2904, 0.01
    %v3033 = vmul.f32 %v2905, 0.01
    %v3034 = vmul.f32 %v2906, 0.01
    %v3035 = vmul.f32 %v2907, 0.01
    %v3036 = vmul.f32 %v2908, 0.01
    %v3037 = vmul.f32 %v2909, 0.01
    %v3038 = vmul.f32 %v2910, 0.01
    %v3039 = vmul.f32 %v2911, 0.01
    %v3040 = vmul.f32 %v2912, 0.01
    %v3041 = vmul.f32 %v2913, 0.01
    %v3042 = vmul.f32 %v2914, 0.01
    %v3043 = vmul.f32 %v2915, 0.01
    %v3044 = vmul.f32 %v2916, 0.01
    %v3045 = vmul.f32 %v2917, 0.01
    %v3046 = vmul.f32 %v2918, 0.01
    %v3047 = vmul.f32 %v2919, 0.01
    %v3048 = vmul.f32 %v2920, 0.01
    %v3049 = vmul.f32 %v2921, 0.01
    %v3050 = vmul.f32 %v2922, 0.01
    %v3051 = vmul.f32 %v2923, 0.01
    %v3052 = vmul.f32 %v2924, 0.01
    %v3053 = vmul.f32 %v2925, 0.01
    %v3054 = vmul.f32 %v2926, 0.01
    %v3055 = vmul.f32 %v2927, 0.01
    %v3056 = vmul.f32 %v2928, 0.01
    %v3057 = vmul.f32 %v2929, 0.01
    %v3058 = vsel %vm2930, %v2866, %v2994
    %v3059 = vsel %vm2931, %v2867, %v2995
    %v3060 = vsel %vm2932, %v2868, %v2996
    %v3061 = vsel %vm2933, %v2869, %v2997
    %v3062 = vsel %vm2934, %v2870, %v2998
    %v3063 = vsel %vm2935, %v2871, %v2999
    %v3064 = vsel %vm2936, %v2872, %v3000
    %v3065 = vsel %vm2937, %v2873, %v3001
    %v3066 = vsel %vm2938, %v2874, %v3002
    %v3067 = vsel %vm2939, %v2875, %v3003
    %v3068 = vsel %vm2940, %v2876, %v3004
    %v3069 = vsel %vm2941, %v2877, %v3005
    %v3070 = vsel %vm2942, %v2878, %v3006
    %v3071 = vsel %vm2943, %v2879, %v3007
    %v3072 = vsel %vm2944, %v2880, %v3008
    %v3073 = vsel %vm2945, %v2881, %v3009
    %v3074 = vsel %vm2946, %v2882, %v3010
    %v3075 = vsel %vm2947, %v2883, %v3011
    %v3076 = vsel %vm2948, %v2884, %v3012
    %v3077 = vsel %vm2949, %v2885, %v3013
    %v3078 = vsel %vm2950, %v2886, %v3014
    %v3079 = vsel %vm2951, %v2887, %v3015
    %v3080 = vsel %vm2952, %v2888, %v3016
    %v3081 = vsel %vm2953, %v2889, %v3017
    %v3082 = vsel %vm2954, %v2890, %v3018
    %v3083 = vsel %vm2955, %v2891, %v3019
    %v3084 = vsel %vm2956, %v2892, %v3020
    %v3085 = vsel %vm2957, %v2893, %v3021
    %v3086 = vsel %vm2958, %v2894, %v3022
    %v3087 = vsel %vm2959, %v2895, %v3023
    %v3088 = vsel %vm2960, %v2896, %v3024
    %v3089 = vsel %vm2961, %v2897, %v3025
    %v3090 = vsel %vm2962, %v2898, %v3026
    %v3091 = vsel %vm2963, %v2899, %v3027
    %v3092 = vsel %vm2964, %v2900, %v3028
    %v3093 = vsel %vm2965, %v2901, %v3029
    %v3094 = vsel %vm2966, %v2902, %v3030
    %v3095 = vsel %vm2967, %v2903, %v3031
    %v3096 = vsel %vm2968, %v2904, %v3032
    %v3097 = vsel %vm2969, %v2905, %v3033
    %v3098 = vsel %vm2970, %v2906, %v3034
    %v3099 = vsel %vm2971, %v2907, %v3035
    %v3100 = vsel %vm2972, %v2908, %v3036
    %v3101 = vsel %vm2973, %v2909, %v3037
    %v3102 = vsel %vm2974, %v2910, %v3038
    %v3103 = vsel %vm2975, %v2911, %v3039
    %v3104 = vsel %vm2976, %v2912, %v3040
    %v3105 = vsel %vm2977, %v2913, %v3041
    %v3106 = vsel %vm2978, %v2914, %v3042
    %v3107 = vsel %vm2979, %v2915, %v3043
    %v3108 = vsel %vm2980, %v2916, %v3044
    %v3109 = vsel %vm2981, %v2917, %v3045
    %v3110 = vsel %vm2982, %v2918, %v3046
    %v3111 = vsel %vm2983, %v2919, %v3047
    %v3112 = vsel %vm2984, %v2920, %v3048
    %v3113 = vsel %vm2985, %v2921, %v3049
    %v3114 = vsel %vm2986, %v2922, %v3050
    %v3115 = vsel %vm2987, %v2923, %v3051
    %v3116 = vsel %vm2988, %v2924, %v3052
    %v3117 = vsel %vm2989, %v2925, %v3053
    %v3118 = vsel %vm2990, %v2926, %v3054
    %v3119 = vsel %vm2991, %v2927, %v3055
    %v3120 = vsel %vm2992, %v2928, %v3056
    %v3121 = vsel %vm2993, %v2929, %v3057
    %v3186 = vcombine.high %v3058, %v3058
    %v3188 = vunpack.c.l.s4 1983009808
    %v3189 = vunpack.c.0.s8 %v3188
    %v3190 = vlaneseq
    %v3191 = vshrl.u32 %v3190, 7
    %v3192 = vsub.s32 %v3189, %v3191
    %v3193 = vrot.slane %v3058, %v3192
    %v3195 = vunpack.c.l.s4 1983009808
    %v3196 = vunpack.c.0.s8 %v3195
    %v3197 = vlaneseq
    %v3198 = vshrl.u32 %v3197, 7
    %v3199 = vsub.s32 %v3196, %v3198
    %v3200 = vrot.slane %v3186, %v3199
    %v3201 = vcombine.high %v3193, %v3193
    %v3202 = vcombine.high %v3200, %v3200
    %v3203 = vcombine.high %v3059, %v3059
    %v3205 = vunpack.c.l.s4 1983009808
    %v3206 = vunpack.c.0.s8 %v3205
    %v3207 = vlaneseq
    %v3208 = vshrl.u32 %v3207, 7
    %v3209 = vsub.s32 %v3206, %v3208
    %v3210 = vrot.slane %v3059, %v3209
    %v3212 = vunpack.c.l.s4 1983009808
    %v3213 = vunpack.c.0.s8 %v3212
    %v3214 = vlaneseq
    %v3215 = vshrl.u32 %v3214, 7
    %v3216 = vsub.s32 %v3213, %v3215
    %v3217 = vrot.slane %v3203, %v3216
    %v3218 = vcombine.high %v3210, %v3210
    %v3219 = vcombine.high %v3217, %v3217
    %v3220 = vcombine.high %v3060, %v3060
    %v3222 = vunpack.c.l.s4 1983009808
    %v3223 = vunpack.c.0.s8 %v3222
    %v3224 = vlaneseq
    %v3225 = vshrl.u32 %v3224, 7
    %v3226 = vsub.s32 %v3223, %v3225
    %v3227 = vrot.slane %v3060, %v3226
    %v3229 = vunpack.c.l.s4 1983009808
    %v3230 = vunpack.c.0.s8 %v3229
    %v3231 = vlaneseq
    %v3232 = vshrl.u32 %v3231, 7
    %v3233 = vsub.s32 %v3230, %v3232
    %v3234 = vrot.slane %v3220, %v3233
    %v3235 = vcombine.high %v3227, %v3227
    %v3236 = vcombine.high %v3234, %v3234
    %v3237 = vcombine.high %v3061, %v3061
    %v3239 = vunpack.c.l.s4 1983009808
    %v3240 = vunpack.c.0.s8 %v3239
    %v3241 = vlaneseq
    %v3242 = vshrl.u32 %v3241, 7
    %v3243 = vsub.s32 %v3240, %v3242
    %v3244 = vrot.slane %v3061, %v3243
    %v3246 = vunpack.c.l.s4 1983009808
    %v3247 = vunpack.c.0.s8 %v3246
    %v3248 = vlaneseq
    %v3249 = vshrl.u32 %v3248, 7
    %v3250 = vsub.s32 %v3247, %v3249
    %v3251 = vrot.slane %v3237, %v3250
    %v3252 = vcombine.high %v3244, %v3244
    %v3253 = vcombine.high %v3251, %v3251
    %v3254 = vcombine.high %v3062, %v3062
    %v3256 = vunpack.c.l.s4 1983009808
    %v3257 = vunpack.c.0.s8 %v3256
    %v3258 = vlaneseq
    %v3259 = vshrl.u32 %v3258, 7
    %v3260 = vsub.s32 %v3257, %v3259
    %v3261 = vrot.slane %v3062, %v3260
    %v3263 = vunpack.c.l.s4 1983009808
    %v3264 = vunpack.c.0.s8 %v3263
    %v3265 = vlaneseq
    %v3266 = vshrl.u32 %v3265, 7
    %v3267 = vsub.s32 %v3264, %v3266
    %v3268 = vrot.slane %v3254, %v3267
    %v3269 = vcombine.high %v3261, %v3261
    %v3270 = vcombine.high %v3268, %v3268
    %v3271 = vcombine.high %v3063, %v3063
    %v3273 = vunpack.c.l.s4 1983009808
    %v3274 = vunpack.c.0.s8 %v3273
    %v3275 = vlaneseq
    %v3276 = vshrl.u32 %v3275, 7
    %v3277 = vsub.s32 %v3274, %v3276
    %v3278 = vrot.slane %v3063, %v3277
    %v3280 = vunpack.c.l.s4 1983009808
    %v3281 = vunpack.c.0.s8 %v3280
    %v3282 = vlaneseq
    %v3283 = vshrl.u32 %v3282, 7
    %v3284 = vsub.s32 %v3281, %v3283
    %v3285 = vrot.slane %v3271, %v3284
    %v3286 = vcombine.high %v3278, %v3278
    %v3287 = vcombine.high %v3285, %v3285
    %v3288 = vcombine.high %v3064, %v3064
    %v3290 = vunpack.c.l.s4 1983009808
    %v3291 = vunpack.c.0.s8 %v3290
    %v3292 = vlaneseq
    %v3293 = vshrl.u32 %v3292, 7
    %v3294 = vsub.s32 %v3291, %v3293
    %v3295 = vrot.slane %v3064, %v3294
    %v3297 = vunpack.c.l.s4 1983009808
    %v3298 = vunpack.c.0.s8 %v3297
    %v3299 = vlaneseq
    %v3300 = vshrl.u32 %v3299, 7
    %v3301 = vsub.s32 %v3298, %v3300
    %v3302 = vrot.slane %v3288, %v3301
    %v3303 = vcombine.high %v3295, %v3295
    %v3304 = vcombine.high %v3302, %v3302
    %v3305 = vcombine.high %v3065, %v3065
    %v3307 = vunpack.c.l.s4 1983009808
    %v3308 = vunpack.c.0.s8 %v3307
    %v3309 = vlaneseq
    %v3310 = vshrl.u32 %v3309, 7
    %v3311 = vsub.s32 %v3308, %v3310
    %v3312 = vrot.slane %v3065, %v3311
    %v3314 = vunpack.c.l.s4 1983009808
    %v3315 = vunpack.c.0.s8 %v3314
    %v3316 = vlaneseq
    %v3317 = vshrl.u32 %v3316, 7
    %v3318 = vsub.s32 %v3315, %v3317
    %v3319 = vrot.slane %v3305, %v3318
    %v3320 = vcombine.high %v3312, %v3312
    %v3321 = vcombine.high %v3319, %v3319
    %v3322 = vcombine.high %v3066, %v3066
    %v3324 = vunpack.c.l.s4 1983009808
    %v3325 = vunpack.c.0.s8 %v3324
    %v3326 = vlaneseq
    %v3327 = vshrl.u32 %v3326, 7
    %v3328 = vsub.s32 %v3325, %v3327
    %v3329 = vrot.slane %v3066, %v3328
    %v3331 = vunpack.c.l.s4 1983009808
    %v3332 = vunpack.c.0.s8 %v3331
    %v3333 = vlaneseq
    %v3334 = vshrl.u32 %v3333, 7
    %v3335 = vsub.s32 %v3332, %v3334
    %v3336 = vrot.slane %v3322, %v3335
    %v3337 = vcombine.high %v3329, %v3329
    %v3338 = vcombine.high %v3336, %v3336
    %v3339 = vcombine.high %v3067, %v3067
    %v3341 = vunpack.c.l.s4 1983009808
    %v3342 = vunpack.c.0.s8 %v3341
    %v3343 = vlaneseq
    %v3344 = vshrl.u32 %v3343, 7
    %v3345 = vsub.s32 %v3342, %v3344
    %v3346 = vrot.slane %v3067, %v3345
    %v3348 = vunpack.c.l.s4 1983009808
    %v3349 = vunpack.c.0.s8 %v3348
    %v3350 = vlaneseq
    %v3351 = vshrl.u32 %v3350, 7
    %v3352 = vsub.s32 %v3349, %v3351
    %v3353 = vrot.slane %v3339, %v3352
    %v3354 = vcombine.high %v3346, %v3346
    %v3355 = vcombine.high %v3353, %v3353
    %v3356 = vcombine.high %v3068, %v3068
    %v3358 = vunpack.c.l.s4 1983009808
    %v3359 = vunpack.c.0.s8 %v3358
    %v3360 = vlaneseq
    %v3361 = vshrl.u32 %v3360, 7
    %v3362 = vsub.s32 %v3359, %v3361
    %v3363 = vrot.slane %v3068, %v3362
    %v3365 = vunpack.c.l.s4 1983009808
    %v3366 = vunpack.c.0.s8 %v3365
    %v3367 = vlaneseq
    %v3368 = vshrl.u32 %v3367, 7
    %v3369 = vsub.s32 %v3366, %v3368
    %v3370 = vrot.slane %v3356, %v3369
    %v3371 = vcombine.high %v3363, %v3363
    %v3372 = vcombine.high %v3370, %v3370
    %v3373 = vcombine.high %v3069, %v3069
    %v3375 = vunpack.c.l.s4 1983009808
    %v3376 = vunpack.c.0.s8 %v3375
    %v3377 = vlaneseq
    %v3378 = vshrl.u32 %v3377, 7
    %v3379 = vsub.s32 %v3376, %v3378
    %v3380 = vrot.slane %v3069, %v3379
    %v3382 = vunpack.c.l.s4 1983009808
    %v3383 = vunpack.c.0.s8 %v3382
    %v3384 = vlaneseq
    %v3385 = vshrl.u32 %v3384, 7
    %v3386 = vsub.s32 %v3383, %v3385
    %v3387 = vrot.slane %v3373, %v3386
    %v3388 = vcombine.high %v3380, %v3380
    %v3389 = vcombine.high %v3387, %v3387
    %v3390 = vcombine.high %v3070, %v3070
    %v3392 = vunpack.c.l.s4 1983009808
    %v3393 = vunpack.c.0.s8 %v3392
    %v3394 = vlaneseq
    %v3395 = vshrl.u32 %v3394, 7
    %v3396 = vsub.s32 %v3393, %v3395
    %v3397 = vrot.slane %v3070, %v3396
    %v3399 = vunpack.c.l.s4 1983009808
    %v3400 = vunpack.c.0.s8 %v3399
    %v3401 = vlaneseq
    %v3402 = vshrl.u32 %v3401, 7
    %v3403 = vsub.s32 %v3400, %v3402
    %v3404 = vrot.slane %v3390, %v3403
    %v3405 = vcombine.high %v3397, %v3397
    %v3406 = vcombine.high %v3404, %v3404
    %v3407 = vcombine.high %v3071, %v3071
    %v3409 = vunpack.c.l.s4 1983009808
    %v3410 = vunpack.c.0.s8 %v3409
    %v3411 = vlaneseq
    %v3412 = vshrl.u32 %v3411, 7
    %v3413 = vsub.s32 %v3410, %v3412
    %v3414 = vrot.slane %v3071, %v3413
    %v3416 = vunpack.c.l.s4 1983009808
    %v3417 = vunpack.c.0.s8 %v3416
    %v3418 = vlaneseq
    %v3419 = vshrl.u32 %v3418, 7
    %v3420 = vsub.s32 %v3417, %v3419
    %v3421 = vrot.slane %v3407, %v3420
    %v3422 = vcombine.high %v3414, %v3414
    %v3423 = vcombine.high %v3421, %v3421
    %v3424 = vcombine.high %v3072, %v3072
    %v3426 = vunpack.c.l.s4 1983009808
    %v3427 = vunpack.c.0.s8 %v3426
    %v3428 = vlaneseq
    %v3429 = vshrl.u32 %v3428, 7
    %v3430 = vsub.s32 %v3427, %v3429
    %v3431 = vrot.slane %v3072, %v3430
    %v3433 = vunpack.c.l.s4 1983009808
    %v3434 = vunpack.c.0.s8 %v3433
    %v3435 = vlaneseq
    %v3436 = vshrl.u32 %v3435, 7
    %v3437 = vsub.s32 %v3434, %v3436
    %v3438 = vrot.slane %v3424, %v3437
    %v3439 = vcombine.high %v3431, %v3431
    %v3440 = vcombine.high %v3438, %v3438
    %v3441 = vcombine.high %v3073, %v3073
    %v3443 = vunpack.c.l.s4 1983009808
    %v3444 = vunpack.c.0.s8 %v3443
    %v3445 = vlaneseq
    %v3446 = vshrl.u32 %v3445, 7
    %v3447 = vsub.s32 %v3444, %v3446
    %v3448 = vrot.slane %v3073, %v3447
    %v3450 = vunpack.c.l.s4 1983009808
    %v3451 = vunpack.c.0.s8 %v3450
    %v3452 = vlaneseq
    %v3453 = vshrl.u32 %v3452, 7
    %v3454 = vsub.s32 %v3451, %v3453
    %v3455 = vrot.slane %v3441, %v3454
    %v3456 = vcombine.high %v3448, %v3448
    %v3457 = vcombine.high %v3455, %v3455
    %v3458 = vcombine.high %v3074, %v3074
    %v3460 = vunpack.c.l.s4 1983009808
    %v3461 = vunpack.c.0.s8 %v3460
    %v3462 = vlaneseq
    %v3463 = vshrl.u32 %v3462, 7
    %v3464 = vsub.s32 %v3461, %v3463
    %v3465 = vrot.slane %v3074, %v3464
    %v3467 = vunpack.c.l.s4 1983009808
    %v3468 = vunpack.c.0.s8 %v3467
    %v3469 = vlaneseq
    %v3470 = vshrl.u32 %v3469, 7
    %v3471 = vsub.s32 %v3468, %v3470
    %v3472 = vrot.slane %v3458, %v3471
    %v3473 = vcombine.high %v3465, %v3465
    %v3474 = vcombine.high %v3472, %v3472
    %v3475 = vcombine.high %v3075, %v3075
    %v3477 = vunpack.c.l.s4 1983009808
    %v3478 = vunpack.c.0.s8 %v3477
    %v3479 = vlaneseq
    %v3480 = vshrl.u32 %v3479, 7
    %v3481 = vsub.s32 %v3478, %v3480
    %v3482 = vrot.slane %v3075, %v3481
    %v3484 = vunpack.c.l.s4 1983009808
    %v3485 = vunpack.c.0.s8 %v3484
    %v3486 = vlaneseq
    %v3487 = vshrl.u32 %v3486, 7
    %v3488 = vsub.s32 %v3485, %v3487
    %v3489 = vrot.slane %v3475, %v3488
    %v3490 = vcombine.high %v3482, %v3482
    %v3491 = vcombine.high %v3489, %v3489
    %v3492 = vcombine.high %v3076, %v3076
    %v3494 = vunpack.c.l.s4 1983009808
    %v3495 = vunpack.c.0.s8 %v3494
    %v3496 = vlaneseq
    %v3497 = vshrl.u32 %v3496, 7
    %v3498 = vsub.s32 %v3495, %v3497
    %v3499 = vrot.slane %v3076, %v3498
    %v3501 = vunpack.c.l.s4 1983009808
    %v3502 = vunpack.c.0.s8 %v3501
    %v3503 = vlaneseq
    %v3504 = vshrl.u32 %v3503, 7
    %v3505 = vsub.s32 %v3502, %v3504
    %v3506 = vrot.slane %v3492, %v3505
    %v3507 = vcombine.high %v3499, %v3499
    %v3508 = vcombine.high %v3506, %v3506
    %v3509 = vcombine.high %v3077, %v3077
    %v3511 = vunpack.c.l.s4 1983009808
    %v3512 = vunpack.c.0.s8 %v3511
    %v3513 = vlaneseq
    %v3514 = vshrl.u32 %v3513, 7
    %v3515 = vsub.s32 %v3512, %v3514
    %v3516 = vrot.slane %v3077, %v3515
    %v3518 = vunpack.c.l.s4 1983009808
    %v3519 = vunpack.c.0.s8 %v3518
    %v3520 = vlaneseq
    %v3521 = vshrl.u32 %v3520, 7
    %v3522 = vsub.s32 %v3519, %v3521
    %v3523 = vrot.slane %v3509, %v3522
    %v3524 = vcombine.high %v3516, %v3516
    %v3525 = vcombine.high %v3523, %v3523
    %v3526 = vcombine.high %v3078, %v3078
    %v3528 = vunpack.c.l.s4 1983009808
    %v3529 = vunpack.c.0.s8 %v3528
    %v3530 = vlaneseq
    %v3531 = vshrl.u32 %v3530, 7
    %v3532 = vsub.s32 %v3529, %v3531
    %v3533 = vrot.slane %v3078, %v3532
    %v3535 = vunpack.c.l.s4 1983009808
    %v3536 = vunpack.c.0.s8 %v3535
    %v3537 = vlaneseq
    %v3538 = vshrl.u32 %v3537, 7
    %v3539 = vsub.s32 %v3536, %v3538
    %v3540 = vrot.slane %v3526, %v3539
    %v3541 = vcombine.high %v3533, %v3533
    %v3542 = vcombine.high %v3540, %v3540
    %v3543 = vcombine.high %v3079, %v3079
    %v3545 = vunpack.c.l.s4 1983009808
    %v3546 = vunpack.c.0.s8 %v3545
    %v3547 = vlaneseq
    %v3548 = vshrl.u32 %v3547, 7
    %v3549 = vsub.s32 %v3546, %v3548
    %v3550 = vrot.slane %v3079, %v3549
    %v3552 = vunpack.c.l.s4 1983009808
    %v3553 = vunpack.c.0.s8 %v3552
    %v3554 = vlaneseq
    %v3555 = vshrl.u32 %v3554, 7
    %v3556 = vsub.s32 %v3553, %v3555
    %v3557 = vrot.slane %v3543, %v3556
    %v3558 = vcombine.high %v3550, %v3550
    %v3559 = vcombine.high %v3557, %v3557
    %v3560 = vcombine.high %v3080, %v3080
    %v3562 = vunpack.c.l.s4 1983009808
    %v3563 = vunpack.c.0.s8 %v3562
    %v3564 = vlaneseq
    %v3565 = vshrl.u32 %v3564, 7
    %v3566 = vsub.s32 %v3563, %v3565
    %v3567 = vrot.slane %v3080, %v3566
    %v3569 = vunpack.c.l.s4 1983009808
    %v3570 = vunpack.c.0.s8 %v3569
    %v3571 = vlaneseq
    %v3572 = vshrl.u32 %v3571, 7
    %v3573 = vsub.s32 %v3570, %v3572
    %v3574 = vrot.slane %v3560, %v3573
    %v3575 = vcombine.high %v3567, %v3567
    %v3576 = vcombine.high %v3574, %v3574
    %v3577 = vcombine.high %v3081, %v3081
    %v3579 = vunpack.c.l.s4 1983009808
    %v3580 = vunpack.c.0.s8 %v3579
    %v3581 = vlaneseq
    %v3582 = vshrl.u32 %v3581, 7
    %v3583 = vsub.s32 %v3580, %v3582
    %v3584 = vrot.slane %v3081, %v3583
    %v3586 = vunpack.c.l.s4 1983009808
    %v3587 = vunpack.c.0.s8 %v3586
    %v3588 = vlaneseq
    %v3589 = vshrl.u32 %v3588, 7
    %v3590 = vsub.s32 %v3587, %v3589
    %v3591 = vrot.slane %v3577, %v3590
    %v3592 = vcombine.high %v3584, %v3584
    %v3593 = vcombine.high %v3591, %v3591
    %v3594 = vcombine.high %v3082, %v3082
    %v3596 = vunpack.c.l.s4 1983009808
    %v3597 = vunpack.c.0.s8 %v3596
    %v3598 = vlaneseq
    %v3599 = vshrl.u32 %v3598, 7
    %v3600 = vsub.s32 %v3597, %v3599
    %v3601 = vrot.slane %v3082, %v3600
    %v3603 = vunpack.c.l.s4 1983009808
    %v3604 = vunpack.c.0.s8 %v3603
    %v3605 = vlaneseq
    %v3606 = vshrl.u32 %v3605, 7
    %v3607 = vsub.s32 %v3604, %v3606
    %v3608 = vrot.slane %v3594, %v3607
    %v3609 = vcombine.high %v3601, %v3601
    %v3610 = vcombine.high %v3608, %v3608
    %v3611 = vcombine.high %v3083, %v3083
    %v3613 = vunpack.c.l.s4 1983009808
    %v3614 = vunpack.c.0.s8 %v3613
    %v3615 = vlaneseq
    %v3616 = vshrl.u32 %v3615, 7
    %v3617 = vsub.s32 %v3614, %v3616
    %v3618 = vrot.slane %v3083, %v3617
    %v3620 = vunpack.c.l.s4 1983009808
    %v3621 = vunpack.c.0.s8 %v3620
    %v3622 = vlaneseq
    %v3623 = vshrl.u32 %v3622, 7
    %v3624 = vsub.s32 %v3621, %v3623
    %v3625 = vrot.slane %v3611, %v3624
    %v3626 = vcombine.high %v3618, %v3618
    %v3627 = vcombine.high %v3625, %v3625
    %v3628 = vcombine.high %v3084, %v3084
    %v3630 = vunpack.c.l.s4 1983009808
    %v3631 = vunpack.c.0.s8 %v3630
    %v3632 = vlaneseq
    %v3633 = vshrl.u32 %v3632, 7
    %v3634 = vsub.s32 %v3631, %v3633
    %v3635 = vrot.slane %v3084, %v3634
    %v3637 = vunpack.c.l.s4 1983009808
    %v3638 = vunpack.c.0.s8 %v3637
    %v3639 = vlaneseq
    %v3640 = vshrl.u32 %v3639, 7
    %v3641 = vsub.s32 %v3638, %v3640
    %v3642 = vrot.slane %v3628, %v3641
    %v3643 = vcombine.high %v3635, %v3635
    %v3644 = vcombine.high %v3642, %v3642
    %v3645 = vcombine.high %v3085, %v3085
    %v3647 = vunpack.c.l.s4 1983009808
    %v3648 = vunpack.c.0.s8 %v3647
    %v3649 = vlaneseq
    %v3650 = vshrl.u32 %v3649, 7
    %v3651 = vsub.s32 %v3648, %v3650
    %v3652 = vrot.slane %v3085, %v3651
    %v3654 = vunpack.c.l.s4 1983009808
    %v3655 = vunpack.c.0.s8 %v3654
    %v3656 = vlaneseq
    %v3657 = vshrl.u32 %v3656, 7
    %v3658 = vsub.s32 %v3655, %v3657
    %v3659 = vrot.slane %v3645, %v3658
    %v3660 = vcombine.high %v3652, %v3652
    %v3661 = vcombine.high %v3659, %v3659
    %v3662 = vcombine.high %v3086, %v3086
    %v3664 = vunpack.c.l.s4 1983009808
    %v3665 = vunpack.c.0.s8 %v3664
    %v3666 = vlaneseq
    %v3667 = vshrl.u32 %v3666, 7
    %v3668 = vsub.s32 %v3665, %v3667
    %v3669 = vrot.slane %v3086, %v3668
    %v3671 = vunpack.c.l.s4 1983009808
    %v3672 = vunpack.c.0.s8 %v3671
    %v3673 = vlaneseq
    %v3674 = vshrl.u32 %v3673, 7
    %v3675 = vsub.s32 %v3672, %v3674
    %v3676 = vrot.slane %v3662, %v3675
    %v3677 = vcombine.high %v3669, %v3669
    %v3678 = vcombine.high %v3676, %v3676
    %v3679 = vcombine.high %v3087, %v3087
    %v3681 = vunpack.c.l.s4 1983009808
    %v3682 = vunpack.c.0.s8 %v3681
    %v3683 = vlaneseq
    %v3684 = vshrl.u32 %v3683, 7
    %v3685 = vsub.s32 %v3682, %v3684
    %v3686 = vrot.slane %v3087, %v3685
    %v3688 = vunpack.c.l.s4 1983009808
    %v3689 = vunpack.c.0.s8 %v3688
    %v3690 = vlaneseq
    %v3691 = vshrl.u32 %v3690, 7
    %v3692 = vsub.s32 %v3689, %v3691
    %v3693 = vrot.slane %v3679, %v3692
    %v3694 = vcombine.high %v3686, %v3686
    %v3695 = vcombine.high %v3693, %v3693
    %v3696 = vcombine.high %v3088, %v3088
    %v3698 = vunpack.c.l.s4 1983009808
    %v3699 = vunpack.c.0.s8 %v3698
    %v3700 = vlaneseq
    %v3701 = vshrl.u32 %v3700, 7
    %v3702 = vsub.s32 %v3699, %v3701
    %v3703 = vrot.slane %v3088, %v3702
    %v3705 = vunpack.c.l.s4 1983009808
    %v3706 = vunpack.c.0.s8 %v3705
    %v3707 = vlaneseq
    %v3708 = vshrl.u32 %v3707, 7
    %v3709 = vsub.s32 %v3706, %v3708
    %v3710 = vrot.slane %v3696, %v3709
    %v3711 = vcombine.high %v3703, %v3703
    %v3712 = vcombine.high %v3710, %v3710
    %v3713 = vcombine.high %v3089, %v3089
    %v3715 = vunpack.c.l.s4 1983009808
    %v3716 = vunpack.c.0.s8 %v3715
    %v3717 = vlaneseq
    %v3718 = vshrl.u32 %v3717, 7
    %v3719 = vsub.s32 %v3716, %v3718
    %v3720 = vrot.slane %v3089, %v3719
    %v3722 = vunpack.c.l.s4 1983009808
    %v3723 = vunpack.c.0.s8 %v3722
    %v3724 = vlaneseq
    %v3725 = vshrl.u32 %v3724, 7
    %v3726 = vsub.s32 %v3723, %v3725
    %v3727 = vrot.slane %v3713, %v3726
    %v3728 = vcombine.high %v3720, %v3720
    %v3729 = vcombine.high %v3727, %v3727
    %v3730 = vcombine.high %v3090, %v3090
    %v3732 = vunpack.c.l.s4 1983009808
    %v3733 = vunpack.c.0.s8 %v3732
    %v3734 = vlaneseq
    %v3735 = vshrl.u32 %v3734, 7
    %v3736 = vsub.s32 %v3733, %v3735
    %v3737 = vrot.slane %v3090, %v3736
    %v3739 = vunpack.c.l.s4 1983009808
    %v3740 = vunpack.c.0.s8 %v3739
    %v3741 = vlaneseq
    %v3742 = vshrl.u32 %v3741, 7
    %v3743 = vsub.s32 %v3740, %v3742
    %v3744 = vrot.slane %v3730, %v3743
    %v3745 = vcombine.high %v3737, %v3737
    %v3746 = vcombine.high %v3744, %v3744
    %v3747 = vcombine.high %v3091, %v3091
    %v3749 = vunpack.c.l.s4 1983009808
    %v3750 = vunpack.c.0.s8 %v3749
    %v3751 = vlaneseq
    %v3752 = vshrl.u32 %v3751, 7
    %v3753 = vsub.s32 %v3750, %v3752
    %v3754 = vrot.slane %v3091, %v3753
    %v3756 = vunpack.c.l.s4 1983009808
    %v3757 = vunpack.c.0.s8 %v3756
    %v3758 = vlaneseq
    %v3759 = vshrl.u32 %v3758, 7
    %v3760 = vsub.s32 %v3757, %v3759
    %v3761 = vrot.slane %v3747, %v3760
    %v3762 = vcombine.high %v3754, %v3754
    %v3763 = vcombine.high %v3761, %v3761
    %v3764 = vcombine.high %v3092, %v3092
    %v3766 = vunpack.c.l.s4 1983009808
    %v3767 = vunpack.c.0.s8 %v3766
    %v3768 = vlaneseq
    %v3769 = vshrl.u32 %v3768, 7
    %v3770 = vsub.s32 %v3767, %v3769
    %v3771 = vrot.slane %v3092, %v3770
    %v3773 = vunpack.c.l.s4 1983009808
    %v3774 = vunpack.c.0.s8 %v3773
    %v3775 = vlaneseq
    %v3776 = vshrl.u32 %v3775, 7
    %v3777 = vsub.s32 %v3774, %v3776
    %v3778 = vrot.slane %v3764, %v3777
    %v3779 = vcombine.high %v3771, %v3771
    %v3780 = vcombine.high %v3778, %v3778
    %v3781 = vcombine.high %v3093, %v3093
    %v3783 = vunpack.c.l.s4 1983009808
    %v3784 = vunpack.c.0.s8 %v3783
    %v3785 = vlaneseq
    %v3786 = vshrl.u32 %v3785, 7
    %v3787 = vsub.s32 %v3784, %v3786
    %v3788 = vrot.slane %v3093, %v3787
    %v3790 = vunpack.c.l.s4 1983009808
    %v3791 = vunpack.c.0.s8 %v3790
    %v3792 = vlaneseq
    %v3793 = vshrl.u32 %v3792, 7
    %v3794 = vsub.s32 %v3791, %v3793
    %v3795 = vrot.slane %v3781, %v3794
    %v3796 = vcombine.high %v3788, %v3788
    %v3797 = vcombine.high %v3795, %v3795
    %v3798 = vcombine.high %v3094, %v3094
    %v3800 = vunpack.c.l.s4 1983009808
    %v3801 = vunpack.c.0.s8 %v3800
    %v3802 = vlaneseq
    %v3803 = vshrl.u32 %v3802, 7
    %v3804 = vsub.s32 %v3801, %v3803
    %v3805 = vrot.slane %v3094, %v3804
    %v3807 = vunpack.c.l.s4 1983009808
    %v3808 = vunpack.c.0.s8 %v3807
    %v3809 = vlaneseq
    %v3810 = vshrl.u32 %v3809, 7
    %v3811 = vsub.s32 %v3808, %v3810
    %v3812 = vrot.slane %v3798, %v3811
    %v3813 = vcombine.high %v3805, %v3805
    %v3814 = vcombine.high %v3812, %v3812
    %v3815 = vcombine.high %v3095, %v3095
    %v3817 = vunpack.c.l.s4 1983009808
    %v3818 = vunpack.c.0.s8 %v3817
    %v3819 = vlaneseq
    %v3820 = vshrl.u32 %v3819, 7
    %v3821 = vsub.s32 %v3818, %v3820
    %v3822 = vrot.slane %v3095, %v3821
    %v3824 = vunpack.c.l.s4 1983009808
    %v3825 = vunpack.c.0.s8 %v3824
    %v3826 = vlaneseq
    %v3827 = vshrl.u32 %v3826, 7
    %v3828 = vsub.s32 %v3825, %v3827
    %v3829 = vrot.slane %v3815, %v3828
    %v3830 = vcombine.high %v3822, %v3822
    %v3831 = vcombine.high %v3829, %v3829
    %v3832 = vcombine.high %v3096, %v3096
    %v3834 = vunpack.c.l.s4 1983009808
    %v3835 = vunpack.c.0.s8 %v3834
    %v3836 = vlaneseq
    %v3837 = vshrl.u32 %v3836, 7
    %v3838 = vsub.s32 %v3835, %v3837
    %v3839 = vrot.slane %v3096, %v3838
    %v3841 = vunpack.c.l.s4 1983009808
    %v3842 = vunpack.c.0.s8 %v3841
    %v3843 = vlaneseq
    %v3844 = vshrl.u32 %v3843, 7
    %v3845 = vsub.s32 %v3842, %v3844
    %v3846 = vrot.slane %v3832, %v3845
    %v3847 = vcombine.high %v3839, %v3839
    %v3848 = vcombine.high %v3846, %v3846
    %v3849 = vcombine.high %v3097, %v3097
    %v3851 = vunpack.c.l.s4 1983009808
    %v3852 = vunpack.c.0.s8 %v3851
    %v3853 = vlaneseq
    %v3854 = vshrl.u32 %v3853, 7
    %v3855 = vsub.s32 %v3852, %v3854
    %v3856 = vrot.slane %v3097, %v3855
    %v3858 = vunpack.c.l.s4 1983009808
    %v3859 = vunpack.c.0.s8 %v3858
    %v3860 = vlaneseq
    %v3861 = vshrl.u32 %v3860, 7
    %v3862 = vsub.s32 %v3859, %v3861
    %v3863 = vrot.slane %v3849, %v3862
    %v3864 = vcombine.high %v3856, %v3856
    %v3865 = vcombine.high %v3863, %v3863
    %v3866 = vcombine.high %v3098, %v3098
    %v3868 = vunpack.c.l.s4 1983009808
    %v3869 = vunpack.c.0.s8 %v3868
    %v3870 = vlaneseq
    %v3871 = vshrl.u32 %v3870, 7
    %v3872 = vsub.s32 %v3869, %v3871
    %v3873 = vrot.slane %v3098, %v3872
    %v3875 = vunpack.c.l.s4 1983009808
    %v3876 = vunpack.c.0.s8 %v3875
    %v3877 = vlaneseq
    %v3878 = vshrl.u32 %v3877, 7
    %v3879 = vsub.s32 %v3876, %v3878
    %v3880 = vrot.slane %v3866, %v3879
    %v3881 = vcombine.high %v3873, %v3873
    %v3882 = vcombine.high %v3880, %v3880
    %v3883 = vcombine.high %v3099, %v3099
    %v3885 = vunpack.c.l.s4 1983009808
    %v3886 = vunpack.c.0.s8 %v3885
    %v3887 = vlaneseq
    %v3888 = vshrl.u32 %v3887, 7
    %v3889 = vsub.s32 %v3886, %v3888
    %v3890 = vrot.slane %v3099, %v3889
    %v3892 = vunpack.c.l.s4 1983009808
    %v3893 = vunpack.c.0.s8 %v3892
    %v3894 = vlaneseq
    %v3895 = vshrl.u32 %v3894, 7
    %v3896 = vsub.s32 %v3893, %v3895
    %v3897 = vrot.slane %v3883, %v3896
    %v3898 = vcombine.high %v3890, %v3890
    %v3899 = vcombine.high %v3897, %v3897
    %v3900 = vcombine.high %v3100, %v3100
    %v3902 = vunpack.c.l.s4 1983009808
    %v3903 = vunpack.c.0.s8 %v3902
    %v3904 = vlaneseq
    %v3905 = vshrl.u32 %v3904, 7
    %v3906 = vsub.s32 %v3903, %v3905
    %v3907 = vrot.slane %v3100, %v3906
    %v3909 = vunpack.c.l.s4 1983009808
    %v3910 = vunpack.c.0.s8 %v3909
    %v3911 = vlaneseq
    %v3912 = vshrl.u32 %v3911, 7
    %v3913 = vsub.s32 %v3910, %v3912
    %v3914 = vrot.slane %v3900, %v3913
    %v3915 = vcombine.high %v3907, %v3907
    %v3916 = vcombine.high %v3914, %v3914
    %v3917 = vcombine.high %v3101, %v3101
    %v3919 = vunpack.c.l.s4 1983009808
    %v3920 = vunpack.c.0.s8 %v3919
    %v3921 = vlaneseq
    %v3922 = vshrl.u32 %v3921, 7
    %v3923 = vsub.s32 %v3920, %v3922
    %v3924 = vrot.slane %v3101, %v3923
    %v3926 = vunpack.c.l.s4 1983009808
    %v3927 = vunpack.c.0.s8 %v3926
    %v3928 = vlaneseq
    %v3929 = vshrl.u32 %v3928, 7
    %v3930 = vsub.s32 %v3927, %v3929
    %v3931 = vrot.slane %v3917, %v3930
    %v3932 = vcombine.high %v3924, %v3924
    %v3933 = vcombine.high %v3931, %v3931
    %v3934 = vcombine.high %v3102, %v3102
    %v3936 = vunpack.c.l.s4 1983009808
    %v3937 = vunpack.c.0.s8 %v3936
    %v3938 = vlaneseq
    %v3939 = vshrl.u32 %v3938, 7
    %v3940 = vsub.s32 %v3937, %v3939
    %v3941 = vrot.slane %v3102, %v3940
    %v3943 = vunpack.c.l.s4 1983009808
    %v3944 = vunpack.c.0.s8 %v3943
    %v3945 = vlaneseq
    %v3946 = vshrl.u32 %v3945, 7
    %v3947 = vsub.s32 %v3944, %v3946
    %v3948 = vrot.slane %v3934, %v3947
    %v3949 = vcombine.high %v3941, %v3941
    %v3950 = vcombine.high %v3948, %v3948
    %v3951 = vcombine.high %v3103, %v3103
    %v3953 = vunpack.c.l.s4 1983009808
    %v3954 = vunpack.c.0.s8 %v3953
    %v3955 = vlaneseq
    %v3956 = vshrl.u32 %v3955, 7
    %v3957 = vsub.s32 %v3954, %v3956
    %v3958 = vrot.slane %v3103, %v3957
    %v3960 = vunpack.c.l.s4 1983009808
    %v3961 = vunpack.c.0.s8 %v3960
    %v3962 = vlaneseq
    %v3963 = vshrl.u32 %v3962, 7
    %v3964 = vsub.s32 %v3961, %v3963
    %v3965 = vrot.slane %v3951, %v3964
    %v3966 = vcombine.high %v3958, %v3958
    %v3967 = vcombine.high %v3965, %v3965
    %v3968 = vcombine.high %v3104, %v3104
    %v3970 = vunpack.c.l.s4 1983009808
    %v3971 = vunpack.c.0.s8 %v3970
    %v3972 = vlaneseq
    %v3973 = vshrl.u32 %v3972, 7
    %v3974 = vsub.s32 %v3971, %v3973
    %v3975 = vrot.slane %v3104, %v3974
    %v3977 = vunpack.c.l.s4 1983009808
    %v3978 = vunpack.c.0.s8 %v3977
    %v3979 = vlaneseq
    %v3980 = vshrl.u32 %v3979, 7
    %v3981 = vsub.s32 %v3978, %v3980
    %v3982 = vrot.slane %v3968, %v3981
    %v3983 = vcombine.high %v3975, %v3975
    %v3984 = vcombine.high %v3982, %v3982
    %v3985 = vcombine.high %v3105, %v3105
    %v3987 = vunpack.c.l.s4 1983009808
    %v3988 = vunpack.c.0.s8 %v3987
    %v3989 = vlaneseq
    %v3990 = vshrl.u32 %v3989, 7
    %v3991 = vsub.s32 %v3988, %v3990
    %v3992 = vrot.slane %v3105, %v3991
    %v3994 = vunpack.c.l.s4 1983009808
    %v3995 = vunpack.c.0.s8 %v3994
    %v3996 = vlaneseq
    %v3997 = vshrl.u32 %v3996, 7
    %v3998 = vsub.s32 %v3995, %v3997
    %v3999 = vrot.slane %v3985, %v3998
    %v4000 = vcombine.high %v3992, %v3992
    %v4001 = vcombine.high %v3999, %v3999
    %v4002 = vcombine.high %v3106, %v3106
    %v4004 = vunpack.c.l.s4 1983009808
    %v4005 = vunpack.c.0.s8 %v4004
    %v4006 = vlaneseq
    %v4007 = vshrl.u32 %v4006, 7
    %v4008 = vsub.s32 %v4005, %v4007
    %v4009 = vrot.slane %v3106, %v4008
    %v4011 = vunpack.c.l.s4 1983009808
    %v4012 = vunpack.c.0.s8 %v4011
    %v4013 = vlaneseq
    %v4014 = vshrl.u32 %v4013, 7
    %v4015 = vsub.s32 %v4012, %v4014
    %v4016 = vrot.slane %v4002, %v4015
    %v4017 = vcombine.high %v4009, %v4009
    %v4018 = vcombine.high %v4016, %v4016
    %v4019 = vcombine.high %v3107, %v3107
    %v4021 = vunpack.c.l.s4 1983009808
    %v4022 = vunpack.c.0.s8 %v4021
    %v4023 = vlaneseq
    %v4024 = vshrl.u32 %v4023, 7
    %v4025 = vsub.s32 %v4022, %v4024
    %v4026 = vrot.slane %v3107, %v4025
    %v4028 = vunpack.c.l.s4 1983009808
    %v4029 = vunpack.c.0.s8 %v4028
    %v4030 = vlaneseq
    %v4031 = vshrl.u32 %v4030, 7
    %v4032 = vsub.s32 %v4029, %v4031
    %v4033 = vrot.slane %v4019, %v4032
    %v4034 = vcombine.high %v4026, %v4026
    %v4035 = vcombine.high %v4033, %v4033
    %v4036 = vcombine.high %v3108, %v3108
    %v4038 = vunpack.c.l.s4 1983009808
    %v4039 = vunpack.c.0.s8 %v4038
    %v4040 = vlaneseq
    %v4041 = vshrl.u32 %v4040, 7
    %v4042 = vsub.s32 %v4039, %v4041
    %v4043 = vrot.slane %v3108, %v4042
    %v4045 = vunpack.c.l.s4 1983009808
    %v4046 = vunpack.c.0.s8 %v4045
    %v4047 = vlaneseq
    %v4048 = vshrl.u32 %v4047, 7
    %v4049 = vsub.s32 %v4046, %v4048
    %v4050 = vrot.slane %v4036, %v4049
    %v4051 = vcombine.high %v4043, %v4043
    %v4052 = vcombine.high %v4050, %v4050
    %v4053 = vcombine.high %v3109, %v3109
    %v4055 = vunpack.c.l.s4 1983009808
    %v4056 = vunpack.c.0.s8 %v4055
    %v4057 = vlaneseq
    %v4058 = vshrl.u32 %v4057, 7
    %v4059 = vsub.s32 %v4056, %v4058
    %v4060 = vrot.slane %v3109, %v4059
    %v4062 = vunpack.c.l.s4 1983009808
    %v4063 = vunpack.c.0.s8 %v4062
    %v4064 = vlaneseq
    %v4065 = vshrl.u32 %v4064, 7
    %v4066 = vsub.s32 %v4063, %v4065
    %v4067 = vrot.slane %v4053, %v4066
    %v4068 = vcombine.high %v4060, %v4060
    %v4069 = vcombine.high %v4067, %v4067
    %v4070 = vcombine.high %v3110, %v3110
    %v4072 = vunpack.c.l.s4 1983009808
    %v4073 = vunpack.c.0.s8 %v4072
    %v4074 = vlaneseq
    %v4075 = vshrl.u32 %v4074, 7
    %v4076 = vsub.s32 %v4073, %v4075
    %v4077 = vrot.slane %v3110, %v4076
    %v4079 = vunpack.c.l.s4 1983009808
    %v4080 = vunpack.c.0.s8 %v4079
    %v4081 = vlaneseq
    %v4082 = vshrl.u32 %v4081, 7
    %v4083 = vsub.s32 %v4080, %v4082
    %v4084 = vrot.slane %v4070, %v4083
    %v4085 = vcombine.high %v4077, %v4077
    %v4086 = vcombine.high %v4084, %v4084
    %v4087 = vcombine.high %v3111, %v3111
    %v4089 = vunpack.c.l.s4 1983009808
    %v4090 = vunpack.c.0.s8 %v4089
    %v4091 = vlaneseq
    %v4092 = vshrl.u32 %v4091, 7
    %v4093 = vsub.s32 %v4090, %v4092
    %v4094 = vrot.slane %v3111, %v4093
    %v4096 = vunpack.c.l.s4 1983009808
    %v4097 = vunpack.c.0.s8 %v4096
    %v4098 = vlaneseq
    %v4099 = vshrl.u32 %v4098, 7
    %v4100 = vsub.s32 %v4097, %v4099
    %v4101 = vrot.slane %v4087, %v4100
    %v4102 = vcombine.high %v4094, %v4094
    %v4103 = vcombine.high %v4101, %v4101
    %v4104 = vcombine.high %v3112, %v3112
    %v4106 = vunpack.c.l.s4 1983009808
    %v4107 = vunpack.c.0.s8 %v4106
    %v4108 = vlaneseq
    %v4109 = vshrl.u32 %v4108, 7
    %v4110 = vsub.s32 %v4107, %v4109
    %v4111 = vrot.slane %v3112, %v4110
    %v4113 = vunpack.c.l.s4 1983009808
    %v4114 = vunpack.c.0.s8 %v4113
    %v4115 = vlaneseq
    %v4116 = vshrl.u32 %v4115, 7
    %v4117 = vsub.s32 %v4114, %v4116
    %v4118 = vrot.slane %v4104, %v4117
    %v4119 = vcombine.high %v4111, %v4111
    %v4120 = vcombine.high %v4118, %v4118
    %v4121 = vcombine.high %v3113, %v3113
    %v4123 = vunpack.c.l.s4 1983009808
    %v4124 = vunpack.c.0.s8 %v4123
    %v4125 = vlaneseq
    %v4126 = vshrl.u32 %v4125, 7
    %v4127 = vsub.s32 %v4124, %v4126
    %v4128 = vrot.slane %v3113, %v4127
    %v4130 = vunpack.c.l.s4 1983009808
    %v4131 = vunpack.c.0.s8 %v4130
    %v4132 = vlaneseq
    %v4133 = vshrl.u32 %v4132, 7
    %v4134 = vsub.s32 %v4131, %v4133
    %v4135 = vrot.slane %v4121, %v4134
    %v4136 = vcombine.high %v4128, %v4128
    %v4137 = vcombine.high %v4135, %v4135
    %v4138 = vcombine.high %v3114, %v3114
    %v4140 = vunpack.c.l.s4 1983009808
    %v4141 = vunpack.c.0.s8 %v4140
    %v4142 = vlaneseq
    %v4143 = vshrl.u32 %v4142, 7
    %v4144 = vsub.s32 %v4141, %v4143
    %v4145 = vrot.slane %v3114, %v4144
    %v4147 = vunpack.c.l.s4 1983009808
    %v4148 = vunpack.c.0.s8 %v4147
    %v4149 = vlaneseq
    %v4150 = vshrl.u32 %v4149, 7
    %v4151 = vsub.s32 %v4148, %v4150
    %v4152 = vrot.slane %v4138, %v4151
    %v4153 = vcombine.high %v4145, %v4145
    %v4154 = vcombine.high %v4152, %v4152
    %v4155 = vcombine.high %v3115, %v3115
    %v4157 = vunpack.c.l.s4 1983009808
    %v4158 = vunpack.c.0.s8 %v4157
    %v4159 = vlaneseq
    %v4160 = vshrl.u32 %v4159, 7
    %v4161 = vsub.s32 %v4158, %v4160
    %v4162 = vrot.slane %v3115, %v4161
    %v4164 = vunpack.c.l.s4 1983009808
    %v4165 = vunpack.c.0.s8 %v4164
    %v4166 = vlaneseq
    %v4167 = vshrl.u32 %v4166, 7
    %v4168 = vsub.s32 %v4165, %v4167
    %v4169 = vrot.slane %v4155, %v4168
    %v4170 = vcombine.high %v4162, %v4162
    %v4171 = vcombine.high %v4169, %v4169
    %v4172 = vcombine.high %v3116, %v3116
    %v4174 = vunpack.c.l.s4 1983009808
    %v4175 = vunpack.c.0.s8 %v4174
    %v4176 = vlaneseq
    %v4177 = vshrl.u32 %v4176, 7
    %v4178 = vsub.s32 %v4175, %v4177
    %v4179 = vrot.slane %v3116, %v4178
    %v4181 = vunpack.c.l.s4 1983009808
    %v4182 = vunpack.c.0.s8 %v4181
    %v4183 = vlaneseq
    %v4184 = vshrl.u32 %v4183, 7
    %v4185 = vsub.s32 %v4182, %v4184
    %v4186 = vrot.slane %v4172, %v4185
    %v4187 = vcombine.high %v4179, %v4179
    %v4188 = vcombine.high %v4186, %v4186
    %v4189 = vcombine.high %v3117, %v3117
    %v4191 = vunpack.c.l.s4 1983009808
    %v4192 = vunpack.c.0.s8 %v4191
    %v4193 = vlaneseq
    %v4194 = vshrl.u32 %v4193, 7
    %v4195 = vsub.s32 %v4192, %v4194
    %v4196 = vrot.slane %v3117, %v4195
    %v4198 = vunpack.c.l.s4 1983009808
    %v4199 = vunpack.c.0.s8 %v4198
    %v4200 = vlaneseq
    %v4201 = vshrl.u32 %v4200, 7
    %v4202 = vsub.s32 %v4199, %v4201
    %v4203 = vrot.slane %v4189, %v4202
    %v4204 = vcombine.high %v4196, %v4196
    %v4205 = vcombine.high %v4203, %v4203
    %v4206 = vcombine.high %v3118, %v3118
    %v4208 = vunpack.c.l.s4 1983009808
    %v4209 = vunpack.c.0.s8 %v4208
    %v4210 = vlaneseq
    %v4211 = vshrl.u32 %v4210, 7
    %v4212 = vsub.s32 %v4209, %v4211
    %v4213 = vrot.slane %v3118, %v4212
    %v4215 = vunpack.c.l.s4 1983009808
    %v4216 = vunpack.c.0.s8 %v4215
    %v4217 = vlaneseq
    %v4218 = vshrl.u32 %v4217, 7
    %v4219 = vsub.s32 %v4216, %v4218
    %v4220 = vrot.slane %v4206, %v4219
    %v4221 = vcombine.high %v4213, %v4213
    %v4222 = vcombine.high %v4220, %v4220
    %v4223 = vcombine.high %v3119, %v3119
    %v4225 = vunpack.c.l.s4 1983009808
    %v4226 = vunpack.c.0.s8 %v4225
    %v4227 = vlaneseq
    %v4228 = vshrl.u32 %v4227, 7
    %v4229 = vsub.s32 %v4226, %v4228
    %v4230 = vrot.slane %v3119, %v4229
    %v4232 = vunpack.c.l.s4 1983009808
    %v4233 = vunpack.c.0.s8 %v4232
    %v4234 = vlaneseq
    %v4235 = vshrl.u32 %v4234, 7
    %v4236 = vsub.s32 %v4233, %v4235
    %v4237 = vrot.slane %v4223, %v4236
    %v4238 = vcombine.high %v4230, %v4230
    %v4239 = vcombine.high %v4237, %v4237
    %v4240 = vcombine.high %v3120, %v3120
    %v4242 = vunpack.c.l.s4 1983009808
    %v4243 = vunpack.c.0.s8 %v4242
    %v4244 = vlaneseq
    %v4245 = vshrl.u32 %v4244, 7
    %v4246 = vsub.s32 %v4243, %v4245
    %v4247 = vrot.slane %v3120, %v4246
    %v4249 = vunpack.c.l.s4 1983009808
    %v4250 = vunpack.c.0.s8 %v4249
    %v4251 = vlaneseq
    %v4252 = vshrl.u32 %v4251, 7
    %v4253 = vsub.s32 %v4250, %v4252
    %v4254 = vrot.slane %v4240, %v4253
    %v4255 = vcombine.high %v4247, %v4247
    %v4256 = vcombine.high %v4254, %v4254
    %v4257 = vcombine.high %v3121, %v3121
    %v4259 = vunpack.c.l.s4 1983009808
    %v4260 = vunpack.c.0.s8 %v4259
    %v4261 = vlaneseq
    %v4262 = vshrl.u32 %v4261, 7
    %v4263 = vsub.s32 %v4260, %v4262
    %v4264 = vrot.slane %v3121, %v4263
    %v4266 = vunpack.c.l.s4 1983009808
    %v4267 = vunpack.c.0.s8 %v4266
    %v4268 = vlaneseq
    %v4269 = vshrl.u32 %v4268, 7
    %v4270 = vsub.s32 %v4267, %v4269
    %v4271 = vrot.slane %v4257, %v4270
    %v4272 = vcombine.high %v4264, %v4264
    %v4273 = vcombine.high %v4271, %v4271
    %vm4530 = vcmask 254976
    %v4531 = vsel %vm4530, %v3193, -inf
    %v4532 = vrot.slane %v4531, 4
    %v4533 = vmax.f32 %v4531, %v4532
    %v4534 = vrot.slane %v4533, 2
    %v4535 = vmax.f32 %v4533, %v4534
    %v4536 = vrot.slane %v4535, 1
    %v4537 = vmax.f32 %v4535, %v4536
    %v4538 = vsel %vm4530, %v3201, -inf
    %v4539 = vrot.slane %v4538, 4
    %v4540 = vmax.f32 %v4538, %v4539
    %v4541 = vrot.slane %v4540, 2
    %v4542 = vmax.f32 %v4540, %v4541
    %v4543 = vrot.slane %v4542, 1
    %v4544 = vmax.f32 %v4542, %v4543
    %v4545 = vsel %vm4530, %v3200, -inf
    %v4546 = vrot.slane %v4545, 4
    %v4547 = vmax.f32 %v4545, %v4546
    %v4548 = vrot.slane %v4547, 2
    %v4549 = vmax.f32 %v4547, %v4548
    %v4550 = vrot.slane %v4549, 1
    %v4551 = vmax.f32 %v4549, %v4550
    %v4552 = vsel %vm4530, %v3202, -inf
    %v4553 = vrot.slane %v4552, 4
    %v4554 = vmax.f32 %v4552, %v4553
    %v4555 = vrot.slane %v4554, 2
    %v4556 = vmax.f32 %v4554, %v4555
    %v4557 = vrot.slane %v4556, 1
    %v4558 = vmax.f32 %v4556, %v4557
    %v4559 = vsel %vm4530, %v3210, -inf
    %v4560 = vrot.slane %v4559, 4
    %v4561 = vmax.f32 %v4559, %v4560
    %v4562 = vrot.slane %v4561, 2
    %v4563 = vmax.f32 %v4561, %v4562
    %v4564 = vrot.slane %v4563, 1
    %v4565 = vmax.f32 %v4563, %v4564
    %v4566 = vsel %vm4530, %v3218, -inf
    %v4567 = vrot.slane %v4566, 4
    %v4568 = vmax.f32 %v4566, %v4567
    %v4569 = vrot.slane %v4568, 2
    %v4570 = vmax.f32 %v4568, %v4569
    %v4571 = vrot.slane %v4570, 1
    %v4572 = vmax.f32 %v4570, %v4571
    %v4573 = vsel %vm4530, %v3217, -inf
    %v4574 = vrot.slane %v4573, 4
    %v4575 = vmax.f32 %v4573, %v4574
    %v4576 = vrot.slane %v4575, 2
    %v4577 = vmax.f32 %v4575, %v4576
    %v4578 = vrot.slane %v4577, 1
    %v4579 = vmax.f32 %v4577, %v4578
    %v4580 = vsel %vm4530, %v3219, -inf
    %v4581 = vrot.slane %v4580, 4
    %v4582 = vmax.f32 %v4580, %v4581
    %v4583 = vrot.slane %v4582, 2
    %v4584 = vmax.f32 %v4582, %v4583
    %v4585 = vrot.slane %v4584, 1
    %v4586 = vmax.f32 %v4584, %v4585
    %v4587 = vsel %vm4530, %v3227, -inf
    %v4588 = vrot.slane %v4587, 4
    %v4589 = vmax.f32 %v4587, %v4588
    %v4590 = vrot.slane %v4589, 2
    %v4591 = vmax.f32 %v4589, %v4590
    %v4592 = vrot.slane %v4591, 1
    %v4593 = vmax.f32 %v4591, %v4592
    %v4594 = vsel %vm4530, %v3235, -inf
    %v4595 = vrot.slane %v4594, 4
    %v4596 = vmax.f32 %v4594, %v4595
    %v4597 = vrot.slane %v4596, 2
    %v4598 = vmax.f32 %v4596, %v4597
    %v4599 = vrot.slane %v4598, 1
    %v4600 = vmax.f32 %v4598, %v4599
    %v4601 = vsel %vm4530, %v3234, -inf
    %v4602 = vrot.slane %v4601, 4
    %v4603 = vmax.f32 %v4601, %v4602
    %v4604 = vrot.slane %v4603, 2
    %v4605 = vmax.f32 %v4603, %v4604
    %v4606 = vrot.slane %v4605, 1
    %v4607 = vmax.f32 %v4605, %v4606
    %v4608 = vsel %vm4530, %v3236, -inf
    %v4609 = vrot.slane %v4608, 4
    %v4610 = vmax.f32 %v4608, %v4609
    %v4611 = vrot.slane %v4610, 2
    %v4612 = vmax.f32 %v4610, %v4611
    %v4613 = vrot.slane %v4612, 1
    %v4614 = vmax.f32 %v4612, %v4613
    %v4615 = vsel %vm4530, %v3244, -inf
    %v4616 = vrot.slane %v4615, 4
    %v4617 = vmax.f32 %v4615, %v4616
    %v4618 = vrot.slane %v4617, 2
    %v4619 = vmax.f32 %v4617, %v4618
    %v4620 = vrot.slane %v4619, 1
    %v4621 = vmax.f32 %v4619, %v4620
    %v4622 = vsel %vm4530, %v3252, -inf
    %v4623 = vrot.slane %v4622, 4
    %v4624 = vmax.f32 %v4622, %v4623
    %v4625 = vrot.slane %v4624, 2
    %v4626 = vmax.f32 %v4624, %v4625
    %v4627 = vrot.slane %v4626, 1
    %v4628 = vmax.f32 %v4626, %v4627
    %v4629 = vsel %vm4530, %v3251, -inf
    %v4630 = vrot.slane %v4629, 4
    %v4631 = vmax.f32 %v4629, %v4630
    %v4632 = vrot.slane %v4631, 2
    %v4633 = vmax.f32 %v4631, %v4632
    %v4634 = vrot.slane %v4633, 1
    %v4635 = vmax.f32 %v4633, %v4634
    %v4636 = vsel %vm4530, %v3253, -inf
    %v4637 = vrot.slane %v4636, 4
    %v4638 = vmax.f32 %v4636, %v4637
    %v4639 = vrot.slane %v4638, 2
    %v4640 = vmax.f32 %v4638, %v4639
    %v4641 = vrot.slane %v4640, 1
    %v4642 = vmax.f32 %v4640, %v4641
    %v4643 = vsel %vm4530, %v3261, -inf
    %v4644 = vrot.slane %v4643, 4
    %v4645 = vmax.f32 %v4643, %v4644
    %v4646 = vrot.slane %v4645, 2
    %v4647 = vmax.f32 %v4645, %v4646
    %v4648 = vrot.slane %v4647, 1
    %v4649 = vmax.f32 %v4647, %v4648
    %v4650 = vsel %vm4530, %v3269, -inf
    %v4651 = vrot.slane %v4650, 4
    %v4652 = vmax.f32 %v4650, %v4651
    %v4653 = vrot.slane %v4652, 2
    %v4654 = vmax.f32 %v4652, %v4653
    %v4655 = vrot.slane %v4654, 1
    %v4656 = vmax.f32 %v4654, %v4655
    %v4657 = vsel %vm4530, %v3268, -inf
    %v4658 = vrot.slane %v4657, 4
    %v4659 = vmax.f32 %v4657, %v4658
    %v4660 = vrot.slane %v4659, 2
    %v4661 = vmax.f32 %v4659, %v4660
    %v4662 = vrot.slane %v4661, 1
    %v4663 = vmax.f32 %v4661, %v4662
    %v4664 = vsel %vm4530, %v3270, -inf
    %v4665 = vrot.slane %v4664, 4
    %v4666 = vmax.f32 %v4664, %v4665
    %v4667 = vrot.slane %v4666, 2
    %v4668 = vmax.f32 %v4666, %v4667
    %v4669 = vrot.slane %v4668, 1
    %v4670 = vmax.f32 %v4668, %v4669
    %v4671 = vsel %vm4530, %v3278, -inf
    %v4672 = vrot.slane %v4671, 4
    %v4673 = vmax.f32 %v4671, %v4672
    %v4674 = vrot.slane %v4673, 2
    %v4675 = vmax.f32 %v4673, %v4674
    %v4676 = vrot.slane %v4675, 1
    %v4677 = vmax.f32 %v4675, %v4676
    %v4678 = vsel %vm4530, %v3286, -inf
    %v4679 = vrot.slane %v4678, 4
    %v4680 = vmax.f32 %v4678, %v4679
    %v4681 = vrot.slane %v4680, 2
    %v4682 = vmax.f32 %v4680, %v4681
    %v4683 = vrot.slane %v4682, 1
    %v4684 = vmax.f32 %v4682, %v4683
    %v4685 = vsel %vm4530, %v3285, -inf
    %v4686 = vrot.slane %v4685, 4
    %v4687 = vmax.f32 %v4685, %v4686
    %v4688 = vrot.slane %v4687, 2
    %v4689 = vmax.f32 %v4687, %v4688
    %v4690 = vrot.slane %v4689, 1
    %v4691 = vmax.f32 %v4689, %v4690
    %v4692 = vsel %vm4530, %v3287, -inf
    %v4693 = vrot.slane %v4692, 4
    %v4694 = vmax.f32 %v4692, %v4693
    %v4695 = vrot.slane %v4694, 2
    %v4696 = vmax.f32 %v4694, %v4695
    %v4697 = vrot.slane %v4696, 1
    %v4698 = vmax.f32 %v4696, %v4697
    %v4699 = vsel %vm4530, %v3295, -inf
    %v4700 = vrot.slane %v4699, 4
    %v4701 = vmax.f32 %v4699, %v4700
    %v4702 = vrot.slane %v4701, 2
    %v4703 = vmax.f32 %v4701, %v4702
    %v4704 = vrot.slane %v4703, 1
    %v4705 = vmax.f32 %v4703, %v4704
    %v4706 = vsel %vm4530, %v3303, -inf
    %v4707 = vrot.slane %v4706, 4
    %v4708 = vmax.f32 %v4706, %v4707
    %v4709 = vrot.slane %v4708, 2
    %v4710 = vmax.f32 %v4708, %v4709
    %v4711 = vrot.slane %v4710, 1
    %v4712 = vmax.f32 %v4710, %v4711
    %v4713 = vsel %vm4530, %v3302, -inf
    %v4714 = vrot.slane %v4713, 4
    %v4715 = vmax.f32 %v4713, %v4714
    %v4716 = vrot.slane %v4715, 2
    %v4717 = vmax.f32 %v4715, %v4716
    %v4718 = vrot.slane %v4717, 1
    %v4719 = vmax.f32 %v4717, %v4718
    %v4720 = vsel %vm4530, %v3304, -inf
    %v4721 = vrot.slane %v4720, 4
    %v4722 = vmax.f32 %v4720, %v4721
    %v4723 = vrot.slane %v4722, 2
    %v4724 = vmax.f32 %v4722, %v4723
    %v4725 = vrot.slane %v4724, 1
    %v4726 = vmax.f32 %v4724, %v4725
    %v4727 = vsel %vm4530, %v3312, -inf
    %v4728 = vrot.slane %v4727, 4
    %v4729 = vmax.f32 %v4727, %v4728
    %v4730 = vrot.slane %v4729, 2
    %v4731 = vmax.f32 %v4729, %v4730
    %v4732 = vrot.slane %v4731, 1
    %v4733 = vmax.f32 %v4731, %v4732
    %v4734 = vsel %vm4530, %v3320, -inf
    %v4735 = vrot.slane %v4734, 4
    %v4736 = vmax.f32 %v4734, %v4735
    %v4737 = vrot.slane %v4736, 2
    %v4738 = vmax.f32 %v4736, %v4737
    %v4739 = vrot.slane %v4738, 1
    %v4740 = vmax.f32 %v4738, %v4739
    %v4741 = vsel %vm4530, %v3319, -inf
    %v4742 = vrot.slane %v4741, 4
    %v4743 = vmax.f32 %v4741, %v4742
    %v4744 = vrot.slane %v4743, 2
    %v4745 = vmax.f32 %v4743, %v4744
    %v4746 = vrot.slane %v4745, 1
    %v4747 = vmax.f32 %v4745, %v4746
    %v4748 = vsel %vm4530, %v3321, -inf
    %v4749 = vrot.slane %v4748, 4
    %v4750 = vmax.f32 %v4748, %v4749
    %v4751 = vrot.slane %v4750, 2
    %v4752 = vmax.f32 %v4750, %v4751
    %v4753 = vrot.slane %v4752, 1
    %v4754 = vmax.f32 %v4752, %v4753
    %v4755 = vsel %vm4530, %v3329, -inf
    %v4756 = vrot.slane %v4755, 4
    %v4757 = vmax.f32 %v4755, %v4756
    %v4758 = vrot.slane %v4757, 2
    %v4759 = vmax.f32 %v4757, %v4758
    %v4760 = vrot.slane %v4759, 1
    %v4761 = vmax.f32 %v4759, %v4760
    %v4762 = vsel %vm4530, %v3337, -inf
    %v4763 = vrot.slane %v4762, 4
    %v4764 = vmax.f32 %v4762, %v4763
    %v4765 = vrot.slane %v4764, 2
    %v4766 = vmax.f32 %v4764, %v4765
    %v4767 = vrot.slane %v4766, 1
    %v4768 = vmax.f32 %v4766, %v4767
    %v4769 = vsel %vm4530, %v3336, -inf
    %v4770 = vrot.slane %v4769, 4
    %v4771 = vmax.f32 %v4769, %v4770
    %v4772 = vrot.slane %v4771, 2
    %v4773 = vmax.f32 %v4771, %v4772
    %v4774 = vrot.slane %v4773, 1
    %v4775 = vmax.f32 %v4773, %v4774
    %v4776 = vsel %vm4530, %v3338, -inf
    %v4777 = vrot.slane %v4776, 4
    %v4778 = vmax.f32 %v4776, %v4777
    %v4779 = vrot.slane %v4778, 2
    %v4780 = vmax.f32 %v4778, %v4779
    %v4781 = vrot.slane %v4780, 1
    %v4782 = vmax.f32 %v4780, %v4781
    %v4783 = vsel %vm4530, %v3346, -inf
    %v4784 = vrot.slane %v4783, 4
    %v4785 = vmax.f32 %v4783, %v4784
    %v4786 = vrot.slane %v4785, 2
    %v4787 = vmax.f32 %v4785, %v4786
    %v4788 = vrot.slane %v4787, 1
    %v4789 = vmax.f32 %v4787, %v4788
    %v4790 = vsel %vm4530, %v3354, -inf
    %v4791 = vrot.slane %v4790, 4
    %v4792 = vmax.f32 %v4790, %v4791
    %v4793 = vrot.slane %v4792, 2
    %v4794 = vmax.f32 %v4792, %v4793
    %v4795 = vrot.slane %v4794, 1
    %v4796 = vmax.f32 %v4794, %v4795
    %v4797 = vsel %vm4530, %v3353, -inf
    %v4798 = vrot.slane %v4797, 4
    %v4799 = vmax.f32 %v4797, %v4798
    %v4800 = vrot.slane %v4799, 2
    %v4801 = vmax.f32 %v4799, %v4800
    %v4802 = vrot.slane %v4801, 1
    %v4803 = vmax.f32 %v4801, %v4802
    %v4804 = vsel %vm4530, %v3355, -inf
    %v4805 = vrot.slane %v4804, 4
    %v4806 = vmax.f32 %v4804, %v4805
    %v4807 = vrot.slane %v4806, 2
    %v4808 = vmax.f32 %v4806, %v4807
    %v4809 = vrot.slane %v4808, 1
    %v4810 = vmax.f32 %v4808, %v4809
    %v4811 = vsel %vm4530, %v3363, -inf
    %v4812 = vrot.slane %v4811, 4
    %v4813 = vmax.f32 %v4811, %v4812
    %v4814 = vrot.slane %v4813, 2
    %v4815 = vmax.f32 %v4813, %v4814
    %v4816 = vrot.slane %v4815, 1
    %v4817 = vmax.f32 %v4815, %v4816
    %v4818 = vsel %vm4530, %v3371, -inf
    %v4819 = vrot.slane %v4818, 4
    %v4820 = vmax.f32 %v4818, %v4819
    %v4821 = vrot.slane %v4820, 2
    %v4822 = vmax.f32 %v4820, %v4821
    %v4823 = vrot.slane %v4822, 1
    %v4824 = vmax.f32 %v4822, %v4823
    %v4825 = vsel %vm4530, %v3370, -inf
    %v4826 = vrot.slane %v4825, 4
    %v4827 = vmax.f32 %v4825, %v4826
    %v4828 = vrot.slane %v4827, 2
    %v4829 = vmax.f32 %v4827, %v4828
    %v4830 = vrot.slane %v4829, 1
    %v4831 = vmax.f32 %v4829, %v4830
    %v4832 = vsel %vm4530, %v3372, -inf
    %v4833 = vrot.slane %v4832, 4
    %v4834 = vmax.f32 %v4832, %v4833
    %v4835 = vrot.slane %v4834, 2
    %v4836 = vmax.f32 %v4834, %v4835
    %v4837 = vrot.slane %v4836, 1
    %v4838 = vmax.f32 %v4836, %v4837
    %v4839 = vsel %vm4530, %v3380, -inf
    %v4840 = vrot.slane %v4839, 4
    %v4841 = vmax.f32 %v4839, %v4840
    %v4842 = vrot.slane %v4841, 2
    %v4843 = vmax.f32 %v4841, %v4842
    %v4844 = vrot.slane %v4843, 1
    %v4845 = vmax.f32 %v4843, %v4844
    %v4846 = vsel %vm4530, %v3388, -inf
    %v4847 = vrot.slane %v4846, 4
    %v4848 = vmax.f32 %v4846, %v4847
    %v4849 = vrot.slane %v4848, 2
    %v4850 = vmax.f32 %v4848, %v4849
    %v4851 = vrot.slane %v4850, 1
    %v4852 = vmax.f32 %v4850, %v4851
    %v4853 = vsel %vm4530, %v3387, -inf
    %v4854 = vrot.slane %v4853, 4
    %v4855 = vmax.f32 %v4853, %v4854
    %v4856 = vrot.slane %v4855, 2
    %v4857 = vmax.f32 %v4855, %v4856
    %v4858 = vrot.slane %v4857, 1
    %v4859 = vmax.f32 %v4857, %v4858
    %v4860 = vsel %vm4530, %v3389, -inf
    %v4861 = vrot.slane %v4860, 4
    %v4862 = vmax.f32 %v4860, %v4861
    %v4863 = vrot.slane %v4862, 2
    %v4864 = vmax.f32 %v4862, %v4863
    %v4865 = vrot.slane %v4864, 1
    %v4866 = vmax.f32 %v4864, %v4865
    %v4867 = vsel %vm4530, %v3397, -inf
    %v4868 = vrot.slane %v4867, 4
    %v4869 = vmax.f32 %v4867, %v4868
    %v4870 = vrot.slane %v4869, 2
    %v4871 = vmax.f32 %v4869, %v4870
    %v4872 = vrot.slane %v4871, 1
    %v4873 = vmax.f32 %v4871, %v4872
    %v4874 = vsel %vm4530, %v3405, -inf
    %v4875 = vrot.slane %v4874, 4
    %v4876 = vmax.f32 %v4874, %v4875
    %v4877 = vrot.slane %v4876, 2
    %v4878 = vmax.f32 %v4876, %v4877
    %v4879 = vrot.slane %v4878, 1
    %v4880 = vmax.f32 %v4878, %v4879
    %v4881 = vsel %vm4530, %v3404, -inf
    %v4882 = vrot.slane %v4881, 4
    %v4883 = vmax.f32 %v4881, %v4882
    %v4884 = vrot.slane %v4883, 2
    %v4885 = vmax.f32 %v4883, %v4884
    %v4886 = vrot.slane %v4885, 1
    %v4887 = vmax.f32 %v4885, %v4886
    %v4888 = vsel %vm4530, %v3406, -inf
    %v4889 = vrot.slane %v4888, 4
    %v4890 = vmax.f32 %v4888, %v4889
    %v4891 = vrot.slane %v4890, 2
    %v4892 = vmax.f32 %v4890, %v4891
    %v4893 = vrot.slane %v4892, 1
    %v4894 = vmax.f32 %v4892, %v4893
    %v4895 = vsel %vm4530, %v3414, -inf
    %v4896 = vrot.slane %v4895, 4
    %v4897 = vmax.f32 %v4895, %v4896
    %v4898 = vrot.slane %v4897, 2
    %v4899 = vmax.f32 %v4897, %v4898
    %v4900 = vrot.slane %v4899, 1
    %v4901 = vmax.f32 %v4899, %v4900
    %v4902 = vsel %vm4530, %v3422, -inf
    %v4903 = vrot.slane %v4902, 4
    %v4904 = vmax.f32 %v4902, %v4903
    %v4905 = vrot.slane %v4904, 2
    %v4906 = vmax.f32 %v4904, %v4905
    %v4907 = vrot.slane %v4906, 1
    %v4908 = vmax.f32 %v4906, %v4907
    %v4909 = vsel %vm4530, %v3421, -inf
    %v4910 = vrot.slane %v4909, 4
    %v4911 = vmax.f32 %v4909, %v4910
    %v4912 = vrot.slane %v4911, 2
    %v4913 = vmax.f32 %v4911, %v4912
    %v4914 = vrot.slane %v4913, 1
    %v4915 = vmax.f32 %v4913, %v4914
    %v4916 = vsel %vm4530, %v3423, -inf
    %v4917 = vrot.slane %v4916, 4
    %v4918 = vmax.f32 %v4916, %v4917
    %v4919 = vrot.slane %v4918, 2
    %v4920 = vmax.f32 %v4918, %v4919
    %v4921 = vrot.slane %v4920, 1
    %v4922 = vmax.f32 %v4920, %v4921
    %v4923 = vsel %vm4530, %v3431, -inf
    %v4924 = vrot.slane %v4923, 4
    %v4925 = vmax.f32 %v4923, %v4924
    %v4926 = vrot.slane %v4925, 2
    %v4927 = vmax.f32 %v4925, %v4926
    %v4928 = vrot.slane %v4927, 1
    %v4929 = vmax.f32 %v4927, %v4928
    %v4930 = vsel %vm4530, %v3439, -inf
    %v4931 = vrot.slane %v4930, 4
    %v4932 = vmax.f32 %v4930, %v4931
    %v4933 = vrot.slane %v4932, 2
    %v4934 = vmax.f32 %v4932, %v4933
    %v4935 = vrot.slane %v4934, 1
    %v4936 = vmax.f32 %v4934, %v4935
    %v4937 = vsel %vm4530, %v3438, -inf
    %v4938 = vrot.slane %v4937, 4
    %v4939 = vmax.f32 %v4937, %v4938
    %v4940 = vrot.slane %v4939, 2
    %v4941 = vmax.f32 %v4939, %v4940
    %v4942 = vrot.slane %v4941, 1
    %v4943 = vmax.f32 %v4941, %v4942
    %v4944 = vsel %vm4530, %v3440, -inf
    %v4945 = vrot.slane %v4944, 4
    %v4946 = vmax.f32 %v4944, %v4945
    %v4947 = vrot.slane %v4946, 2
    %v4948 = vmax.f32 %v4946, %v4947
    %v4949 = vrot.slane %v4948, 1
    %v4950 = vmax.f32 %v4948, %v4949
    %v4951 = vsel %vm4530, %v3448, -inf
    %v4952 = vrot.slane %v4951, 4
    %v4953 = vmax.f32 %v4951, %v4952
    %v4954 = vrot.slane %v4953, 2
    %v4955 = vmax.f32 %v4953, %v4954
    %v4956 = vrot.slane %v4955, 1
    %v4957 = vmax.f32 %v4955, %v4956
    %v4958 = vsel %vm4530, %v3456, -inf
    %v4959 = vrot.slane %v4958, 4
    %v4960 = vmax.f32 %v4958, %v4959
    %v4961 = vrot.slane %v4960, 2
    %v4962 = vmax.f32 %v4960, %v4961
    %v4963 = vrot.slane %v4962, 1
    %v4964 = vmax.f32 %v4962, %v4963
    %v4965 = vsel %vm4530, %v3455, -inf
    %v4966 = vrot.slane %v4965, 4
    %v4967 = vmax.f32 %v4965, %v4966
    %v4968 = vrot.slane %v4967, 2
    %v4969 = vmax.f32 %v4967, %v4968
    %v4970 = vrot.slane %v4969, 1
    %v4971 = vmax.f32 %v4969, %v4970
    %v4972 = vsel %vm4530, %v3457, -inf
    %v4973 = vrot.slane %v4972, 4
    %v4974 = vmax.f32 %v4972, %v4973
    %v4975 = vrot.slane %v4974, 2
    %v4976 = vmax.f32 %v4974, %v4975
    %v4977 = vrot.slane %v4976, 1
    %v4978 = vmax.f32 %v4976, %v4977
    %v4979 = vsel %vm4530, %v3465, -inf
    %v4980 = vrot.slane %v4979, 4
    %v4981 = vmax.f32 %v4979, %v4980
    %v4982 = vrot.slane %v4981, 2
    %v4983 = vmax.f32 %v4981, %v4982
    %v4984 = vrot.slane %v4983, 1
    %v4985 = vmax.f32 %v4983, %v4984
    %v4986 = vsel %vm4530, %v3473, -inf
    %v4987 = vrot.slane %v4986, 4
    %v4988 = vmax.f32 %v4986, %v4987
    %v4989 = vrot.slane %v4988, 2
    %v4990 = vmax.f32 %v4988, %v4989
    %v4991 = vrot.slane %v4990, 1
    %v4992 = vmax.f32 %v4990, %v4991
    %v4993 = vsel %vm4530, %v3472, -inf
    %v4994 = vrot.slane %v4993, 4
    %v4995 = vmax.f32 %v4993, %v4994
    %v4996 = vrot.slane %v4995, 2
    %v4997 = vmax.f32 %v4995, %v4996
    %v4998 = vrot.slane %v4997, 1
    %v4999 = vmax.f32 %v4997, %v4998
    %v5000 = vsel %vm4530, %v3474, -inf
    %v5001 = vrot.slane %v5000, 4
    %v5002 = vmax.f32 %v5000, %v5001
    %v5003 = vrot.slane %v5002, 2
    %v5004 = vmax.f32 %v5002, %v5003
    %v5005 = vrot.slane %v5004, 1
    %v5006 = vmax.f32 %v5004, %v5005
    %v5007 = vsel %vm4530, %v3482, -inf
    %v5008 = vrot.slane %v5007, 4
    %v5009 = vmax.f32 %v5007, %v5008
    %v5010 = vrot.slane %v5009, 2
    %v5011 = vmax.f32 %v5009, %v5010
    %v5012 = vrot.slane %v5011, 1
    %v5013 = vmax.f32 %v5011, %v5012
    %v5014 = vsel %vm4530, %v3490, -inf
    %v5015 = vrot.slane %v5014, 4
    %v5016 = vmax.f32 %v5014, %v5015
    %v5017 = vrot.slane %v5016, 2
    %v5018 = vmax.f32 %v5016, %v5017
    %v5019 = vrot.slane %v5018, 1
    %v5020 = vmax.f32 %v5018, %v5019
    %v5021 = vsel %vm4530, %v3489, -inf
    %v5022 = vrot.slane %v5021, 4
    %v5023 = vmax.f32 %v5021, %v5022
    %v5024 = vrot.slane %v5023, 2
    %v5025 = vmax.f32 %v5023, %v5024
    %v5026 = vrot.slane %v5025, 1
    %v5027 = vmax.f32 %v5025, %v5026
    %v5028 = vsel %vm4530, %v3491, -inf
    %v5029 = vrot.slane %v5028, 4
    %v5030 = vmax.f32 %v5028, %v5029
    %v5031 = vrot.slane %v5030, 2
    %v5032 = vmax.f32 %v5030, %v5031
    %v5033 = vrot.slane %v5032, 1
    %v5034 = vmax.f32 %v5032, %v5033
    %v5035 = vsel %vm4530, %v3499, -inf
    %v5036 = vrot.slane %v5035, 4
    %v5037 = vmax.f32 %v5035, %v5036
    %v5038 = vrot.slane %v5037, 2
    %v5039 = vmax.f32 %v5037, %v5038
    %v5040 = vrot.slane %v5039, 1
    %v5041 = vmax.f32 %v5039, %v5040
    %v5042 = vsel %vm4530, %v3507, -inf
    %v5043 = vrot.slane %v5042, 4
    %v5044 = vmax.f32 %v5042, %v5043
    %v5045 = vrot.slane %v5044, 2
    %v5046 = vmax.f32 %v5044, %v5045
    %v5047 = vrot.slane %v5046, 1
    %v5048 = vmax.f32 %v5046, %v5047
    %v5049 = vsel %vm4530, %v3506, -inf
    %v5050 = vrot.slane %v5049, 4
    %v5051 = vmax.f32 %v5049, %v5050
    %v5052 = vrot.slane %v5051, 2
    %v5053 = vmax.f32 %v5051, %v5052
    %v5054 = vrot.slane %v5053, 1
    %v5055 = vmax.f32 %v5053, %v5054
    %v5056 = vsel %vm4530, %v3508, -inf
    %v5057 = vrot.slane %v5056, 4
    %v5058 = vmax.f32 %v5056, %v5057
    %v5059 = vrot.slane %v5058, 2
    %v5060 = vmax.f32 %v5058, %v5059
    %v5061 = vrot.slane %v5060, 1
    %v5062 = vmax.f32 %v5060, %v5061
    %v5063 = vsel %vm4530, %v3516, -inf
    %v5064 = vrot.slane %v5063, 4
    %v5065 = vmax.f32 %v5063, %v5064
    %v5066 = vrot.slane %v5065, 2
    %v5067 = vmax.f32 %v5065, %v5066
    %v5068 = vrot.slane %v5067, 1
    %v5069 = vmax.f32 %v5067, %v5068
    %v5070 = vsel %vm4530, %v3524, -inf
    %v5071 = vrot.slane %v5070, 4
    %v5072 = vmax.f32 %v5070, %v5071
    %v5073 = vrot.slane %v5072, 2
    %v5074 = vmax.f32 %v5072, %v5073
    %v5075 = vrot.slane %v5074, 1
    %v5076 = vmax.f32 %v5074, %v5075
    %v5077 = vsel %vm4530, %v3523, -inf
    %v5078 = vrot.slane %v5077, 4
    %v5079 = vmax.f32 %v5077, %v5078
    %v5080 = vrot.slane %v5079, 2
    %v5081 = vmax.f32 %v5079, %v5080
    %v5082 = vrot.slane %v5081, 1
    %v5083 = vmax.f32 %v5081, %v5082
    %v5084 = vsel %vm4530, %v3525, -inf
    %v5085 = vrot.slane %v5084, 4
    %v5086 = vmax.f32 %v5084, %v5085
    %v5087 = vrot.slane %v5086, 2
    %v5088 = vmax.f32 %v5086, %v5087
    %v5089 = vrot.slane %v5088, 1
    %v5090 = vmax.f32 %v5088, %v5089
    %v5091 = vsel %vm4530, %v3533, -inf
    %v5092 = vrot.slane %v5091, 4
    %v5093 = vmax.f32 %v5091, %v5092
    %v5094 = vrot.slane %v5093, 2
    %v5095 = vmax.f32 %v5093, %v5094
    %v5096 = vrot.slane %v5095, 1
    %v5097 = vmax.f32 %v5095, %v5096
    %v5098 = vsel %vm4530, %v3541, -inf
    %v5099 = vrot.slane %v5098, 4
    %v5100 = vmax.f32 %v5098, %v5099
    %v5101 = vrot.slane %v5100, 2
    %v5102 = vmax.f32 %v5100, %v5101
    %v5103 = vrot.slane %v5102, 1
    %v5104 = vmax.f32 %v5102, %v5103
    %v5105 = vsel %vm4530, %v3540, -inf
    %v5106 = vrot.slane %v5105, 4
    %v5107 = vmax.f32 %v5105, %v5106
    %v5108 = vrot.slane %v5107, 2
    %v5109 = vmax.f32 %v5107, %v5108
    %v5110 = vrot.slane %v5109, 1
    %v5111 = vmax.f32 %v5109, %v5110
    %v5112 = vsel %vm4530, %v3542, -inf
    %v5113 = vrot.slane %v5112, 4
    %v5114 = vmax.f32 %v5112, %v5113
    %v5115 = vrot.slane %v5114, 2
    %v5116 = vmax.f32 %v5114, %v5115
    %v5117 = vrot.slane %v5116, 1
    %v5118 = vmax.f32 %v5116, %v5117
    %v5119 = vsel %vm4530, %v3550, -inf
    %v5120 = vrot.slane %v5119, 4
    %v5121 = vmax.f32 %v5119, %v5120
    %v5122 = vrot.slane %v5121, 2
    %v5123 = vmax.f32 %v5121, %v5122
    %v5124 = vrot.slane %v5123, 1
    %v5125 = vmax.f32 %v5123, %v5124
    %v5126 = vsel %vm4530, %v3558, -inf
    %v5127 = vrot.slane %v5126, 4
    %v5128 = vmax.f32 %v5126, %v5127
    %v5129 = vrot.slane %v5128, 2
    %v5130 = vmax.f32 %v5128, %v5129
    %v5131 = vrot.slane %v5130, 1
    %v5132 = vmax.f32 %v5130, %v5131
    %v5133 = vsel %vm4530, %v3557, -inf
    %v5134 = vrot.slane %v5133, 4
    %v5135 = vmax.f32 %v5133, %v5134
    %v5136 = vrot.slane %v5135, 2
    %v5137 = vmax.f32 %v5135, %v5136
    %v5138 = vrot.slane %v5137, 1
    %v5139 = vmax.f32 %v5137, %v5138
    %v5140 = vsel %vm4530, %v3559, -inf
    %v5141 = vrot.slane %v5140, 4
    %v5142 = vmax.f32 %v5140, %v5141
    %v5143 = vrot.slane %v5142, 2
    %v5144 = vmax.f32 %v5142, %v5143
    %v5145 = vrot.slane %v5144, 1
    %v5146 = vmax.f32 %v5144, %v5145
    %v5147 = vsel %vm4530, %v3567, -inf
    %v5148 = vrot.slane %v5147, 4
    %v5149 = vmax.f32 %v5147, %v5148
    %v5150 = vrot.slane %v5149, 2
    %v5151 = vmax.f32 %v5149, %v5150
    %v5152 = vrot.slane %v5151, 1
    %v5153 = vmax.f32 %v5151, %v5152
    %v5154 = vsel %vm4530, %v3575, -inf
    %v5155 = vrot.slane %v5154, 4
    %v5156 = vmax.f32 %v5154, %v5155
    %v5157 = vrot.slane %v5156, 2
    %v5158 = vmax.f32 %v5156, %v5157
    %v5159 = vrot.slane %v5158, 1
    %v5160 = vmax.f32 %v5158, %v5159
    %v5161 = vsel %vm4530, %v3574, -inf
    %v5162 = vrot.slane %v5161, 4
    %v5163 = vmax.f32 %v5161, %v5162
    %v5164 = vrot.slane %v5163, 2
    %v5165 = vmax.f32 %v5163, %v5164
    %v5166 = vrot.slane %v5165, 1
    %v5167 = vmax.f32 %v5165, %v5166
    %v5168 = vsel %vm4530, %v3576, -inf
    %v5169 = vrot.slane %v5168, 4
    %v5170 = vmax.f32 %v5168, %v5169
    %v5171 = vrot.slane %v5170, 2
    %v5172 = vmax.f32 %v5170, %v5171
    %v5173 = vrot.slane %v5172, 1
    %v5174 = vmax.f32 %v5172, %v5173
    %v5175 = vsel %vm4530, %v3584, -inf
    %v5176 = vrot.slane %v5175, 4
    %v5177 = vmax.f32 %v5175, %v5176
    %v5178 = vrot.slane %v5177, 2
    %v5179 = vmax.f32 %v5177, %v5178
    %v5180 = vrot.slane %v5179, 1
    %v5181 = vmax.f32 %v5179, %v5180
    %v5182 = vsel %vm4530, %v3592, -inf
    %v5183 = vrot.slane %v5182, 4
    %v5184 = vmax.f32 %v5182, %v5183
    %v5185 = vrot.slane %v5184, 2
    %v5186 = vmax.f32 %v5184, %v5185
    %v5187 = vrot.slane %v5186, 1
    %v5188 = vmax.f32 %v5186, %v5187
    %v5189 = vsel %vm4530, %v3591, -inf
    %v5190 = vrot.slane %v5189, 4
    %v5191 = vmax.f32 %v5189, %v5190
    %v5192 = vrot.slane %v5191, 2
    %v5193 = vmax.f32 %v5191, %v5192
    %v5194 = vrot.slane %v5193, 1
    %v5195 = vmax.f32 %v5193, %v5194
    %v5196 = vsel %vm4530, %v3593, -inf
    %v5197 = vrot.slane %v5196, 4
    %v5198 = vmax.f32 %v5196, %v5197
    %v5199 = vrot.slane %v5198, 2
    %v5200 = vmax.f32 %v5198, %v5199
    %v5201 = vrot.slane %v5200, 1
    %v5202 = vmax.f32 %v5200, %v5201
    %v5203 = vsel %vm4530, %v3601, -inf
    %v5204 = vrot.slane %v5203, 4
    %v5205 = vmax.f32 %v5203, %v5204
    %v5206 = vrot.slane %v5205, 2
    %v5207 = vmax.f32 %v5205, %v5206
    %v5208 = vrot.slane %v5207, 1
    %v5209 = vmax.f32 %v5207, %v5208
    %v5210 = vsel %vm4530, %v3609, -inf
    %v5211 = vrot.slane %v5210, 4
    %v5212 = vmax.f32 %v5210, %v5211
    %v5213 = vrot.slane %v5212, 2
    %v5214 = vmax.f32 %v5212, %v5213
    %v5215 = vrot.slane %v5214, 1
    %v5216 = vmax.f32 %v5214, %v5215
    %v5217 = vsel %vm4530, %v3608, -inf
    %v5218 = vrot.slane %v5217, 4
    %v5219 = vmax.f32 %v5217, %v5218
    %v5220 = vrot.slane %v5219, 2
    %v5221 = vmax.f32 %v5219, %v5220
    %v5222 = vrot.slane %v5221, 1
    %v5223 = vmax.f32 %v5221, %v5222
    %v5224 = vsel %vm4530, %v3610, -inf
    %v5225 = vrot.slane %v5224, 4
    %v5226 = vmax.f32 %v5224, %v5225
    %v5227 = vrot.slane %v5226, 2
    %v5228 = vmax.f32 %v5226, %v5227
    %v5229 = vrot.slane %v5228, 1
    %v5230 = vmax.f32 %v5228, %v5229
    %v5231 = vsel %vm4530, %v3618, -inf
    %v5232 = vrot.slane %v5231, 4
    %v5233 = vmax.f32 %v5231, %v5232
    %v5234 = vrot.slane %v5233, 2
    %v5235 = vmax.f32 %v5233, %v5234
    %v5236 = vrot.slane %v5235, 1
    %v5237 = vmax.f32 %v5235, %v5236
    %v5238 = vsel %vm4530, %v3626, -inf
    %v5239 = vrot.slane %v5238, 4
    %v5240 = vmax.f32 %v5238, %v5239
    %v5241 = vrot.slane %v5240, 2
    %v5242 = vmax.f32 %v5240, %v5241
    %v5243 = vrot.slane %v5242, 1
    %v5244 = vmax.f32 %v5242, %v5243
    %v5245 = vsel %vm4530, %v3625, -inf
    %v5246 = vrot.slane %v5245, 4
    %v5247 = vmax.f32 %v5245, %v5246
    %v5248 = vrot.slane %v5247, 2
    %v5249 = vmax.f32 %v5247, %v5248
    %v5250 = vrot.slane %v5249, 1
    %v5251 = vmax.f32 %v5249, %v5250
    %v5252 = vsel %vm4530, %v3627, -inf
    %v5253 = vrot.slane %v5252, 4
    %v5254 = vmax.f32 %v5252, %v5253
    %v5255 = vrot.slane %v5254, 2
    %v5256 = vmax.f32 %v5254, %v5255
    %v5257 = vrot.slane %v5256, 1
    %v5258 = vmax.f32 %v5256, %v5257
    %v5259 = vsel %vm4530, %v3635, -inf
    %v5260 = vrot.slane %v5259, 4
    %v5261 = vmax.f32 %v5259, %v5260
    %v5262 = vrot.slane %v5261, 2
    %v5263 = vmax.f32 %v5261, %v5262
    %v5264 = vrot.slane %v5263, 1
    %v5265 = vmax.f32 %v5263, %v5264
    %v5266 = vsel %vm4530, %v3643, -inf
    %v5267 = vrot.slane %v5266, 4
    %v5268 = vmax.f32 %v5266, %v5267
    %v5269 = vrot.slane %v5268, 2
    %v5270 = vmax.f32 %v5268, %v5269
    %v5271 = vrot.slane %v5270, 1
    %v5272 = vmax.f32 %v5270, %v5271
    %v5273 = vsel %vm4530, %v3642, -inf
    %v5274 = vrot.slane %v5273, 4
    %v5275 = vmax.f32 %v5273, %v5274
    %v5276 = vrot.slane %v5275, 2
    %v5277 = vmax.f32 %v5275, %v5276
    %v5278 = vrot.slane %v5277, 1
    %v5279 = vmax.f32 %v5277, %v5278
    %v5280 = vsel %vm4530, %v3644, -inf
    %v5281 = vrot.slane %v5280, 4
    %v5282 = vmax.f32 %v5280, %v5281
    %v5283 = vrot.slane %v5282, 2
    %v5284 = vmax.f32 %v5282, %v5283
    %v5285 = vrot.slane %v5284, 1
    %v5286 = vmax.f32 %v5284, %v5285
    %v5287 = vsel %vm4530, %v3652, -inf
    %v5288 = vrot.slane %v5287, 4
    %v5289 = vmax.f32 %v5287, %v5288
    %v5290 = vrot.slane %v5289, 2
    %v5291 = vmax.f32 %v5289, %v5290
    %v5292 = vrot.slane %v5291, 1
    %v5293 = vmax.f32 %v5291, %v5292
    %v5294 = vsel %vm4530, %v3660, -inf
    %v5295 = vrot.slane %v5294, 4
    %v5296 = vmax.f32 %v5294, %v5295
    %v5297 = vrot.slane %v5296, 2
    %v5298 = vmax.f32 %v5296, %v5297
    %v5299 = vrot.slane %v5298, 1
    %v5300 = vmax.f32 %v5298, %v5299
    %v5301 = vsel %vm4530, %v3659, -inf
    %v5302 = vrot.slane %v5301, 4
    %v5303 = vmax.f32 %v5301, %v5302
    %v5304 = vrot.slane %v5303, 2
    %v5305 = vmax.f32 %v5303, %v5304
    %v5306 = vrot.slane %v5305, 1
    %v5307 = vmax.f32 %v5305, %v5306
    %v5308 = vsel %vm4530, %v3661, -inf
    %v5309 = vrot.slane %v5308, 4
    %v5310 = vmax.f32 %v5308, %v5309
    %v5311 = vrot.slane %v5310, 2
    %v5312 = vmax.f32 %v5310, %v5311
    %v5313 = vrot.slane %v5312, 1
    %v5314 = vmax.f32 %v5312, %v5313
    %v5315 = vsel %vm4530, %v3669, -inf
    %v5316 = vrot.slane %v5315, 4
    %v5317 = vmax.f32 %v5315, %v5316
    %v5318 = vrot.slane %v5317, 2
    %v5319 = vmax.f32 %v5317, %v5318
    %v5320 = vrot.slane %v5319, 1
    %v5321 = vmax.f32 %v5319, %v5320
    %v5322 = vsel %vm4530, %v3677, -inf
    %v5323 = vrot.slane %v5322, 4
    %v5324 = vmax.f32 %v5322, %v5323
    %v5325 = vrot.slane %v5324, 2
    %v5326 = vmax.f32 %v5324, %v5325
    %v5327 = vrot.slane %v5326, 1
    %v5328 = vmax.f32 %v5326, %v5327
    %v5329 = vsel %vm4530, %v3676, -inf
    %v5330 = vrot.slane %v5329, 4
    %v5331 = vmax.f32 %v5329, %v5330
    %v5332 = vrot.slane %v5331, 2
    %v5333 = vmax.f32 %v5331, %v5332
    %v5334 = vrot.slane %v5333, 1
    %v5335 = vmax.f32 %v5333, %v5334
    %v5336 = vsel %vm4530, %v3678, -inf
    %v5337 = vrot.slane %v5336, 4
    %v5338 = vmax.f32 %v5336, %v5337
    %v5339 = vrot.slane %v5338, 2
    %v5340 = vmax.f32 %v5338, %v5339
    %v5341 = vrot.slane %v5340, 1
    %v5342 = vmax.f32 %v5340, %v5341
    %v5343 = vsel %vm4530, %v3686, -inf
    %v5344 = vrot.slane %v5343, 4
    %v5345 = vmax.f32 %v5343, %v5344
    %v5346 = vrot.slane %v5345, 2
    %v5347 = vmax.f32 %v5345, %v5346
    %v5348 = vrot.slane %v5347, 1
    %v5349 = vmax.f32 %v5347, %v5348
    %v5350 = vsel %vm4530, %v3694, -inf
    %v5351 = vrot.slane %v5350, 4
    %v5352 = vmax.f32 %v5350, %v5351
    %v5353 = vrot.slane %v5352, 2
    %v5354 = vmax.f32 %v5352, %v5353
    %v5355 = vrot.slane %v5354, 1
    %v5356 = vmax.f32 %v5354, %v5355
    %v5357 = vsel %vm4530, %v3693, -inf
    %v5358 = vrot.slane %v5357, 4
    %v5359 = vmax.f32 %v5357, %v5358
    %v5360 = vrot.slane %v5359, 2
    %v5361 = vmax.f32 %v5359, %v5360
    %v5362 = vrot.slane %v5361, 1
    %v5363 = vmax.f32 %v5361, %v5362
    %v5364 = vsel %vm4530, %v3695, -inf
    %v5365 = vrot.slane %v5364, 4
    %v5366 = vmax.f32 %v5364, %v5365
    %v5367 = vrot.slane %v5366, 2
    %v5368 = vmax.f32 %v5366, %v5367
    %v5369 = vrot.slane %v5368, 1
    %v5370 = vmax.f32 %v5368, %v5369
    %v5371 = vsel %vm4530, %v3703, -inf
    %v5372 = vrot.slane %v5371, 4
    %v5373 = vmax.f32 %v5371, %v5372
    %v5374 = vrot.slane %v5373, 2
    %v5375 = vmax.f32 %v5373, %v5374
    %v5376 = vrot.slane %v5375, 1
    %v5377 = vmax.f32 %v5375, %v5376
    %v5378 = vsel %vm4530, %v3711, -inf
    %v5379 = vrot.slane %v5378, 4
    %v5380 = vmax.f32 %v5378, %v5379
    %v5381 = vrot.slane %v5380, 2
    %v5382 = vmax.f32 %v5380, %v5381
    %v5383 = vrot.slane %v5382, 1
    %v5384 = vmax.f32 %v5382, %v5383
    %v5385 = vsel %vm4530, %v3710, -inf
    %v5386 = vrot.slane %v5385, 4
    %v5387 = vmax.f32 %v5385, %v5386
    %v5388 = vrot.slane %v5387, 2
    %v5389 = vmax.f32 %v5387, %v5388
    %v5390 = vrot.slane %v5389, 1
    %v5391 = vmax.f32 %v5389, %v5390
    %v5392 = vsel %vm4530, %v3712, -inf
    %v5393 = vrot.slane %v5392, 4
    %v5394 = vmax.f32 %v5392, %v5393
    %v5395 = vrot.slane %v5394, 2
    %v5396 = vmax.f32 %v5394, %v5395
    %v5397 = vrot.slane %v5396, 1
    %v5398 = vmax.f32 %v5396, %v5397
    %v5399 = vsel %vm4530, %v3720, -inf
    %v5400 = vrot.slane %v5399, 4
    %v5401 = vmax.f32 %v5399, %v5400
    %v5402 = vrot.slane %v5401, 2
    %v5403 = vmax.f32 %v5401, %v5402
    %v5404 = vrot.slane %v5403, 1
    %v5405 = vmax.f32 %v5403, %v5404
    %v5406 = vsel %vm4530, %v3728, -inf
    %v5407 = vrot.slane %v5406, 4
    %v5408 = vmax.f32 %v5406, %v5407
    %v5409 = vrot.slane %v5408, 2
    %v5410 = vmax.f32 %v5408, %v5409
    %v5411 = vrot.slane %v5410, 1
    %v5412 = vmax.f32 %v5410, %v5411
    %v5413 = vsel %vm4530, %v3727, -inf
    %v5414 = vrot.slane %v5413, 4
    %v5415 = vmax.f32 %v5413, %v5414
    %v5416 = vrot.slane %v5415, 2
    %v5417 = vmax.f32 %v5415, %v5416
    %v5418 = vrot.slane %v5417, 1
    %v5419 = vmax.f32 %v5417, %v5418
    %v5420 = vsel %vm4530, %v3729, -inf
    %v5421 = vrot.slane %v5420, 4
    %v5422 = vmax.f32 %v5420, %v5421
    %v5423 = vrot.slane %v5422, 2
    %v5424 = vmax.f32 %v5422, %v5423
    %v5425 = vrot.slane %v5424, 1
    %v5426 = vmax.f32 %v5424, %v5425
    %v5427 = vsel %vm4530, %v3737, -inf
    %v5428 = vrot.slane %v5427, 4
    %v5429 = vmax.f32 %v5427, %v5428
    %v5430 = vrot.slane %v5429, 2
    %v5431 = vmax.f32 %v5429, %v5430
    %v5432 = vrot.slane %v5431, 1
    %v5433 = vmax.f32 %v5431, %v5432
    %v5434 = vsel %vm4530, %v3745, -inf
    %v5435 = vrot.slane %v5434, 4
    %v5436 = vmax.f32 %v5434, %v5435
    %v5437 = vrot.slane %v5436, 2
    %v5438 = vmax.f32 %v5436, %v5437
    %v5439 = vrot.slane %v5438, 1
    %v5440 = vmax.f32 %v5438, %v5439
    %v5441 = vsel %vm4530, %v3744, -inf
    %v5442 = vrot.slane %v5441, 4
    %v5443 = vmax.f32 %v5441, %v5442
    %v5444 = vrot.slane %v5443, 2
    %v5445 = vmax.f32 %v5443, %v5444
    %v5446 = vrot.slane %v5445, 1
    %v5447 = vmax.f32 %v5445, %v5446
    %v5448 = vsel %vm4530, %v3746, -inf
    %v5449 = vrot.slane %v5448, 4
    %v5450 = vmax.f32 %v5448, %v5449
    %v5451 = vrot.slane %v5450, 2
    %v5452 = vmax.f32 %v5450, %v5451
    %v5453 = vrot.slane %v5452, 1
    %v5454 = vmax.f32 %v5452, %v5453
    %v5455 = vsel %vm4530, %v3754, -inf
    %v5456 = vrot.slane %v5455, 4
    %v5457 = vmax.f32 %v5455, %v5456
    %v5458 = vrot.slane %v5457, 2
    %v5459 = vmax.f32 %v5457, %v5458
    %v5460 = vrot.slane %v5459, 1
    %v5461 = vmax.f32 %v5459, %v5460
    %v5462 = vsel %vm4530, %v3762, -inf
    %v5463 = vrot.slane %v5462, 4
    %v5464 = vmax.f32 %v5462, %v5463
    %v5465 = vrot.slane %v5464, 2
    %v5466 = vmax.f32 %v5464, %v5465
    %v5467 = vrot.slane %v5466, 1
    %v5468 = vmax.f32 %v5466, %v5467
    %v5469 = vsel %vm4530, %v3761, -inf
    %v5470 = vrot.slane %v5469, 4
    %v5471 = vmax.f32 %v5469, %v5470
    %v5472 = vrot.slane %v5471, 2
    %v5473 = vmax.f32 %v5471, %v5472
    %v5474 = vrot.slane %v5473, 1
    %v5475 = vmax.f32 %v5473, %v5474
    %v5476 = vsel %vm4530, %v3763, -inf
    %v5477 = vrot.slane %v5476, 4
    %v5478 = vmax.f32 %v5476, %v5477
    %v5479 = vrot.slane %v5478, 2
    %v5480 = vmax.f32 %v5478, %v5479
    %v5481 = vrot.slane %v5480, 1
    %v5482 = vmax.f32 %v5480, %v5481
    %v5483 = vsel %vm4530, %v3771, -inf
    %v5484 = vrot.slane %v5483, 4
    %v5485 = vmax.f32 %v5483, %v5484
    %v5486 = vrot.slane %v5485, 2
    %v5487 = vmax.f32 %v5485, %v5486
    %v5488 = vrot.slane %v5487, 1
    %v5489 = vmax.f32 %v5487, %v5488
    %v5490 = vsel %vm4530, %v3779, -inf
    %v5491 = vrot.slane %v5490, 4
    %v5492 = vmax.f32 %v5490, %v5491
    %v5493 = vrot.slane %v5492, 2
    %v5494 = vmax.f32 %v5492, %v5493
    %v5495 = vrot.slane %v5494, 1
    %v5496 = vmax.f32 %v5494, %v5495
    %v5497 = vsel %vm4530, %v3778, -inf
    %v5498 = vrot.slane %v5497, 4
    %v5499 = vmax.f32 %v5497, %v5498
    %v5500 = vrot.slane %v5499, 2
    %v5501 = vmax.f32 %v5499, %v5500
    %v5502 = vrot.slane %v5501, 1
    %v5503 = vmax.f32 %v5501, %v5502
    %v5504 = vsel %vm4530, %v3780, -inf
    %v5505 = vrot.slane %v5504, 4
    %v5506 = vmax.f32 %v5504, %v5505
    %v5507 = vrot.slane %v5506, 2
    %v5508 = vmax.f32 %v5506, %v5507
    %v5509 = vrot.slane %v5508, 1
    %v5510 = vmax.f32 %v5508, %v5509
    %v5511 = vsel %vm4530, %v3788, -inf
    %v5512 = vrot.slane %v5511, 4
    %v5513 = vmax.f32 %v5511, %v5512
    %v5514 = vrot.slane %v5513, 2
    %v5515 = vmax.f32 %v5513, %v5514
    %v5516 = vrot.slane %v5515, 1
    %v5517 = vmax.f32 %v5515, %v5516
    %v5518 = vsel %vm4530, %v3796, -inf
    %v5519 = vrot.slane %v5518, 4
    %v5520 = vmax.f32 %v5518, %v5519
    %v5521 = vrot.slane %v5520, 2
    %v5522 = vmax.f32 %v5520, %v5521
    %v5523 = vrot.slane %v5522, 1
    %v5524 = vmax.f32 %v5522, %v5523
    %v5525 = vsel %vm4530, %v3795, -inf
    %v5526 = vrot.slane %v5525, 4
    %v5527 = vmax.f32 %v5525, %v5526
    %v5528 = vrot.slane %v5527, 2
    %v5529 = vmax.f32 %v5527, %v5528
    %v5530 = vrot.slane %v5529, 1
    %v5531 = vmax.f32 %v5529, %v5530
    %v5532 = vsel %vm4530, %v3797, -inf
    %v5533 = vrot.slane %v5532, 4
    %v5534 = vmax.f32 %v5532, %v5533
    %v5535 = vrot.slane %v5534, 2
    %v5536 = vmax.f32 %v5534, %v5535
    %v5537 = vrot.slane %v5536, 1
    %v5538 = vmax.f32 %v5536, %v5537
    %v5539 = vsel %vm4530, %v3805, -inf
    %v5540 = vrot.slane %v5539, 4
    %v5541 = vmax.f32 %v5539, %v5540
    %v5542 = vrot.slane %v5541, 2
    %v5543 = vmax.f32 %v5541, %v5542
    %v5544 = vrot.slane %v5543, 1
    %v5545 = vmax.f32 %v5543, %v5544
    %v5546 = vsel %vm4530, %v3813, -inf
    %v5547 = vrot.slane %v5546, 4
    %v5548 = vmax.f32 %v5546, %v5547
    %v5549 = vrot.slane %v5548, 2
    %v5550 = vmax.f32 %v5548, %v5549
    %v5551 = vrot.slane %v5550, 1
    %v5552 = vmax.f32 %v5550, %v5551
    %v5553 = vsel %vm4530, %v3812, -inf
    %v5554 = vrot.slane %v5553, 4
    %v5555 = vmax.f32 %v5553, %v5554
    %v5556 = vrot.slane %v5555, 2
    %v5557 = vmax.f32 %v5555, %v5556
    %v5558 = vrot.slane %v5557, 1
    %v5559 = vmax.f32 %v5557, %v5558
    %v5560 = vsel %vm4530, %v3814, -inf
    %v5561 = vrot.slane %v5560, 4
    %v5562 = vmax.f32 %v5560, %v5561
    %v5563 = vrot.slane %v5562, 2
    %v5564 = vmax.f32 %v5562, %v5563
    %v5565 = vrot.slane %v5564, 1
    %v5566 = vmax.f32 %v5564, %v5565
    %v5567 = vsel %vm4530, %v3822, -inf
    %v5568 = vrot.slane %v5567, 4
    %v5569 = vmax.f32 %v5567, %v5568
    %v5570 = vrot.slane %v5569, 2
    %v5571 = vmax.f32 %v5569, %v5570
    %v5572 = vrot.slane %v5571, 1
    %v5573 = vmax.f32 %v5571, %v5572
    %v5574 = vsel %vm4530, %v3830, -inf
    %v5575 = vrot.slane %v5574, 4
    %v5576 = vmax.f32 %v5574, %v5575
    %v5577 = vrot.slane %v5576, 2
    %v5578 = vmax.f32 %v5576, %v5577
    %v5579 = vrot.slane %v5578, 1
    %v5580 = vmax.f32 %v5578, %v5579
    %v5581 = vsel %vm4530, %v3829, -inf
    %v5582 = vrot.slane %v5581, 4
    %v5583 = vmax.f32 %v5581, %v5582
    %v5584 = vrot.slane %v5583, 2
    %v5585 = vmax.f32 %v5583, %v5584
    %v5586 = vrot.slane %v5585, 1
    %v5587 = vmax.f32 %v5585, %v5586
    %v5588 = vsel %vm4530, %v3831, -inf
    %v5589 = vrot.slane %v5588, 4
    %v5590 = vmax.f32 %v5588, %v5589
    %v5591 = vrot.slane %v5590, 2
    %v5592 = vmax.f32 %v5590, %v5591
    %v5593 = vrot.slane %v5592, 1
    %v5594 = vmax.f32 %v5592, %v5593
    %v5595 = vsel %vm4530, %v3839, -inf
    %v5596 = vrot.slane %v5595, 4
    %v5597 = vmax.f32 %v5595, %v5596
    %v5598 = vrot.slane %v5597, 2
    %v5599 = vmax.f32 %v5597, %v5598
    %v5600 = vrot.slane %v5599, 1
    %v5601 = vmax.f32 %v5599, %v5600
    %v5602 = vsel %vm4530, %v3847, -inf
    %v5603 = vrot.slane %v5602, 4
    %v5604 = vmax.f32 %v5602, %v5603
    %v5605 = vrot.slane %v5604, 2
    %v5606 = vmax.f32 %v5604, %v5605
    %v5607 = vrot.slane %v5606, 1
    %v5608 = vmax.f32 %v5606, %v5607
    %v5609 = vsel %vm4530, %v3846, -inf
    %v5610 = vrot.slane %v5609, 4
    %v5611 = vmax.f32 %v5609, %v5610
    %v5612 = vrot.slane %v5611, 2
    %v5613 = vmax.f32 %v5611, %v5612
    %v5614 = vrot.slane %v5613, 1
    %v5615 = vmax.f32 %v5613, %v5614
    %v5616 = vsel %vm4530, %v3848, -inf
    %v5617 = vrot.slane %v5616, 4
    %v5618 = vmax.f32 %v5616, %v5617
    %v5619 = vrot.slane %v5618, 2
    %v5620 = vmax.f32 %v5618, %v5619
    %v5621 = vrot.slane %v5620, 1
    %v5622 = vmax.f32 %v5620, %v5621
    %v5623 = vsel %vm4530, %v3856, -inf
    %v5624 = vrot.slane %v5623, 4
    %v5625 = vmax.f32 %v5623, %v5624
    %v5626 = vrot.slane %v5625, 2
    %v5627 = vmax.f32 %v5625, %v5626
    %v5628 = vrot.slane %v5627, 1
    %v5629 = vmax.f32 %v5627, %v5628
    %v5630 = vsel %vm4530, %v3864, -inf
    %v5631 = vrot.slane %v5630, 4
    %v5632 = vmax.f32 %v5630, %v5631
    %v5633 = vrot.slane %v5632, 2
    %v5634 = vmax.f32 %v5632, %v5633
    %v5635 = vrot.slane %v5634, 1
    %v5636 = vmax.f32 %v5634, %v5635
    %v5637 = vsel %vm4530, %v3863, -inf
    %v5638 = vrot.slane %v5637, 4
    %v5639 = vmax.f32 %v5637, %v5638
    %v5640 = vrot.slane %v5639, 2
    %v5641 = vmax.f32 %v5639, %v5640
    %v5642 = vrot.slane %v5641, 1
    %v5643 = vmax.f32 %v5641, %v5642
    %v5644 = vsel %vm4530, %v3865, -inf
    %v5645 = vrot.slane %v5644, 4
    %v5646 = vmax.f32 %v5644, %v5645
    %v5647 = vrot.slane %v5646, 2
    %v5648 = vmax.f32 %v5646, %v5647
    %v5649 = vrot.slane %v5648, 1
    %v5650 = vmax.f32 %v5648, %v5649
    %v5651 = vsel %vm4530, %v3873, -inf
    %v5652 = vrot.slane %v5651, 4
    %v5653 = vmax.f32 %v5651, %v5652
    %v5654 = vrot.slane %v5653, 2
    %v5655 = vmax.f32 %v5653, %v5654
    %v5656 = vrot.slane %v5655, 1
    %v5657 = vmax.f32 %v5655, %v5656
    %v5658 = vsel %vm4530, %v3881, -inf
    %v5659 = vrot.slane %v5658, 4
    %v5660 = vmax.f32 %v5658, %v5659
    %v5661 = vrot.slane %v5660, 2
    %v5662 = vmax.f32 %v5660, %v5661
    %v5663 = vrot.slane %v5662, 1
    %v5664 = vmax.f32 %v5662, %v5663
    %v5665 = vsel %vm4530, %v3880, -inf
    %v5666 = vrot.slane %v5665, 4
    %v5667 = vmax.f32 %v5665, %v5666
    %v5668 = vrot.slane %v5667, 2
    %v5669 = vmax.f32 %v5667, %v5668
    %v5670 = vrot.slane %v5669, 1
    %v5671 = vmax.f32 %v5669, %v5670
    %v5672 = vsel %vm4530, %v3882, -inf
    %v5673 = vrot.slane %v5672, 4
    %v5674 = vmax.f32 %v5672, %v5673
    %v5675 = vrot.slane %v5674, 2
    %v5676 = vmax.f32 %v5674, %v5675
    %v5677 = vrot.slane %v5676, 1
    %v5678 = vmax.f32 %v5676, %v5677
    %v5679 = vsel %vm4530, %v3890, -inf
    %v5680 = vrot.slane %v5679, 4
    %v5681 = vmax.f32 %v5679, %v5680
    %v5682 = vrot.slane %v5681, 2
    %v5683 = vmax.f32 %v5681, %v5682
    %v5684 = vrot.slane %v5683, 1
    %v5685 = vmax.f32 %v5683, %v5684
    %v5686 = vsel %vm4530, %v3898, -inf
    %v5687 = vrot.slane %v5686, 4
    %v5688 = vmax.f32 %v5686, %v5687
    %v5689 = vrot.slane %v5688, 2
    %v5690 = vmax.f32 %v5688, %v5689
    %v5691 = vrot.slane %v5690, 1
    %v5692 = vmax.f32 %v5690, %v5691
    %v5693 = vsel %vm4530, %v3897, -inf
    %v5694 = vrot.slane %v5693, 4
    %v5695 = vmax.f32 %v5693, %v5694
    %v5696 = vrot.slane %v5695, 2
    %v5697 = vmax.f32 %v5695, %v5696
    %v5698 = vrot.slane %v5697, 1
    %v5699 = vmax.f32 %v5697, %v5698
    %v5700 = vsel %vm4530, %v3899, -inf
    %v5701 = vrot.slane %v5700, 4
    %v5702 = vmax.f32 %v5700, %v5701
    %v5703 = vrot.slane %v5702, 2
    %v5704 = vmax.f32 %v5702, %v5703
    %v5705 = vrot.slane %v5704, 1
    %v5706 = vmax.f32 %v5704, %v5705
    %v5707 = vsel %vm4530, %v3907, -inf
    %v5708 = vrot.slane %v5707, 4
    %v5709 = vmax.f32 %v5707, %v5708
    %v5710 = vrot.slane %v5709, 2
    %v5711 = vmax.f32 %v5709, %v5710
    %v5712 = vrot.slane %v5711, 1
    %v5713 = vmax.f32 %v5711, %v5712
    %v5714 = vsel %vm4530, %v3915, -inf
    %v5715 = vrot.slane %v5714, 4
    %v5716 = vmax.f32 %v5714, %v5715
    %v5717 = vrot.slane %v5716, 2
    %v5718 = vmax.f32 %v5716, %v5717
    %v5719 = vrot.slane %v5718, 1
    %v5720 = vmax.f32 %v5718, %v5719
    %v5721 = vsel %vm4530, %v3914, -inf
    %v5722 = vrot.slane %v5721, 4
    %v5723 = vmax.f32 %v5721, %v5722
    %v5724 = vrot.slane %v5723, 2
    %v5725 = vmax.f32 %v5723, %v5724
    %v5726 = vrot.slane %v5725, 1
    %v5727 = vmax.f32 %v5725, %v5726
    %v5728 = vsel %vm4530, %v3916, -inf
    %v5729 = vrot.slane %v5728, 4
    %v5730 = vmax.f32 %v5728, %v5729
    %v5731 = vrot.slane %v5730, 2
    %v5732 = vmax.f32 %v5730, %v5731
    %v5733 = vrot.slane %v5732, 1
    %v5734 = vmax.f32 %v5732, %v5733
    %v5735 = vsel %vm4530, %v3924, -inf
    %v5736 = vrot.slane %v5735, 4
    %v5737 = vmax.f32 %v5735, %v5736
    %v5738 = vrot.slane %v5737, 2
    %v5739 = vmax.f32 %v5737, %v5738
    %v5740 = vrot.slane %v5739, 1
    %v5741 = vmax.f32 %v5739, %v5740
    %v5742 = vsel %vm4530, %v3932, -inf
    %v5743 = vrot.slane %v5742, 4
    %v5744 = vmax.f32 %v5742, %v5743
    %v5745 = vrot.slane %v5744, 2
    %v5746 = vmax.f32 %v5744, %v5745
    %v5747 = vrot.slane %v5746, 1
    %v5748 = vmax.f32 %v5746, %v5747
    %v5749 = vsel %vm4530, %v3931, -inf
    %v5750 = vrot.slane %v5749, 4
    %v5751 = vmax.f32 %v5749, %v5750
    %v5752 = vrot.slane %v5751, 2
    %v5753 = vmax.f32 %v5751, %v5752
    %v5754 = vrot.slane %v5753, 1
    %v5755 = vmax.f32 %v5753, %v5754
    %v5756 = vsel %vm4530, %v3933, -inf
    %v5757 = vrot.slane %v5756, 4
    %v5758 = vmax.f32 %v5756, %v5757
    %v5759 = vrot.slane %v5758, 2
    %v5760 = vmax.f32 %v5758, %v5759
    %v5761 = vrot.slane %v5760, 1
    %v5762 = vmax.f32 %v5760, %v5761
    %v5763 = vsel %vm4530, %v3941, -inf
    %v5764 = vrot.slane %v5763, 4
    %v5765 = vmax.f32 %v5763, %v5764
    %v5766 = vrot.slane %v5765, 2
    %v5767 = vmax.f32 %v5765, %v5766
    %v5768 = vrot.slane %v5767, 1
    %v5769 = vmax.f32 %v5767, %v5768
    %v5770 = vsel %vm4530, %v3949, -inf
    %v5771 = vrot.slane %v5770, 4
    %v5772 = vmax.f32 %v5770, %v5771
    %v5773 = vrot.slane %v5772, 2
    %v5774 = vmax.f32 %v5772, %v5773
    %v5775 = vrot.slane %v5774, 1
    %v5776 = vmax.f32 %v5774, %v5775
    %v5777 = vsel %vm4530, %v3948, -inf
    %v5778 = vrot.slane %v5777, 4
    %v5779 = vmax.f32 %v5777, %v5778
    %v5780 = vrot.slane %v5779, 2
    %v5781 = vmax.f32 %v5779, %v5780
    %v5782 = vrot.slane %v5781, 1
    %v5783 = vmax.f32 %v5781, %v5782
    %v5784 = vsel %vm4530, %v3950, -inf
    %v5785 = vrot.slane %v5784, 4
    %v5786 = vmax.f32 %v5784, %v5785
    %v5787 = vrot.slane %v5786, 2
    %v5788 = vmax.f32 %v5786, %v5787
    %v5789 = vrot.slane %v5788, 1
    %v5790 = vmax.f32 %v5788, %v5789
    %v5791 = vsel %vm4530, %v3958, -inf
    %v5792 = vrot.slane %v5791, 4
    %v5793 = vmax.f32 %v5791, %v5792
    %v5794 = vrot.slane %v5793, 2
    %v5795 = vmax.f32 %v5793, %v5794
    %v5796 = vrot.slane %v5795, 1
    %v5797 = vmax.f32 %v5795, %v5796
    %v5798 = vsel %vm4530, %v3966, -inf
    %v5799 = vrot.slane %v5798, 4
    %v5800 = vmax.f32 %v5798, %v5799
    %v5801 = vrot.slane %v5800, 2
    %v5802 = vmax.f32 %v5800, %v5801
    %v5803 = vrot.slane %v5802, 1
    %v5804 = vmax.f32 %v5802, %v5803
    %v5805 = vsel %vm4530, %v3965, -inf
    %v5806 = vrot.slane %v5805, 4
    %v5807 = vmax.f32 %v5805, %v5806
    %v5808 = vrot.slane %v5807, 2
    %v5809 = vmax.f32 %v5807, %v5808
    %v5810 = vrot.slane %v5809, 1
    %v5811 = vmax.f32 %v5809, %v5810
    %v5812 = vsel %vm4530, %v3967, -inf
    %v5813 = vrot.slane %v5812, 4
    %v5814 = vmax.f32 %v5812, %v5813
    %v5815 = vrot.slane %v5814, 2
    %v5816 = vmax.f32 %v5814, %v5815
    %v5817 = vrot.slane %v5816, 1
    %v5818 = vmax.f32 %v5816, %v5817
    %v5819 = vsel %vm4530, %v3975, -inf
    %v5820 = vrot.slane %v5819, 4
    %v5821 = vmax.f32 %v5819, %v5820
    %v5822 = vrot.slane %v5821, 2
    %v5823 = vmax.f32 %v5821, %v5822
    %v5824 = vrot.slane %v5823, 1
    %v5825 = vmax.f32 %v5823, %v5824
    %v5826 = vsel %vm4530, %v3983, -inf
    %v5827 = vrot.slane %v5826, 4
    %v5828 = vmax.f32 %v5826, %v5827
    %v5829 = vrot.slane %v5828, 2
    %v5830 = vmax.f32 %v5828, %v5829
    %v5831 = vrot.slane %v5830, 1
    %v5832 = vmax.f32 %v5830, %v5831
    %v5833 = vsel %vm4530, %v3982, -inf
    %v5834 = vrot.slane %v5833, 4
    %v5835 = vmax.f32 %v5833, %v5834
    %v5836 = vrot.slane %v5835, 2
    %v5837 = vmax.f32 %v5835, %v5836
    %v5838 = vrot.slane %v5837, 1
    %v5839 = vmax.f32 %v5837, %v5838
    %v5840 = vsel %vm4530, %v3984, -inf
    %v5841 = vrot.slane %v5840, 4
    %v5842 = vmax.f32 %v5840, %v5841
    %v5843 = vrot.slane %v5842, 2
    %v5844 = vmax.f32 %v5842, %v5843
    %v5845 = vrot.slane %v5844, 1
    %v5846 = vmax.f32 %v5844, %v5845
    %v5847 = vsel %vm4530, %v3992, -inf
    %v5848 = vrot.slane %v5847, 4
    %v5849 = vmax.f32 %v5847, %v5848
    %v5850 = vrot.slane %v5849, 2
    %v5851 = vmax.f32 %v5849, %v5850
    %v5852 = vrot.slane %v5851, 1
    %v5853 = vmax.f32 %v5851, %v5852
    %v5854 = vsel %vm4530, %v4000, -inf
    %v5855 = vrot.slane %v5854, 4
    %v5856 = vmax.f32 %v5854, %v5855
    %v5857 = vrot.slane %v5856, 2
    %v5858 = vmax.f32 %v5856, %v5857
    %v5859 = vrot.slane %v5858, 1
    %v5860 = vmax.f32 %v5858, %v5859
    %v5861 = vsel %vm4530, %v3999, -inf
    %v5862 = vrot.slane %v5861, 4
    %v5863 = vmax.f32 %v5861, %v5862
    %v5864 = vrot.slane %v5863, 2
    %v5865 = vmax.f32 %v5863, %v5864
    %v5866 = vrot.slane %v5865, 1
    %v5867 = vmax.f32 %v5865, %v5866
    %v5868 = vsel %vm4530, %v4001, -inf
    %v5869 = vrot.slane %v5868, 4
    %v5870 = vmax.f32 %v5868, %v5869
    %v5871 = vrot.slane %v5870, 2
    %v5872 = vmax.f32 %v5870, %v5871
    %v5873 = vrot.slane %v5872, 1
    %v5874 = vmax.f32 %v5872, %v5873
    %v5875 = vsel %vm4530, %v4009, -inf
    %v5876 = vrot.slane %v5875, 4
    %v5877 = vmax.f32 %v5875, %v5876
    %v5878 = vrot.slane %v5877, 2
    %v5879 = vmax.f32 %v5877, %v5878
    %v5880 = vrot.slane %v5879, 1
    %v5881 = vmax.f32 %v5879, %v5880
    %v5882 = vsel %vm4530, %v4017, -inf
    %v5883 = vrot.slane %v5882, 4
    %v5884 = vmax.f32 %v5882, %v5883
    %v5885 = vrot.slane %v5884, 2
    %v5886 = vmax.f32 %v5884, %v5885
    %v5887 = vrot.slane %v5886, 1
    %v5888 = vmax.f32 %v5886, %v5887
    %v5889 = vsel %vm4530, %v4016, -inf
    %v5890 = vrot.slane %v5889, 4
    %v5891 = vmax.f32 %v5889, %v5890
    %v5892 = vrot.slane %v5891, 2
    %v5893 = vmax.f32 %v5891, %v5892
    %v5894 = vrot.slane %v5893, 1
    %v5895 = vmax.f32 %v5893, %v5894
    %v5896 = vsel %vm4530, %v4018, -inf
    %v5897 = vrot.slane %v5896, 4
    %v5898 = vmax.f32 %v5896, %v5897
    %v5899 = vrot.slane %v5898, 2
    %v5900 = vmax.f32 %v5898, %v5899
    %v5901 = vrot.slane %v5900, 1
    %v5902 = vmax.f32 %v5900, %v5901
    %v5903 = vsel %vm4530, %v4026, -inf
    %v5904 = vrot.slane %v5903, 4
    %v5905 = vmax.f32 %v5903, %v5904
    %v5906 = vrot.slane %v5905, 2
    %v5907 = vmax.f32 %v5905, %v5906
    %v5908 = vrot.slane %v5907, 1
    %v5909 = vmax.f32 %v5907, %v5908
    %v5910 = vsel %vm4530, %v4034, -inf
    %v5911 = vrot.slane %v5910, 4
    %v5912 = vmax.f32 %v5910, %v5911
    %v5913 = vrot.slane %v5912, 2
    %v5914 = vmax.f32 %v5912, %v5913
    %v5915 = vrot.slane %v5914, 1
    %v5916 = vmax.f32 %v5914, %v5915
    %v5917 = vsel %vm4530, %v4033, -inf
    %v5918 = vrot.slane %v5917, 4
    %v5919 = vmax.f32 %v5917, %v5918
    %v5920 = vrot.slane %v5919, 2
    %v5921 = vmax.f32 %v5919, %v5920
    %v5922 = vrot.slane %v5921, 1
    %v5923 = vmax.f32 %v5921, %v5922
    %v5924 = vsel %vm4530, %v4035, -inf
    %v5925 = vrot.slane %v5924, 4
    %v5926 = vmax.f32 %v5924, %v5925
    %v5927 = vrot.slane %v5926, 2
    %v5928 = vmax.f32 %v5926, %v5927
    %v5929 = vrot.slane %v5928, 1
    %v5930 = vmax.f32 %v5928, %v5929
    %v5931 = vsel %vm4530, %v4043, -inf
    %v5932 = vrot.slane %v5931, 4
    %v5933 = vmax.f32 %v5931, %v5932
    %v5934 = vrot.slane %v5933, 2
    %v5935 = vmax.f32 %v5933, %v5934
    %v5936 = vrot.slane %v5935, 1
    %v5937 = vmax.f32 %v5935, %v5936
    %v5938 = vsel %vm4530, %v4051, -inf
    %v5939 = vrot.slane %v5938, 4
    %v5940 = vmax.f32 %v5938, %v5939
    %v5941 = vrot.slane %v5940, 2
    %v5942 = vmax.f32 %v5940, %v5941
    %v5943 = vrot.slane %v5942, 1
    %v5944 = vmax.f32 %v5942, %v5943
    %v5945 = vsel %vm4530, %v4050, -inf
    %v5946 = vrot.slane %v5945, 4
    %v5947 = vmax.f32 %v5945, %v5946
    %v5948 = vrot.slane %v5947, 2
    %v5949 = vmax.f32 %v5947, %v5948
    %v5950 = vrot.slane %v5949, 1
    %v5951 = vmax.f32 %v5949, %v5950
    %v5952 = vsel %vm4530, %v4052, -inf
    %v5953 = vrot.slane %v5952, 4
    %v5954 = vmax.f32 %v5952, %v5953
    %v5955 = vrot.slane %v5954, 2
    %v5956 = vmax.f32 %v5954, %v5955
    %v5957 = vrot.slane %v5956, 1
    %v5958 = vmax.f32 %v5956, %v5957
    %v5959 = vsel %vm4530, %v4060, -inf
    %v5960 = vrot.slane %v5959, 4
    %v5961 = vmax.f32 %v5959, %v5960
    %v5962 = vrot.slane %v5961, 2
    %v5963 = vmax.f32 %v5961, %v5962
    %v5964 = vrot.slane %v5963, 1
    %v5965 = vmax.f32 %v5963, %v5964
    %v5966 = vsel %vm4530, %v4068, -inf
    %v5967 = vrot.slane %v5966, 4
    %v5968 = vmax.f32 %v5966, %v5967
    %v5969 = vrot.slane %v5968, 2
    %v5970 = vmax.f32 %v5968, %v5969
    %v5971 = vrot.slane %v5970, 1
    %v5972 = vmax.f32 %v5970, %v5971
    %v5973 = vsel %vm4530, %v4067, -inf
    %v5974 = vrot.slane %v5973, 4
    %v5975 = vmax.f32 %v5973, %v5974
    %v5976 = vrot.slane %v5975, 2
    %v5977 = vmax.f32 %v5975, %v5976
    %v5978 = vrot.slane %v5977, 1
    %v5979 = vmax.f32 %v5977, %v5978
    %v5980 = vsel %vm4530, %v4069, -inf
    %v5981 = vrot.slane %v5980, 4
    %v5982 = vmax.f32 %v5980, %v5981
    %v5983 = vrot.slane %v5982, 2
    %v5984 = vmax.f32 %v5982, %v5983
    %v5985 = vrot.slane %v5984, 1
    %v5986 = vmax.f32 %v5984, %v5985
    %v5987 = vsel %vm4530, %v4077, -inf
    %v5988 = vrot.slane %v5987, 4
    %v5989 = vmax.f32 %v5987, %v5988
    %v5990 = vrot.slane %v5989, 2
    %v5991 = vmax.f32 %v5989, %v5990
    %v5992 = vrot.slane %v5991, 1
    %v5993 = vmax.f32 %v5991, %v5992
    %v5994 = vsel %vm4530, %v4085, -inf
    %v5995 = vrot.slane %v5994, 4
    %v5996 = vmax.f32 %v5994, %v5995
    %v5997 = vrot.slane %v5996, 2
    %v5998 = vmax.f32 %v5996, %v5997
    %v5999 = vrot.slane %v5998, 1
    %v6000 = vmax.f32 %v5998, %v5999
    %v6001 = vsel %vm4530, %v4084, -inf
    %v6002 = vrot.slane %v6001, 4
    %v6003 = vmax.f32 %v6001, %v6002
    %v6004 = vrot.slane %v6003, 2
    %v6005 = vmax.f32 %v6003, %v6004
    %v6006 = vrot.slane %v6005, 1
    %v6007 = vmax.f32 %v6005, %v6006
    %v6008 = vsel %vm4530, %v4086, -inf
    %v6009 = vrot.slane %v6008, 4
    %v6010 = vmax.f32 %v6008, %v6009
    %v6011 = vrot.slane %v6010, 2
    %v6012 = vmax.f32 %v6010, %v6011
    %v6013 = vrot.slane %v6012, 1
    %v6014 = vmax.f32 %v6012, %v6013
    %v6015 = vsel %vm4530, %v4094, -inf
    %v6016 = vrot.slane %v6015, 4
    %v6017 = vmax.f32 %v6015, %v6016
    %v6018 = vrot.slane %v6017, 2
    %v6019 = vmax.f32 %v6017, %v6018
    %v6020 = vrot.slane %v6019, 1
    %v6021 = vmax.f32 %v6019, %v6020
    %v6022 = vsel %vm4530, %v4102, -inf
    %v6023 = vrot.slane %v6022, 4
    %v6024 = vmax.f32 %v6022, %v6023
    %v6025 = vrot.slane %v6024, 2
    %v6026 = vmax.f32 %v6024, %v6025
    %v6027 = vrot.slane %v6026, 1
    %v6028 = vmax.f32 %v6026, %v6027
    %v6029 = vsel %vm4530, %v4101, -inf
    %v6030 = vrot.slane %v6029, 4
    %v6031 = vmax.f32 %v6029, %v6030
    %v6032 = vrot.slane %v6031, 2
    %v6033 = vmax.f32 %v6031, %v6032
    %v6034 = vrot.slane %v6033, 1
    %v6035 = vmax.f32 %v6033, %v6034
    %v6036 = vsel %vm4530, %v4103, -inf
    %v6037 = vrot.slane %v6036, 4
    %v6038 = vmax.f32 %v6036, %v6037
    %v6039 = vrot.slane %v6038, 2
    %v6040 = vmax.f32 %v6038, %v6039
    %v6041 = vrot.slane %v6040, 1
    %v6042 = vmax.f32 %v6040, %v6041
    %v6043 = vsel %vm4530, %v4111, -inf
    %v6044 = vrot.slane %v6043, 4
    %v6045 = vmax.f32 %v6043, %v6044
    %v6046 = vrot.slane %v6045, 2
    %v6047 = vmax.f32 %v6045, %v6046
    %v6048 = vrot.slane %v6047, 1
    %v6049 = vmax.f32 %v6047, %v6048
    %v6050 = vsel %vm4530, %v4119, -inf
    %v6051 = vrot.slane %v6050, 4
    %v6052 = vmax.f32 %v6050, %v6051
    %v6053 = vrot.slane %v6052, 2
    %v6054 = vmax.f32 %v6052, %v6053
    %v6055 = vrot.slane %v6054, 1
    %v6056 = vmax.f32 %v6054, %v6055
    %v6057 = vsel %vm4530, %v4118, -inf
    %v6058 = vrot.slane %v6057, 4
    %v6059 = vmax.f32 %v6057, %v6058
    %v6060 = vrot.slane %v6059, 2
    %v6061 = vmax.f32 %v6059, %v6060
    %v6062 = vrot.slane %v6061, 1
    %v6063 = vmax.f32 %v6061, %v6062
    %v6064 = vsel %vm4530, %v4120, -inf
    %v6065 = vrot.slane %v6064, 4
    %v6066 = vmax.f32 %v6064, %v6065
    %v6067 = vrot.slane %v6066, 2
    %v6068 = vmax.f32 %v6066, %v6067
    %v6069 = vrot.slane %v6068, 1
    %v6070 = vmax.f32 %v6068, %v6069
    %v6071 = vsel %vm4530, %v4128, -inf
    %v6072 = vrot.slane %v6071, 4
    %v6073 = vmax.f32 %v6071, %v6072
    %v6074 = vrot.slane %v6073, 2
    %v6075 = vmax.f32 %v6073, %v6074
    %v6076 = vrot.slane %v6075, 1
    %v6077 = vmax.f32 %v6075, %v6076
    %v6078 = vsel %vm4530, %v4136, -inf
    %v6079 = vrot.slane %v6078, 4
    %v6080 = vmax.f32 %v6078, %v6079
    %v6081 = vrot.slane %v6080, 2
    %v6082 = vmax.f32 %v6080, %v6081
    %v6083 = vrot.slane %v6082, 1
    %v6084 = vmax.f32 %v6082, %v6083
    %v6085 = vsel %vm4530, %v4135, -inf
    %v6086 = vrot.slane %v6085, 4
    %v6087 = vmax.f32 %v6085, %v6086
    %v6088 = vrot.slane %v6087, 2
    %v6089 = vmax.f32 %v6087, %v6088
    %v6090 = vrot.slane %v6089, 1
    %v6091 = vmax.f32 %v6089, %v6090
    %v6092 = vsel %vm4530, %v4137, -inf
    %v6093 = vrot.slane %v6092, 4
    %v6094 = vmax.f32 %v6092, %v6093
    %v6095 = vrot.slane %v6094, 2
    %v6096 = vmax.f32 %v6094, %v6095
    %v6097 = vrot.slane %v6096, 1
    %v6098 = vmax.f32 %v6096, %v6097
    %v6099 = vsel %vm4530, %v4145, -inf
    %v6100 = vrot.slane %v6099, 4
    %v6101 = vmax.f32 %v6099, %v6100
    %v6102 = vrot.slane %v6101, 2
    %v6103 = vmax.f32 %v6101, %v6102
    %v6104 = vrot.slane %v6103, 1
    %v6105 = vmax.f32 %v6103, %v6104
    %v6106 = vsel %vm4530, %v4153, -inf
    %v6107 = vrot.slane %v6106, 4
    %v6108 = vmax.f32 %v6106, %v6107
    %v6109 = vrot.slane %v6108, 2
    %v6110 = vmax.f32 %v6108, %v6109
    %v6111 = vrot.slane %v6110, 1
    %v6112 = vmax.f32 %v6110, %v6111
    %v6113 = vsel %vm4530, %v4152, -inf
    %v6114 = vrot.slane %v6113, 4
    %v6115 = vmax.f32 %v6113, %v6114
    %v6116 = vrot.slane %v6115, 2
    %v6117 = vmax.f32 %v6115, %v6116
    %v6118 = vrot.slane %v6117, 1
    %v6119 = vmax.f32 %v6117, %v6118
    %v6120 = vsel %vm4530, %v4154, -inf
    %v6121 = vrot.slane %v6120, 4
    %v6122 = vmax.f32 %v6120, %v6121
    %v6123 = vrot.slane %v6122, 2
    %v6124 = vmax.f32 %v6122, %v6123
    %v6125 = vrot.slane %v6124, 1
    %v6126 = vmax.f32 %v6124, %v6125
    %v6127 = vsel %vm4530, %v4162, -inf
    %v6128 = vrot.slane %v6127, 4
    %v6129 = vmax.f32 %v6127, %v6128
    %v6130 = vrot.slane %v6129, 2
    %v6131 = vmax.f32 %v6129, %v6130
    %v6132 = vrot.slane %v6131, 1
    %v6133 = vmax.f32 %v6131, %v6132
    %v6134 = vsel %vm4530, %v4170, -inf
    %v6135 = vrot.slane %v6134, 4
    %v6136 = vmax.f32 %v6134, %v6135
    %v6137 = vrot.slane %v6136, 2
    %v6138 = vmax.f32 %v6136, %v6137
    %v6139 = vrot.slane %v6138, 1
    %v6140 = vmax.f32 %v6138, %v6139
    %v6141 = vsel %vm4530, %v4169, -inf
    %v6142 = vrot.slane %v6141, 4
    %v6143 = vmax.f32 %v6141, %v6142
    %v6144 = vrot.slane %v6143, 2
    %v6145 = vmax.f32 %v6143, %v6144
    %v6146 = vrot.slane %v6145, 1
    %v6147 = vmax.f32 %v6145, %v6146
    %v6148 = vsel %vm4530, %v4171, -inf
    %v6149 = vrot.slane %v6148, 4
    %v6150 = vmax.f32 %v6148, %v6149
    %v6151 = vrot.slane %v6150, 2
    %v6152 = vmax.f32 %v6150, %v6151
    %v6153 = vrot.slane %v6152, 1
    %v6154 = vmax.f32 %v6152, %v6153
    %v6155 = vsel %vm4530, %v4179, -inf
    %v6156 = vrot.slane %v6155, 4
    %v6157 = vmax.f32 %v6155, %v6156
    %v6158 = vrot.slane %v6157, 2
    %v6159 = vmax.f32 %v6157, %v6158
    %v6160 = vrot.slane %v6159, 1
    %v6161 = vmax.f32 %v6159, %v6160
    %v6162 = vsel %vm4530, %v4187, -inf
    %v6163 = vrot.slane %v6162, 4
    %v6164 = vmax.f32 %v6162, %v6163
    %v6165 = vrot.slane %v6164, 2
    %v6166 = vmax.f32 %v6164, %v6165
    %v6167 = vrot.slane %v6166, 1
    %v6168 = vmax.f32 %v6166, %v6167
    %v6169 = vsel %vm4530, %v4186, -inf
    %v6170 = vrot.slane %v6169, 4
    %v6171 = vmax.f32 %v6169, %v6170
    %v6172 = vrot.slane %v6171, 2
    %v6173 = vmax.f32 %v6171, %v6172
    %v6174 = vrot.slane %v6173, 1
    %v6175 = vmax.f32 %v6173, %v6174
    %v6176 = vsel %vm4530, %v4188, -inf
    %v6177 = vrot.slane %v6176, 4
    %v6178 = vmax.f32 %v6176, %v6177
    %v6179 = vrot.slane %v6178, 2
    %v6180 = vmax.f32 %v6178, %v6179
    %v6181 = vrot.slane %v6180, 1
    %v6182 = vmax.f32 %v6180, %v6181
    %v6183 = vsel %vm4530, %v4196, -inf
    %v6184 = vrot.slane %v6183, 4
    %v6185 = vmax.f32 %v6183, %v6184
    %v6186 = vrot.slane %v6185, 2
    %v6187 = vmax.f32 %v6185, %v6186
    %v6188 = vrot.slane %v6187, 1
    %v6189 = vmax.f32 %v6187, %v6188
    %v6190 = vsel %vm4530, %v4204, -inf
    %v6191 = vrot.slane %v6190, 4
    %v6192 = vmax.f32 %v6190, %v6191
    %v6193 = vrot.slane %v6192, 2
    %v6194 = vmax.f32 %v6192, %v6193
    %v6195 = vrot.slane %v6194, 1
    %v6196 = vmax.f32 %v6194, %v6195
    %v6197 = vsel %vm4530, %v4203, -inf
    %v6198 = vrot.slane %v6197, 4
    %v6199 = vmax.f32 %v6197, %v6198
    %v6200 = vrot.slane %v6199, 2
    %v6201 = vmax.f32 %v6199, %v6200
    %v6202 = vrot.slane %v6201, 1
    %v6203 = vmax.f32 %v6201, %v6202
    %v6204 = vsel %vm4530, %v4205, -inf
    %v6205 = vrot.slane %v6204, 4
    %v6206 = vmax.f32 %v6204, %v6205
    %v6207 = vrot.slane %v6206, 2
    %v6208 = vmax.f32 %v6206, %v6207
    %v6209 = vrot.slane %v6208, 1
    %v6210 = vmax.f32 %v6208, %v6209
    %v6211 = vsel %vm4530, %v4213, -inf
    %v6212 = vrot.slane %v6211, 4
    %v6213 = vmax.f32 %v6211, %v6212
    %v6214 = vrot.slane %v6213, 2
    %v6215 = vmax.f32 %v6213, %v6214
    %v6216 = vrot.slane %v6215, 1
    %v6217 = vmax.f32 %v6215, %v6216
    %v6218 = vsel %vm4530, %v4221, -inf
    %v6219 = vrot.slane %v6218, 4
    %v6220 = vmax.f32 %v6218, %v6219
    %v6221 = vrot.slane %v6220, 2
    %v6222 = vmax.f32 %v6220, %v6221
    %v6223 = vrot.slane %v6222, 1
    %v6224 = vmax.f32 %v6222, %v6223
    %v6225 = vsel %vm4530, %v4220, -inf
    %v6226 = vrot.slane %v6225, 4
    %v6227 = vmax.f32 %v6225, %v6226
    %v6228 = vrot.slane %v6227, 2
    %v6229 = vmax.f32 %v6227, %v6228
    %v6230 = vrot.slane %v6229, 1
    %v6231 = vmax.f32 %v6229, %v6230
    %v6232 = vsel %vm4530, %v4222, -inf
    %v6233 = vrot.slane %v6232, 4
    %v6234 = vmax.f32 %v6232, %v6233
    %v6235 = vrot.slane %v6234, 2
    %v6236 = vmax.f32 %v6234, %v6235
    %v6237 = vrot.slane %v6236, 1
    %v6238 = vmax.f32 %v6236, %v6237
    %v6239 = vsel %vm4530, %v4230, -inf
    %v6240 = vrot.slane %v6239, 4
    %v6241 = vmax.f32 %v6239, %v6240
    %v6242 = vrot.slane %v6241, 2
    %v6243 = vmax.f32 %v6241, %v6242
    %v6244 = vrot.slane %v6243, 1
    %v6245 = vmax.f32 %v6243, %v6244
    %v6246 = vsel %vm4530, %v4238, -inf
    %v6247 = vrot.slane %v6246, 4
    %v6248 = vmax.f32 %v6246, %v6247
    %v6249 = vrot.slane %v6248, 2
    %v6250 = vmax.f32 %v6248, %v6249
    %v6251 = vrot.slane %v6250, 1
    %v6252 = vmax.f32 %v6250, %v6251
    %v6253 = vsel %vm4530, %v4237, -inf
    %v6254 = vrot.slane %v6253, 4
    %v6255 = vmax.f32 %v6253, %v6254
    %v6256 = vrot.slane %v6255, 2
    %v6257 = vmax.f32 %v6255, %v6256
    %v6258 = vrot.slane %v6257, 1
    %v6259 = vmax.f32 %v6257, %v6258
    %v6260 = vsel %vm4530, %v4239, -inf
    %v6261 = vrot.slane %v6260, 4
    %v6262 = vmax.f32 %v6260, %v6261
    %v6263 = vrot.slane %v6262, 2
    %v6264 = vmax.f32 %v6262, %v6263
    %v6265 = vrot.slane %v6264, 1
    %v6266 = vmax.f32 %v6264, %v6265
    %v6267 = vsel %vm4530, %v4247, -inf
    %v6268 = vrot.slane %v6267, 4
    %v6269 = vmax.f32 %v6267, %v6268
    %v6270 = vrot.slane %v6269, 2
    %v6271 = vmax.f32 %v6269, %v6270
    %v6272 = vrot.slane %v6271, 1
    %v6273 = vmax.f32 %v6271, %v6272
    %v6274 = vsel %vm4530, %v4255, -inf
    %v6275 = vrot.slane %v6274, 4
    %v6276 = vmax.f32 %v6274, %v6275
    %v6277 = vrot.slane %v6276, 2
    %v6278 = vmax.f32 %v6276, %v6277
    %v6279 = vrot.slane %v6278, 1
    %v6280 = vmax.f32 %v6278, %v6279
    %v6281 = vsel %vm4530, %v4254, -inf
    %v6282 = vrot.slane %v6281, 4
    %v6283 = vmax.f32 %v6281, %v6282
    %v6284 = vrot.slane %v6283, 2
    %v6285 = vmax.f32 %v6283, %v6284
    %v6286 = vrot.slane %v6285, 1
    %v6287 = vmax.f32 %v6285, %v6286
    %v6288 = vsel %vm4530, %v4256, -inf
    %v6289 = vrot.slane %v6288, 4
    %v6290 = vmax.f32 %v6288, %v6289
    %v6291 = vrot.slane %v6290, 2
    %v6292 = vmax.f32 %v6290, %v6291
    %v6293 = vrot.slane %v6292, 1
    %v6294 = vmax.f32 %v6292, %v6293
    %v6295 = vsel %vm4530, %v4264, -inf
    %v6296 = vrot.slane %v6295, 4
    %v6297 = vmax.f32 %v6295, %v6296
    %v6298 = vrot.slane %v6297, 2
    %v6299 = vmax.f32 %v6297, %v6298
    %v6300 = vrot.slane %v6299, 1
    %v6301 = vmax.f32 %v6299, %v6300
    %v6302 = vsel %vm4530, %v4272, -inf
    %v6303 = vrot.slane %v6302, 4
    %v6304 = vmax.f32 %v6302, %v6303
    %v6305 = vrot.slane %v6304, 2
    %v6306 = vmax.f32 %v6304, %v6305
    %v6307 = vrot.slane %v6306, 1
    %v6308 = vmax.f32 %v6306, %v6307
    %v6309 = vsel %vm4530, %v4271, -inf
    %v6310 = vrot.slane %v6309, 4
    %v6311 = vmax.f32 %v6309, %v6310
    %v6312 = vrot.slane %v6311, 2
    %v6313 = vmax.f32 %v6311, %v6312
    %v6314 = vrot.slane %v6313, 1
    %v6315 = vmax.f32 %v6313, %v6314
    %v6316 = vsel %vm4530, %v4273, -inf
    %v6317 = vrot.slane %v6316, 4
    %v6318 = vmax.f32 %v6316, %v6317
    %v6319 = vrot.slane %v6318, 2
    %v6320 = vmax.f32 %v6318, %v6319
    %v6321 = vrot.slane %v6320, 1
    %v6322 = vmax.f32 %v6320, %v6321
    %v6323 = vpack.c.bf16 %v4537, %v4537
    %v6324 = vpack.c.bf16 %v4544, %v4544
    %v6325 = vpack.c.bf16 %v4551, %v4551
    %v6326 = vpack.c.bf16 %v4558, %v4558
    %v6327 = vpack.c.bf16 %v4565, %v4565
    %v6328 = vpack.c.bf16 %v4572, %v4572
    %v6329 = vpack.c.bf16 %v4579, %v4579
    %v6330 = vpack.c.bf16 %v4586, %v4586
    %v6331 = vpack.c.bf16 %v4593, %v4593
    %v6332 = vpack.c.bf16 %v4600, %v4600
    %v6333 = vpack.c.bf16 %v4607, %v4607
    %v6334 = vpack.c.bf16 %v4614, %v4614
    %v6335 = vpack.c.bf16 %v4621, %v4621
    %v6336 = vpack.c.bf16 %v4628, %v4628
    %v6337 = vpack.c.bf16 %v4635, %v4635
    %v6338 = vpack.c.bf16 %v4642, %v4642
    %v6339 = vpack.c.bf16 %v4649, %v4649
    %v6340 = vpack.c.bf16 %v4656, %v4656
    %v6341 = vpack.c.bf16 %v4663, %v4663
    %v6342 = vpack.c.bf16 %v4670, %v4670
    %v6343 = vpack.c.bf16 %v4677, %v4677
    %v6344 = vpack.c.bf16 %v4684, %v4684
    %v6345 = vpack.c.bf16 %v4691, %v4691
    %v6346 = vpack.c.bf16 %v4698, %v4698
    %v6347 = vpack.c.bf16 %v4705, %v4705
    %v6348 = vpack.c.bf16 %v4712, %v4712
    %v6349 = vpack.c.bf16 %v4719, %v4719
    %v6350 = vpack.c.bf16 %v4726, %v4726
    %v6351 = vpack.c.bf16 %v4733, %v4733
    %v6352 = vpack.c.bf16 %v4740, %v4740
    %v6353 = vpack.c.bf16 %v4747, %v4747
    %v6354 = vpack.c.bf16 %v4754, %v4754
    %v6355 = vpack.c.bf16 %v4761, %v4761
    %v6356 = vpack.c.bf16 %v4768, %v4768
    %v6357 = vpack.c.bf16 %v4775, %v4775
    %v6358 = vpack.c.bf16 %v4782, %v4782
    %v6359 = vpack.c.bf16 %v4789, %v4789
    %v6360 = vpack.c.bf16 %v4796, %v4796
    %v6361 = vpack.c.bf16 %v4803, %v4803
    %v6362 = vpack.c.bf16 %v4810, %v4810
    %v6363 = vpack.c.bf16 %v4817, %v4817
    %v6364 = vpack.c.bf16 %v4824, %v4824
    %v6365 = vpack.c.bf16 %v4831, %v4831
    %v6366 = vpack.c.bf16 %v4838, %v4838
    %v6367 = vpack.c.bf16 %v4845, %v4845
    %v6368 = vpack.c.bf16 %v4852, %v4852
    %v6369 = vpack.c.bf16 %v4859, %v4859
    %v6370 = vpack.c.bf16 %v4866, %v4866
    %v6371 = vpack.c.bf16 %v4873, %v4873
    %v6372 = vpack.c.bf16 %v4880, %v4880
    %v6373 = vpack.c.bf16 %v4887, %v4887
    %v6374 = vpack.c.bf16 %v4894, %v4894
    %v6375 = vpack.c.bf16 %v4901, %v4901
    %v6376 = vpack.c.bf16 %v4908, %v4908
    %v6377 = vpack.c.bf16 %v4915, %v4915
    %v6378 = vpack.c.bf16 %v4922, %v4922
    %v6379 = vpack.c.bf16 %v4929, %v4929
    %v6380 = vpack.c.bf16 %v4936, %v4936
    %v6381 = vpack.c.bf16 %v4943, %v4943
    %v6382 = vpack.c.bf16 %v4950, %v4950
    %v6383 = vpack.c.bf16 %v4957, %v4957
    %v6384 = vpack.c.bf16 %v4964, %v4964
    %v6385 = vpack.c.bf16 %v4971, %v4971
    %v6386 = vpack.c.bf16 %v4978, %v4978
    %v6387 = vpack.c.bf16 %v4985, %v4985
    %v6388 = vpack.c.bf16 %v4992, %v4992
    %v6389 = vpack.c.bf16 %v4999, %v4999
    %v6390 = vpack.c.bf16 %v5006, %v5006
    %v6391 = vpack.c.bf16 %v5013, %v5013
    %v6392 = vpack.c.bf16 %v5020, %v5020
    %v6393 = vpack.c.bf16 %v5027, %v5027
    %v6394 = vpack.c.bf16 %v5034, %v5034
    %v6395 = vpack.c.bf16 %v5041, %v5041
    %v6396 = vpack.c.bf16 %v5048, %v5048
    %v6397 = vpack.c.bf16 %v5055, %v5055
    %v6398 = vpack.c.bf16 %v5062, %v5062
    %v6399 = vpack.c.bf16 %v5069, %v5069
    %v6400 = vpack.c.bf16 %v5076, %v5076
    %v6401 = vpack.c.bf16 %v5083, %v5083
    %v6402 = vpack.c.bf16 %v5090, %v5090
    %v6403 = vpack.c.bf16 %v5097, %v5097
    %v6404 = vpack.c.bf16 %v5104, %v5104
    %v6405 = vpack.c.bf16 %v5111, %v5111
    %v6406 = vpack.c.bf16 %v5118, %v5118
    %v6407 = vpack.c.bf16 %v5125, %v5125
    %v6408 = vpack.c.bf16 %v5132, %v5132
    %v6409 = vpack.c.bf16 %v5139, %v5139
    %v6410 = vpack.c.bf16 %v5146, %v5146
    %v6411 = vpack.c.bf16 %v5153, %v5153
    %v6412 = vpack.c.bf16 %v5160, %v5160
    %v6413 = vpack.c.bf16 %v5167, %v5167
    %v6414 = vpack.c.bf16 %v5174, %v5174
    %v6415 = vpack.c.bf16 %v5181, %v5181
    %v6416 = vpack.c.bf16 %v5188, %v5188
    %v6417 = vpack.c.bf16 %v5195, %v5195
    %v6418 = vpack.c.bf16 %v5202, %v5202
    %v6419 = vpack.c.bf16 %v5209, %v5209
    %v6420 = vpack.c.bf16 %v5216, %v5216
    %v6421 = vpack.c.bf16 %v5223, %v5223
    %v6422 = vpack.c.bf16 %v5230, %v5230
    %v6423 = vpack.c.bf16 %v5237, %v5237
    %v6424 = vpack.c.bf16 %v5244, %v5244
    %v6425 = vpack.c.bf16 %v5251, %v5251
    %v6426 = vpack.c.bf16 %v5258, %v5258
    %v6427 = vpack.c.bf16 %v5265, %v5265
    %v6428 = vpack.c.bf16 %v5272, %v5272
    %v6429 = vpack.c.bf16 %v5279, %v5279
    %v6430 = vpack.c.bf16 %v5286, %v5286
    %v6431 = vpack.c.bf16 %v5293, %v5293
    %v6432 = vpack.c.bf16 %v5300, %v5300
    %v6433 = vpack.c.bf16 %v5307, %v5307
    %v6434 = vpack.c.bf16 %v5314, %v5314
    %v6435 = vpack.c.bf16 %v5321, %v5321
    %v6436 = vpack.c.bf16 %v5328, %v5328
    %v6437 = vpack.c.bf16 %v5335, %v5335
    %v6438 = vpack.c.bf16 %v5342, %v5342
    %v6439 = vpack.c.bf16 %v5349, %v5349
    %v6440 = vpack.c.bf16 %v5356, %v5356
    %v6441 = vpack.c.bf16 %v5363, %v5363
    %v6442 = vpack.c.bf16 %v5370, %v5370
    %v6443 = vpack.c.bf16 %v5377, %v5377
    %v6444 = vpack.c.bf16 %v5384, %v5384
    %v6445 = vpack.c.bf16 %v5391, %v5391
    %v6446 = vpack.c.bf16 %v5398, %v5398
    %v6447 = vpack.c.bf16 %v5405, %v5405
    %v6448 = vpack.c.bf16 %v5412, %v5412
    %v6449 = vpack.c.bf16 %v5419, %v5419
    %v6450 = vpack.c.bf16 %v5426, %v5426
    %v6451 = vpack.c.bf16 %v5433, %v5433
    %v6452 = vpack.c.bf16 %v5440, %v5440
    %v6453 = vpack.c.bf16 %v5447, %v5447
    %v6454 = vpack.c.bf16 %v5454, %v5454
    %v6455 = vpack.c.bf16 %v5461, %v5461
    %v6456 = vpack.c.bf16 %v5468, %v5468
    %v6457 = vpack.c.bf16 %v5475, %v5475
    %v6458 = vpack.c.bf16 %v5482, %v5482
    %v6459 = vpack.c.bf16 %v5489, %v5489
    %v6460 = vpack.c.bf16 %v5496, %v5496
    %v6461 = vpack.c.bf16 %v5503, %v5503
    %v6462 = vpack.c.bf16 %v5510, %v5510
    %v6463 = vpack.c.bf16 %v5517, %v5517
    %v6464 = vpack.c.bf16 %v5524, %v5524
    %v6465 = vpack.c.bf16 %v5531, %v5531
    %v6466 = vpack.c.bf16 %v5538, %v5538
    %v6467 = vpack.c.bf16 %v5545, %v5545
    %v6468 = vpack.c.bf16 %v5552, %v5552
    %v6469 = vpack.c.bf16 %v5559, %v5559
    %v6470 = vpack.c.bf16 %v5566, %v5566
    %v6471 = vpack.c.bf16 %v5573, %v5573
    %v6472 = vpack.c.bf16 %v5580, %v5580
    %v6473 = vpack.c.bf16 %v5587, %v5587
    %v6474 = vpack.c.bf16 %v5594, %v5594
    %v6475 = vpack.c.bf16 %v5601, %v5601
    %v6476 = vpack.c.bf16 %v5608, %v5608
    %v6477 = vpack.c.bf16 %v5615, %v5615
    %v6478 = vpack.c.bf16 %v5622, %v5622
    %v6479 = vpack.c.bf16 %v5629, %v5629
    %v6480 = vpack.c.bf16 %v5636, %v5636
    %v6481 = vpack.c.bf16 %v5643, %v5643
    %v6482 = vpack.c.bf16 %v5650, %v5650
    %v6483 = vpack.c.bf16 %v5657, %v5657
    %v6484 = vpack.c.bf16 %v5664, %v5664
    %v6485 = vpack.c.bf16 %v5671, %v5671
    %v6486 = vpack.c.bf16 %v5678, %v5678
    %v6487 = vpack.c.bf16 %v5685, %v5685
    %v6488 = vpack.c.bf16 %v5692, %v5692
    %v6489 = vpack.c.bf16 %v5699, %v5699
    %v6490 = vpack.c.bf16 %v5706, %v5706
    %v6491 = vpack.c.bf16 %v5713, %v5713
    %v6492 = vpack.c.bf16 %v5720, %v5720
    %v6493 = vpack.c.bf16 %v5727, %v5727
    %v6494 = vpack.c.bf16 %v5734, %v5734
    %v6495 = vpack.c.bf16 %v5741, %v5741
    %v6496 = vpack.c.bf16 %v5748, %v5748
    %v6497 = vpack.c.bf16 %v5755, %v5755
    %v6498 = vpack.c.bf16 %v5762, %v5762
    %v6499 = vpack.c.bf16 %v5769, %v5769
    %v6500 = vpack.c.bf16 %v5776, %v5776
    %v6501 = vpack.c.bf16 %v5783, %v5783
    %v6502 = vpack.c.bf16 %v5790, %v5790
    %v6503 = vpack.c.bf16 %v5797, %v5797
    %v6504 = vpack.c.bf16 %v5804, %v5804
    %v6505 = vpack.c.bf16 %v5811, %v5811
    %v6506 = vpack.c.bf16 %v5818, %v5818
    %v6507 = vpack.c.bf16 %v5825, %v5825
    %v6508 = vpack.c.bf16 %v5832, %v5832
    %v6509 = vpack.c.bf16 %v5839, %v5839
    %v6510 = vpack.c.bf16 %v5846, %v5846
    %v6511 = vpack.c.bf16 %v5853, %v5853
    %v6512 = vpack.c.bf16 %v5860, %v5860
    %v6513 = vpack.c.bf16 %v5867, %v5867
    %v6514 = vpack.c.bf16 %v5874, %v5874
    %v6515 = vpack.c.bf16 %v5881, %v5881
    %v6516 = vpack.c.bf16 %v5888, %v5888
    %v6517 = vpack.c.bf16 %v5895, %v5895
    %v6518 = vpack.c.bf16 %v5902, %v5902
    %v6519 = vpack.c.bf16 %v5909, %v5909
    %v6520 = vpack.c.bf16 %v5916, %v5916
    %v6521 = vpack.c.bf16 %v5923, %v5923
    %v6522 = vpack.c.bf16 %v5930, %v5930
    %v6523 = vpack.c.bf16 %v5937, %v5937
    %v6524 = vpack.c.bf16 %v5944, %v5944
    %v6525 = vpack.c.bf16 %v5951, %v5951
    %v6526 = vpack.c.bf16 %v5958, %v5958
    %v6527 = vpack.c.bf16 %v5965, %v5965
    %v6528 = vpack.c.bf16 %v5972, %v5972
    %v6529 = vpack.c.bf16 %v5979, %v5979
    %v6530 = vpack.c.bf16 %v5986, %v5986
    %v6531 = vpack.c.bf16 %v5993, %v5993
    %v6532 = vpack.c.bf16 %v6000, %v6000
    %v6533 = vpack.c.bf16 %v6007, %v6007
    %v6534 = vpack.c.bf16 %v6014, %v6014
    %v6535 = vpack.c.bf16 %v6021, %v6021
    %v6536 = vpack.c.bf16 %v6028, %v6028
    %v6537 = vpack.c.bf16 %v6035, %v6035
    %v6538 = vpack.c.bf16 %v6042, %v6042
    %v6539 = vpack.c.bf16 %v6049, %v6049
    %v6540 = vpack.c.bf16 %v6056, %v6056
    %v6541 = vpack.c.bf16 %v6063, %v6063
    %v6542 = vpack.c.bf16 %v6070, %v6070
    %v6543 = vpack.c.bf16 %v6077, %v6077
    %v6544 = vpack.c.bf16 %v6084, %v6084
    %v6545 = vpack.c.bf16 %v6091, %v6091
    %v6546 = vpack.c.bf16 %v6098, %v6098
    %v6547 = vpack.c.bf16 %v6105, %v6105
    %v6548 = vpack.c.bf16 %v6112, %v6112
    %v6549 = vpack.c.bf16 %v6119, %v6119
    %v6550 = vpack.c.bf16 %v6126, %v6126
    %v6551 = vpack.c.bf16 %v6133, %v6133
    %v6552 = vpack.c.bf16 %v6140, %v6140
    %v6553 = vpack.c.bf16 %v6147, %v6147
    %v6554 = vpack.c.bf16 %v6154, %v6154
    %v6555 = vpack.c.bf16 %v6161, %v6161
    %v6556 = vpack.c.bf16 %v6168, %v6168
    %v6557 = vpack.c.bf16 %v6175, %v6175
    %v6558 = vpack.c.bf16 %v6182, %v6182
    %v6559 = vpack.c.bf16 %v6189, %v6189
    %v6560 = vpack.c.bf16 %v6196, %v6196
    %v6561 = vpack.c.bf16 %v6203, %v6203
    %v6562 = vpack.c.bf16 %v6210, %v6210
    %v6563 = vpack.c.bf16 %v6217, %v6217
    %v6564 = vpack.c.bf16 %v6224, %v6224
    %v6565 = vpack.c.bf16 %v6231, %v6231
    %v6566 = vpack.c.bf16 %v6238, %v6238
    %v6567 = vpack.c.bf16 %v6245, %v6245
    %v6568 = vpack.c.bf16 %v6252, %v6252
    %v6569 = vpack.c.bf16 %v6259, %v6259
    %v6570 = vpack.c.bf16 %v6266, %v6266
    %v6571 = vpack.c.bf16 %v6273, %v6273
    %v6572 = vpack.c.bf16 %v6280, %v6280
    %v6573 = vpack.c.bf16 %v6287, %v6287
    %v6574 = vpack.c.bf16 %v6294, %v6294
    %v6575 = vpack.c.bf16 %v6301, %v6301
    %v6576 = vpack.c.bf16 %v6308, %v6308
    %v6577 = vpack.c.bf16 %v6315, %v6315
    %v6578 = vpack.c.bf16 %v6322, %v6322
    %v6835 = vunpack.c.l.b16 %v6323
    %v6836 = vunpack.c.l.b16 %v6324
    %v6837 = vunpack.c.l.b16 %v6325
    %v6838 = vunpack.c.l.b16 %v6326
    %v6839 = vunpack.c.l.b16 %v6327
    %v6840 = vunpack.c.l.b16 %v6328
    %v6841 = vunpack.c.l.b16 %v6329
    %v6842 = vunpack.c.l.b16 %v6330
    %v6843 = vunpack.c.l.b16 %v6331
    %v6844 = vunpack.c.l.b16 %v6332
    %v6845 = vunpack.c.l.b16 %v6333
    %v6846 = vunpack.c.l.b16 %v6334
    %v6847 = vunpack.c.l.b16 %v6335
    %v6848 = vunpack.c.l.b16 %v6336
    %v6849 = vunpack.c.l.b16 %v6337
    %v6850 = vunpack.c.l.b16 %v6338
    %v6851 = vunpack.c.l.b16 %v6339
    %v6852 = vunpack.c.l.b16 %v6340
    %v6853 = vunpack.c.l.b16 %v6341
    %v6854 = vunpack.c.l.b16 %v6342
    %v6855 = vunpack.c.l.b16 %v6343
    %v6856 = vunpack.c.l.b16 %v6344
    %v6857 = vunpack.c.l.b16 %v6345
    %v6858 = vunpack.c.l.b16 %v6346
    %v6859 = vunpack.c.l.b16 %v6347
    %v6860 = vunpack.c.l.b16 %v6348
    %v6861 = vunpack.c.l.b16 %v6349
    %v6862 = vunpack.c.l.b16 %v6350
    %v6863 = vunpack.c.l.b16 %v6351
    %v6864 = vunpack.c.l.b16 %v6352
    %v6865 = vunpack.c.l.b16 %v6353
    %v6866 = vunpack.c.l.b16 %v6354
    %v6867 = vunpack.c.l.b16 %v6355
    %v6868 = vunpack.c.l.b16 %v6356
    %v6869 = vunpack.c.l.b16 %v6357
    %v6870 = vunpack.c.l.b16 %v6358
    %v6871 = vunpack.c.l.b16 %v6359
    %v6872 = vunpack.c.l.b16 %v6360
    %v6873 = vunpack.c.l.b16 %v6361
    %v6874 = vunpack.c.l.b16 %v6362
    %v6875 = vunpack.c.l.b16 %v6363
    %v6876 = vunpack.c.l.b16 %v6364
    %v6877 = vunpack.c.l.b16 %v6365
    %v6878 = vunpack.c.l.b16 %v6366
    %v6879 = vunpack.c.l.b16 %v6367
    %v6880 = vunpack.c.l.b16 %v6368
    %v6881 = vunpack.c.l.b16 %v6369
    %v6882 = vunpack.c.l.b16 %v6370
    %v6883 = vunpack.c.l.b16 %v6371
    %v6884 = vunpack.c.l.b16 %v6372
    %v6885 = vunpack.c.l.b16 %v6373
    %v6886 = vunpack.c.l.b16 %v6374
    %v6887 = vunpack.c.l.b16 %v6375
    %v6888 = vunpack.c.l.b16 %v6376
    %v6889 = vunpack.c.l.b16 %v6377
    %v6890 = vunpack.c.l.b16 %v6378
    %v6891 = vunpack.c.l.b16 %v6379
    %v6892 = vunpack.c.l.b16 %v6380
    %v6893 = vunpack.c.l.b16 %v6381
    %v6894 = vunpack.c.l.b16 %v6382
    %v6895 = vunpack.c.l.b16 %v6383
    %v6896 = vunpack.c.l.b16 %v6384
    %v6897 = vunpack.c.l.b16 %v6385
    %v6898 = vunpack.c.l.b16 %v6386
    %v6899 = vunpack.c.l.b16 %v6387
    %v6900 = vunpack.c.l.b16 %v6388
    %v6901 = vunpack.c.l.b16 %v6389
    %v6902 = vunpack.c.l.b16 %v6390
    %v6903 = vunpack.c.l.b16 %v6391
    %v6904 = vunpack.c.l.b16 %v6392
    %v6905 = vunpack.c.l.b16 %v6393
    %v6906 = vunpack.c.l.b16 %v6394
    %v6907 = vunpack.c.l.b16 %v6395
    %v6908 = vunpack.c.l.b16 %v6396
    %v6909 = vunpack.c.l.b16 %v6397
    %v6910 = vunpack.c.l.b16 %v6398
    %v6911 = vunpack.c.l.b16 %v6399
    %v6912 = vunpack.c.l.b16 %v6400
    %v6913 = vunpack.c.l.b16 %v6401
    %v6914 = vunpack.c.l.b16 %v6402
    %v6915 = vunpack.c.l.b16 %v6403
    %v6916 = vunpack.c.l.b16 %v6404
    %v6917 = vunpack.c.l.b16 %v6405
    %v6918 = vunpack.c.l.b16 %v6406
    %v6919 = vunpack.c.l.b16 %v6407
    %v6920 = vunpack.c.l.b16 %v6408
    %v6921 = vunpack.c.l.b16 %v6409
    %v6922 = vunpack.c.l.b16 %v6410
    %v6923 = vunpack.c.l.b16 %v6411
    %v6924 = vunpack.c.l.b16 %v6412
    %v6925 = vunpack.c.l.b16 %v6413
    %v6926 = vunpack.c.l.b16 %v6414
    %v6927 = vunpack.c.l.b16 %v6415
    %v6928 = vunpack.c.l.b16 %v6416
    %v6929 = vunpack.c.l.b16 %v6417
    %v6930 = vunpack.c.l.b16 %v6418
    %v6931 = vunpack.c.l.b16 %v6419
    %v6932 = vunpack.c.l.b16 %v6420
    %v6933 = vunpack.c.l.b16 %v6421
    %v6934 = vunpack.c.l.b16 %v6422
    %v6935 = vunpack.c.l.b16 %v6423
    %v6936 = vunpack.c.l.b16 %v6424
    %v6937 = vunpack.c.l.b16 %v6425
    %v6938 = vunpack.c.l.b16 %v6426
    %v6939 = vunpack.c.l.b16 %v6427
    %v6940 = vunpack.c.l.b16 %v6428
    %v6941 = vunpack.c.l.b16 %v6429
    %v6942 = vunpack.c.l.b16 %v6430
    %v6943 = vunpack.c.l.b16 %v6431
    %v6944 = vunpack.c.l.b16 %v6432
    %v6945 = vunpack.c.l.b16 %v6433
    %v6946 = vunpack.c.l.b16 %v6434
    %v6947 = vunpack.c.l.b16 %v6435
    %v6948 = vunpack.c.l.b16 %v6436
    %v6949 = vunpack.c.l.b16 %v6437
    %v6950 = vunpack.c.l.b16 %v6438
    %v6951 = vunpack.c.l.b16 %v6439
    %v6952 = vunpack.c.l.b16 %v6440
    %v6953 = vunpack.c.l.b16 %v6441
    %v6954 = vunpack.c.l.b16 %v6442
    %v6955 = vunpack.c.l.b16 %v6443
    %v6956 = vunpack.c.l.b16 %v6444
    %v6957 = vunpack.c.l.b16 %v6445
    %v6958 = vunpack.c.l.b16 %v6446
    %v6959 = vunpack.c.l.b16 %v6447
    %v6960 = vunpack.c.l.b16 %v6448
    %v6961 = vunpack.c.l.b16 %v6449
    %v6962 = vunpack.c.l.b16 %v6450
    %v6963 = vunpack.c.l.b16 %v6451
    %v6964 = vunpack.c.l.b16 %v6452
    %v6965 = vunpack.c.l.b16 %v6453
    %v6966 = vunpack.c.l.b16 %v6454
    %v6967 = vunpack.c.l.b16 %v6455
    %v6968 = vunpack.c.l.b16 %v6456
    %v6969 = vunpack.c.l.b16 %v6457
    %v6970 = vunpack.c.l.b16 %v6458
    %v6971 = vunpack.c.l.b16 %v6459
    %v6972 = vunpack.c.l.b16 %v6460
    %v6973 = vunpack.c.l.b16 %v6461
    %v6974 = vunpack.c.l.b16 %v6462
    %v6975 = vunpack.c.l.b16 %v6463
    %v6976 = vunpack.c.l.b16 %v6464
    %v6977 = vunpack.c.l.b16 %v6465
    %v6978 = vunpack.c.l.b16 %v6466
    %v6979 = vunpack.c.l.b16 %v6467
    %v6980 = vunpack.c.l.b16 %v6468
    %v6981 = vunpack.c.l.b16 %v6469
    %v6982 = vunpack.c.l.b16 %v6470
    %v6983 = vunpack.c.l.b16 %v6471
    %v6984 = vunpack.c.l.b16 %v6472
    %v6985 = vunpack.c.l.b16 %v6473
    %v6986 = vunpack.c.l.b16 %v6474
    %v6987 = vunpack.c.l.b16 %v6475
    %v6988 = vunpack.c.l.b16 %v6476
    %v6989 = vunpack.c.l.b16 %v6477
    %v6990 = vunpack.c.l.b16 %v6478
    %v6991 = vunpack.c.l.b16 %v6479
    %v6992 = vunpack.c.l.b16 %v6480
    %v6993 = vunpack.c.l.b16 %v6481
    %v6994 = vunpack.c.l.b16 %v6482
    %v6995 = vunpack.c.l.b16 %v6483
    %v6996 = vunpack.c.l.b16 %v6484
    %v6997 = vunpack.c.l.b16 %v6485
    %v6998 = vunpack.c.l.b16 %v6486
    %v6999 = vunpack.c.l.b16 %v6487
    %v7000 = vunpack.c.l.b16 %v6488
    %v7001 = vunpack.c.l.b16 %v6489
    %v7002 = vunpack.c.l.b16 %v6490
    %v7003 = vunpack.c.l.b16 %v6491
    %v7004 = vunpack.c.l.b16 %v6492
    %v7005 = vunpack.c.l.b16 %v6493
    %v7006 = vunpack.c.l.b16 %v6494
    %v7007 = vunpack.c.l.b16 %v6495
    %v7008 = vunpack.c.l.b16 %v6496
    %v7009 = vunpack.c.l.b16 %v6497
    %v7010 = vunpack.c.l.b16 %v6498
    %v7011 = vunpack.c.l.b16 %v6499
    %v7012 = vunpack.c.l.b16 %v6500
    %v7013 = vunpack.c.l.b16 %v6501
    %v7014 = vunpack.c.l.b16 %v6502
    %v7015 = vunpack.c.l.b16 %v6503
    %v7016 = vunpack.c.l.b16 %v6504
    %v7017 = vunpack.c.l.b16 %v6505
    %v7018 = vunpack.c.l.b16 %v6506
    %v7019 = vunpack.c.l.b16 %v6507
    %v7020 = vunpack.c.l.b16 %v6508
    %v7021 = vunpack.c.l.b16 %v6509
    %v7022 = vunpack.c.l.b16 %v6510
    %v7023 = vunpack.c.l.b16 %v6511
    %v7024 = vunpack.c.l.b16 %v6512
    %v7025 = vunpack.c.l.b16 %v6513
    %v7026 = vunpack.c.l.b16 %v6514
    %v7027 = vunpack.c.l.b16 %v6515
    %v7028 = vunpack.c.l.b16 %v6516
    %v7029 = vunpack.c.l.b16 %v6517
    %v7030 = vunpack.c.l.b16 %v6518
    %v7031 = vunpack.c.l.b16 %v6519
    %v7032 = vunpack.c.l.b16 %v6520
    %v7033 = vunpack.c.l.b16 %v6521
    %v7034 = vunpack.c.l.b16 %v6522
    %v7035 = vunpack.c.l.b16 %v6523
    %v7036 = vunpack.c.l.b16 %v6524
    %v7037 = vunpack.c.l.b16 %v6525
    %v7038 = vunpack.c.l.b16 %v6526
    %v7039 = vunpack.c.l.b16 %v6527
    %v7040 = vunpack.c.l.b16 %v6528
    %v7041 = vunpack.c.l.b16 %v6529
    %v7042 = vunpack.c.l.b16 %v6530
    %v7043 = vunpack.c.l.b16 %v6531
    %v7044 = vunpack.c.l.b16 %v6532
    %v7045 = vunpack.c.l.b16 %v6533
    %v7046 = vunpack.c.l.b16 %v6534
    %v7047 = vunpack.c.l.b16 %v6535
    %v7048 = vunpack.c.l.b16 %v6536
    %v7049 = vunpack.c.l.b16 %v6537
    %v7050 = vunpack.c.l.b16 %v6538
    %v7051 = vunpack.c.l.b16 %v6539
    %v7052 = vunpack.c.l.b16 %v6540
    %v7053 = vunpack.c.l.b16 %v6541
    %v7054 = vunpack.c.l.b16 %v6542
    %v7055 = vunpack.c.l.b16 %v6543
    %v7056 = vunpack.c.l.b16 %v6544
    %v7057 = vunpack.c.l.b16 %v6545
    %v7058 = vunpack.c.l.b16 %v6546
    %v7059 = vunpack.c.l.b16 %v6547
    %v7060 = vunpack.c.l.b16 %v6548
    %v7061 = vunpack.c.l.b16 %v6549
    %v7062 = vunpack.c.l.b16 %v6550
    %v7063 = vunpack.c.l.b16 %v6551
    %v7064 = vunpack.c.l.b16 %v6552
    %v7065 = vunpack.c.l.b16 %v6553
    %v7066 = vunpack.c.l.b16 %v6554
    %v7067 = vunpack.c.l.b16 %v6555
    %v7068 = vunpack.c.l.b16 %v6556
    %v7069 = vunpack.c.l.b16 %v6557
    %v7070 = vunpack.c.l.b16 %v6558
    %v7071 = vunpack.c.l.b16 %v6559
    %v7072 = vunpack.c.l.b16 %v6560
    %v7073 = vunpack.c.l.b16 %v6561
    %v7074 = vunpack.c.l.b16 %v6562
    %v7075 = vunpack.c.l.b16 %v6563
    %v7076 = vunpack.c.l.b16 %v6564
    %v7077 = vunpack.c.l.b16 %v6565
    %v7078 = vunpack.c.l.b16 %v6566
    %v7079 = vunpack.c.l.b16 %v6567
    %v7080 = vunpack.c.l.b16 %v6568
    %v7081 = vunpack.c.l.b16 %v6569
    %v7082 = vunpack.c.l.b16 %v6570
    %v7083 = vunpack.c.l.b16 %v6571
    %v7084 = vunpack.c.l.b16 %v6572
    %v7085 = vunpack.c.l.b16 %v6573
    %v7086 = vunpack.c.l.b16 %v6574
    %v7087 = vunpack.c.l.b16 %v6575
    %v7088 = vunpack.c.l.b16 %v6576
    %v7089 = vunpack.c.l.b16 %v6577
    %v7090 = vunpack.c.l.b16 %v6578
    %v7091 = vpack.c.b16 %v6835, %v6835
    %v7092 = vpack.c.b16 %v6836, %v6836
    %v7093 = vpack.c.b16 %v6837, %v6837
    %v7094 = vpack.c.b16 %v6838, %v6838
    %v7095 = vpack.c.b16 %v6839, %v6839
    %v7096 = vpack.c.b16 %v6840, %v6840
    %v7097 = vpack.c.b16 %v6841, %v6841
    %v7098 = vpack.c.b16 %v6842, %v6842
    %v7099 = vpack.c.b16 %v6843, %v6843
    %v7100 = vpack.c.b16 %v6844, %v6844
    %v7101 = vpack.c.b16 %v6845, %v6845
    %v7102 = vpack.c.b16 %v6846, %v6846
    %v7103 = vpack.c.b16 %v6847, %v6847
    %v7104 = vpack.c.b16 %v6848, %v6848
    %v7105 = vpack.c.b16 %v6849, %v6849
    %v7106 = vpack.c.b16 %v6850, %v6850
    %v7107 = vpack.c.b16 %v6851, %v6851
    %v7108 = vpack.c.b16 %v6852, %v6852
    %v7109 = vpack.c.b16 %v6853, %v6853
    %v7110 = vpack.c.b16 %v6854, %v6854
    %v7111 = vpack.c.b16 %v6855, %v6855
    %v7112 = vpack.c.b16 %v6856, %v6856
    %v7113 = vpack.c.b16 %v6857, %v6857
    %v7114 = vpack.c.b16 %v6858, %v6858
    %v7115 = vpack.c.b16 %v6859, %v6859
    %v7116 = vpack.c.b16 %v6860, %v6860
    %v7117 = vpack.c.b16 %v6861, %v6861
    %v7118 = vpack.c.b16 %v6862, %v6862
    %v7119 = vpack.c.b16 %v6863, %v6863
    %v7120 = vpack.c.b16 %v6864, %v6864
    %v7121 = vpack.c.b16 %v6865, %v6865
    %v7122 = vpack.c.b16 %v6866, %v6866
    %v7123 = vpack.c.b16 %v6867, %v6867
    %v7124 = vpack.c.b16 %v6868, %v6868
    %v7125 = vpack.c.b16 %v6869, %v6869
    %v7126 = vpack.c.b16 %v6870, %v6870
    %v7127 = vpack.c.b16 %v6871, %v6871
    %v7128 = vpack.c.b16 %v6872, %v6872
    %v7129 = vpack.c.b16 %v6873, %v6873
    %v7130 = vpack.c.b16 %v6874, %v6874
    %v7131 = vpack.c.b16 %v6875, %v6875
    %v7132 = vpack.c.b16 %v6876, %v6876
    %v7133 = vpack.c.b16 %v6877, %v6877
    %v7134 = vpack.c.b16 %v6878, %v6878
    %v7135 = vpack.c.b16 %v6879, %v6879
    %v7136 = vpack.c.b16 %v6880, %v6880
    %v7137 = vpack.c.b16 %v6881, %v6881
    %v7138 = vpack.c.b16 %v6882, %v6882
    %v7139 = vpack.c.b16 %v6883, %v6883
    %v7140 = vpack.c.b16 %v6884, %v6884
    %v7141 = vpack.c.b16 %v6885, %v6885
    %v7142 = vpack.c.b16 %v6886, %v6886
    %v7143 = vpack.c.b16 %v6887, %v6887
    %v7144 = vpack.c.b16 %v6888, %v6888
    %v7145 = vpack.c.b16 %v6889, %v6889
    %v7146 = vpack.c.b16 %v6890, %v6890
    %v7147 = vpack.c.b16 %v6891, %v6891
    %v7148 = vpack.c.b16 %v6892, %v6892
    %v7149 = vpack.c.b16 %v6893, %v6893
    %v7150 = vpack.c.b16 %v6894, %v6894
    %v7151 = vpack.c.b16 %v6895, %v6895
    %v7152 = vpack.c.b16 %v6896, %v6896
    %v7153 = vpack.c.b16 %v6897, %v6897
    %v7154 = vpack.c.b16 %v6898, %v6898
    %v7155 = vpack.c.b16 %v6899, %v6899
    %v7156 = vpack.c.b16 %v6900, %v6900
    %v7157 = vpack.c.b16 %v6901, %v6901
    %v7158 = vpack.c.b16 %v6902, %v6902
    %v7159 = vpack.c.b16 %v6903, %v6903
    %v7160 = vpack.c.b16 %v6904, %v6904
    %v7161 = vpack.c.b16 %v6905, %v6905
    %v7162 = vpack.c.b16 %v6906, %v6906
    %v7163 = vpack.c.b16 %v6907, %v6907
    %v7164 = vpack.c.b16 %v6908, %v6908
    %v7165 = vpack.c.b16 %v6909, %v6909
    %v7166 = vpack.c.b16 %v6910, %v6910
    %v7167 = vpack.c.b16 %v6911, %v6911
    %v7168 = vpack.c.b16 %v6912, %v6912
    %v7169 = vpack.c.b16 %v6913, %v6913
    %v7170 = vpack.c.b16 %v6914, %v6914
    %v7171 = vpack.c.b16 %v6915, %v6915
    %v7172 = vpack.c.b16 %v6916, %v6916
    %v7173 = vpack.c.b16 %v6917, %v6917
    %v7174 = vpack.c.b16 %v6918, %v6918
    %v7175 = vpack.c.b16 %v6919, %v6919
    %v7176 = vpack.c.b16 %v6920, %v6920
    %v7177 = vpack.c.b16 %v6921, %v6921
    %v7178 = vpack.c.b16 %v6922, %v6922
    %v7179 = vpack.c.b16 %v6923, %v6923
    %v7180 = vpack.c.b16 %v6924, %v6924
    %v7181 = vpack.c.b16 %v6925, %v6925
    %v7182 = vpack.c.b16 %v6926, %v6926
    %v7183 = vpack.c.b16 %v6927, %v6927
    %v7184 = vpack.c.b16 %v6928, %v6928
    %v7185 = vpack.c.b16 %v6929, %v6929
    %v7186 = vpack.c.b16 %v6930, %v6930
    %v7187 = vpack.c.b16 %v6931, %v6931
    %v7188 = vpack.c.b16 %v6932, %v6932
    %v7189 = vpack.c.b16 %v6933, %v6933
    %v7190 = vpack.c.b16 %v6934, %v6934
    %v7191 = vpack.c.b16 %v6935, %v6935
    %v7192 = vpack.c.b16 %v6936, %v6936
    %v7193 = vpack.c.b16 %v6937, %v6937
    %v7194 = vpack.c.b16 %v6938, %v6938
    %v7195 = vpack.c.b16 %v6939, %v6939
    %v7196 = vpack.c.b16 %v6940, %v6940
    %v7197 = vpack.c.b16 %v6941, %v6941
    %v7198 = vpack.c.b16 %v6942, %v6942
    %v7199 = vpack.c.b16 %v6943, %v6943
    %v7200 = vpack.c.b16 %v6944, %v6944
    %v7201 = vpack.c.b16 %v6945, %v6945
    %v7202 = vpack.c.b16 %v6946, %v6946
    %v7203 = vpack.c.b16 %v6947, %v6947
    %v7204 = vpack.c.b16 %v6948, %v6948
    %v7205 = vpack.c.b16 %v6949, %v6949
    %v7206 = vpack.c.b16 %v6950, %v6950
    %v7207 = vpack.c.b16 %v6951, %v6951
    %v7208 = vpack.c.b16 %v6952, %v6952
    %v7209 = vpack.c.b16 %v6953, %v6953
    %v7210 = vpack.c.b16 %v6954, %v6954
    %v7211 = vpack.c.b16 %v6955, %v6955
    %v7212 = vpack.c.b16 %v6956, %v6956
    %v7213 = vpack.c.b16 %v6957, %v6957
    %v7214 = vpack.c.b16 %v6958, %v6958
    %v7215 = vpack.c.b16 %v6959, %v6959
    %v7216 = vpack.c.b16 %v6960, %v6960
    %v7217 = vpack.c.b16 %v6961, %v6961
    %v7218 = vpack.c.b16 %v6962, %v6962
    %v7219 = vpack.c.b16 %v6963, %v6963
    %v7220 = vpack.c.b16 %v6964, %v6964
    %v7221 = vpack.c.b16 %v6965, %v6965
    %v7222 = vpack.c.b16 %v6966, %v6966
    %v7223 = vpack.c.b16 %v6967, %v6967
    %v7224 = vpack.c.b16 %v6968, %v6968
    %v7225 = vpack.c.b16 %v6969, %v6969
    %v7226 = vpack.c.b16 %v6970, %v6970
    %v7227 = vpack.c.b16 %v6971, %v6971
    %v7228 = vpack.c.b16 %v6972, %v6972
    %v7229 = vpack.c.b16 %v6973, %v6973
    %v7230 = vpack.c.b16 %v6974, %v6974
    %v7231 = vpack.c.b16 %v6975, %v6975
    %v7232 = vpack.c.b16 %v6976, %v6976
    %v7233 = vpack.c.b16 %v6977, %v6977
    %v7234 = vpack.c.b16 %v6978, %v6978
    %v7235 = vpack.c.b16 %v6979, %v6979
    %v7236 = vpack.c.b16 %v6980, %v6980
    %v7237 = vpack.c.b16 %v6981, %v6981
    %v7238 = vpack.c.b16 %v6982, %v6982
    %v7239 = vpack.c.b16 %v6983, %v6983
    %v7240 = vpack.c.b16 %v6984, %v6984
    %v7241 = vpack.c.b16 %v6985, %v6985
    %v7242 = vpack.c.b16 %v6986, %v6986
    %v7243 = vpack.c.b16 %v6987, %v6987
    %v7244 = vpack.c.b16 %v6988, %v6988
    %v7245 = vpack.c.b16 %v6989, %v6989
    %v7246 = vpack.c.b16 %v6990, %v6990
    %v7247 = vpack.c.b16 %v6991, %v6991
    %v7248 = vpack.c.b16 %v6992, %v6992
    %v7249 = vpack.c.b16 %v6993, %v6993
    %v7250 = vpack.c.b16 %v6994, %v6994
    %v7251 = vpack.c.b16 %v6995, %v6995
    %v7252 = vpack.c.b16 %v6996, %v6996
    %v7253 = vpack.c.b16 %v6997, %v6997
    %v7254 = vpack.c.b16 %v6998, %v6998
    %v7255 = vpack.c.b16 %v6999, %v6999
    %v7256 = vpack.c.b16 %v7000, %v7000
    %v7257 = vpack.c.b16 %v7001, %v7001
    %v7258 = vpack.c.b16 %v7002, %v7002
    %v7259 = vpack.c.b16 %v7003, %v7003
    %v7260 = vpack.c.b16 %v7004, %v7004
    %v7261 = vpack.c.b16 %v7005, %v7005
    %v7262 = vpack.c.b16 %v7006, %v7006
    %v7263 = vpack.c.b16 %v7007, %v7007
    %v7264 = vpack.c.b16 %v7008, %v7008
    %v7265 = vpack.c.b16 %v7009, %v7009
    %v7266 = vpack.c.b16 %v7010, %v7010
    %v7267 = vpack.c.b16 %v7011, %v7011
    %v7268 = vpack.c.b16 %v7012, %v7012
    %v7269 = vpack.c.b16 %v7013, %v7013
    %v7270 = vpack.c.b16 %v7014, %v7014
    %v7271 = vpack.c.b16 %v7015, %v7015
    %v7272 = vpack.c.b16 %v7016, %v7016
    %v7273 = vpack.c.b16 %v7017, %v7017
    %v7274 = vpack.c.b16 %v7018, %v7018
    %v7275 = vpack.c.b16 %v7019, %v7019
    %v7276 = vpack.c.b16 %v7020, %v7020
    %v7277 = vpack.c.b16 %v7021, %v7021
    %v7278 = vpack.c.b16 %v7022, %v7022
    %v7279 = vpack.c.b16 %v7023, %v7023
    %v7280 = vpack.c.b16 %v7024, %v7024
    %v7281 = vpack.c.b16 %v7025, %v7025
    %v7282 = vpack.c.b16 %v7026, %v7026
    %v7283 = vpack.c.b16 %v7027, %v7027
    %v7284 = vpack.c.b16 %v7028, %v7028
    %v7285 = vpack.c.b16 %v7029, %v7029
    %v7286 = vpack.c.b16 %v7030, %v7030
    %v7287 = vpack.c.b16 %v7031, %v7031
    %v7288 = vpack.c.b16 %v7032, %v7032
    %v7289 = vpack.c.b16 %v7033, %v7033
    %v7290 = vpack.c.b16 %v7034, %v7034
    %v7291 = vpack.c.b16 %v7035, %v7035
    %v7292 = vpack.c.b16 %v7036, %v7036
    %v7293 = vpack.c.b16 %v7037, %v7037
    %v7294 = vpack.c.b16 %v7038, %v7038
    %v7295 = vpack.c.b16 %v7039, %v7039
    %v7296 = vpack.c.b16 %v7040, %v7040
    %v7297 = vpack.c.b16 %v7041, %v7041
    %v7298 = vpack.c.b16 %v7042, %v7042
    %v7299 = vpack.c.b16 %v7043, %v7043
    %v7300 = vpack.c.b16 %v7044, %v7044
    %v7301 = vpack.c.b16 %v7045, %v7045
    %v7302 = vpack.c.b16 %v7046, %v7046
    %v7303 = vpack.c.b16 %v7047, %v7047
    %v7304 = vpack.c.b16 %v7048, %v7048
    %v7305 = vpack.c.b16 %v7049, %v7049
    %v7306 = vpack.c.b16 %v7050, %v7050
    %v7307 = vpack.c.b16 %v7051, %v7051
    %v7308 = vpack.c.b16 %v7052, %v7052
    %v7309 = vpack.c.b16 %v7053, %v7053
    %v7310 = vpack.c.b16 %v7054, %v7054
    %v7311 = vpack.c.b16 %v7055, %v7055
    %v7312 = vpack.c.b16 %v7056, %v7056
    %v7313 = vpack.c.b16 %v7057, %v7057
    %v7314 = vpack.c.b16 %v7058, %v7058
    %v7315 = vpack.c.b16 %v7059, %v7059
    %v7316 = vpack.c.b16 %v7060, %v7060
    %v7317 = vpack.c.b16 %v7061, %v7061
    %v7318 = vpack.c.b16 %v7062, %v7062
    %v7319 = vpack.c.b16 %v7063, %v7063
    %v7320 = vpack.c.b16 %v7064, %v7064
    %v7321 = vpack.c.b16 %v7065, %v7065
    %v7322 = vpack.c.b16 %v7066, %v7066
    %v7323 = vpack.c.b16 %v7067, %v7067
    %v7324 = vpack.c.b16 %v7068, %v7068
    %v7325 = vpack.c.b16 %v7069, %v7069
    %v7326 = vpack.c.b16 %v7070, %v7070
    %v7327 = vpack.c.b16 %v7071, %v7071
    %v7328 = vpack.c.b16 %v7072, %v7072
    %v7329 = vpack.c.b16 %v7073, %v7073
    %v7330 = vpack.c.b16 %v7074, %v7074
    %v7331 = vpack.c.b16 %v7075, %v7075
    %v7332 = vpack.c.b16 %v7076, %v7076
    %v7333 = vpack.c.b16 %v7077, %v7077
    %v7334 = vpack.c.b16 %v7078, %v7078
    %v7335 = vpack.c.b16 %v7079, %v7079
    %v7336 = vpack.c.b16 %v7080, %v7080
    %v7337 = vpack.c.b16 %v7081, %v7081
    %v7338 = vpack.c.b16 %v7082, %v7082
    %v7339 = vpack.c.b16 %v7083, %v7083
    %v7340 = vpack.c.b16 %v7084, %v7084
    %v7341 = vpack.c.b16 %v7085, %v7085
    %v7342 = vpack.c.b16 %v7086, %v7086
    %v7343 = vpack.c.b16 %v7087, %v7087
    %v7344 = vpack.c.b16 %v7088, %v7088
    %v7345 = vpack.c.b16 %v7089, %v7089
    %v7346 = vpack.c.b16 %v7090, %v7090
    %v7347 = vunpack.c.l.b16 %v7091
    %v7348 = vunpack.c.l.b16 %v7092
    %v7349 = vunpack.c.l.b16 %v7093
    %v7350 = vunpack.c.l.b16 %v7094
    %v7351 = vunpack.c.l.b16 %v7095
    %v7352 = vunpack.c.l.b16 %v7096
    %v7353 = vunpack.c.l.b16 %v7097
    %v7354 = vunpack.c.l.b16 %v7098
    %v7355 = vunpack.c.l.b16 %v7099
    %v7356 = vunpack.c.l.b16 %v7100
    %v7357 = vunpack.c.l.b16 %v7101
    %v7358 = vunpack.c.l.b16 %v7102
    %v7359 = vunpack.c.l.b16 %v7103
    %v7360 = vunpack.c.l.b16 %v7104
    %v7361 = vunpack.c.l.b16 %v7105
    %v7362 = vunpack.c.l.b16 %v7106
    %v7363 = vunpack.c.l.b16 %v7107
    %v7364 = vunpack.c.l.b16 %v7108
    %v7365 = vunpack.c.l.b16 %v7109
    %v7366 = vunpack.c.l.b16 %v7110
    %v7367 = vunpack.c.l.b16 %v7111
    %v7368 = vunpack.c.l.b16 %v7112
    %v7369 = vunpack.c.l.b16 %v7113
    %v7370 = vunpack.c.l.b16 %v7114
    %v7371 = vunpack.c.l.b16 %v7115
    %v7372 = vunpack.c.l.b16 %v7116
    %v7373 = vunpack.c.l.b16 %v7117
    %v7374 = vunpack.c.l.b16 %v7118
    %v7375 = vunpack.c.l.b16 %v7119
    %v7376 = vunpack.c.l.b16 %v7120
    %v7377 = vunpack.c.l.b16 %v7121
    %v7378 = vunpack.c.l.b16 %v7122
    %v7379 = vunpack.c.l.b16 %v7123
    %v7380 = vunpack.c.l.b16 %v7124
    %v7381 = vunpack.c.l.b16 %v7125
    %v7382 = vunpack.c.l.b16 %v7126
    %v7383 = vunpack.c.l.b16 %v7127
    %v7384 = vunpack.c.l.b16 %v7128
    %v7385 = vunpack.c.l.b16 %v7129
    %v7386 = vunpack.c.l.b16 %v7130
    %v7387 = vunpack.c.l.b16 %v7131
    %v7388 = vunpack.c.l.b16 %v7132
    %v7389 = vunpack.c.l.b16 %v7133
    %v7390 = vunpack.c.l.b16 %v7134
    %v7391 = vunpack.c.l.b16 %v7135
    %v7392 = vunpack.c.l.b16 %v7136
    %v7393 = vunpack.c.l.b16 %v7137
    %v7394 = vunpack.c.l.b16 %v7138
    %v7395 = vunpack.c.l.b16 %v7139
    %v7396 = vunpack.c.l.b16 %v7140
    %v7397 = vunpack.c.l.b16 %v7141
    %v7398 = vunpack.c.l.b16 %v7142
    %v7399 = vunpack.c.l.b16 %v7143
    %v7400 = vunpack.c.l.b16 %v7144
    %v7401 = vunpack.c.l.b16 %v7145
    %v7402 = vunpack.c.l.b16 %v7146
    %v7403 = vunpack.c.l.b16 %v7147
    %v7404 = vunpack.c.l.b16 %v7148
    %v7405 = vunpack.c.l.b16 %v7149
    %v7406 = vunpack.c.l.b16 %v7150
    %v7407 = vunpack.c.l.b16 %v7151
    %v7408 = vunpack.c.l.b16 %v7152
    %v7409 = vunpack.c.l.b16 %v7153
    %v7410 = vunpack.c.l.b16 %v7154
    %v7411 = vunpack.c.l.b16 %v7155
    %v7412 = vunpack.c.l.b16 %v7156
    %v7413 = vunpack.c.l.b16 %v7157
    %v7414 = vunpack.c.l.b16 %v7158
    %v7415 = vunpack.c.l.b16 %v7159
    %v7416 = vunpack.c.l.b16 %v7160
    %v7417 = vunpack.c.l.b16 %v7161
    %v7418 = vunpack.c.l.b16 %v7162
    %v7419 = vunpack.c.l.b16 %v7163
    %v7420 = vunpack.c.l.b16 %v7164
    %v7421 = vunpack.c.l.b16 %v7165
    %v7422 = vunpack.c.l.b16 %v7166
    %v7423 = vunpack.c.l.b16 %v7167
    %v7424 = vunpack.c.l.b16 %v7168
    %v7425 = vunpack.c.l.b16 %v7169
    %v7426 = vunpack.c.l.b16 %v7170
    %v7427 = vunpack.c.l.b16 %v7171
    %v7428 = vunpack.c.l.b16 %v7172
    %v7429 = vunpack.c.l.b16 %v7173
    %v7430 = vunpack.c.l.b16 %v7174
    %v7431 = vunpack.c.l.b16 %v7175
    %v7432 = vunpack.c.l.b16 %v7176
    %v7433 = vunpack.c.l.b16 %v7177
    %v7434 = vunpack.c.l.b16 %v7178
    %v7435 = vunpack.c.l.b16 %v7179
    %v7436 = vunpack.c.l.b16 %v7180
    %v7437 = vunpack.c.l.b16 %v7181
    %v7438 = vunpack.c.l.b16 %v7182
    %v7439 = vunpack.c.l.b16 %v7183
    %v7440 = vunpack.c.l.b16 %v7184
    %v7441 = vunpack.c.l.b16 %v7185
    %v7442 = vunpack.c.l.b16 %v7186
    %v7443 = vunpack.c.l.b16 %v7187
    %v7444 = vunpack.c.l.b16 %v7188
    %v7445 = vunpack.c.l.b16 %v7189
    %v7446 = vunpack.c.l.b16 %v7190
    %v7447 = vunpack.c.l.b16 %v7191
    %v7448 = vunpack.c.l.b16 %v7192
    %v7449 = vunpack.c.l.b16 %v7193
    %v7450 = vunpack.c.l.b16 %v7194
    %v7451 = vunpack.c.l.b16 %v7195
    %v7452 = vunpack.c.l.b16 %v7196
    %v7453 = vunpack.c.l.b16 %v7197
    %v7454 = vunpack.c.l.b16 %v7198
    %v7455 = vunpack.c.l.b16 %v7199
    %v7456 = vunpack.c.l.b16 %v7200
    %v7457 = vunpack.c.l.b16 %v7201
    %v7458 = vunpack.c.l.b16 %v7202
    %v7459 = vunpack.c.l.b16 %v7203
    %v7460 = vunpack.c.l.b16 %v7204
    %v7461 = vunpack.c.l.b16 %v7205
    %v7462 = vunpack.c.l.b16 %v7206
    %v7463 = vunpack.c.l.b16 %v7207
    %v7464 = vunpack.c.l.b16 %v7208
    %v7465 = vunpack.c.l.b16 %v7209
    %v7466 = vunpack.c.l.b16 %v7210
    %v7467 = vunpack.c.l.b16 %v7211
    %v7468 = vunpack.c.l.b16 %v7212
    %v7469 = vunpack.c.l.b16 %v7213
    %v7470 = vunpack.c.l.b16 %v7214
    %v7471 = vunpack.c.l.b16 %v7215
    %v7472 = vunpack.c.l.b16 %v7216
    %v7473 = vunpack.c.l.b16 %v7217
    %v7474 = vunpack.c.l.b16 %v7218
    %v7475 = vunpack.c.l.b16 %v7219
    %v7476 = vunpack.c.l.b16 %v7220
    %v7477 = vunpack.c.l.b16 %v7221
    %v7478 = vunpack.c.l.b16 %v7222
    %v7479 = vunpack.c.l.b16 %v7223
    %v7480 = vunpack.c.l.b16 %v7224
    %v7481 = vunpack.c.l.b16 %v7225
    %v7482 = vunpack.c.l.b16 %v7226
    %v7483 = vunpack.c.l.b16 %v7227
    %v7484 = vunpack.c.l.b16 %v7228
    %v7485 = vunpack.c.l.b16 %v7229
    %v7486 = vunpack.c.l.b16 %v7230
    %v7487 = vunpack.c.l.b16 %v7231
    %v7488 = vunpack.c.l.b16 %v7232
    %v7489 = vunpack.c.l.b16 %v7233
    %v7490 = vunpack.c.l.b16 %v7234
    %v7491 = vunpack.c.l.b16 %v7235
    %v7492 = vunpack.c.l.b16 %v7236
    %v7493 = vunpack.c.l.b16 %v7237
    %v7494 = vunpack.c.l.b16 %v7238
    %v7495 = vunpack.c.l.b16 %v7239
    %v7496 = vunpack.c.l.b16 %v7240
    %v7497 = vunpack.c.l.b16 %v7241
    %v7498 = vunpack.c.l.b16 %v7242
    %v7499 = vunpack.c.l.b16 %v7243
    %v7500 = vunpack.c.l.b16 %v7244
    %v7501 = vunpack.c.l.b16 %v7245
    %v7502 = vunpack.c.l.b16 %v7246
    %v7503 = vunpack.c.l.b16 %v7247
    %v7504 = vunpack.c.l.b16 %v7248
    %v7505 = vunpack.c.l.b16 %v7249
    %v7506 = vunpack.c.l.b16 %v7250
    %v7507 = vunpack.c.l.b16 %v7251
    %v7508 = vunpack.c.l.b16 %v7252
    %v7509 = vunpack.c.l.b16 %v7253
    %v7510 = vunpack.c.l.b16 %v7254
    %v7511 = vunpack.c.l.b16 %v7255
    %v7512 = vunpack.c.l.b16 %v7256
    %v7513 = vunpack.c.l.b16 %v7257
    %v7514 = vunpack.c.l.b16 %v7258
    %v7515 = vunpack.c.l.b16 %v7259
    %v7516 = vunpack.c.l.b16 %v7260
    %v7517 = vunpack.c.l.b16 %v7261
    %v7518 = vunpack.c.l.b16 %v7262
    %v7519 = vunpack.c.l.b16 %v7263
    %v7520 = vunpack.c.l.b16 %v7264
    %v7521 = vunpack.c.l.b16 %v7265
    %v7522 = vunpack.c.l.b16 %v7266
    %v7523 = vunpack.c.l.b16 %v7267
    %v7524 = vunpack.c.l.b16 %v7268
    %v7525 = vunpack.c.l.b16 %v7269
    %v7526 = vunpack.c.l.b16 %v7270
    %v7527 = vunpack.c.l.b16 %v7271
    %v7528 = vunpack.c.l.b16 %v7272
    %v7529 = vunpack.c.l.b16 %v7273
    %v7530 = vunpack.c.l.b16 %v7274
    %v7531 = vunpack.c.l.b16 %v7275
    %v7532 = vunpack.c.l.b16 %v7276
    %v7533 = vunpack.c.l.b16 %v7277
    %v7534 = vunpack.c.l.b16 %v7278
    %v7535 = vunpack.c.l.b16 %v7279
    %v7536 = vunpack.c.l.b16 %v7280
    %v7537 = vunpack.c.l.b16 %v7281
    %v7538 = vunpack.c.l.b16 %v7282
    %v7539 = vunpack.c.l.b16 %v7283
    %v7540 = vunpack.c.l.b16 %v7284
    %v7541 = vunpack.c.l.b16 %v7285
    %v7542 = vunpack.c.l.b16 %v7286
    %v7543 = vunpack.c.l.b16 %v7287
    %v7544 = vunpack.c.l.b16 %v7288
    %v7545 = vunpack.c.l.b16 %v7289
    %v7546 = vunpack.c.l.b16 %v7290
    %v7547 = vunpack.c.l.b16 %v7291
    %v7548 = vunpack.c.l.b16 %v7292
    %v7549 = vunpack.c.l.b16 %v7293
    %v7550 = vunpack.c.l.b16 %v7294
    %v7551 = vunpack.c.l.b16 %v7295
    %v7552 = vunpack.c.l.b16 %v7296
    %v7553 = vunpack.c.l.b16 %v7297
    %v7554 = vunpack.c.l.b16 %v7298
    %v7555 = vunpack.c.l.b16 %v7299
    %v7556 = vunpack.c.l.b16 %v7300
    %v7557 = vunpack.c.l.b16 %v7301
    %v7558 = vunpack.c.l.b16 %v7302
    %v7559 = vunpack.c.l.b16 %v7303
    %v7560 = vunpack.c.l.b16 %v7304
    %v7561 = vunpack.c.l.b16 %v7305
    %v7562 = vunpack.c.l.b16 %v7306
    %v7563 = vunpack.c.l.b16 %v7307
    %v7564 = vunpack.c.l.b16 %v7308
    %v7565 = vunpack.c.l.b16 %v7309
    %v7566 = vunpack.c.l.b16 %v7310
    %v7567 = vunpack.c.l.b16 %v7311
    %v7568 = vunpack.c.l.b16 %v7312
    %v7569 = vunpack.c.l.b16 %v7313
    %v7570 = vunpack.c.l.b16 %v7314
    %v7571 = vunpack.c.l.b16 %v7315
    %v7572 = vunpack.c.l.b16 %v7316
    %v7573 = vunpack.c.l.b16 %v7317
    %v7574 = vunpack.c.l.b16 %v7318
    %v7575 = vunpack.c.l.b16 %v7319
    %v7576 = vunpack.c.l.b16 %v7320
    %v7577 = vunpack.c.l.b16 %v7321
    %v7578 = vunpack.c.l.b16 %v7322
    %v7579 = vunpack.c.l.b16 %v7323
    %v7580 = vunpack.c.l.b16 %v7324
    %v7581 = vunpack.c.l.b16 %v7325
    %v7582 = vunpack.c.l.b16 %v7326
    %v7583 = vunpack.c.l.b16 %v7327
    %v7584 = vunpack.c.l.b16 %v7328
    %v7585 = vunpack.c.l.b16 %v7329
    %v7586 = vunpack.c.l.b16 %v7330
    %v7587 = vunpack.c.l.b16 %v7331
    %v7588 = vunpack.c.l.b16 %v7332
    %v7589 = vunpack.c.l.b16 %v7333
    %v7590 = vunpack.c.l.b16 %v7334
    %v7591 = vunpack.c.l.b16 %v7335
    %v7592 = vunpack.c.l.b16 %v7336
    %v7593 = vunpack.c.l.b16 %v7337
    %v7594 = vunpack.c.l.b16 %v7338
    %v7595 = vunpack.c.l.b16 %v7339
    %v7596 = vunpack.c.l.b16 %v7340
    %v7597 = vunpack.c.l.b16 %v7341
    %v7598 = vunpack.c.l.b16 %v7342
    %v7599 = vunpack.c.l.b16 %v7343
    %v7600 = vunpack.c.l.b16 %v7344
    %v7601 = vunpack.c.l.b16 %v7345
    %v7602 = vunpack.c.l.b16 %v7346
    %vm7603 = vcmask 1042434
    %v7604 = vsel %vm7603, %v7348, %v7347
    %vm7605 = vcmask 1043459
    %v7606 = vsel %vm7605, %v7349, %v7604
    %vm7607 = vcmask 1044484
    %v7608 = vsel %vm7607, %v7350, %v7606
    %vm7609 = vcmask 1045509
    %v7610 = vsel %vm7609, %v7351, %v7608
    %vm7611 = vcmask 1046534
    %v7612 = vsel %vm7611, %v7352, %v7610
    %vm7613 = vcmask 1047559
    %v7614 = vsel %vm7613, %v7353, %v7612
    %vm7615 = vcmask 1041409
    %v7616 = vsel %vm7615, %v7355, %v7354
    %v7617 = vsel %vm7603, %v7356, %v7616
    %v7618 = vsel %vm7605, %v7357, %v7617
    %v7619 = vsel %vm7607, %v7358, %v7618
    %v7620 = vsel %vm7609, %v7359, %v7619
    %v7621 = vsel %vm7611, %v7360, %v7620
    %v7622 = vsel %vm7613, %v7361, %v7621
    %v7623 = vsel %vm7615, %v7363, %v7362
    %v7624 = vsel %vm7603, %v7364, %v7623
    %v7625 = vsel %vm7605, %v7365, %v7624
    %v7626 = vsel %vm7607, %v7366, %v7625
    %v7627 = vsel %vm7609, %v7367, %v7626
    %v7628 = vsel %vm7611, %v7368, %v7627
    %v7629 = vsel %vm7613, %v7369, %v7628
    %v7630 = vsel %vm7615, %v7371, %v7370
    %v7631 = vsel %vm7603, %v7372, %v7630
    %v7632 = vsel %vm7605, %v7373, %v7631
    %v7633 = vsel %vm7607, %v7374, %v7632
    %v7634 = vsel %vm7609, %v7375, %v7633
    %v7635 = vsel %vm7611, %v7376, %v7634
    %v7636 = vsel %vm7613, %v7377, %v7635
    %v7637 = vsel %vm7603, %v7380, %v7379
    %v7638 = vsel %vm7605, %v7381, %v7637
    %v7639 = vsel %vm7607, %v7382, %v7638
    %v7640 = vsel %vm7609, %v7383, %v7639
    %v7641 = vsel %vm7611, %v7384, %v7640
    %v7642 = vsel %vm7613, %v7385, %v7641
    %v7643 = vsel %vm7615, %v7387, %v7386
    %v7644 = vsel %vm7603, %v7388, %v7643
    %v7645 = vsel %vm7605, %v7389, %v7644
    %v7646 = vsel %vm7607, %v7390, %v7645
    %v7647 = vsel %vm7609, %v7391, %v7646
    %v7648 = vsel %vm7611, %v7392, %v7647
    %v7649 = vsel %vm7613, %v7393, %v7648
    %v7650 = vsel %vm7615, %v7395, %v7394
    %v7651 = vsel %vm7603, %v7396, %v7650
    %v7652 = vsel %vm7605, %v7397, %v7651
    %v7653 = vsel %vm7607, %v7398, %v7652
    %v7654 = vsel %vm7609, %v7399, %v7653
    %v7655 = vsel %vm7611, %v7400, %v7654
    %v7656 = vsel %vm7613, %v7401, %v7655
    %v7657 = vsel %vm7615, %v7403, %v7402
    %v7658 = vsel %vm7603, %v7404, %v7657
    %v7659 = vsel %vm7605, %v7405, %v7658
    %v7660 = vsel %vm7607, %v7406, %v7659
    %v7661 = vsel %vm7609, %v7407, %v7660
    %v7662 = vsel %vm7611, %v7408, %v7661
    %v7663 = vsel %vm7613, %v7409, %v7662
    %v7664 = vsel %vm7603, %v7412, %v7411
    %v7665 = vsel %vm7605, %v7413, %v7664
    %v7666 = vsel %vm7607, %v7414, %v7665
    %v7667 = vsel %vm7609, %v7415, %v7666
    %v7668 = vsel %vm7611, %v7416, %v7667
    %v7669 = vsel %vm7613, %v7417, %v7668
    %v7670 = vsel %vm7615, %v7419, %v7418
    %v7671 = vsel %vm7603, %v7420, %v7670
    %v7672 = vsel %vm7605, %v7421, %v7671
    %v7673 = vsel %vm7607, %v7422, %v7672
    %v7674 = vsel %vm7609, %v7423, %v7673
    %v7675 = vsel %vm7611, %v7424, %v7674
    %v7676 = vsel %vm7613, %v7425, %v7675
    %v7677 = vsel %vm7615, %v7427, %v7426
    %v7678 = vsel %vm7603, %v7428, %v7677
    %v7679 = vsel %vm7605, %v7429, %v7678
    %v7680 = vsel %vm7607, %v7430, %v7679
    %v7681 = vsel %vm7609, %v7431, %v7680
    %v7682 = vsel %vm7611, %v7432, %v7681
    %v7683 = vsel %vm7613, %v7433, %v7682
    %v7684 = vsel %vm7615, %v7435, %v7434
    %v7685 = vsel %vm7603, %v7436, %v7684
    %v7686 = vsel %vm7605, %v7437, %v7685
    %v7687 = vsel %vm7607, %v7438, %v7686
    %v7688 = vsel %vm7609, %v7439, %v7687
    %v7689 = vsel %vm7611, %v7440, %v7688
    %v7690 = vsel %vm7613, %v7441, %v7689
    %v7691 = vsel %vm7603, %v7444, %v7443
    %v7692 = vsel %vm7605, %v7445, %v7691
    %v7693 = vsel %vm7607, %v7446, %v7692
    %v7694 = vsel %vm7609, %v7447, %v7693
    %v7695 = vsel %vm7611, %v7448, %v7694
    %v7696 = vsel %vm7613, %v7449, %v7695
    %v7697 = vsel %vm7615, %v7451, %v7450
    %v7698 = vsel %vm7603, %v7452, %v7697
    %v7699 = vsel %vm7605, %v7453, %v7698
    %v7700 = vsel %vm7607, %v7454, %v7699
    %v7701 = vsel %vm7609, %v7455, %v7700
    %v7702 = vsel %vm7611, %v7456, %v7701
    %v7703 = vsel %vm7613, %v7457, %v7702
    %v7704 = vsel %vm7615, %v7459, %v7458
    %v7705 = vsel %vm7603, %v7460, %v7704
    %v7706 = vsel %vm7605, %v7461, %v7705
    %v7707 = vsel %vm7607, %v7462, %v7706
    %v7708 = vsel %vm7609, %v7463, %v7707
    %v7709 = vsel %vm7611, %v7464, %v7708
    %v7710 = vsel %vm7613, %v7465, %v7709
    %v7711 = vsel %vm7615, %v7467, %v7466
    %v7712 = vsel %vm7603, %v7468, %v7711
    %v7713 = vsel %vm7605, %v7469, %v7712
    %v7714 = vsel %vm7607, %v7470, %v7713
    %v7715 = vsel %vm7609, %v7471, %v7714
    %v7716 = vsel %vm7611, %v7472, %v7715
    %v7717 = vsel %vm7613, %v7473, %v7716
    %v7718 = vsel %vm7603, %v7476, %v7475
    %v7719 = vsel %vm7605, %v7477, %v7718
    %v7720 = vsel %vm7607, %v7478, %v7719
    %v7721 = vsel %vm7609, %v7479, %v7720
    %v7722 = vsel %vm7611, %v7480, %v7721
    %v7723 = vsel %vm7613, %v7481, %v7722
    %v7724 = vsel %vm7615, %v7483, %v7482
    %v7725 = vsel %vm7603, %v7484, %v7724
    %v7726 = vsel %vm7605, %v7485, %v7725
    %v7727 = vsel %vm7607, %v7486, %v7726
    %v7728 = vsel %vm7609, %v7487, %v7727
    %v7729 = vsel %vm7611, %v7488, %v7728
    %v7730 = vsel %vm7613, %v7489, %v7729
    %v7731 = vsel %vm7615, %v7491, %v7490
    %v7732 = vsel %vm7603, %v7492, %v7731
    %v7733 = vsel %vm7605, %v7493, %v7732
    %v7734 = vsel %vm7607, %v7494, %v7733
    %v7735 = vsel %vm7609, %v7495, %v7734
    %v7736 = vsel %vm7611, %v7496, %v7735
    %v7737 = vsel %vm7613, %v7497, %v7736
    %v7738 = vsel %vm7615, %v7499, %v7498
    %v7739 = vsel %vm7603, %v7500, %v7738
    %v7740 = vsel %vm7605, %v7501, %v7739
    %v7741 = vsel %vm7607, %v7502, %v7740
    %v7742 = vsel %vm7609, %v7503, %v7741
    %v7743 = vsel %vm7611, %v7504, %v7742
    %v7744 = vsel %vm7613, %v7505, %v7743
    %v7745 = vsel %vm7603, %v7508, %v7507
    %v7746 = vsel %vm7605, %v7509, %v7745
    %v7747 = vsel %vm7607, %v7510, %v7746
    %v7748 = vsel %vm7609, %v7511, %v7747
    %v7749 = vsel %vm7611, %v7512, %v7748
    %v7750 = vsel %vm7613, %v7513, %v7749
    %v7751 = vsel %vm7615, %v7515, %v7514
    %v7752 = vsel %vm7603, %v7516, %v7751
    %v7753 = vsel %vm7605, %v7517, %v7752
    %v7754 = vsel %vm7607, %v7518, %v7753
    %v7755 = vsel %vm7609, %v7519, %v7754
    %v7756 = vsel %vm7611, %v7520, %v7755
    %v7757 = vsel %vm7613, %v7521, %v7756
    %v7758 = vsel %vm7615, %v7523, %v7522
    %v7759 = vsel %vm7603, %v7524, %v7758
    %v7760 = vsel %vm7605, %v7525, %v7759
    %v7761 = vsel %vm7607, %v7526, %v7760
    %v7762 = vsel %vm7609, %v7527, %v7761
    %v7763 = vsel %vm7611, %v7528, %v7762
    %v7764 = vsel %vm7613, %v7529, %v7763
    %v7765 = vsel %vm7615, %v7531, %v7530
    %v7766 = vsel %vm7603, %v7532, %v7765
    %v7767 = vsel %vm7605, %v7533, %v7766
    %v7768 = vsel %vm7607, %v7534, %v7767
    %v7769 = vsel %vm7609, %v7535, %v7768
    %v7770 = vsel %vm7611, %v7536, %v7769
    %v7771 = vsel %vm7613, %v7537, %v7770
    %v7772 = vsel %vm7603, %v7540, %v7539
    %v7773 = vsel %vm7605, %v7541, %v7772
    %v7774 = vsel %vm7607, %v7542, %v7773
    %v7775 = vsel %vm7609, %v7543, %v7774
    %v7776 = vsel %vm7611, %v7544, %v7775
    %v7777 = vsel %vm7613, %v7545, %v7776
    %v7778 = vsel %vm7615, %v7547, %v7546
    %v7779 = vsel %vm7603, %v7548, %v7778
    %v7780 = vsel %vm7605, %v7549, %v7779
    %v7781 = vsel %vm7607, %v7550, %v7780
    %v7782 = vsel %vm7609, %v7551, %v7781
    %v7783 = vsel %vm7611, %v7552, %v7782
    %v7784 = vsel %vm7613, %v7553, %v7783
    %v7785 = vsel %vm7615, %v7555, %v7554
    %v7786 = vsel %vm7603, %v7556, %v7785
    %v7787 = vsel %vm7605, %v7557, %v7786
    %v7788 = vsel %vm7607, %v7558, %v7787
    %v7789 = vsel %vm7609, %v7559, %v7788
    %v7790 = vsel %vm7611, %v7560, %v7789
    %v7791 = vsel %vm7613, %v7561, %v7790
    %v7792 = vsel %vm7615, %v7563, %v7562
    %v7793 = vsel %vm7603, %v7564, %v7792
    %v7794 = vsel %vm7605, %v7565, %v7793
    %v7795 = vsel %vm7607, %v7566, %v7794
    %v7796 = vsel %vm7609, %v7567, %v7795
    %v7797 = vsel %vm7611, %v7568, %v7796
    %v7798 = vsel %vm7613, %v7569, %v7797
    %v7799 = vsel %vm7603, %v7572, %v7571
    %v7800 = vsel %vm7605, %v7573, %v7799
    %v7801 = vsel %vm7607, %v7574, %v7800
    %v7802 = vsel %vm7609, %v7575, %v7801
    %v7803 = vsel %vm7611, %v7576, %v7802
    %v7804 = vsel %vm7613, %v7577, %v7803
    %v7805 = vsel %vm7615, %v7579, %v7578
    %v7806 = vsel %vm7603, %v7580, %v7805
    %v7807 = vsel %vm7605, %v7581, %v7806
    %v7808 = vsel %vm7607, %v7582, %v7807
    %v7809 = vsel %vm7609, %v7583, %v7808
    %v7810 = vsel %vm7611, %v7584, %v7809
    %v7811 = vsel %vm7613, %v7585, %v7810
    %v7812 = vsel %vm7615, %v7587, %v7586
    %v7813 = vsel %vm7603, %v7588, %v7812
    %v7814 = vsel %vm7605, %v7589, %v7813
    %v7815 = vsel %vm7607, %v7590, %v7814
    %v7816 = vsel %vm7609, %v7591, %v7815
    %v7817 = vsel %vm7611, %v7592, %v7816
    %v7818 = vsel %vm7613, %v7593, %v7817
    %v7819 = vsel %vm7615, %v7595, %v7594
    %v7820 = vsel %vm7603, %v7596, %v7819
    %v7821 = vsel %vm7605, %v7597, %v7820
    %v7822 = vsel %vm7607, %v7598, %v7821
    %v7823 = vsel %vm7609, %v7599, %v7822
    %v7824 = vsel %vm7611, %v7600, %v7823
    %v7825 = vsel %vm7613, %v7601, %v7824
    %v7826 = vpack.c.b16 %v7614, %v7614
    %v7827 = vpack.c.b16 %v7622, %v7622
    %v7828 = vpack.c.b16 %v7629, %v7629
    %v7829 = vpack.c.b16 %v7636, %v7636
    %v7830 = vpack.c.b16 %v7378, %v7378
    %v7831 = vpack.c.b16 %v7642, %v7642
    %v7832 = vpack.c.b16 %v7649, %v7649
    %v7833 = vpack.c.b16 %v7656, %v7656
    %v7834 = vpack.c.b16 %v7663, %v7663
    %v7835 = vpack.c.b16 %v7410, %v7410
    %v7836 = vpack.c.b16 %v7669, %v7669
    %v7837 = vpack.c.b16 %v7676, %v7676
    %v7838 = vpack.c.b16 %v7683, %v7683
    %v7839 = vpack.c.b16 %v7690, %v7690
    %v7840 = vpack.c.b16 %v7442, %v7442
    %v7841 = vpack.c.b16 %v7696, %v7696
    %v7842 = vpack.c.b16 %v7703, %v7703
    %v7843 = vpack.c.b16 %v7710, %v7710
    %v7844 = vpack.c.b16 %v7717, %v7717
    %v7845 = vpack.c.b16 %v7474, %v7474
    %v7846 = vpack.c.b16 %v7723, %v7723
    %v7847 = vpack.c.b16 %v7730, %v7730
    %v7848 = vpack.c.b16 %v7737, %v7737
    %v7849 = vpack.c.b16 %v7744, %v7744
    %v7850 = vpack.c.b16 %v7506, %v7506
    %v7851 = vpack.c.b16 %v7750, %v7750
    %v7852 = vpack.c.b16 %v7757, %v7757
    %v7853 = vpack.c.b16 %v7764, %v7764
    %v7854 = vpack.c.b16 %v7771, %v7771
    %v7855 = vpack.c.b16 %v7538, %v7538
    %v7856 = vpack.c.b16 %v7777, %v7777
    %v7857 = vpack.c.b16 %v7784, %v7784
    %v7858 = vpack.c.b16 %v7791, %v7791
    %v7859 = vpack.c.b16 %v7798, %v7798
    %v7860 = vpack.c.b16 %v7570, %v7570
    %v7861 = vpack.c.b16 %v7804, %v7804
    %v7862 = vpack.c.b16 %v7811, %v7811
    %v7863 = vpack.c.b16 %v7818, %v7818
    %v7864 = vpack.c.b16 %v7825, %v7825
    %v7865 = vpack.c.b16 %v7602, %v7602
    %vm7906 = vcmask 257024
    %vm7907 = vmand %vm7906, %vm72
    %v7908 = vld [vmem:[#allocation3] sm:$0xf]
    %v7909 = vsel %vm7907, %v7826, %v7908
    %7910 = vst [vmem:[#allocation3] sm:$0xf] %v7909
    %vm7911 = vcmask 257024
    %7912 = vst.msk [vmem:[#allocation3 + $0x4] sm:$0xf] %vm7911, %v7827
    %7913 = vst.msk [vmem:[#allocation3 + $0x8] sm:$0xf] %vm7911, %v7828
    %7914 = vst.msk [vmem:[#allocation3 + $0xc] sm:$0xf] %vm7911, %v7829
    %v7915 = vld [vmem:[#allocation3 + $0x10] sm:$0x1]
    %v7916 = vsel %vm47, %v7830, %v7915
    %7917 = vst [vmem:[#allocation3 + $0x10] sm:$0x1] %v7916
    %v7918 = vld [vmem:[#allocation3 + $0x14] sm:$0xf]
    %v7919 = vsel %vm7907, %v7831, %v7918
    %7920 = vst [vmem:[#allocation3 + $0x14] sm:$0xf] %v7919
    %7921 = vst.msk [vmem:[#allocation3 + $0x18] sm:$0xf] %vm7911, %v7832
    %7922 = vst.msk [vmem:[#allocation3 + $0x1c] sm:$0xf] %vm7911, %v7833
    %7923 = vst.msk [vmem:[#allocation3 + $0x20] sm:$0xf] %vm7911, %v7834
    %v7924 = vld [vmem:[#allocation3 + $0x24] sm:$0x1]
    %v7925 = vsel %vm47, %v7835, %v7924
    %7926 = vst [vmem:[#allocation3 + $0x24] sm:$0x1] %v7925
    %v7927 = vld [vmem:[#allocation3 + $0x28] sm:$0xf]
    %v7928 = vsel %vm7907, %v7836, %v7927
    %7929 = vst [vmem:[#allocation3 + $0x28] sm:$0xf] %v7928
    %7930 = vst.msk [vmem:[#allocation3 + $0x2c] sm:$0xf] %vm7911, %v7837
    %7931 = vst.msk [vmem:[#allocation3 + $0x30] sm:$0xf] %vm7911, %v7838
    %7932 = vst.msk [vmem:[#allocation3 + $0x34] sm:$0xf] %vm7911, %v7839
    %v7933 = vld [vmem:[#allocation3 + $0x38] sm:$0x1]
    %v7934 = vsel %vm47, %v7840, %v7933
    %7935 = vst [vmem:[#allocation3 + $0x38] sm:$0x1] %v7934
    %v7936 = vld [vmem:[#allocation3 + $0x3c] sm:$0xf]
    %v7937 = vsel %vm7907, %v7841, %v7936
    %7938 = vst [vmem:[#allocation3 + $0x3c] sm:$0xf] %v7937
    %7939 = vst.msk [vmem:[#allocation3 + $0x40] sm:$0xf] %vm7911, %v7842
    %7940 = vst.msk [vmem:[#allocation3 + $0x44] sm:$0xf] %vm7911, %v7843
    %7941 = vst.msk [vmem:[#allocation3 + $0x48] sm:$0xf] %vm7911, %v7844
    %v7942 = vld [vmem:[#allocation3 + $0x4c] sm:$0x1]
    %v7943 = vsel %vm47, %v7845, %v7942
    %7944 = vst [vmem:[#allocation3 + $0x4c] sm:$0x1] %v7943
    %v7945 = vld [vmem:[#allocation3 + $0x50] sm:$0xf]
    %v7946 = vsel %vm7907, %v7846, %v7945
    %7947 = vst [vmem:[#allocation3 + $0x50] sm:$0xf] %v7946
    %7948 = vst.msk [vmem:[#allocation3 + $0x54] sm:$0xf] %vm7911, %v7847
    %7949 = vst.msk [vmem:[#allocation3 + $0x58] sm:$0xf] %vm7911, %v7848
    %7950 = vst.msk [vmem:[#allocation3 + $0x5c] sm:$0xf] %vm7911, %v7849
    %v7951 = vld [vmem:[#allocation3 + $0x60] sm:$0x1]
    %v7952 = vsel %vm47, %v7850, %v7951
    %7953 = vst [vmem:[#allocation3 + $0x60] sm:$0x1] %v7952
    %v7954 = vld [vmem:[#allocation3 + $0x64] sm:$0xf]
    %v7955 = vsel %vm7907, %v7851, %v7954
    %7956 = vst [vmem:[#allocation3 + $0x64] sm:$0xf] %v7955
    %7957 = vst.msk [vmem:[#allocation3 + $0x68] sm:$0xf] %vm7911, %v7852
    %7958 = vst.msk [vmem:[#allocation3 + $0x6c] sm:$0xf] %vm7911, %v7853
    %7959 = vst.msk [vmem:[#allocation3 + $0x70] sm:$0xf] %vm7911, %v7854
    %v7960 = vld [vmem:[#allocation3 + $0x74] sm:$0x1]
    %v7961 = vsel %vm47, %v7855, %v7960
    %7962 = vst [vmem:[#allocation3 + $0x74] sm:$0x1] %v7961
    %v7963 = vld [vmem:[#allocation3 + $0x78] sm:$0xf]
    %v7964 = vsel %vm7907, %v7856, %v7963
    %7965 = vst [vmem:[#allocation3 + $0x78] sm:$0xf] %v7964
    %7966 = vst.msk [vmem:[#allocation3 + $0x7c] sm:$0xf] %vm7911, %v7857
    %7967 = vst.msk [vmem:[#allocation3 + $0x80] sm:$0xf] %vm7911, %v7858
    %7968 = vst.msk [vmem:[#allocation3 + $0x84] sm:$0xf] %vm7911, %v7859
    %v7969 = vld [vmem:[#allocation3 + $0x88] sm:$0x1]
    %v7970 = vsel %vm47, %v7860, %v7969
    %7971 = vst [vmem:[#allocation3 + $0x88] sm:$0x1] %v7970
    %v7972 = vld [vmem:[#allocation3 + $0x8c] sm:$0xf]
    %v7973 = vsel %vm7907, %v7861, %v7972
    %7974 = vst [vmem:[#allocation3 + $0x8c] sm:$0xf] %v7973
    %7975 = vst.msk [vmem:[#allocation3 + $0x90] sm:$0xf] %vm7911, %v7862
    %7976 = vst.msk [vmem:[#allocation3 + $0x94] sm:$0xf] %vm7911, %v7863
    %7977 = vst.msk [vmem:[#allocation3 + $0x98] sm:$0xf] %vm7911, %v7864
    %v7978 = vld [vmem:[#allocation3 + $0x9c] sm:$0x1]
    %v7979 = vsel %vm47, %v7865, %v7978
    %7980 = vst [vmem:[#allocation3 + $0x9c] sm:$0x1] %v7979
    %v7981 = vld [vmem:[%s3] sm:$0xf]
    %v7982 = vld [vmem:[%s3 + $0x4] sm:$0xf]
    %v7983 = vld [vmem:[%s3 + $0x8] sm:$0xf]
    %v7984 = vld [vmem:[%s3 + $0xc] sm:$0xf]
    %v7985 = vld [vmem:[%s3 + $0x10] sm:$0xf]
    %v7986 = vld [vmem:[%s3 + $0x14] sm:$0xf]
    %v7987 = vld [vmem:[%s3 + $0x18] sm:$0xf]
    %v7988 = vld [vmem:[%s3 + $0x1c] sm:$0xf]
    %v7989 = vld [vmem:[%s3 + $0x20] sm:$0xf]
    %v7990 = vld [vmem:[%s3 + $0x24] sm:$0xf]
    %v7991 = vld [vmem:[%s3 + $0x28] sm:$0xf]
    %v7992 = vld [vmem:[%s3 + $0x2c] sm:$0xf]
    %v7993 = vld [vmem:[%s4] sm:$0x1]
    %v7994 = vld [vmem:[#allocation3] sm:$0xf]
    %v7995 = vld [vmem:[#allocation3 + $0x4] sm:$0xf]
    %v7996 = vld [vmem:[#allocation3 + $0x8] sm:$0xf]
    %v7997 = vld [vmem:[#allocation3 + $0xc] sm:$0xf]
    %v7998 = vld [vmem:[#allocation3 + $0x14] sm:$0xf]
    %v7999 = vld [vmem:[#allocation3 + $0x18] sm:$0xf]
    %v8000 = vld [vmem:[#allocation3 + $0x1c] sm:$0xf]
    %v8001 = vld [vmem:[#allocation3 + $0x20] sm:$0xf]
    %v8002 = vld [vmem:[#allocation3 + $0x28] sm:$0xf]
    %v8003 = vld [vmem:[#allocation3 + $0x2c] sm:$0xf]
    %v8004 = vld [vmem:[#allocation3 + $0x30] sm:$0xf]
    %v8005 = vld [vmem:[#allocation3 + $0x34] sm:$0xf]
    %v8006 = vld [vmem:[#allocation3 + $0x3c] sm:$0xf]
    %v8007 = vld [vmem:[#allocation3 + $0x40] sm:$0xf]
    %v8008 = vld [vmem:[#allocation3 + $0x44] sm:$0xf]
    %v8009 = vld [vmem:[#allocation3 + $0x48] sm:$0xf]
    %v8010 = vld [vmem:[#allocation3 + $0x50] sm:$0xf]
    %v8011 = vld [vmem:[#allocation3 + $0x54] sm:$0xf]
    %v8012 = vld [vmem:[#allocation3 + $0x58] sm:$0xf]
    %v8013 = vld [vmem:[#allocation3 + $0x5c] sm:$0xf]
    %v8014 = vld [vmem:[#allocation3 + $0x64] sm:$0xf]
    %v8015 = vld [vmem:[#allocation3 + $0x68] sm:$0xf]
    %v8016 = vld [vmem:[#allocation3 + $0x6c] sm:$0xf]
    %v8017 = vld [vmem:[#allocation3 + $0x70] sm:$0xf]
    %v8018 = vld [vmem:[#allocation3 + $0x78] sm:$0xf]
    %v8019 = vld [vmem:[#allocation3 + $0x7c] sm:$0xf]
    %v8020 = vld [vmem:[#allocation3 + $0x80] sm:$0xf]
    %v8021 = vld [vmem:[#allocation3 + $0x84] sm:$0xf]
    %v8022 = vld [vmem:[#allocation3 + $0x8c] sm:$0xf]
    %v8023 = vld [vmem:[#allocation3 + $0x90] sm:$0xf]
    %v8024 = vld [vmem:[#allocation3 + $0x94] sm:$0xf]
    %v8025 = vld [vmem:[#allocation3 + $0x98] sm:$0xf]
    %v8026 = vld [vmem:[#allocation3 + $0x10] sm:$0x1]
    %v8027 = vld [vmem:[#allocation3 + $0x24] sm:$0x1]
    %v8028 = vld [vmem:[#allocation3 + $0x38] sm:$0x1]
    %v8029 = vld [vmem:[#allocation3 + $0x4c] sm:$0x1]
    %v8030 = vld [vmem:[#allocation3 + $0x60] sm:$0x1]
    %v8031 = vld [vmem:[#allocation3 + $0x74] sm:$0x1]
    %v8032 = vld [vmem:[#allocation3 + $0x88] sm:$0x1]
    %v8033 = vld [vmem:[#allocation3 + $0x9c] sm:$0x1]
    %v8034 = vld [vmem:[#allocation3] sm:$0xe]
    %v8035 = vld [vmem:[#allocation3 + $0x14] sm:$0xe]
    %v8036 = vld [vmem:[#allocation3 + $0x28] sm:$0xe]
    %v8037 = vld [vmem:[#allocation3 + $0x3c] sm:$0xe]
    %v8038 = vld [vmem:[#allocation3 + $0x50] sm:$0xe]
    %v8039 = vld [vmem:[#allocation3 + $0x64] sm:$0xe]
    %v8040 = vld [vmem:[#allocation3 + $0x78] sm:$0xe]
    %v8041 = vld [vmem:[#allocation3 + $0x8c] sm:$0xe]
    %v8074 = vunpack.c.l.b16 %v7994
    %v8075 = vunpack.c.l.b16 %v7995
    %v8076 = vunpack.c.l.b16 %v7996
    %v8077 = vunpack.c.l.b16 %v7997
    %v8078 = vunpack.c.l.b16 %v7998
    %v8079 = vunpack.c.l.b16 %v7999
    %v8080 = vunpack.c.l.b16 %v8000
    %v8081 = vunpack.c.l.b16 %v8001
    %v8082 = vunpack.c.l.b16 %v8002
    %v8083 = vunpack.c.l.b16 %v8003
    %v8084 = vunpack.c.l.b16 %v8004
    %v8085 = vunpack.c.l.b16 %v8005
    %v8086 = vunpack.c.l.b16 %v8006
    %v8087 = vunpack.c.l.b16 %v8007
    %v8088 = vunpack.c.l.b16 %v8008
    %v8089 = vunpack.c.l.b16 %v8009
    %v8090 = vunpack.c.l.b16 %v8010
    %v8091 = vunpack.c.l.b16 %v8011
    %v8092 = vunpack.c.l.b16 %v8012
    %v8093 = vunpack.c.l.b16 %v8013
    %v8094 = vunpack.c.l.b16 %v8014
    %v8095 = vunpack.c.l.b16 %v8015
    %v8096 = vunpack.c.l.b16 %v8016
    %v8097 = vunpack.c.l.b16 %v8017
    %v8098 = vunpack.c.l.b16 %v8018
    %v8099 = vunpack.c.l.b16 %v8019
    %v8100 = vunpack.c.l.b16 %v8020
    %v8101 = vunpack.c.l.b16 %v8021
    %v8102 = vunpack.c.l.b16 %v8022
    %v8103 = vunpack.c.l.b16 %v8023
    %v8104 = vunpack.c.l.b16 %v8024
    %v8105 = vunpack.c.l.b16 %v8025
    %v8106 = vpack.c.b16 %v8075, %v8074
    %v8107 = vpack.c.b16 %v8077, %v8076
    %v8108 = vpack.c.b16 %v8079, %v8078
    %v8109 = vpack.c.b16 %v8081, %v8080
    %v8110 = vpack.c.b16 %v8083, %v8082
    %v8111 = vpack.c.b16 %v8085, %v8084
    %v8112 = vpack.c.b16 %v8087, %v8086
    %v8113 = vpack.c.b16 %v8089, %v8088
    %v8114 = vpack.c.b16 %v8091, %v8090
    %v8115 = vpack.c.b16 %v8093, %v8092
    %v8116 = vpack.c.b16 %v8095, %v8094
    %v8117 = vpack.c.b16 %v8097, %v8096
    %v8118 = vpack.c.b16 %v8099, %v8098
    %v8119 = vpack.c.b16 %v8101, %v8100
    %v8120 = vpack.c.b16 %v8103, %v8102
    %v8121 = vpack.c.b16 %v8105, %v8104
    %v8130 = vunpack.c.l.b16 %v8026
    %v8131 = vunpack.c.l.b16 %v8027
    %v8132 = vunpack.c.l.b16 %v8028
    %v8133 = vunpack.c.l.b16 %v8029
    %v8134 = vunpack.c.l.b16 %v8030
    %v8135 = vunpack.c.l.b16 %v8031
    %v8136 = vunpack.c.l.b16 %v8032
    %v8137 = vunpack.c.l.b16 %v8033
    %v8138 = vpack.c.b16 %v8130, %v8130
    %v8139 = vpack.c.b16 %v8131, %v8131
    %v8140 = vpack.c.b16 %v8132, %v8132
    %v8141 = vpack.c.b16 %v8133, %v8133
    %v8142 = vpack.c.b16 %v8134, %v8134
    %v8143 = vpack.c.b16 %v8135, %v8135
    %v8144 = vpack.c.b16 %v8136, %v8136
    %v8145 = vpack.c.b16 %v8137, %v8137
    %vm8146 = vsmask.f32 7424
    %v8148 = vshrl.u32 %v8106, 16
    %v8150 = vshll.u32 %v8106, 16
    %v8152 = vrot.slane %v8150, 1
    %v8153 = vor.u32 %v8148, %v8152
    %v8155 = vshll.u32 %v8107, 16
    %v8157 = vrot.slane %v8155, 1
    %v8158 = vsel %vm8146, %v8153, %v8157
    %v8159 = vshrl.u32 %v8107, 16
    %v8161 = vor.u32 %v8159, %v8157
    %v8163 = vshll.u32 %v8138, 16
    %v8165 = vrot.slane %v8163, 1
    %v8166 = vsel %vm8146, %v8161, %v8165
    %v8168 = vshrl.u32 %v8108, 16
    %v8170 = vshll.u32 %v8108, 16
    %v8172 = vrot.slane %v8170, 1
    %v8173 = vor.u32 %v8168, %v8172
    %v8175 = vshll.u32 %v8109, 16
    %v8177 = vrot.slane %v8175, 1
    %v8178 = vsel %vm8146, %v8173, %v8177
    %v8179 = vshrl.u32 %v8109, 16
    %v8181 = vor.u32 %v8179, %v8177
    %v8183 = vshll.u32 %v8139, 16
    %v8185 = vrot.slane %v8183, 1
    %v8186 = vsel %vm8146, %v8181, %v8185
    %v8188 = vshrl.u32 %v8110, 16
    %v8190 = vshll.u32 %v8110, 16
    %v8192 = vrot.slane %v8190, 1
    %v8193 = vor.u32 %v8188, %v8192
    %v8195 = vshll.u32 %v8111, 16
    %v8197 = vrot.slane %v8195, 1
    %v8198 = vsel %vm8146, %v8193, %v8197
    %v8199 = vshrl.u32 %v8111, 16
    %v8201 = vor.u32 %v8199, %v8197
    %v8203 = vshll.u32 %v8140, 16
    %v8205 = vrot.slane %v8203, 1
    %v8206 = vsel %vm8146, %v8201, %v8205
    %v8208 = vshrl.u32 %v8112, 16
    %v8210 = vshll.u32 %v8112, 16
    %v8212 = vrot.slane %v8210, 1
    %v8213 = vor.u32 %v8208, %v8212
    %v8215 = vshll.u32 %v8113, 16
    %v8217 = vrot.slane %v8215, 1
    %v8218 = vsel %vm8146, %v8213, %v8217
    %v8219 = vshrl.u32 %v8113, 16
    %v8221 = vor.u32 %v8219, %v8217
    %v8223 = vshll.u32 %v8141, 16
    %v8225 = vrot.slane %v8223, 1
    %v8226 = vsel %vm8146, %v8221, %v8225
    %v8228 = vshrl.u32 %v8114, 16
    %v8230 = vshll.u32 %v8114, 16
    %v8232 = vrot.slane %v8230, 1
    %v8233 = vor.u32 %v8228, %v8232
    %v8235 = vshll.u32 %v8115, 16
    %v8237 = vrot.slane %v8235, 1
    %v8238 = vsel %vm8146, %v8233, %v8237
    %v8239 = vshrl.u32 %v8115, 16
    %v8241 = vor.u32 %v8239, %v8237
    %v8243 = vshll.u32 %v8142, 16
    %v8245 = vrot.slane %v8243, 1
    %v8246 = vsel %vm8146, %v8241, %v8245
    %v8248 = vshrl.u32 %v8116, 16
    %v8250 = vshll.u32 %v8116, 16
    %v8252 = vrot.slane %v8250, 1
    %v8253 = vor.u32 %v8248, %v8252
    %v8255 = vshll.u32 %v8117, 16
    %v8257 = vrot.slane %v8255, 1
    %v8258 = vsel %vm8146, %v8253, %v8257
    %v8259 = vshrl.u32 %v8117, 16
    %v8261 = vor.u32 %v8259, %v8257
    %v8263 = vshll.u32 %v8143, 16
    %v8265 = vrot.slane %v8263, 1
    %v8266 = vsel %vm8146, %v8261, %v8265
    %v8268 = vshrl.u32 %v8118, 16
    %v8270 = vshll.u32 %v8118, 16
    %v8272 = vrot.slane %v8270, 1
    %v8273 = vor.u32 %v8268, %v8272
    %v8275 = vshll.u32 %v8119, 16
    %v8277 = vrot.slane %v8275, 1
    %v8278 = vsel %vm8146, %v8273, %v8277
    %v8279 = vshrl.u32 %v8119, 16
    %v8281 = vor.u32 %v8279, %v8277
    %v8283 = vshll.u32 %v8144, 16
    %v8285 = vrot.slane %v8283, 1
    %v8286 = vsel %vm8146, %v8281, %v8285
    %v8288 = vshrl.u32 %v8120, 16
    %v8290 = vshll.u32 %v8120, 16
    %v8292 = vrot.slane %v8290, 1
    %v8293 = vor.u32 %v8288, %v8292
    %v8295 = vshll.u32 %v8121, 16
    %v8297 = vrot.slane %v8295, 1
    %v8298 = vsel %vm8146, %v8293, %v8297
    %v8299 = vshrl.u32 %v8121, 16
    %v8301 = vor.u32 %v8299, %v8297
    %v8303 = vshll.u32 %v8145, 16
    %v8305 = vrot.slane %v8303, 1
    %v8306 = vsel %vm8146, %v8301, %v8305
    %8307 = vrot.lane.b32.xlu0 %v8158, 32
    %v8308 = vpop.permute.xlu0 %8307
    %8309 = vrot.lane.b32.xlu0 %v8166, 32
    %v8310 = vpop.permute.xlu0 %8309
    %8311 = vrot.lane.b32.xlu0 %v8178, 32
    %v8312 = vpop.permute.xlu0 %8311
    %8313 = vrot.lane.b32.xlu0 %v8186, 32
    %v8314 = vpop.permute.xlu0 %8313
    %8315 = vrot.lane.b32.xlu0 %v8198, 32
    %v8316 = vpop.permute.xlu0 %8315
    %8317 = vrot.lane.b32.xlu0 %v8206, 32
    %v8318 = vpop.permute.xlu0 %8317
    %8319 = vrot.lane.b32.xlu0 %v8218, 32
    %v8320 = vpop.permute.xlu0 %8319
    %8321 = vrot.lane.b32.xlu0 %v8226, 32
    %v8322 = vpop.permute.xlu0 %8321
    %8323 = vrot.lane.b32.xlu0 %v8238, 32
    %v8324 = vpop.permute.xlu0 %8323
    %8325 = vrot.lane.b32.xlu0 %v8246, 32
    %v8326 = vpop.permute.xlu0 %8325
    %8327 = vrot.lane.b32.xlu0 %v8258, 32
    %v8328 = vpop.permute.xlu0 %8327
    %8329 = vrot.lane.b32.xlu0 %v8266, 32
    %v8330 = vpop.permute.xlu0 %8329
    %8331 = vrot.lane.b32.xlu0 %v8278, 32
    %v8332 = vpop.permute.xlu0 %8331
    %8333 = vrot.lane.b32.xlu0 %v8286, 32
    %v8334 = vpop.permute.xlu0 %8333
    %8335 = vrot.lane.b32.xlu0 %v8298, 32
    %v8336 = vpop.permute.xlu0 %8335
    %8337 = vrot.lane.b32.xlu0 %v8306, 32
    %v8338 = vpop.permute.xlu0 %8337
    %v8347 = vunpack.c.l.b16 %v8034
    %v8348 = vunpack.c.l.b16 %v8035
    %v8349 = vunpack.c.l.b16 %v8036
    %v8350 = vunpack.c.l.b16 %v8037
    %v8351 = vunpack.c.l.b16 %v8038
    %v8352 = vunpack.c.l.b16 %v8039
    %v8353 = vunpack.c.l.b16 %v8040
    %v8354 = vunpack.c.l.b16 %v8041
    %v8355 = vpack.c.b16 %v8075, %v8347
    %v8356 = vpack.c.b16 %v8079, %v8348
    %v8357 = vpack.c.b16 %v8083, %v8349
    %v8358 = vpack.c.b16 %v8087, %v8350
    %v8359 = vpack.c.b16 %v8091, %v8351
    %v8360 = vpack.c.b16 %v8095, %v8352
    %v8361 = vpack.c.b16 %v8099, %v8353
    %v8362 = vpack.c.b16 %v8103, %v8354
    %vm8363 = vcmask 1046528
    %v8364 = vrot.slane %v8355, 1
    %v8365 = vrot.slane %v8107, 1
    %v8366 = vsel %vm8363, %v8364, %v8365
    %v8367 = vrot.slane %v8138, 1
    %v8368 = vsel %vm8363, %v8365, %v8367
    %v8369 = vrot.slane %v8356, 1
    %v8370 = vrot.slane %v8109, 1
    %v8371 = vsel %vm8363, %v8369, %v8370
    %v8372 = vrot.slane %v8139, 1
    %v8373 = vsel %vm8363, %v8370, %v8372
    %v8374 = vrot.slane %v8357, 1
    %v8375 = vrot.slane %v8111, 1
    %v8376 = vsel %vm8363, %v8374, %v8375
    %v8377 = vrot.slane %v8140, 1
    %v8378 = vsel %vm8363, %v8375, %v8377
    %v8379 = vrot.slane %v8358, 1
    %v8380 = vrot.slane %v8113, 1
    %v8381 = vsel %vm8363, %v8379, %v8380
    %v8382 = vrot.slane %v8141, 1
    %v8383 = vsel %vm8363, %v8380, %v8382
    %v8384 = vrot.slane %v8359, 1
    %v8385 = vrot.slane %v8115, 1
    %v8386 = vsel %vm8363, %v8384, %v8385
    %v8387 = vrot.slane %v8142, 1
    %v8388 = vsel %vm8363, %v8385, %v8387
    %v8389 = vrot.slane %v8360, 1
    %v8390 = vrot.slane %v8117, 1
    %v8391 = vsel %vm8363, %v8389, %v8390
    %v8392 = vrot.slane %v8143, 1
    %v8393 = vsel %vm8363, %v8390, %v8392
    %v8394 = vrot.slane %v8361, 1
    %v8395 = vrot.slane %v8119, 1
    %v8396 = vsel %vm8363, %v8394, %v8395
    %v8397 = vrot.slane %v8144, 1
    %v8398 = vsel %vm8363, %v8395, %v8397
    %v8399 = vrot.slane %v8362, 1
    %v8400 = vrot.slane %v8121, 1
    %v8401 = vsel %vm8363, %v8399, %v8400
    %v8402 = vrot.slane %v8145, 1
    %v8403 = vsel %vm8363, %v8400, %v8402
    %8404 = vrot.lane.b32.xlu0 %v8366, 64
    %v8405 = vpop.permute.xlu0 %8404
    %8406 = vrot.lane.b32.xlu0 %v8368, 64
    %v8407 = vpop.permute.xlu0 %8406
    %8408 = vrot.lane.b32.xlu0 %v8371, 64
    %v8409 = vpop.permute.xlu0 %8408
    %8410 = vrot.lane.b32.xlu0 %v8373, 64
    %v8411 = vpop.permute.xlu0 %8410
    %8412 = vrot.lane.b32.xlu0 %v8376, 64
    %v8413 = vpop.permute.xlu0 %8412
    %8414 = vrot.lane.b32.xlu0 %v8378, 64
    %v8415 = vpop.permute.xlu0 %8414
    %8416 = vrot.lane.b32.xlu0 %v8381, 64
    %v8417 = vpop.permute.xlu0 %8416
    %8418 = vrot.lane.b32.xlu0 %v8383, 64
    %v8419 = vpop.permute.xlu0 %8418
    %8420 = vrot.lane.b32.xlu0 %v8386, 64
    %v8421 = vpop.permute.xlu0 %8420
    %8422 = vrot.lane.b32.xlu0 %v8388, 64
    %v8423 = vpop.permute.xlu0 %8422
    %8424 = vrot.lane.b32.xlu0 %v8391, 64
    %v8425 = vpop.permute.xlu0 %8424
    %8426 = vrot.lane.b32.xlu0 %v8393, 64
    %v8427 = vpop.permute.xlu0 %8426
    %8428 = vrot.lane.b32.xlu0 %v8396, 64
    %v8429 = vpop.permute.xlu0 %8428
    %8430 = vrot.lane.b32.xlu0 %v8398, 64
    %v8431 = vpop.permute.xlu0 %8430
    %8432 = vrot.lane.b32.xlu0 %v8401, 64
    %v8433 = vpop.permute.xlu0 %8432
    %8434 = vrot.lane.b32.xlu0 %v8403, 64
    %v8435 = vpop.permute.xlu0 %8434
    %vm8436 = vcmask 261120
    %v8438 = vsel %vm8436, %v8106, %v8308
    %v8440 = vsel %vm8436, %v8107, %v8310
    %v8442 = vsel %vm8436, %v8108, %v8312
    %v8444 = vsel %vm8436, %v8109, %v8314
    %v8446 = vsel %vm8436, %v8110, %v8316
    %v8448 = vsel %vm8436, %v8111, %v8318
    %v8450 = vsel %vm8436, %v8112, %v8320
    %v8452 = vsel %vm8436, %v8113, %v8322
    %v8454 = vsel %vm8436, %v8114, %v8324
    %v8456 = vsel %vm8436, %v8115, %v8326
    %v8458 = vsel %vm8436, %v8116, %v8328
    %v8460 = vsel %vm8436, %v8117, %v8330
    %v8462 = vsel %vm8436, %v8118, %v8332
    %v8464 = vsel %vm8436, %v8119, %v8334
    %v8466 = vsel %vm8436, %v8120, %v8336
    %v8468 = vsel %vm8436, %v8121, %v8338
    %vm8469 = vcmask 523264
    %v8471 = vsel %vm8469, %v8438, %v8405
    %v8473 = vsel %vm8469, %v8440, %v8407
    %v8475 = vsel %vm8469, %v8442, %v8409
    %v8477 = vsel %vm8469, %v8444, %v8411
    %v8479 = vsel %vm8469, %v8446, %v8413
    %v8481 = vsel %vm8469, %v8448, %v8415
    %v8483 = vsel %vm8469, %v8450, %v8417
    %v8485 = vsel %vm8469, %v8452, %v8419
    %v8487 = vsel %vm8469, %v8454, %v8421
    %v8489 = vsel %vm8469, %v8456, %v8423
    %v8491 = vsel %vm8469, %v8458, %v8425
    %v8493 = vsel %vm8469, %v8460, %v8427
    %v8495 = vsel %vm8469, %v8462, %v8429
    %v8497 = vsel %vm8469, %v8464, %v8431
    %v8499 = vsel %vm8469, %v8466, %v8433
    %v8501 = vsel %vm8469, %v8468, %v8435
    %v8503 = vlaneseq
    %v8504 = vshrl.u32 %v8503, 7
    %v8505 = vsub.s32 0, %v8504
    %v8506 = vrot.slane %v7993, %v8505
    %v8520 = vunpack.c.l.b16 %v7981
    %v8521 = vunpack.c.l.b16 %v7982
    %v8522 = vunpack.c.l.b16 %v7983
    %v8523 = vunpack.c.l.b16 %v7984
    %v8524 = vunpack.c.l.b16 %v7985
    %v8525 = vunpack.c.l.b16 %v7986
    %v8526 = vunpack.c.l.b16 %v7987
    %v8527 = vunpack.c.l.b16 %v7988
    %v8528 = vunpack.c.l.b16 %v7989
    %v8529 = vunpack.c.l.b16 %v7990
    %v8530 = vunpack.c.l.b16 %v7991
    %v8531 = vunpack.c.l.b16 %v7992
    %v8532 = vpack.c.b16 %v8521, %v8520
    %v8533 = vpack.c.b16 %v8523, %v8522
    %v8534 = vpack.c.b16 %v8525, %v8524
    %v8535 = vpack.c.b16 %v8527, %v8526
    %v8536 = vpack.c.b16 %v8529, %v8528
    %v8537 = vpack.c.b16 %v8531, %v8530
    %vm8544 = vcmask 785408
    %v8545 = vsel %vm8544, %v8471, 0
    %v8547 = vsel %vm8544, %v8473, 0
    %v8549 = vsel %vm8544, %v8475, 0
    %v8551 = vsel %vm8544, %v8477, 0
    %v8553 = vsel %vm8544, %v8479, 0
    %v8555 = vsel %vm8544, %v8481, 0
    %v8557 = vsel %vm8544, %v8483, 0
    %v8559 = vsel %vm8544, %v8485, 0
    %v8561 = vsel %vm8544, %v8487, 0
    %v8563 = vsel %vm8544, %v8489, 0
    %v8565 = vsel %vm8544, %v8491, 0
    %v8567 = vsel %vm8544, %v8493, 0
    %v8569 = vsel %vm8544, %v8495, 0
    %v8571 = vsel %vm8544, %v8497, 0
    %v8573 = vsel %vm8544, %v8499, 0
    %v8575 = vsel %vm8544, %v8501, 0
    %8577 = vmatprep.subr.bf16.mxu0 0
    %8578 = vmatpush1.bf16.msra.mxu0 %v8532
    %8579 = vmatprep.subr.bf16.mxu0 0
    %8580 = vmatpush1.bf16.msra.mxu0 %v8533
    %8581 = vmatprep.subr.bf16.mxu0 0
    %8582 = vmatpush1.bf16.msra.mxu0 %v8534
    %8583 = vmatprep.subr.bf16.mxu0 0
    %8584 = vmatpush1.bf16.msra.mxu0 %v8535
    %8585 = vmatprep.subr.bf16.mxu0 0
    %8586 = vmatpush1.bf16.msra.mxu0 %v8536
    %8587 = vmatprep.subr.bf16.mxu0 0
    %8588 = vmatpush1.bf16.msra.mxu0 %v8537
    %8589 = vmatprep.subr.bf16.mxu0 0
    %8590 = vmatpush1.bf16.msra.mxu0 0
    %8591 = vmatprep.subr.bf16.mxu0 0
    %8592 = vmatpush1.bf16.msra.mxu0 0
    %8593 = vmatprep.subr.bf16.mxu0 0
    %8594 = vmatpush1.bf16.msra.mxu0 0
    %8595 = vmatprep.subr.bf16.mxu0 0
    %8596 = vmatpush1.bf16.msra.mxu0 0
    %8597 = vmatprep.subr.bf16.mxu0 0
    %8598 = vmatpush1.bf16.msra.mxu0 0
    %8599 = vmatprep.subr.bf16.mxu0 0
    %8600 = vmatpush1.bf16.msra.mxu0 0
    %8601 = vmatprep.subr.bf16.mxu0 0
    %8602 = vmatpush1.bf16.msra.mxu0 0
    %8603 = vmatprep.subr.bf16.mxu0 0
    %8604 = vmatpush1.bf16.msra.mxu0 0
    %8605 = vmatprep.subr.bf16.mxu0 0
    %8606 = vmatpush1.bf16.msra.mxu0 0
    %8607 = vmatprep.subr.bf16.mxu0 0
    %8608 = vmatpush1.bf16.msra.mxu0 0
    %8609 = vmatprep.mubr.bf16.mxu0 0
    %8610 = vmatmul.mubr.bf16.gmra.mrb[0].mxu0 %v8545
    %v8611 = vpop.f32.mrb[0].mxu0
    %v8612 = vadd.f32 %v8506, %v8611
    %v8613 = vpop.f32.mrb[0].mxu0
    %v8614 = vpop.f32.mrb[0].mxu0
    %v8615 = vadd.f32 %v8506, %v8614
    %v8616 = vpop.f32.mrb[0].mxu0
    %8617 = vmatprep.mubr.bf16.mxu0 0
    %8618 = vmatmul.mubr.bf16.gmra.mrb[0].mxu0 %v8547
    %v8619 = vpop.f32.mrb[0].mxu0
    %v8620 = vadd.f32 %v8506, %v8619
    %v8621 = vpop.f32.mrb[0].mxu0
    %v8622 = vpop.f32.mrb[0].mxu0
    %v8623 = vadd.f32 %v8506, %v8622
    %v8624 = vpop.f32.mrb[0].mxu0
    %8625 = vmatprep.mubr.bf16.mxu0 0
    %8626 = vmatmul.mubr.bf16.gmra.mrb[0].mxu0 %v8549
    %v8627 = vpop.f32.mrb[0].mxu0
    %v8628 = vadd.f32 %v8506, %v8627
    %v8629 = vpop.f32.mrb[0].mxu0
    %v8630 = vpop.f32.mrb[0].mxu0
    %v8631 = vadd.f32 %v8506, %v8630
    %v8632 = vpop.f32.mrb[0].mxu0
    %8633 = vmatprep.mubr.bf16.mxu0 0
    %8634 = vmatmul.mubr.bf16.gmra.mrb[0].mxu0 %v8551
    %v8635 = vpop.f32.mrb[0].mxu0
    %v8636 = vadd.f32 %v8506, %v8635
    %v8637 = vpop.f32.mrb[0].mxu0
    %v8638 = vpop.f32.mrb[0].mxu0
    %v8639 = vadd.f32 %v8506, %v8638
    %v8640 = vpop.f32.mrb[0].mxu0
    %8641 = vmatprep.mubr.bf16.mxu0 0
    %8642 = vmatmul.mubr.bf16.gmra.mrb[0].mxu0 %v8553
    %v8643 = vpop.f32.mrb[0].mxu0
    %v8644 = vadd.f32 %v8506, %v8643
    %v8645 = vpop.f32.mrb[0].mxu0
    %v8646 = vpop.f32.mrb[0].mxu0
    %v8647 = vadd.f32 %v8506, %v8646
    %v8648 = vpop.f32.mrb[0].mxu0
    %8649 = vmatprep.mubr.bf16.mxu0 0
    %8650 = vmatmul.mubr.bf16.gmra.mrb[0].mxu0 %v8555
    %v8651 = vpop.f32.mrb[0].mxu0
    %v8652 = vadd.f32 %v8506, %v8651
    %v8653 = vpop.f32.mrb[0].mxu0
    %v8654 = vpop.f32.mrb[0].mxu0
    %v8655 = vadd.f32 %v8506, %v8654
    %v8656 = vpop.f32.mrb[0].mxu0
    %8657 = vmatprep.mubr.bf16.mxu0 0
    %8658 = vmatmul.mubr.bf16.gmra.mrb[0].mxu0 %v8557
    %v8659 = vpop.f32.mrb[0].mxu0
    %v8660 = vadd.f32 %v8506, %v8659
    %v8661 = vpop.f32.mrb[0].mxu0
    %v8662 = vpop.f32.mrb[0].mxu0
    %v8663 = vadd.f32 %v8506, %v8662
    %v8664 = vpop.f32.mrb[0].mxu0
    %8665 = vmatprep.mubr.bf16.mxu0 0
    %8666 = vmatmul.mubr.bf16.gmra.mrb[0].mxu0 %v8559
    %v8667 = vpop.f32.mrb[0].mxu0
    %v8668 = vadd.f32 %v8506, %v8667
    %v8669 = vpop.f32.mrb[0].mxu0
    %v8670 = vpop.f32.mrb[0].mxu0
    %v8671 = vadd.f32 %v8506, %v8670
    %v8672 = vpop.f32.mrb[0].mxu0
    %8673 = vmatprep.mubr.bf16.mxu0 0
    %8674 = vmatmul.mubr.bf16.gmra.mrb[0].mxu0 %v8561
    %v8675 = vpop.f32.mrb[0].mxu0
    %v8676 = vadd.f32 %v8506, %v8675
    %v8677 = vpop.f32.mrb[0].mxu0
    %v8678 = vpop.f32.mrb[0].mxu0
    %v8679 = vadd.f32 %v8506, %v8678
    %v8680 = vpop.f32.mrb[0].mxu0
    %8681 = vmatprep.mubr.bf16.mxu0 0
    %8682 = vmatmul.mubr.bf16.gmra.mrb[0].mxu0 %v8563
    %v8683 = vpop.f32.mrb[0].mxu0
    %v8684 = vadd.f32 %v8506, %v8683
    %v8685 = vpop.f32.mrb[0].mxu0
    %v8686 = vpop.f32.mrb[0].mxu0
    %v8687 = vadd.f32 %v8506, %v8686
    %v8688 = vpop.f32.mrb[0].mxu0
    %8689 = vmatprep.mubr.bf16.mxu0 0
    %8690 = vmatmul.mubr.bf16.gmra.mrb[0].mxu0 %v8565
    %v8691 = vpop.f32.mrb[0].mxu0
    %v8692 = vadd.f32 %v8506, %v8691
    %v8693 = vpop.f32.mrb[0].mxu0
    %v8694 = vpop.f32.mrb[0].mxu0
    %v8695 = vadd.f32 %v8506, %v8694
    %v8696 = vpop.f32.mrb[0].mxu0
    %8697 = vmatprep.mubr.bf16.mxu0 0
    %8698 = vmatmul.mubr.bf16.gmra.mrb[0].mxu0 %v8567
    %v8699 = vpop.f32.mrb[0].mxu0
    %v8700 = vadd.f32 %v8506, %v8699
    %v8701 = vpop.f32.mrb[0].mxu0
    %v8702 = vpop.f32.mrb[0].mxu0
    %v8703 = vadd.f32 %v8506, %v8702
    %v8704 = vpop.f32.mrb[0].mxu0
    %8705 = vmatprep.mubr.bf16.mxu0 0
    %8706 = vmatmul.mubr.bf16.gmra.mrb[0].mxu0 %v8569
    %v8707 = vpop.f32.mrb[0].mxu0
    %v8708 = vadd.f32 %v8506, %v8707
    %v8709 = vpop.f32.mrb[0].mxu0
    %v8710 = vpop.f32.mrb[0].mxu0
    %v8711 = vadd.f32 %v8506, %v8710
    %v8712 = vpop.f32.mrb[0].mxu0
    %8713 = vmatprep.mubr.bf16.mxu0 0
    %8714 = vmatmul.mubr.bf16.gmra.mrb[0].mxu0 %v8571
    %v8715 = vpop.f32.mrb[0].mxu0
    %v8716 = vadd.f32 %v8506, %v8715
    %v8717 = vpop.f32.mrb[0].mxu0
    %v8718 = vpop.f32.mrb[0].mxu0
    %v8719 = vadd.f32 %v8506, %v8718
    %v8720 = vpop.f32.mrb[0].mxu0
    %8721 = vmatprep.mubr.bf16.mxu0 0
    %8722 = vmatmul.mubr.bf16.gmra.mrb[0].mxu0 %v8573
    %v8723 = vpop.f32.mrb[0].mxu0
    %v8724 = vadd.f32 %v8506, %v8723
    %v8725 = vpop.f32.mrb[0].mxu0
    %v8726 = vpop.f32.mrb[0].mxu0
    %v8727 = vadd.f32 %v8506, %v8726
    %v8728 = vpop.f32.mrb[0].mxu0
    %8729 = vmatprep.mubr.bf16.mxu0 0
    %8730 = vmatmul.mubr.bf16.gmra.mrb[0].mxu0 %v8575
    %v8731 = vpop.f32.mrb[0].mxu0
    %v8732 = vadd.f32 %v8506, %v8731
    %v8733 = vpop.f32.mrb[0].mxu0
    %v8734 = vpop.f32.mrb[0].mxu0
    %v8735 = vadd.f32 %v8506, %v8734
    %v8736 = vpop.f32.mrb[0].mxu0
    %8737 = vdwg.mxu0
    %vm8738 = vcmp.gt.f32.partialorder %v8612, 0.0
    %vm8739 = vcmp.gt.f32.partialorder %v8615, 0.0
    %vm8740 = vcmp.gt.f32.partialorder %v8620, 0.0
    %vm8741 = vcmp.gt.f32.partialorder %v8623, 0.0
    %vm8742 = vcmp.gt.f32.partialorder %v8628, 0.0
    %vm8743 = vcmp.gt.f32.partialorder %v8631, 0.0
    %vm8744 = vcmp.gt.f32.partialorder %v8636, 0.0
    %vm8745 = vcmp.gt.f32.partialorder %v8639, 0.0
    %vm8746 = vcmp.gt.f32.partialorder %v8644, 0.0
    %vm8747 = vcmp.gt.f32.partialorder %v8647, 0.0
    %vm8748 = vcmp.gt.f32.partialorder %v8652, 0.0
    %vm8749 = vcmp.gt.f32.partialorder %v8655, 0.0
    %vm8750 = vcmp.gt.f32.partialorder %v8660, 0.0
    %vm8751 = vcmp.gt.f32.partialorder %v8663, 0.0
    %vm8752 = vcmp.gt.f32.partialorder %v8668, 0.0
    %vm8753 = vcmp.gt.f32.partialorder %v8671, 0.0
    %vm8754 = vcmp.gt.f32.partialorder %v8676, 0.0
    %vm8755 = vcmp.gt.f32.partialorder %v8679, 0.0
    %vm8756 = vcmp.gt.f32.partialorder %v8684, 0.0
    %vm8757 = vcmp.gt.f32.partialorder %v8687, 0.0
    %vm8758 = vcmp.gt.f32.partialorder %v8692, 0.0
    %vm8759 = vcmp.gt.f32.partialorder %v8695, 0.0
    %vm8760 = vcmp.gt.f32.partialorder %v8700, 0.0
    %vm8761 = vcmp.gt.f32.partialorder %v8703, 0.0
    %vm8762 = vcmp.gt.f32.partialorder %v8708, 0.0
    %vm8763 = vcmp.gt.f32.partialorder %v8711, 0.0
    %vm8764 = vcmp.gt.f32.partialorder %v8716, 0.0
    %vm8765 = vcmp.gt.f32.partialorder %v8719, 0.0
    %vm8766 = vcmp.gt.f32.partialorder %v8724, 0.0
    %vm8767 = vcmp.gt.f32.partialorder %v8727, 0.0
    %vm8768 = vcmp.gt.f32.partialorder %v8732, 0.0
    %vm8769 = vcmp.gt.f32.partialorder %v8735, 0.0
    %v8770 = vmul.f32 %v8612, 0.01
    %v8771 = vmul.f32 %v8615, 0.01
    %v8772 = vmul.f32 %v8620, 0.01
    %v8773 = vmul.f32 %v8623, 0.01
    %v8774 = vmul.f32 %v8628, 0.01
    %v8775 = vmul.f32 %v8631, 0.01
    %v8776 = vmul.f32 %v8636, 0.01
    %v8777 = vmul.f32 %v8639, 0.01
    %v8778 = vmul.f32 %v8644, 0.01
    %v8779 = vmul.f32 %v8647, 0.01
    %v8780 = vmul.f32 %v8652, 0.01
    %v8781 = vmul.f32 %v8655, 0.01
    %v8782 = vmul.f32 %v8660, 0.01
    %v8783 = vmul.f32 %v8663, 0.01
    %v8784 = vmul.f32 %v8668, 0.01
    %v8785 = vmul.f32 %v8671, 0.01
    %v8786 = vmul.f32 %v8676, 0.01
    %v8787 = vmul.f32 %v8679, 0.01
    %v8788 = vmul.f32 %v8684, 0.01
    %v8789 = vmul.f32 %v8687, 0.01
    %v8790 = vmul.f32 %v8692, 0.01
    %v8791 = vmul.f32 %v8695, 0.01
    %v8792 = vmul.f32 %v8700, 0.01
    %v8793 = vmul.f32 %v8703, 0.01
    %v8794 = vmul.f32 %v8708, 0.01
    %v8795 = vmul.f32 %v8711, 0.01
    %v8796 = vmul.f32 %v8716, 0.01
    %v8797 = vmul.f32 %v8719, 0.01
    %v8798 = vmul.f32 %v8724, 0.01
    %v8799 = vmul.f32 %v8727, 0.01
    %v8800 = vmul.f32 %v8732, 0.01
    %v8801 = vmul.f32 %v8735, 0.01
    %v8802 = vsel %vm8738, %v8612, %v8770
    %v8803 = vsel %vm8739, %v8615, %v8771
    %v8804 = vsel %vm8740, %v8620, %v8772
    %v8805 = vsel %vm8741, %v8623, %v8773
    %v8806 = vsel %vm8742, %v8628, %v8774
    %v8807 = vsel %vm8743, %v8631, %v8775
    %v8808 = vsel %vm8744, %v8636, %v8776
    %v8809 = vsel %vm8745, %v8639, %v8777
    %v8810 = vsel %vm8746, %v8644, %v8778
    %v8811 = vsel %vm8747, %v8647, %v8779
    %v8812 = vsel %vm8748, %v8652, %v8780
    %v8813 = vsel %vm8749, %v8655, %v8781
    %v8814 = vsel %vm8750, %v8660, %v8782
    %v8815 = vsel %vm8751, %v8663, %v8783
    %v8816 = vsel %vm8752, %v8668, %v8784
    %v8817 = vsel %vm8753, %v8671, %v8785
    %v8818 = vsel %vm8754, %v8676, %v8786
    %v8819 = vsel %vm8755, %v8679, %v8787
    %v8820 = vsel %vm8756, %v8684, %v8788
    %v8821 = vsel %vm8757, %v8687, %v8789
    %v8822 = vsel %vm8758, %v8692, %v8790
    %v8823 = vsel %vm8759, %v8695, %v8791
    %v8824 = vsel %vm8760, %v8700, %v8792
    %v8825 = vsel %vm8761, %v8703, %v8793
    %v8826 = vsel %vm8762, %v8708, %v8794
    %v8827 = vsel %vm8763, %v8711, %v8795
    %v8828 = vsel %vm8764, %v8716, %v8796
    %v8829 = vsel %vm8765, %v8719, %v8797
    %v8830 = vsel %vm8766, %v8724, %v8798
    %v8831 = vsel %vm8767, %v8727, %v8799
    %v8832 = vsel %vm8768, %v8732, %v8800
    %v8833 = vsel %vm8769, %v8735, %v8801
    %v8866 = vcombine.high %v8802, %v8802
    %v8868 = vunpack.c.l.s4 1983009808
    %v8869 = vunpack.c.0.s8 %v8868
    %v8870 = vlaneseq
    %v8871 = vshrl.u32 %v8870, 7
    %v8872 = vsub.s32 %v8869, %v8871
    %v8873 = vrot.slane %v8802, %v8872
    %v8875 = vunpack.c.l.s4 1983009808
    %v8876 = vunpack.c.0.s8 %v8875
    %v8877 = vlaneseq
    %v8878 = vshrl.u32 %v8877, 7
    %v8879 = vsub.s32 %v8876, %v8878
    %v8880 = vrot.slane %v8866, %v8879
    %v8881 = vcombine.high %v8873, %v8873
    %v8882 = vcombine.high %v8880, %v8880
    %v8883 = vcombine.high %v8803, %v8803
    %v8885 = vunpack.c.l.s4 1983009808
    %v8886 = vunpack.c.0.s8 %v8885
    %v8887 = vlaneseq
    %v8888 = vshrl.u32 %v8887, 7
    %v8889 = vsub.s32 %v8886, %v8888
    %v8890 = vrot.slane %v8803, %v8889
    %v8892 = vunpack.c.l.s4 1983009808
    %v8893 = vunpack.c.0.s8 %v8892
    %v8894 = vlaneseq
    %v8895 = vshrl.u32 %v8894, 7
    %v8896 = vsub.s32 %v8893, %v8895
    %v8897 = vrot.slane %v8883, %v8896
    %v8898 = vcombine.high %v8890, %v8890
    %v8899 = vcombine.high %v8897, %v8897
    %v8900 = vcombine.high %v8804, %v8804
    %v8902 = vunpack.c.l.s4 1983009808
    %v8903 = vunpack.c.0.s8 %v8902
    %v8904 = vlaneseq
    %v8905 = vshrl.u32 %v8904, 7
    %v8906 = vsub.s32 %v8903, %v8905
    %v8907 = vrot.slane %v8804, %v8906
    %v8909 = vunpack.c.l.s4 1983009808
    %v8910 = vunpack.c.0.s8 %v8909
    %v8911 = vlaneseq
    %v8912 = vshrl.u32 %v8911, 7
    %v8913 = vsub.s32 %v8910, %v8912
    %v8914 = vrot.slane %v8900, %v8913
    %v8915 = vcombine.high %v8907, %v8907
    %v8916 = vcombine.high %v8914, %v8914
    %v8917 = vcombine.high %v8805, %v8805
    %v8919 = vunpack.c.l.s4 1983009808
    %v8920 = vunpack.c.0.s8 %v8919
    %v8921 = vlaneseq
    %v8922 = vshrl.u32 %v8921, 7
    %v8923 = vsub.s32 %v8920, %v8922
    %v8924 = vrot.slane %v8805, %v8923
    %v8926 = vunpack.c.l.s4 1983009808
    %v8927 = vunpack.c.0.s8 %v8926
    %v8928 = vlaneseq
    %v8929 = vshrl.u32 %v8928, 7
    %v8930 = vsub.s32 %v8927, %v8929
    %v8931 = vrot.slane %v8917, %v8930
    %v8932 = vcombine.high %v8924, %v8924
    %v8933 = vcombine.high %v8931, %v8931
    %v8934 = vcombine.high %v8806, %v8806
    %v8936 = vunpack.c.l.s4 1983009808
    %v8937 = vunpack.c.0.s8 %v8936
    %v8938 = vlaneseq
    %v8939 = vshrl.u32 %v8938, 7
    %v8940 = vsub.s32 %v8937, %v8939
    %v8941 = vrot.slane %v8806, %v8940
    %v8943 = vunpack.c.l.s4 1983009808
    %v8944 = vunpack.c.0.s8 %v8943
    %v8945 = vlaneseq
    %v8946 = vshrl.u32 %v8945, 7
    %v8947 = vsub.s32 %v8944, %v8946
    %v8948 = vrot.slane %v8934, %v8947
    %v8949 = vcombine.high %v8941, %v8941
    %v8950 = vcombine.high %v8948, %v8948
    %v8951 = vcombine.high %v8807, %v8807
    %v8953 = vunpack.c.l.s4 1983009808
    %v8954 = vunpack.c.0.s8 %v8953
    %v8955 = vlaneseq
    %v8956 = vshrl.u32 %v8955, 7
    %v8957 = vsub.s32 %v8954, %v8956
    %v8958 = vrot.slane %v8807, %v8957
    %v8960 = vunpack.c.l.s4 1983009808
    %v8961 = vunpack.c.0.s8 %v8960
    %v8962 = vlaneseq
    %v8963 = vshrl.u32 %v8962, 7
    %v8964 = vsub.s32 %v8961, %v8963
    %v8965 = vrot.slane %v8951, %v8964
    %v8966 = vcombine.high %v8958, %v8958
    %v8967 = vcombine.high %v8965, %v8965
    %v8968 = vcombine.high %v8808, %v8808
    %v8970 = vunpack.c.l.s4 1983009808
    %v8971 = vunpack.c.0.s8 %v8970
    %v8972 = vlaneseq
    %v8973 = vshrl.u32 %v8972, 7
    %v8974 = vsub.s32 %v8971, %v8973
    %v8975 = vrot.slane %v8808, %v8974
    %v8977 = vunpack.c.l.s4 1983009808
    %v8978 = vunpack.c.0.s8 %v8977
    %v8979 = vlaneseq
    %v8980 = vshrl.u32 %v8979, 7
    %v8981 = vsub.s32 %v8978, %v8980
    %v8982 = vrot.slane %v8968, %v8981
    %v8983 = vcombine.high %v8975, %v8975
    %v8984 = vcombine.high %v8982, %v8982
    %v8985 = vcombine.high %v8809, %v8809
    %v8987 = vunpack.c.l.s4 1983009808
    %v8988 = vunpack.c.0.s8 %v8987
    %v8989 = vlaneseq
    %v8990 = vshrl.u32 %v8989, 7
    %v8991 = vsub.s32 %v8988, %v8990
    %v8992 = vrot.slane %v8809, %v8991
    %v8994 = vunpack.c.l.s4 1983009808
    %v8995 = vunpack.c.0.s8 %v8994
    %v8996 = vlaneseq
    %v8997 = vshrl.u32 %v8996, 7
    %v8998 = vsub.s32 %v8995, %v8997
    %v8999 = vrot.slane %v8985, %v8998
    %v9000 = vcombine.high %v8992, %v8992
    %v9001 = vcombine.high %v8999, %v8999
    %v9002 = vcombine.high %v8810, %v8810
    %v9004 = vunpack.c.l.s4 1983009808
    %v9005 = vunpack.c.0.s8 %v9004
    %v9006 = vlaneseq
    %v9007 = vshrl.u32 %v9006, 7
    %v9008 = vsub.s32 %v9005, %v9007
    %v9009 = vrot.slane %v8810, %v9008
    %v9011 = vunpack.c.l.s4 1983009808
    %v9012 = vunpack.c.0.s8 %v9011
    %v9013 = vlaneseq
    %v9014 = vshrl.u32 %v9013, 7
    %v9015 = vsub.s32 %v9012, %v9014
    %v9016 = vrot.slane %v9002, %v9015
    %v9017 = vcombine.high %v9009, %v9009
    %v9018 = vcombine.high %v9016, %v9016
    %v9019 = vcombine.high %v8811, %v8811
    %v9021 = vunpack.c.l.s4 1983009808
    %v9022 = vunpack.c.0.s8 %v9021
    %v9023 = vlaneseq
    %v9024 = vshrl.u32 %v9023, 7
    %v9025 = vsub.s32 %v9022, %v9024
    %v9026 = vrot.slane %v8811, %v9025
    %v9028 = vunpack.c.l.s4 1983009808
    %v9029 = vunpack.c.0.s8 %v9028
    %v9030 = vlaneseq
    %v9031 = vshrl.u32 %v9030, 7
    %v9032 = vsub.s32 %v9029, %v9031
    %v9033 = vrot.slane %v9019, %v9032
    %v9034 = vcombine.high %v9026, %v9026
    %v9035 = vcombine.high %v9033, %v9033
    %v9036 = vcombine.high %v8812, %v8812
    %v9038 = vunpack.c.l.s4 1983009808
    %v9039 = vunpack.c.0.s8 %v9038
    %v9040 = vlaneseq
    %v9041 = vshrl.u32 %v9040, 7
    %v9042 = vsub.s32 %v9039, %v9041
    %v9043 = vrot.slane %v8812, %v9042
    %v9045 = vunpack.c.l.s4 1983009808
    %v9046 = vunpack.c.0.s8 %v9045
    %v9047 = vlaneseq
    %v9048 = vshrl.u32 %v9047, 7
    %v9049 = vsub.s32 %v9046, %v9048
    %v9050 = vrot.slane %v9036, %v9049
    %v9051 = vcombine.high %v9043, %v9043
    %v9052 = vcombine.high %v9050, %v9050
    %v9053 = vcombine.high %v8813, %v8813
    %v9055 = vunpack.c.l.s4 1983009808
    %v9056 = vunpack.c.0.s8 %v9055
    %v9057 = vlaneseq
    %v9058 = vshrl.u32 %v9057, 7
    %v9059 = vsub.s32 %v9056, %v9058
    %v9060 = vrot.slane %v8813, %v9059
    %v9062 = vunpack.c.l.s4 1983009808
    %v9063 = vunpack.c.0.s8 %v9062
    %v9064 = vlaneseq
    %v9065 = vshrl.u32 %v9064, 7
    %v9066 = vsub.s32 %v9063, %v9065
    %v9067 = vrot.slane %v9053, %v9066
    %v9068 = vcombine.high %v9060, %v9060
    %v9069 = vcombine.high %v9067, %v9067
    %v9070 = vcombine.high %v8814, %v8814
    %v9072 = vunpack.c.l.s4 1983009808
    %v9073 = vunpack.c.0.s8 %v9072
    %v9074 = vlaneseq
    %v9075 = vshrl.u32 %v9074, 7
    %v9076 = vsub.s32 %v9073, %v9075
    %v9077 = vrot.slane %v8814, %v9076
    %v9079 = vunpack.c.l.s4 1983009808
    %v9080 = vunpack.c.0.s8 %v9079
    %v9081 = vlaneseq
    %v9082 = vshrl.u32 %v9081, 7
    %v9083 = vsub.s32 %v9080, %v9082
    %v9084 = vrot.slane %v9070, %v9083
    %v9085 = vcombine.high %v9077, %v9077
    %v9086 = vcombine.high %v9084, %v9084
    %v9087 = vcombine.high %v8815, %v8815
    %v9089 = vunpack.c.l.s4 1983009808
    %v9090 = vunpack.c.0.s8 %v9089
    %v9091 = vlaneseq
    %v9092 = vshrl.u32 %v9091, 7
    %v9093 = vsub.s32 %v9090, %v9092
    %v9094 = vrot.slane %v8815, %v9093
    %v9096 = vunpack.c.l.s4 1983009808
    %v9097 = vunpack.c.0.s8 %v9096
    %v9098 = vlaneseq
    %v9099 = vshrl.u32 %v9098, 7
    %v9100 = vsub.s32 %v9097, %v9099
    %v9101 = vrot.slane %v9087, %v9100
    %v9102 = vcombine.high %v9094, %v9094
    %v9103 = vcombine.high %v9101, %v9101
    %v9104 = vcombine.high %v8816, %v8816
    %v9106 = vunpack.c.l.s4 1983009808
    %v9107 = vunpack.c.0.s8 %v9106
    %v9108 = vlaneseq
    %v9109 = vshrl.u32 %v9108, 7
    %v9110 = vsub.s32 %v9107, %v9109
    %v9111 = vrot.slane %v8816, %v9110
    %v9113 = vunpack.c.l.s4 1983009808
    %v9114 = vunpack.c.0.s8 %v9113
    %v9115 = vlaneseq
    %v9116 = vshrl.u32 %v9115, 7
    %v9117 = vsub.s32 %v9114, %v9116
    %v9118 = vrot.slane %v9104, %v9117
    %v9119 = vcombine.high %v9111, %v9111
    %v9120 = vcombine.high %v9118, %v9118
    %v9121 = vcombine.high %v8817, %v8817
    %v9123 = vunpack.c.l.s4 1983009808
    %v9124 = vunpack.c.0.s8 %v9123
    %v9125 = vlaneseq
    %v9126 = vshrl.u32 %v9125, 7
    %v9127 = vsub.s32 %v9124, %v9126
    %v9128 = vrot.slane %v8817, %v9127
    %v9130 = vunpack.c.l.s4 1983009808
    %v9131 = vunpack.c.0.s8 %v9130
    %v9132 = vlaneseq
    %v9133 = vshrl.u32 %v9132, 7
    %v9134 = vsub.s32 %v9131, %v9133
    %v9135 = vrot.slane %v9121, %v9134
    %v9136 = vcombine.high %v9128, %v9128
    %v9137 = vcombine.high %v9135, %v9135
    %v9138 = vcombine.high %v8818, %v8818
    %v9140 = vunpack.c.l.s4 1983009808
    %v9141 = vunpack.c.0.s8 %v9140
    %v9142 = vlaneseq
    %v9143 = vshrl.u32 %v9142, 7
    %v9144 = vsub.s32 %v9141, %v9143
    %v9145 = vrot.slane %v8818, %v9144
    %v9147 = vunpack.c.l.s4 1983009808
    %v9148 = vunpack.c.0.s8 %v9147
    %v9149 = vlaneseq
    %v9150 = vshrl.u32 %v9149, 7
    %v9151 = vsub.s32 %v9148, %v9150
    %v9152 = vrot.slane %v9138, %v9151
    %v9153 = vcombine.high %v9145, %v9145
    %v9154 = vcombine.high %v9152, %v9152
    %v9155 = vcombine.high %v8819, %v8819
    %v9157 = vunpack.c.l.s4 1983009808
    %v9158 = vunpack.c.0.s8 %v9157
    %v9159 = vlaneseq
    %v9160 = vshrl.u32 %v9159, 7
    %v9161 = vsub.s32 %v9158, %v9160
    %v9162 = vrot.slane %v8819, %v9161
    %v9164 = vunpack.c.l.s4 1983009808
    %v9165 = vunpack.c.0.s8 %v9164
    %v9166 = vlaneseq
    %v9167 = vshrl.u32 %v9166, 7
    %v9168 = vsub.s32 %v9165, %v9167
    %v9169 = vrot.slane %v9155, %v9168
    %v9170 = vcombine.high %v9162, %v9162
    %v9171 = vcombine.high %v9169, %v9169
    %v9172 = vcombine.high %v8820, %v8820
    %v9174 = vunpack.c.l.s4 1983009808
    %v9175 = vunpack.c.0.s8 %v9174
    %v9176 = vlaneseq
    %v9177 = vshrl.u32 %v9176, 7
    %v9178 = vsub.s32 %v9175, %v9177
    %v9179 = vrot.slane %v8820, %v9178
    %v9181 = vunpack.c.l.s4 1983009808
    %v9182 = vunpack.c.0.s8 %v9181
    %v9183 = vlaneseq
    %v9184 = vshrl.u32 %v9183, 7
    %v9185 = vsub.s32 %v9182, %v9184
    %v9186 = vrot.slane %v9172, %v9185
    %v9187 = vcombine.high %v9179, %v9179
    %v9188 = vcombine.high %v9186, %v9186
    %v9189 = vcombine.high %v8821, %v8821
    %v9191 = vunpack.c.l.s4 1983009808
    %v9192 = vunpack.c.0.s8 %v9191
    %v9193 = vlaneseq
    %v9194 = vshrl.u32 %v9193, 7
    %v9195 = vsub.s32 %v9192, %v9194
    %v9196 = vrot.slane %v8821, %v9195
    %v9198 = vunpack.c.l.s4 1983009808
    %v9199 = vunpack.c.0.s8 %v9198
    %v9200 = vlaneseq
    %v9201 = vshrl.u32 %v9200, 7
    %v9202 = vsub.s32 %v9199, %v9201
    %v9203 = vrot.slane %v9189, %v9202
    %v9204 = vcombine.high %v9196, %v9196
    %v9205 = vcombine.high %v9203, %v9203
    %v9206 = vcombine.high %v8822, %v8822
    %v9208 = vunpack.c.l.s4 1983009808
    %v9209 = vunpack.c.0.s8 %v9208
    %v9210 = vlaneseq
    %v9211 = vshrl.u32 %v9210, 7
    %v9212 = vsub.s32 %v9209, %v9211
    %v9213 = vrot.slane %v8822, %v9212
    %v9215 = vunpack.c.l.s4 1983009808
    %v9216 = vunpack.c.0.s8 %v9215
    %v9217 = vlaneseq
    %v9218 = vshrl.u32 %v9217, 7
    %v9219 = vsub.s32 %v9216, %v9218
    %v9220 = vrot.slane %v9206, %v9219
    %v9221 = vcombine.high %v9213, %v9213
    %v9222 = vcombine.high %v9220, %v9220
    %v9223 = vcombine.high %v8823, %v8823
    %v9225 = vunpack.c.l.s4 1983009808
    %v9226 = vunpack.c.0.s8 %v9225
    %v9227 = vlaneseq
    %v9228 = vshrl.u32 %v9227, 7
    %v9229 = vsub.s32 %v9226, %v9228
    %v9230 = vrot.slane %v8823, %v9229
    %v9232 = vunpack.c.l.s4 1983009808
    %v9233 = vunpack.c.0.s8 %v9232
    %v9234 = vlaneseq
    %v9235 = vshrl.u32 %v9234, 7
    %v9236 = vsub.s32 %v9233, %v9235
    %v9237 = vrot.slane %v9223, %v9236
    %v9238 = vcombine.high %v9230, %v9230
    %v9239 = vcombine.high %v9237, %v9237
    %v9240 = vcombine.high %v8824, %v8824
    %v9242 = vunpack.c.l.s4 1983009808
    %v9243 = vunpack.c.0.s8 %v9242
    %v9244 = vlaneseq
    %v9245 = vshrl.u32 %v9244, 7
    %v9246 = vsub.s32 %v9243, %v9245
    %v9247 = vrot.slane %v8824, %v9246
    %v9249 = vunpack.c.l.s4 1983009808
    %v9250 = vunpack.c.0.s8 %v9249
    %v9251 = vlaneseq
    %v9252 = vshrl.u32 %v9251, 7
    %v9253 = vsub.s32 %v9250, %v9252
    %v9254 = vrot.slane %v9240, %v9253
    %v9255 = vcombine.high %v9247, %v9247
    %v9256 = vcombine.high %v9254, %v9254
    %v9257 = vcombine.high %v8825, %v8825
    %v9259 = vunpack.c.l.s4 1983009808
    %v9260 = vunpack.c.0.s8 %v9259
    %v9261 = vlaneseq
    %v9262 = vshrl.u32 %v9261, 7
    %v9263 = vsub.s32 %v9260, %v9262
    %v9264 = vrot.slane %v8825, %v9263
    %v9266 = vunpack.c.l.s4 1983009808
    %v9267 = vunpack.c.0.s8 %v9266
    %v9268 = vlaneseq
    %v9269 = vshrl.u32 %v9268, 7
    %v9270 = vsub.s32 %v9267, %v9269
    %v9271 = vrot.slane %v9257, %v9270
    %v9272 = vcombine.high %v9264, %v9264
    %v9273 = vcombine.high %v9271, %v9271
    %v9274 = vcombine.high %v8826, %v8826
    %v9276 = vunpack.c.l.s4 1983009808
    %v9277 = vunpack.c.0.s8 %v9276
    %v9278 = vlaneseq
    %v9279 = vshrl.u32 %v9278, 7
    %v9280 = vsub.s32 %v9277, %v9279
    %v9281 = vrot.slane %v8826, %v9280
    %v9283 = vunpack.c.l.s4 1983009808
    %v9284 = vunpack.c.0.s8 %v9283
    %v9285 = vlaneseq
    %v9286 = vshrl.u32 %v9285, 7
    %v9287 = vsub.s32 %v9284, %v9286
    %v9288 = vrot.slane %v9274, %v9287
    %v9289 = vcombine.high %v9281, %v9281
    %v9290 = vcombine.high %v9288, %v9288
    %v9291 = vcombine.high %v8827, %v8827
    %v9293 = vunpack.c.l.s4 1983009808
    %v9294 = vunpack.c.0.s8 %v9293
    %v9295 = vlaneseq
    %v9296 = vshrl.u32 %v9295, 7
    %v9297 = vsub.s32 %v9294, %v9296
    %v9298 = vrot.slane %v8827, %v9297
    %v9300 = vunpack.c.l.s4 1983009808
    %v9301 = vunpack.c.0.s8 %v9300
    %v9302 = vlaneseq
    %v9303 = vshrl.u32 %v9302, 7
    %v9304 = vsub.s32 %v9301, %v9303
    %v9305 = vrot.slane %v9291, %v9304
    %v9306 = vcombine.high %v9298, %v9298
    %v9307 = vcombine.high %v9305, %v9305
    %v9308 = vcombine.high %v8828, %v8828
    %v9310 = vunpack.c.l.s4 1983009808
    %v9311 = vunpack.c.0.s8 %v9310
    %v9312 = vlaneseq
    %v9313 = vshrl.u32 %v9312, 7
    %v9314 = vsub.s32 %v9311, %v9313
    %v9315 = vrot.slane %v8828, %v9314
    %v9317 = vunpack.c.l.s4 1983009808
    %v9318 = vunpack.c.0.s8 %v9317
    %v9319 = vlaneseq
    %v9320 = vshrl.u32 %v9319, 7
    %v9321 = vsub.s32 %v9318, %v9320
    %v9322 = vrot.slane %v9308, %v9321
    %v9323 = vcombine.high %v9315, %v9315
    %v9324 = vcombine.high %v9322, %v9322
    %v9325 = vcombine.high %v8829, %v8829
    %v9327 = vunpack.c.l.s4 1983009808
    %v9328 = vunpack.c.0.s8 %v9327
    %v9329 = vlaneseq
    %v9330 = vshrl.u32 %v9329, 7
    %v9331 = vsub.s32 %v9328, %v9330
    %v9332 = vrot.slane %v8829, %v9331
    %v9334 = vunpack.c.l.s4 1983009808
    %v9335 = vunpack.c.0.s8 %v9334
    %v9336 = vlaneseq
    %v9337 = vshrl.u32 %v9336, 7
    %v9338 = vsub.s32 %v9335, %v9337
    %v9339 = vrot.slane %v9325, %v9338
    %v9340 = vcombine.high %v9332, %v9332
    %v9341 = vcombine.high %v9339, %v9339
    %v9342 = vcombine.high %v8830, %v8830
    %v9344 = vunpack.c.l.s4 1983009808
    %v9345 = vunpack.c.0.s8 %v9344
    %v9346 = vlaneseq
    %v9347 = vshrl.u32 %v9346, 7
    %v9348 = vsub.s32 %v9345, %v9347
    %v9349 = vrot.slane %v8830, %v9348
    %v9351 = vunpack.c.l.s4 1983009808
    %v9352 = vunpack.c.0.s8 %v9351
    %v9353 = vlaneseq
    %v9354 = vshrl.u32 %v9353, 7
    %v9355 = vsub.s32 %v9352, %v9354
    %v9356 = vrot.slane %v9342, %v9355
    %v9357 = vcombine.high %v9349, %v9349
    %v9358 = vcombine.high %v9356, %v9356
    %v9359 = vcombine.high %v8831, %v8831
    %v9361 = vunpack.c.l.s4 1983009808
    %v9362 = vunpack.c.0.s8 %v9361
    %v9363 = vlaneseq
    %v9364 = vshrl.u32 %v9363, 7
    %v9365 = vsub.s32 %v9362, %v9364
    %v9366 = vrot.slane %v8831, %v9365
    %v9368 = vunpack.c.l.s4 1983009808
    %v9369 = vunpack.c.0.s8 %v9368
    %v9370 = vlaneseq
    %v9371 = vshrl.u32 %v9370, 7
    %v9372 = vsub.s32 %v9369, %v9371
    %v9373 = vrot.slane %v9359, %v9372
    %v9374 = vcombine.high %v9366, %v9366
    %v9375 = vcombine.high %v9373, %v9373
    %v9376 = vcombine.high %v8832, %v8832
    %v9378 = vunpack.c.l.s4 1983009808
    %v9379 = vunpack.c.0.s8 %v9378
    %v9380 = vlaneseq
    %v9381 = vshrl.u32 %v9380, 7
    %v9382 = vsub.s32 %v9379, %v9381
    %v9383 = vrot.slane %v8832, %v9382
    %v9385 = vunpack.c.l.s4 1983009808
    %v9386 = vunpack.c.0.s8 %v9385
    %v9387 = vlaneseq
    %v9388 = vshrl.u32 %v9387, 7
    %v9389 = vsub.s32 %v9386, %v9388
    %v9390 = vrot.slane %v9376, %v9389
    %v9391 = vcombine.high %v9383, %v9383
    %v9392 = vcombine.high %v9390, %v9390
    %v9393 = vcombine.high %v8833, %v8833
    %v9395 = vunpack.c.l.s4 1983009808
    %v9396 = vunpack.c.0.s8 %v9395
    %v9397 = vlaneseq
    %v9398 = vshrl.u32 %v9397, 7
    %v9399 = vsub.s32 %v9396, %v9398
    %v9400 = vrot.slane %v8833, %v9399
    %v9402 = vunpack.c.l.s4 1983009808
    %v9403 = vunpack.c.0.s8 %v9402
    %v9404 = vlaneseq
    %v9405 = vshrl.u32 %v9404, 7
    %v9406 = vsub.s32 %v9403, %v9405
    %v9407 = vrot.slane %v9393, %v9406
    %v9408 = vcombine.high %v9400, %v9400
    %v9409 = vcombine.high %v9407, %v9407
    %vm9538 = vcmask 517120
    %v9539 = vsel %vm9538, %v8873, -inf
    %v9540 = vrot.slane %v9539, 4
    %v9541 = vmax.f32 %v9539, %v9540
    %v9542 = vrot.slane %v9541, 2
    %v9543 = vmax.f32 %v9541, %v9542
    %v9544 = vrot.slane %v9543, 1
    %v9545 = vmax.f32 %v9543, %v9544
    %v9546 = vsel %vm9538, %v8881, -inf
    %v9547 = vrot.slane %v9546, 4
    %v9548 = vmax.f32 %v9546, %v9547
    %v9549 = vrot.slane %v9548, 2
    %v9550 = vmax.f32 %v9548, %v9549
    %v9551 = vrot.slane %v9550, 1
    %v9552 = vmax.f32 %v9550, %v9551
    %v9553 = vsel %vm9538, %v8880, -inf
    %v9554 = vrot.slane %v9553, 4
    %v9555 = vmax.f32 %v9553, %v9554
    %v9556 = vrot.slane %v9555, 2
    %v9557 = vmax.f32 %v9555, %v9556
    %v9558 = vrot.slane %v9557, 1
    %v9559 = vmax.f32 %v9557, %v9558
    %v9560 = vsel %vm9538, %v8882, -inf
    %v9561 = vrot.slane %v9560, 4
    %v9562 = vmax.f32 %v9560, %v9561
    %v9563 = vrot.slane %v9562, 2
    %v9564 = vmax.f32 %v9562, %v9563
    %v9565 = vrot.slane %v9564, 1
    %v9566 = vmax.f32 %v9564, %v9565
    %v9567 = vsel %vm9538, %v8890, -inf
    %v9568 = vrot.slane %v9567, 4
    %v9569 = vmax.f32 %v9567, %v9568
    %v9570 = vrot.slane %v9569, 2
    %v9571 = vmax.f32 %v9569, %v9570
    %v9572 = vrot.slane %v9571, 1
    %v9573 = vmax.f32 %v9571, %v9572
    %v9574 = vsel %vm9538, %v8898, -inf
    %v9575 = vrot.slane %v9574, 4
    %v9576 = vmax.f32 %v9574, %v9575
    %v9577 = vrot.slane %v9576, 2
    %v9578 = vmax.f32 %v9576, %v9577
    %v9579 = vrot.slane %v9578, 1
    %v9580 = vmax.f32 %v9578, %v9579
    %v9581 = vsel %vm9538, %v8897, -inf
    %v9582 = vrot.slane %v9581, 4
    %v9583 = vmax.f32 %v9581, %v9582
    %v9584 = vrot.slane %v9583, 2
    %v9585 = vmax.f32 %v9583, %v9584
    %v9586 = vrot.slane %v9585, 1
    %v9587 = vmax.f32 %v9585, %v9586
    %v9588 = vsel %vm9538, %v8899, -inf
    %v9589 = vrot.slane %v9588, 4
    %v9590 = vmax.f32 %v9588, %v9589
    %v9591 = vrot.slane %v9590, 2
    %v9592 = vmax.f32 %v9590, %v9591
    %v9593 = vrot.slane %v9592, 1
    %v9594 = vmax.f32 %v9592, %v9593
    %v9595 = vsel %vm9538, %v8907, -inf
    %v9596 = vrot.slane %v9595, 4
    %v9597 = vmax.f32 %v9595, %v9596
    %v9598 = vrot.slane %v9597, 2
    %v9599 = vmax.f32 %v9597, %v9598
    %v9600 = vrot.slane %v9599, 1
    %v9601 = vmax.f32 %v9599, %v9600
    %v9602 = vsel %vm9538, %v8915, -inf
    %v9603 = vrot.slane %v9602, 4
    %v9604 = vmax.f32 %v9602, %v9603
    %v9605 = vrot.slane %v9604, 2
    %v9606 = vmax.f32 %v9604, %v9605
    %v9607 = vrot.slane %v9606, 1
    %v9608 = vmax.f32 %v9606, %v9607
    %v9609 = vsel %vm9538, %v8914, -inf
    %v9610 = vrot.slane %v9609, 4
    %v9611 = vmax.f32 %v9609, %v9610
    %v9612 = vrot.slane %v9611, 2
    %v9613 = vmax.f32 %v9611, %v9612
    %v9614 = vrot.slane %v9613, 1
    %v9615 = vmax.f32 %v9613, %v9614
    %v9616 = vsel %vm9538, %v8916, -inf
    %v9617 = vrot.slane %v9616, 4
    %v9618 = vmax.f32 %v9616, %v9617
    %v9619 = vrot.slane %v9618, 2
    %v9620 = vmax.f32 %v9618, %v9619
    %v9621 = vrot.slane %v9620, 1
    %v9622 = vmax.f32 %v9620, %v9621
    %v9623 = vsel %vm9538, %v8924, -inf
    %v9624 = vrot.slane %v9623, 4
    %v9625 = vmax.f32 %v9623, %v9624
    %v9626 = vrot.slane %v9625, 2
    %v9627 = vmax.f32 %v9625, %v9626
    %v9628 = vrot.slane %v9627, 1
    %v9629 = vmax.f32 %v9627, %v9628
    %v9630 = vsel %vm9538, %v8932, -inf
    %v9631 = vrot.slane %v9630, 4
    %v9632 = vmax.f32 %v9630, %v9631
    %v9633 = vrot.slane %v9632, 2
    %v9634 = vmax.f32 %v9632, %v9633
    %v9635 = vrot.slane %v9634, 1
    %v9636 = vmax.f32 %v9634, %v9635
    %v9637 = vsel %vm9538, %v8931, -inf
    %v9638 = vrot.slane %v9637, 4
    %v9639 = vmax.f32 %v9637, %v9638
    %v9640 = vrot.slane %v9639, 2
    %v9641 = vmax.f32 %v9639, %v9640
    %v9642 = vrot.slane %v9641, 1
    %v9643 = vmax.f32 %v9641, %v9642
    %v9644 = vsel %vm9538, %v8933, -inf
    %v9645 = vrot.slane %v9644, 4
    %v9646 = vmax.f32 %v9644, %v9645
    %v9647 = vrot.slane %v9646, 2
    %v9648 = vmax.f32 %v9646, %v9647
    %v9649 = vrot.slane %v9648, 1
    %v9650 = vmax.f32 %v9648, %v9649
    %v9651 = vsel %vm9538, %v8941, -inf
    %v9652 = vrot.slane %v9651, 4
    %v9653 = vmax.f32 %v9651, %v9652
    %v9654 = vrot.slane %v9653, 2
    %v9655 = vmax.f32 %v9653, %v9654
    %v9656 = vrot.slane %v9655, 1
    %v9657 = vmax.f32 %v9655, %v9656
    %v9658 = vsel %vm9538, %v8949, -inf
    %v9659 = vrot.slane %v9658, 4
    %v9660 = vmax.f32 %v9658, %v9659
    %v9661 = vrot.slane %v9660, 2
    %v9662 = vmax.f32 %v9660, %v9661
    %v9663 = vrot.slane %v9662, 1
    %v9664 = vmax.f32 %v9662, %v9663
    %v9665 = vsel %vm9538, %v8948, -inf
    %v9666 = vrot.slane %v9665, 4
    %v9667 = vmax.f32 %v9665, %v9666
    %v9668 = vrot.slane %v9667, 2
    %v9669 = vmax.f32 %v9667, %v9668
    %v9670 = vrot.slane %v9669, 1
    %v9671 = vmax.f32 %v9669, %v9670
    %v9672 = vsel %vm9538, %v8950, -inf
    %v9673 = vrot.slane %v9672, 4
    %v9674 = vmax.f32 %v9672, %v9673
    %v9675 = vrot.slane %v9674, 2
    %v9676 = vmax.f32 %v9674, %v9675
    %v9677 = vrot.slane %v9676, 1
    %v9678 = vmax.f32 %v9676, %v9677
    %v9679 = vsel %vm9538, %v8958, -inf
    %v9680 = vrot.slane %v9679, 4
    %v9681 = vmax.f32 %v9679, %v9680
    %v9682 = vrot.slane %v9681, 2
    %v9683 = vmax.f32 %v9681, %v9682
    %v9684 = vrot.slane %v9683, 1
    %v9685 = vmax.f32 %v9683, %v9684
    %v9686 = vsel %vm9538, %v8966, -inf
    %v9687 = vrot.slane %v9686, 4
    %v9688 = vmax.f32 %v9686, %v9687
    %v9689 = vrot.slane %v9688, 2
    %v9690 = vmax.f32 %v9688, %v9689
    %v9691 = vrot.slane %v9690, 1
    %v9692 = vmax.f32 %v9690, %v9691
    %v9693 = vsel %vm9538, %v8965, -inf
    %v9694 = vrot.slane %v9693, 4
    %v9695 = vmax.f32 %v9693, %v9694
    %v9696 = vrot.slane %v9695, 2
    %v9697 = vmax.f32 %v9695, %v9696
    %v9698 = vrot.slane %v9697, 1
    %v9699 = vmax.f32 %v9697, %v9698
    %v9700 = vsel %vm9538, %v8967, -inf
    %v9701 = vrot.slane %v9700, 4
    %v9702 = vmax.f32 %v9700, %v9701
    %v9703 = vrot.slane %v9702, 2
    %v9704 = vmax.f32 %v9702, %v9703
    %v9705 = vrot.slane %v9704, 1
    %v9706 = vmax.f32 %v9704, %v9705
    %v9707 = vsel %vm9538, %v8975, -inf
    %v9708 = vrot.slane %v9707, 4
    %v9709 = vmax.f32 %v9707, %v9708
    %v9710 = vrot.slane %v9709, 2
    %v9711 = vmax.f32 %v9709, %v9710
    %v9712 = vrot.slane %v9711, 1
    %v9713 = vmax.f32 %v9711, %v9712
    %v9714 = vsel %vm9538, %v8983, -inf
    %v9715 = vrot.slane %v9714, 4
    %v9716 = vmax.f32 %v9714, %v9715
    %v9717 = vrot.slane %v9716, 2
    %v9718 = vmax.f32 %v9716, %v9717
    %v9719 = vrot.slane %v9718, 1
    %v9720 = vmax.f32 %v9718, %v9719
    %v9721 = vsel %vm9538, %v8982, -inf
    %v9722 = vrot.slane %v9721, 4
    %v9723 = vmax.f32 %v9721, %v9722
    %v9724 = vrot.slane %v9723, 2
    %v9725 = vmax.f32 %v9723, %v9724
    %v9726 = vrot.slane %v9725, 1
    %v9727 = vmax.f32 %v9725, %v9726
    %v9728 = vsel %vm9538, %v8984, -inf
    %v9729 = vrot.slane %v9728, 4
    %v9730 = vmax.f32 %v9728, %v9729
    %v9731 = vrot.slane %v9730, 2
    %v9732 = vmax.f32 %v9730, %v9731
    %v9733 = vrot.slane %v9732, 1
    %v9734 = vmax.f32 %v9732, %v9733
    %v9735 = vsel %vm9538, %v8992, -inf
    %v9736 = vrot.slane %v9735, 4
    %v9737 = vmax.f32 %v9735, %v9736
    %v9738 = vrot.slane %v9737, 2
    %v9739 = vmax.f32 %v9737, %v9738
    %v9740 = vrot.slane %v9739, 1
    %v9741 = vmax.f32 %v9739, %v9740
    %v9742 = vsel %vm9538, %v9000, -inf
    %v9743 = vrot.slane %v9742, 4
    %v9744 = vmax.f32 %v9742, %v9743
    %v9745 = vrot.slane %v9744, 2
    %v9746 = vmax.f32 %v9744, %v9745
    %v9747 = vrot.slane %v9746, 1
    %v9748 = vmax.f32 %v9746, %v9747
    %v9749 = vsel %vm9538, %v8999, -inf
    %v9750 = vrot.slane %v9749, 4
    %v9751 = vmax.f32 %v9749, %v9750
    %v9752 = vrot.slane %v9751, 2
    %v9753 = vmax.f32 %v9751, %v9752
    %v9754 = vrot.slane %v9753, 1
    %v9755 = vmax.f32 %v9753, %v9754
    %v9756 = vsel %vm9538, %v9001, -inf
    %v9757 = vrot.slane %v9756, 4
    %v9758 = vmax.f32 %v9756, %v9757
    %v9759 = vrot.slane %v9758, 2
    %v9760 = vmax.f32 %v9758, %v9759
    %v9761 = vrot.slane %v9760, 1
    %v9762 = vmax.f32 %v9760, %v9761
    %v9763 = vsel %vm9538, %v9009, -inf
    %v9764 = vrot.slane %v9763, 4
    %v9765 = vmax.f32 %v9763, %v9764
    %v9766 = vrot.slane %v9765, 2
    %v9767 = vmax.f32 %v9765, %v9766
    %v9768 = vrot.slane %v9767, 1
    %v9769 = vmax.f32 %v9767, %v9768
    %v9770 = vsel %vm9538, %v9017, -inf
    %v9771 = vrot.slane %v9770, 4
    %v9772 = vmax.f32 %v9770, %v9771
    %v9773 = vrot.slane %v9772, 2
    %v9774 = vmax.f32 %v9772, %v9773
    %v9775 = vrot.slane %v9774, 1
    %v9776 = vmax.f32 %v9774, %v9775
    %v9777 = vsel %vm9538, %v9016, -inf
    %v9778 = vrot.slane %v9777, 4
    %v9779 = vmax.f32 %v9777, %v9778
    %v9780 = vrot.slane %v9779, 2
    %v9781 = vmax.f32 %v9779, %v9780
    %v9782 = vrot.slane %v9781, 1
    %v9783 = vmax.f32 %v9781, %v9782
    %v9784 = vsel %vm9538, %v9018, -inf
    %v9785 = vrot.slane %v9784, 4
    %v9786 = vmax.f32 %v9784, %v9785
    %v9787 = vrot.slane %v9786, 2
    %v9788 = vmax.f32 %v9786, %v9787
    %v9789 = vrot.slane %v9788, 1
    %v9790 = vmax.f32 %v9788, %v9789
    %v9791 = vsel %vm9538, %v9026, -inf
    %v9792 = vrot.slane %v9791, 4
    %v9793 = vmax.f32 %v9791, %v9792
    %v9794 = vrot.slane %v9793, 2
    %v9795 = vmax.f32 %v9793, %v9794
    %v9796 = vrot.slane %v9795, 1
    %v9797 = vmax.f32 %v9795, %v9796
    %v9798 = vsel %vm9538, %v9034, -inf
    %v9799 = vrot.slane %v9798, 4
    %v9800 = vmax.f32 %v9798, %v9799
    %v9801 = vrot.slane %v9800, 2
    %v9802 = vmax.f32 %v9800, %v9801
    %v9803 = vrot.slane %v9802, 1
    %v9804 = vmax.f32 %v9802, %v9803
    %v9805 = vsel %vm9538, %v9033, -inf
    %v9806 = vrot.slane %v9805, 4
    %v9807 = vmax.f32 %v9805, %v9806
    %v9808 = vrot.slane %v9807, 2
    %v9809 = vmax.f32 %v9807, %v9808
    %v9810 = vrot.slane %v9809, 1
    %v9811 = vmax.f32 %v9809, %v9810
    %v9812 = vsel %vm9538, %v9035, -inf
    %v9813 = vrot.slane %v9812, 4
    %v9814 = vmax.f32 %v9812, %v9813
    %v9815 = vrot.slane %v9814, 2
    %v9816 = vmax.f32 %v9814, %v9815
    %v9817 = vrot.slane %v9816, 1
    %v9818 = vmax.f32 %v9816, %v9817
    %v9819 = vsel %vm9538, %v9043, -inf
    %v9820 = vrot.slane %v9819, 4
    %v9821 = vmax.f32 %v9819, %v9820
    %v9822 = vrot.slane %v9821, 2
    %v9823 = vmax.f32 %v9821, %v9822
    %v9824 = vrot.slane %v9823, 1
    %v9825 = vmax.f32 %v9823, %v9824
    %v9826 = vsel %vm9538, %v9051, -inf
    %v9827 = vrot.slane %v9826, 4
    %v9828 = vmax.f32 %v9826, %v9827
    %v9829 = vrot.slane %v9828, 2
    %v9830 = vmax.f32 %v9828, %v9829
    %v9831 = vrot.slane %v9830, 1
    %v9832 = vmax.f32 %v9830, %v9831
    %v9833 = vsel %vm9538, %v9050, -inf
    %v9834 = vrot.slane %v9833, 4
    %v9835 = vmax.f32 %v9833, %v9834
    %v9836 = vrot.slane %v9835, 2
    %v9837 = vmax.f32 %v9835, %v9836
    %v9838 = vrot.slane %v9837, 1
    %v9839 = vmax.f32 %v9837, %v9838
    %v9840 = vsel %vm9538, %v9052, -inf
    %v9841 = vrot.slane %v9840, 4
    %v9842 = vmax.f32 %v9840, %v9841
    %v9843 = vrot.slane %v9842, 2
    %v9844 = vmax.f32 %v9842, %v9843
    %v9845 = vrot.slane %v9844, 1
    %v9846 = vmax.f32 %v9844, %v9845
    %v9847 = vsel %vm9538, %v9060, -inf
    %v9848 = vrot.slane %v9847, 4
    %v9849 = vmax.f32 %v9847, %v9848
    %v9850 = vrot.slane %v9849, 2
    %v9851 = vmax.f32 %v9849, %v9850
    %v9852 = vrot.slane %v9851, 1
    %v9853 = vmax.f32 %v9851, %v9852
    %v9854 = vsel %vm9538, %v9068, -inf
    %v9855 = vrot.slane %v9854, 4
    %v9856 = vmax.f32 %v9854, %v9855
    %v9857 = vrot.slane %v9856, 2
    %v9858 = vmax.f32 %v9856, %v9857
    %v9859 = vrot.slane %v9858, 1
    %v9860 = vmax.f32 %v9858, %v9859
    %v9861 = vsel %vm9538, %v9067, -inf
    %v9862 = vrot.slane %v9861, 4
    %v9863 = vmax.f32 %v9861, %v9862
    %v9864 = vrot.slane %v9863, 2
    %v9865 = vmax.f32 %v9863, %v9864
    %v9866 = vrot.slane %v9865, 1
    %v9867 = vmax.f32 %v9865, %v9866
    %v9868 = vsel %vm9538, %v9069, -inf
    %v9869 = vrot.slane %v9868, 4
    %v9870 = vmax.f32 %v9868, %v9869
    %v9871 = vrot.slane %v9870, 2
    %v9872 = vmax.f32 %v9870, %v9871
    %v9873 = vrot.slane %v9872, 1
    %v9874 = vmax.f32 %v9872, %v9873
    %v9875 = vsel %vm9538, %v9077, -inf
    %v9876 = vrot.slane %v9875, 4
    %v9877 = vmax.f32 %v9875, %v9876
    %v9878 = vrot.slane %v9877, 2
    %v9879 = vmax.f32 %v9877, %v9878
    %v9880 = vrot.slane %v9879, 1
    %v9881 = vmax.f32 %v9879, %v9880
    %v9882 = vsel %vm9538, %v9085, -inf
    %v9883 = vrot.slane %v9882, 4
    %v9884 = vmax.f32 %v9882, %v9883
    %v9885 = vrot.slane %v9884, 2
    %v9886 = vmax.f32 %v9884, %v9885
    %v9887 = vrot.slane %v9886, 1
    %v9888 = vmax.f32 %v9886, %v9887
    %v9889 = vsel %vm9538, %v9084, -inf
    %v9890 = vrot.slane %v9889, 4
    %v9891 = vmax.f32 %v9889, %v9890
    %v9892 = vrot.slane %v9891, 2
    %v9893 = vmax.f32 %v9891, %v9892
    %v9894 = vrot.slane %v9893, 1
    %v9895 = vmax.f32 %v9893, %v9894
    %v9896 = vsel %vm9538, %v9086, -inf
    %v9897 = vrot.slane %v9896, 4
    %v9898 = vmax.f32 %v9896, %v9897
    %v9899 = vrot.slane %v9898, 2
    %v9900 = vmax.f32 %v9898, %v9899
    %v9901 = vrot.slane %v9900, 1
    %v9902 = vmax.f32 %v9900, %v9901
    %v9903 = vsel %vm9538, %v9094, -inf
    %v9904 = vrot.slane %v9903, 4
    %v9905 = vmax.f32 %v9903, %v9904
    %v9906 = vrot.slane %v9905, 2
    %v9907 = vmax.f32 %v9905, %v9906
    %v9908 = vrot.slane %v9907, 1
    %v9909 = vmax.f32 %v9907, %v9908
    %v9910 = vsel %vm9538, %v9102, -inf
    %v9911 = vrot.slane %v9910, 4
    %v9912 = vmax.f32 %v9910, %v9911
    %v9913 = vrot.slane %v9912, 2
    %v9914 = vmax.f32 %v9912, %v9913
    %v9915 = vrot.slane %v9914, 1
    %v9916 = vmax.f32 %v9914, %v9915
    %v9917 = vsel %vm9538, %v9101, -inf
    %v9918 = vrot.slane %v9917, 4
    %v9919 = vmax.f32 %v9917, %v9918
    %v9920 = vrot.slane %v9919, 2
    %v9921 = vmax.f32 %v9919, %v9920
    %v9922 = vrot.slane %v9921, 1
    %v9923 = vmax.f32 %v9921, %v9922
    %v9924 = vsel %vm9538, %v9103, -inf
    %v9925 = vrot.slane %v9924, 4
    %v9926 = vmax.f32 %v9924, %v9925
    %v9927 = vrot.slane %v9926, 2
    %v9928 = vmax.f32 %v9926, %v9927
    %v9929 = vrot.slane %v9928, 1
    %v9930 = vmax.f32 %v9928, %v9929
    %v9931 = vsel %vm9538, %v9111, -inf
    %v9932 = vrot.slane %v9931, 4
    %v9933 = vmax.f32 %v9931, %v9932
    %v9934 = vrot.slane %v9933, 2
    %v9935 = vmax.f32 %v9933, %v9934
    %v9936 = vrot.slane %v9935, 1
    %v9937 = vmax.f32 %v9935, %v9936
    %v9938 = vsel %vm9538, %v9119, -inf
    %v9939 = vrot.slane %v9938, 4
    %v9940 = vmax.f32 %v9938, %v9939
    %v9941 = vrot.slane %v9940, 2
    %v9942 = vmax.f32 %v9940, %v9941
    %v9943 = vrot.slane %v9942, 1
    %v9944 = vmax.f32 %v9942, %v9943
    %v9945 = vsel %vm9538, %v9118, -inf
    %v9946 = vrot.slane %v9945, 4
    %v9947 = vmax.f32 %v9945, %v9946
    %v9948 = vrot.slane %v9947, 2
    %v9949 = vmax.f32 %v9947, %v9948
    %v9950 = vrot.slane %v9949, 1
    %v9951 = vmax.f32 %v9949, %v9950
    %v9952 = vsel %vm9538, %v9120, -inf
    %v9953 = vrot.slane %v9952, 4
    %v9954 = vmax.f32 %v9952, %v9953
    %v9955 = vrot.slane %v9954, 2
    %v9956 = vmax.f32 %v9954, %v9955
    %v9957 = vrot.slane %v9956, 1
    %v9958 = vmax.f32 %v9956, %v9957
    %v9959 = vsel %vm9538, %v9128, -inf
    %v9960 = vrot.slane %v9959, 4
    %v9961 = vmax.f32 %v9959, %v9960
    %v9962 = vrot.slane %v9961, 2
    %v9963 = vmax.f32 %v9961, %v9962
    %v9964 = vrot.slane %v9963, 1
    %v9965 = vmax.f32 %v9963, %v9964
    %v9966 = vsel %vm9538, %v9136, -inf
    %v9967 = vrot.slane %v9966, 4
    %v9968 = vmax.f32 %v9966, %v9967
    %v9969 = vrot.slane %v9968, 2
    %v9970 = vmax.f32 %v9968, %v9969
    %v9971 = vrot.slane %v9970, 1
    %v9972 = vmax.f32 %v9970, %v9971
    %v9973 = vsel %vm9538, %v9135, -inf
    %v9974 = vrot.slane %v9973, 4
    %v9975 = vmax.f32 %v9973, %v9974
    %v9976 = vrot.slane %v9975, 2
    %v9977 = vmax.f32 %v9975, %v9976
    %v9978 = vrot.slane %v9977, 1
    %v9979 = vmax.f32 %v9977, %v9978
    %v9980 = vsel %vm9538, %v9137, -inf
    %v9981 = vrot.slane %v9980, 4
    %v9982 = vmax.f32 %v9980, %v9981
    %v9983 = vrot.slane %v9982, 2
    %v9984 = vmax.f32 %v9982, %v9983
    %v9985 = vrot.slane %v9984, 1
    %v9986 = vmax.f32 %v9984, %v9985
    %v9987 = vsel %vm9538, %v9145, -inf
    %v9988 = vrot.slane %v9987, 4
    %v9989 = vmax.f32 %v9987, %v9988
    %v9990 = vrot.slane %v9989, 2
    %v9991 = vmax.f32 %v9989, %v9990
    %v9992 = vrot.slane %v9991, 1
    %v9993 = vmax.f32 %v9991, %v9992
    %v9994 = vsel %vm9538, %v9153, -inf
    %v9995 = vrot.slane %v9994, 4
    %v9996 = vmax.f32 %v9994, %v9995
    %v9997 = vrot.slane %v9996, 2
    %v9998 = vmax.f32 %v9996, %v9997
    %v9999 = vrot.slane %v9998, 1
    %v10000 = vmax.f32 %v9998, %v9999
    %v10001 = vsel %vm9538, %v9152, -inf
    %v10002 = vrot.slane %v10001, 4
    %v10003 = vmax.f32 %v10001, %v10002
    %v10004 = vrot.slane %v10003, 2
    %v10005 = vmax.f32 %v10003, %v10004
    %v10006 = vrot.slane %v10005, 1
    %v10007 = vmax.f32 %v10005, %v10006
    %v10008 = vsel %vm9538, %v9154, -inf
    %v10009 = vrot.slane %v10008, 4
    %v10010 = vmax.f32 %v10008, %v10009
    %v10011 = vrot.slane %v10010, 2
    %v10012 = vmax.f32 %v10010, %v10011
    %v10013 = vrot.slane %v10012, 1
    %v10014 = vmax.f32 %v10012, %v10013
    %v10015 = vsel %vm9538, %v9162, -inf
    %v10016 = vrot.slane %v10015, 4
    %v10017 = vmax.f32 %v10015, %v10016
    %v10018 = vrot.slane %v10017, 2
    %v10019 = vmax.f32 %v10017, %v10018
    %v10020 = vrot.slane %v10019, 1
    %v10021 = vmax.f32 %v10019, %v10020
    %v10022 = vsel %vm9538, %v9170, -inf
    %v10023 = vrot.slane %v10022, 4
    %v10024 = vmax.f32 %v10022, %v10023
    %v10025 = vrot.slane %v10024, 2
    %v10026 = vmax.f32 %v10024, %v10025
    %v10027 = vrot.slane %v10026, 1
    %v10028 = vmax.f32 %v10026, %v10027
    %v10029 = vsel %vm9538, %v9169, -inf
    %v10030 = vrot.slane %v10029, 4
    %v10031 = vmax.f32 %v10029, %v10030
    %v10032 = vrot.slane %v10031, 2
    %v10033 = vmax.f32 %v10031, %v10032
    %v10034 = vrot.slane %v10033, 1
    %v10035 = vmax.f32 %v10033, %v10034
    %v10036 = vsel %vm9538, %v9171, -inf
    %v10037 = vrot.slane %v10036, 4
    %v10038 = vmax.f32 %v10036, %v10037
    %v10039 = vrot.slane %v10038, 2
    %v10040 = vmax.f32 %v10038, %v10039
    %v10041 = vrot.slane %v10040, 1
    %v10042 = vmax.f32 %v10040, %v10041
    %v10043 = vsel %vm9538, %v9179, -inf
    %v10044 = vrot.slane %v10043, 4
    %v10045 = vmax.f32 %v10043, %v10044
    %v10046 = vrot.slane %v10045, 2
    %v10047 = vmax.f32 %v10045, %v10046
    %v10048 = vrot.slane %v10047, 1
    %v10049 = vmax.f32 %v10047, %v10048
    %v10050 = vsel %vm9538, %v9187, -inf
    %v10051 = vrot.slane %v10050, 4
    %v10052 = vmax.f32 %v10050, %v10051
    %v10053 = vrot.slane %v10052, 2
    %v10054 = vmax.f32 %v10052, %v10053
    %v10055 = vrot.slane %v10054, 1
    %v10056 = vmax.f32 %v10054, %v10055
    %v10057 = vsel %vm9538, %v9186, -inf
    %v10058 = vrot.slane %v10057, 4
    %v10059 = vmax.f32 %v10057, %v10058
    %v10060 = vrot.slane %v10059, 2
    %v10061 = vmax.f32 %v10059, %v10060
    %v10062 = vrot.slane %v10061, 1
    %v10063 = vmax.f32 %v10061, %v10062
    %v10064 = vsel %vm9538, %v9188, -inf
    %v10065 = vrot.slane %v10064, 4
    %v10066 = vmax.f32 %v10064, %v10065
    %v10067 = vrot.slane %v10066, 2
    %v10068 = vmax.f32 %v10066, %v10067
    %v10069 = vrot.slane %v10068, 1
    %v10070 = vmax.f32 %v10068, %v10069
    %v10071 = vsel %vm9538, %v9196, -inf
    %v10072 = vrot.slane %v10071, 4
    %v10073 = vmax.f32 %v10071, %v10072
    %v10074 = vrot.slane %v10073, 2
    %v10075 = vmax.f32 %v10073, %v10074
    %v10076 = vrot.slane %v10075, 1
    %v10077 = vmax.f32 %v10075, %v10076
    %v10078 = vsel %vm9538, %v9204, -inf
    %v10079 = vrot.slane %v10078, 4
    %v10080 = vmax.f32 %v10078, %v10079
    %v10081 = vrot.slane %v10080, 2
    %v10082 = vmax.f32 %v10080, %v10081
    %v10083 = vrot.slane %v10082, 1
    %v10084 = vmax.f32 %v10082, %v10083
    %v10085 = vsel %vm9538, %v9203, -inf
    %v10086 = vrot.slane %v10085, 4
    %v10087 = vmax.f32 %v10085, %v10086
    %v10088 = vrot.slane %v10087, 2
    %v10089 = vmax.f32 %v10087, %v10088
    %v10090 = vrot.slane %v10089, 1
    %v10091 = vmax.f32 %v10089, %v10090
    %v10092 = vsel %vm9538, %v9205, -inf
    %v10093 = vrot.slane %v10092, 4
    %v10094 = vmax.f32 %v10092, %v10093
    %v10095 = vrot.slane %v10094, 2
    %v10096 = vmax.f32 %v10094, %v10095
    %v10097 = vrot.slane %v10096, 1
    %v10098 = vmax.f32 %v10096, %v10097
    %v10099 = vsel %vm9538, %v9213, -inf
    %v10100 = vrot.slane %v10099, 4
    %v10101 = vmax.f32 %v10099, %v10100
    %v10102 = vrot.slane %v10101, 2
    %v10103 = vmax.f32 %v10101, %v10102
    %v10104 = vrot.slane %v10103, 1
    %v10105 = vmax.f32 %v10103, %v10104
    %v10106 = vsel %vm9538, %v9221, -inf
    %v10107 = vrot.slane %v10106, 4
    %v10108 = vmax.f32 %v10106, %v10107
    %v10109 = vrot.slane %v10108, 2
    %v10110 = vmax.f32 %v10108, %v10109
    %v10111 = vrot.slane %v10110, 1
    %v10112 = vmax.f32 %v10110, %v10111
    %v10113 = vsel %vm9538, %v9220, -inf
    %v10114 = vrot.slane %v10113, 4
    %v10115 = vmax.f32 %v10113, %v10114
    %v10116 = vrot.slane %v10115, 2
    %v10117 = vmax.f32 %v10115, %v10116
    %v10118 = vrot.slane %v10117, 1
    %v10119 = vmax.f32 %v10117, %v10118
    %v10120 = vsel %vm9538, %v9222, -inf
    %v10121 = vrot.slane %v10120, 4
    %v10122 = vmax.f32 %v10120, %v10121
    %v10123 = vrot.slane %v10122, 2
    %v10124 = vmax.f32 %v10122, %v10123
    %v10125 = vrot.slane %v10124, 1
    %v10126 = vmax.f32 %v10124, %v10125
    %v10127 = vsel %vm9538, %v9230, -inf
    %v10128 = vrot.slane %v10127, 4
    %v10129 = vmax.f32 %v10127, %v10128
    %v10130 = vrot.slane %v10129, 2
    %v10131 = vmax.f32 %v10129, %v10130
    %v10132 = vrot.slane %v10131, 1
    %v10133 = vmax.f32 %v10131, %v10132
    %v10134 = vsel %vm9538, %v9238, -inf
    %v10135 = vrot.slane %v10134, 4
    %v10136 = vmax.f32 %v10134, %v10135
    %v10137 = vrot.slane %v10136, 2
    %v10138 = vmax.f32 %v10136, %v10137
    %v10139 = vrot.slane %v10138, 1
    %v10140 = vmax.f32 %v10138, %v10139
    %v10141 = vsel %vm9538, %v9237, -inf
    %v10142 = vrot.slane %v10141, 4
    %v10143 = vmax.f32 %v10141, %v10142
    %v10144 = vrot.slane %v10143, 2
    %v10145 = vmax.f32 %v10143, %v10144
    %v10146 = vrot.slane %v10145, 1
    %v10147 = vmax.f32 %v10145, %v10146
    %v10148 = vsel %vm9538, %v9239, -inf
    %v10149 = vrot.slane %v10148, 4
    %v10150 = vmax.f32 %v10148, %v10149
    %v10151 = vrot.slane %v10150, 2
    %v10152 = vmax.f32 %v10150, %v10151
    %v10153 = vrot.slane %v10152, 1
    %v10154 = vmax.f32 %v10152, %v10153
    %v10155 = vsel %vm9538, %v9247, -inf
    %v10156 = vrot.slane %v10155, 4
    %v10157 = vmax.f32 %v10155, %v10156
    %v10158 = vrot.slane %v10157, 2
    %v10159 = vmax.f32 %v10157, %v10158
    %v10160 = vrot.slane %v10159, 1
    %v10161 = vmax.f32 %v10159, %v10160
    %v10162 = vsel %vm9538, %v9255, -inf
    %v10163 = vrot.slane %v10162, 4
    %v10164 = vmax.f32 %v10162, %v10163
    %v10165 = vrot.slane %v10164, 2
    %v10166 = vmax.f32 %v10164, %v10165
    %v10167 = vrot.slane %v10166, 1
    %v10168 = vmax.f32 %v10166, %v10167
    %v10169 = vsel %vm9538, %v9254, -inf
    %v10170 = vrot.slane %v10169, 4
    %v10171 = vmax.f32 %v10169, %v10170
    %v10172 = vrot.slane %v10171, 2
    %v10173 = vmax.f32 %v10171, %v10172
    %v10174 = vrot.slane %v10173, 1
    %v10175 = vmax.f32 %v10173, %v10174
    %v10176 = vsel %vm9538, %v9256, -inf
    %v10177 = vrot.slane %v10176, 4
    %v10178 = vmax.f32 %v10176, %v10177
    %v10179 = vrot.slane %v10178, 2
    %v10180 = vmax.f32 %v10178, %v10179
    %v10181 = vrot.slane %v10180, 1
    %v10182 = vmax.f32 %v10180, %v10181
    %v10183 = vsel %vm9538, %v9264, -inf
    %v10184 = vrot.slane %v10183, 4
    %v10185 = vmax.f32 %v10183, %v10184
    %v10186 = vrot.slane %v10185, 2
    %v10187 = vmax.f32 %v10185, %v10186
    %v10188 = vrot.slane %v10187, 1
    %v10189 = vmax.f32 %v10187, %v10188
    %v10190 = vsel %vm9538, %v9272, -inf
    %v10191 = vrot.slane %v10190, 4
    %v10192 = vmax.f32 %v10190, %v10191
    %v10193 = vrot.slane %v10192, 2
    %v10194 = vmax.f32 %v10192, %v10193
    %v10195 = vrot.slane %v10194, 1
    %v10196 = vmax.f32 %v10194, %v10195
    %v10197 = vsel %vm9538, %v9271, -inf
    %v10198 = vrot.slane %v10197, 4
    %v10199 = vmax.f32 %v10197, %v10198
    %v10200 = vrot.slane %v10199, 2
    %v10201 = vmax.f32 %v10199, %v10200
    %v10202 = vrot.slane %v10201, 1
    %v10203 = vmax.f32 %v10201, %v10202
    %v10204 = vsel %vm9538, %v9273, -inf
    %v10205 = vrot.slane %v10204, 4
    %v10206 = vmax.f32 %v10204, %v10205
    %v10207 = vrot.slane %v10206, 2
    %v10208 = vmax.f32 %v10206, %v10207
    %v10209 = vrot.slane %v10208, 1
    %v10210 = vmax.f32 %v10208, %v10209
    %v10211 = vsel %vm9538, %v9281, -inf
    %v10212 = vrot.slane %v10211, 4
    %v10213 = vmax.f32 %v10211, %v10212
    %v10214 = vrot.slane %v10213, 2
    %v10215 = vmax.f32 %v10213, %v10214
    %v10216 = vrot.slane %v10215, 1
    %v10217 = vmax.f32 %v10215, %v10216
    %v10218 = vsel %vm9538, %v9289, -inf
    %v10219 = vrot.slane %v10218, 4
    %v10220 = vmax.f32 %v10218, %v10219
    %v10221 = vrot.slane %v10220, 2
    %v10222 = vmax.f32 %v10220, %v10221
    %v10223 = vrot.slane %v10222, 1
    %v10224 = vmax.f32 %v10222, %v10223
    %v10225 = vsel %vm9538, %v9288, -inf
    %v10226 = vrot.slane %v10225, 4
    %v10227 = vmax.f32 %v10225, %v10226
    %v10228 = vrot.slane %v10227, 2
    %v10229 = vmax.f32 %v10227, %v10228
    %v10230 = vrot.slane %v10229, 1
    %v10231 = vmax.f32 %v10229, %v10230
    %v10232 = vsel %vm9538, %v9290, -inf
    %v10233 = vrot.slane %v10232, 4
    %v10234 = vmax.f32 %v10232, %v10233
    %v10235 = vrot.slane %v10234, 2
    %v10236 = vmax.f32 %v10234, %v10235
    %v10237 = vrot.slane %v10236, 1
    %v10238 = vmax.f32 %v10236, %v10237
    %v10239 = vsel %vm9538, %v9298, -inf
    %v10240 = vrot.slane %v10239, 4
    %v10241 = vmax.f32 %v10239, %v10240
    %v10242 = vrot.slane %v10241, 2
    %v10243 = vmax.f32 %v10241, %v10242
    %v10244 = vrot.slane %v10243, 1
    %v10245 = vmax.f32 %v10243, %v10244
    %v10246 = vsel %vm9538, %v9306, -inf
    %v10247 = vrot.slane %v10246, 4
    %v10248 = vmax.f32 %v10246, %v10247
    %v10249 = vrot.slane %v10248, 2
    %v10250 = vmax.f32 %v10248, %v10249
    %v10251 = vrot.slane %v10250, 1
    %v10252 = vmax.f32 %v10250, %v10251
    %v10253 = vsel %vm9538, %v9305, -inf
    %v10254 = vrot.slane %v10253, 4
    %v10255 = vmax.f32 %v10253, %v10254
    %v10256 = vrot.slane %v10255, 2
    %v10257 = vmax.f32 %v10255, %v10256
    %v10258 = vrot.slane %v10257, 1
    %v10259 = vmax.f32 %v10257, %v10258
    %v10260 = vsel %vm9538, %v9307, -inf
    %v10261 = vrot.slane %v10260, 4
    %v10262 = vmax.f32 %v10260, %v10261
    %v10263 = vrot.slane %v10262, 2
    %v10264 = vmax.f32 %v10262, %v10263
    %v10265 = vrot.slane %v10264, 1
    %v10266 = vmax.f32 %v10264, %v10265
    %v10267 = vsel %vm9538, %v9315, -inf
    %v10268 = vrot.slane %v10267, 4
    %v10269 = vmax.f32 %v10267, %v10268
    %v10270 = vrot.slane %v10269, 2
    %v10271 = vmax.f32 %v10269, %v10270
    %v10272 = vrot.slane %v10271, 1
    %v10273 = vmax.f32 %v10271, %v10272
    %v10274 = vsel %vm9538, %v9323, -inf
    %v10275 = vrot.slane %v10274, 4
    %v10276 = vmax.f32 %v10274, %v10275
    %v10277 = vrot.slane %v10276, 2
    %v10278 = vmax.f32 %v10276, %v10277
    %v10279 = vrot.slane %v10278, 1
    %v10280 = vmax.f32 %v10278, %v10279
    %v10281 = vsel %vm9538, %v9322, -inf
    %v10282 = vrot.slane %v10281, 4
    %v10283 = vmax.f32 %v10281, %v10282
    %v10284 = vrot.slane %v10283, 2
    %v10285 = vmax.f32 %v10283, %v10284
    %v10286 = vrot.slane %v10285, 1
    %v10287 = vmax.f32 %v10285, %v10286
    %v10288 = vsel %vm9538, %v9324, -inf
    %v10289 = vrot.slane %v10288, 4
    %v10290 = vmax.f32 %v10288, %v10289
    %v10291 = vrot.slane %v10290, 2
    %v10292 = vmax.f32 %v10290, %v10291
    %v10293 = vrot.slane %v10292, 1
    %v10294 = vmax.f32 %v10292, %v10293
    %v10295 = vsel %vm9538, %v9332, -inf
    %v10296 = vrot.slane %v10295, 4
    %v10297 = vmax.f32 %v10295, %v10296
    %v10298 = vrot.slane %v10297, 2
    %v10299 = vmax.f32 %v10297, %v10298
    %v10300 = vrot.slane %v10299, 1
    %v10301 = vmax.f32 %v10299, %v10300
    %v10302 = vsel %vm9538, %v9340, -inf
    %v10303 = vrot.slane %v10302, 4
    %v10304 = vmax.f32 %v10302, %v10303
    %v10305 = vrot.slane %v10304, 2
    %v10306 = vmax.f32 %v10304, %v10305
    %v10307 = vrot.slane %v10306, 1
    %v10308 = vmax.f32 %v10306, %v10307
    %v10309 = vsel %vm9538, %v9339, -inf
    %v10310 = vrot.slane %v10309, 4
    %v10311 = vmax.f32 %v10309, %v10310
    %v10312 = vrot.slane %v10311, 2
    %v10313 = vmax.f32 %v10311, %v10312
    %v10314 = vrot.slane %v10313, 1
    %v10315 = vmax.f32 %v10313, %v10314
    %v10316 = vsel %vm9538, %v9341, -inf
    %v10317 = vrot.slane %v10316, 4
    %v10318 = vmax.f32 %v10316, %v10317
    %v10319 = vrot.slane %v10318, 2
    %v10320 = vmax.f32 %v10318, %v10319
    %v10321 = vrot.slane %v10320, 1
    %v10322 = vmax.f32 %v10320, %v10321
    %v10323 = vsel %vm9538, %v9349, -inf
    %v10324 = vrot.slane %v10323, 4
    %v10325 = vmax.f32 %v10323, %v10324
    %v10326 = vrot.slane %v10325, 2
    %v10327 = vmax.f32 %v10325, %v10326
    %v10328 = vrot.slane %v10327, 1
    %v10329 = vmax.f32 %v10327, %v10328
    %v10330 = vsel %vm9538, %v9357, -inf
    %v10331 = vrot.slane %v10330, 4
    %v10332 = vmax.f32 %v10330, %v10331
    %v10333 = vrot.slane %v10332, 2
    %v10334 = vmax.f32 %v10332, %v10333
    %v10335 = vrot.slane %v10334, 1
    %v10336 = vmax.f32 %v10334, %v10335
    %v10337 = vsel %vm9538, %v9356, -inf
    %v10338 = vrot.slane %v10337, 4
    %v10339 = vmax.f32 %v10337, %v10338
    %v10340 = vrot.slane %v10339, 2
    %v10341 = vmax.f32 %v10339, %v10340
    %v10342 = vrot.slane %v10341, 1
    %v10343 = vmax.f32 %v10341, %v10342
    %v10344 = vsel %vm9538, %v9358, -inf
    %v10345 = vrot.slane %v10344, 4
    %v10346 = vmax.f32 %v10344, %v10345
    %v10347 = vrot.slane %v10346, 2
    %v10348 = vmax.f32 %v10346, %v10347
    %v10349 = vrot.slane %v10348, 1
    %v10350 = vmax.f32 %v10348, %v10349
    %v10351 = vsel %vm9538, %v9366, -inf
    %v10352 = vrot.slane %v10351, 4
    %v10353 = vmax.f32 %v10351, %v10352
    %v10354 = vrot.slane %v10353, 2
    %v10355 = vmax.f32 %v10353, %v10354
    %v10356 = vrot.slane %v10355, 1
    %v10357 = vmax.f32 %v10355, %v10356
    %v10358 = vsel %vm9538, %v9374, -inf
    %v10359 = vrot.slane %v10358, 4
    %v10360 = vmax.f32 %v10358, %v10359
    %v10361 = vrot.slane %v10360, 2
    %v10362 = vmax.f32 %v10360, %v10361
    %v10363 = vrot.slane %v10362, 1
    %v10364 = vmax.f32 %v10362, %v10363
    %v10365 = vsel %vm9538, %v9373, -inf
    %v10366 = vrot.slane %v10365, 4
    %v10367 = vmax.f32 %v10365, %v10366
    %v10368 = vrot.slane %v10367, 2
    %v10369 = vmax.f32 %v10367, %v10368
    %v10370 = vrot.slane %v10369, 1
    %v10371 = vmax.f32 %v10369, %v10370
    %v10372 = vsel %vm9538, %v9375, -inf
    %v10373 = vrot.slane %v10372, 4
    %v10374 = vmax.f32 %v10372, %v10373
    %v10375 = vrot.slane %v10374, 2
    %v10376 = vmax.f32 %v10374, %v10375
    %v10377 = vrot.slane %v10376, 1
    %v10378 = vmax.f32 %v10376, %v10377
    %v10379 = vsel %vm9538, %v9383, -inf
    %v10380 = vrot.slane %v10379, 4
    %v10381 = vmax.f32 %v10379, %v10380
    %v10382 = vrot.slane %v10381, 2
    %v10383 = vmax.f32 %v10381, %v10382
    %v10384 = vrot.slane %v10383, 1
    %v10385 = vmax.f32 %v10383, %v10384
    %v10386 = vsel %vm9538, %v9391, -inf
    %v10387 = vrot.slane %v10386, 4
    %v10388 = vmax.f32 %v10386, %v10387
    %v10389 = vrot.slane %v10388, 2
    %v10390 = vmax.f32 %v10388, %v10389
    %v10391 = vrot.slane %v10390, 1
    %v10392 = vmax.f32 %v10390, %v10391
    %v10393 = vsel %vm9538, %v9390, -inf
    %v10394 = vrot.slane %v10393, 4
    %v10395 = vmax.f32 %v10393, %v10394
    %v10396 = vrot.slane %v10395, 2
    %v10397 = vmax.f32 %v10395, %v10396
    %v10398 = vrot.slane %v10397, 1
    %v10399 = vmax.f32 %v10397, %v10398
    %v10400 = vsel %vm9538, %v9392, -inf
    %v10401 = vrot.slane %v10400, 4
    %v10402 = vmax.f32 %v10400, %v10401
    %v10403 = vrot.slane %v10402, 2
    %v10404 = vmax.f32 %v10402, %v10403
    %v10405 = vrot.slane %v10404, 1
    %v10406 = vmax.f32 %v10404, %v10405
    %v10407 = vsel %vm9538, %v9400, -inf
    %v10408 = vrot.slane %v10407, 4
    %v10409 = vmax.f32 %v10407, %v10408
    %v10410 = vrot.slane %v10409, 2
    %v10411 = vmax.f32 %v10409, %v10410
    %v10412 = vrot.slane %v10411, 1
    %v10413 = vmax.f32 %v10411, %v10412
    %v10414 = vsel %vm9538, %v9408, -inf
    %v10415 = vrot.slane %v10414, 4
    %v10416 = vmax.f32 %v10414, %v10415
    %v10417 = vrot.slane %v10416, 2
    %v10418 = vmax.f32 %v10416, %v10417
    %v10419 = vrot.slane %v10418, 1
    %v10420 = vmax.f32 %v10418, %v10419
    %v10421 = vsel %vm9538, %v9407, -inf
    %v10422 = vrot.slane %v10421, 4
    %v10423 = vmax.f32 %v10421, %v10422
    %v10424 = vrot.slane %v10423, 2
    %v10425 = vmax.f32 %v10423, %v10424
    %v10426 = vrot.slane %v10425, 1
    %v10427 = vmax.f32 %v10425, %v10426
    %v10428 = vsel %vm9538, %v9409, -inf
    %v10429 = vrot.slane %v10428, 4
    %v10430 = vmax.f32 %v10428, %v10429
    %v10431 = vrot.slane %v10430, 2
    %v10432 = vmax.f32 %v10430, %v10431
    %v10433 = vrot.slane %v10432, 1
    %v10434 = vmax.f32 %v10432, %v10433
    %v10435 = vpack.c.bf16 %v9545, %v9545
    %v10436 = vpack.c.bf16 %v9552, %v9552
    %v10437 = vpack.c.bf16 %v9559, %v9559
    %v10438 = vpack.c.bf16 %v9566, %v9566
    %v10439 = vpack.c.bf16 %v9573, %v9573
    %v10440 = vpack.c.bf16 %v9580, %v9580
    %v10441 = vpack.c.bf16 %v9587, %v9587
    %v10442 = vpack.c.bf16 %v9594, %v9594
    %v10443 = vpack.c.bf16 %v9601, %v9601
    %v10444 = vpack.c.bf16 %v9608, %v9608
    %v10445 = vpack.c.bf16 %v9615, %v9615
    %v10446 = vpack.c.bf16 %v9622, %v9622
    %v10447 = vpack.c.bf16 %v9629, %v9629
    %v10448 = vpack.c.bf16 %v9636, %v9636
    %v10449 = vpack.c.bf16 %v9643, %v9643
    %v10450 = vpack.c.bf16 %v9650, %v9650
    %v10451 = vpack.c.bf16 %v9657, %v9657
    %v10452 = vpack.c.bf16 %v9664, %v9664
    %v10453 = vpack.c.bf16 %v9671, %v9671
    %v10454 = vpack.c.bf16 %v9678, %v9678
    %v10455 = vpack.c.bf16 %v9685, %v9685
    %v10456 = vpack.c.bf16 %v9692, %v9692
    %v10457 = vpack.c.bf16 %v9699, %v9699
    %v10458 = vpack.c.bf16 %v9706, %v9706
    %v10459 = vpack.c.bf16 %v9713, %v9713
    %v10460 = vpack.c.bf16 %v9720, %v9720
    %v10461 = vpack.c.bf16 %v9727, %v9727
    %v10462 = vpack.c.bf16 %v9734, %v9734
    %v10463 = vpack.c.bf16 %v9741, %v9741
    %v10464 = vpack.c.bf16 %v9748, %v9748
    %v10465 = vpack.c.bf16 %v9755, %v9755
    %v10466 = vpack.c.bf16 %v9762, %v9762
    %v10467 = vpack.c.bf16 %v9769, %v9769
    %v10468 = vpack.c.bf16 %v9776, %v9776
    %v10469 = vpack.c.bf16 %v9783, %v9783
    %v10470 = vpack.c.bf16 %v9790, %v9790
    %v10471 = vpack.c.bf16 %v9797, %v9797
    %v10472 = vpack.c.bf16 %v9804, %v9804
    %v10473 = vpack.c.bf16 %v9811, %v9811
    %v10474 = vpack.c.bf16 %v9818, %v9818
    %v10475 = vpack.c.bf16 %v9825, %v9825
    %v10476 = vpack.c.bf16 %v9832, %v9832
    %v10477 = vpack.c.bf16 %v9839, %v9839
    %v10478 = vpack.c.bf16 %v9846, %v9846
    %v10479 = vpack.c.bf16 %v9853, %v9853
    %v10480 = vpack.c.bf16 %v9860, %v9860
    %v10481 = vpack.c.bf16 %v9867, %v9867
    %v10482 = vpack.c.bf16 %v9874, %v9874
    %v10483 = vpack.c.bf16 %v9881, %v9881
    %v10484 = vpack.c.bf16 %v9888, %v9888
    %v10485 = vpack.c.bf16 %v9895, %v9895
    %v10486 = vpack.c.bf16 %v9902, %v9902
    %v10487 = vpack.c.bf16 %v9909, %v9909
    %v10488 = vpack.c.bf16 %v9916, %v9916
    %v10489 = vpack.c.bf16 %v9923, %v9923
    %v10490 = vpack.c.bf16 %v9930, %v9930
    %v10491 = vpack.c.bf16 %v9937, %v9937
    %v10492 = vpack.c.bf16 %v9944, %v9944
    %v10493 = vpack.c.bf16 %v9951, %v9951
    %v10494 = vpack.c.bf16 %v9958, %v9958
    %v10495 = vpack.c.bf16 %v9965, %v9965
    %v10496 = vpack.c.bf16 %v9972, %v9972
    %v10497 = vpack.c.bf16 %v9979, %v9979
    %v10498 = vpack.c.bf16 %v9986, %v9986
    %v10499 = vpack.c.bf16 %v9993, %v9993
    %v10500 = vpack.c.bf16 %v10000, %v10000
    %v10501 = vpack.c.bf16 %v10007, %v10007
    %v10502 = vpack.c.bf16 %v10014, %v10014
    %v10503 = vpack.c.bf16 %v10021, %v10021
    %v10504 = vpack.c.bf16 %v10028, %v10028
    %v10505 = vpack.c.bf16 %v10035, %v10035
    %v10506 = vpack.c.bf16 %v10042, %v10042
    %v10507 = vpack.c.bf16 %v10049, %v10049
    %v10508 = vpack.c.bf16 %v10056, %v10056
    %v10509 = vpack.c.bf16 %v10063, %v10063
    %v10510 = vpack.c.bf16 %v10070, %v10070
    %v10511 = vpack.c.bf16 %v10077, %v10077
    %v10512 = vpack.c.bf16 %v10084, %v10084
    %v10513 = vpack.c.bf16 %v10091, %v10091
    %v10514 = vpack.c.bf16 %v10098, %v10098
    %v10515 = vpack.c.bf16 %v10105, %v10105
    %v10516 = vpack.c.bf16 %v10112, %v10112
    %v10517 = vpack.c.bf16 %v10119, %v10119
    %v10518 = vpack.c.bf16 %v10126, %v10126
    %v10519 = vpack.c.bf16 %v10133, %v10133
    %v10520 = vpack.c.bf16 %v10140, %v10140
    %v10521 = vpack.c.bf16 %v10147, %v10147
    %v10522 = vpack.c.bf16 %v10154, %v10154
    %v10523 = vpack.c.bf16 %v10161, %v10161
    %v10524 = vpack.c.bf16 %v10168, %v10168
    %v10525 = vpack.c.bf16 %v10175, %v10175
    %v10526 = vpack.c.bf16 %v10182, %v10182
    %v10527 = vpack.c.bf16 %v10189, %v10189
    %v10528 = vpack.c.bf16 %v10196, %v10196
    %v10529 = vpack.c.bf16 %v10203, %v10203
    %v10530 = vpack.c.bf16 %v10210, %v10210
    %v10531 = vpack.c.bf16 %v10217, %v10217
    %v10532 = vpack.c.bf16 %v10224, %v10224
    %v10533 = vpack.c.bf16 %v10231, %v10231
    %v10534 = vpack.c.bf16 %v10238, %v10238
    %v10535 = vpack.c.bf16 %v10245, %v10245
    %v10536 = vpack.c.bf16 %v10252, %v10252
    %v10537 = vpack.c.bf16 %v10259, %v10259
    %v10538 = vpack.c.bf16 %v10266, %v10266
    %v10539 = vpack.c.bf16 %v10273, %v10273
    %v10540 = vpack.c.bf16 %v10280, %v10280
    %v10541 = vpack.c.bf16 %v10287, %v10287
    %v10542 = vpack.c.bf16 %v10294, %v10294
    %v10543 = vpack.c.bf16 %v10301, %v10301
    %v10544 = vpack.c.bf16 %v10308, %v10308
    %v10545 = vpack.c.bf16 %v10315, %v10315
    %v10546 = vpack.c.bf16 %v10322, %v10322
    %v10547 = vpack.c.bf16 %v10329, %v10329
    %v10548 = vpack.c.bf16 %v10336, %v10336
    %v10549 = vpack.c.bf16 %v10343, %v10343
    %v10550 = vpack.c.bf16 %v10350, %v10350
    %v10551 = vpack.c.bf16 %v10357, %v10357
    %v10552 = vpack.c.bf16 %v10364, %v10364
    %v10553 = vpack.c.bf16 %v10371, %v10371
    %v10554 = vpack.c.bf16 %v10378, %v10378
    %v10555 = vpack.c.bf16 %v10385, %v10385
    %v10556 = vpack.c.bf16 %v10392, %v10392
    %v10557 = vpack.c.bf16 %v10399, %v10399
    %v10558 = vpack.c.bf16 %v10406, %v10406
    %v10559 = vpack.c.bf16 %v10413, %v10413
    %v10560 = vpack.c.bf16 %v10420, %v10420
    %v10561 = vpack.c.bf16 %v10427, %v10427
    %v10562 = vpack.c.bf16 %v10434, %v10434
    %v10691 = vunpack.c.l.b16 %v10435
    %v10692 = vunpack.c.l.b16 %v10436
    %v10693 = vunpack.c.l.b16 %v10437
    %v10694 = vunpack.c.l.b16 %v10438
    %v10695 = vunpack.c.l.b16 %v10439
    %v10696 = vunpack.c.l.b16 %v10440
    %v10697 = vunpack.c.l.b16 %v10441
    %v10698 = vunpack.c.l.b16 %v10442
    %v10699 = vunpack.c.l.b16 %v10443
    %v10700 = vunpack.c.l.b16 %v10444
    %v10701 = vunpack.c.l.b16 %v10445
    %v10702 = vunpack.c.l.b16 %v10446
    %v10703 = vunpack.c.l.b16 %v10447
    %v10704 = vunpack.c.l.b16 %v10448
    %v10705 = vunpack.c.l.b16 %v10449
    %v10706 = vunpack.c.l.b16 %v10450
    %v10707 = vunpack.c.l.b16 %v10451
    %v10708 = vunpack.c.l.b16 %v10452
    %v10709 = vunpack.c.l.b16 %v10453
    %v10710 = vunpack.c.l.b16 %v10454
    %v10711 = vunpack.c.l.b16 %v10455
    %v10712 = vunpack.c.l.b16 %v10456
    %v10713 = vunpack.c.l.b16 %v10457
    %v10714 = vunpack.c.l.b16 %v10458
    %v10715 = vunpack.c.l.b16 %v10459
    %v10716 = vunpack.c.l.b16 %v10460
    %v10717 = vunpack.c.l.b16 %v10461
    %v10718 = vunpack.c.l.b16 %v10462
    %v10719 = vunpack.c.l.b16 %v10463
    %v10720 = vunpack.c.l.b16 %v10464
    %v10721 = vunpack.c.l.b16 %v10465
    %v10722 = vunpack.c.l.b16 %v10466
    %v10723 = vunpack.c.l.b16 %v10467
    %v10724 = vunpack.c.l.b16 %v10468
    %v10725 = vunpack.c.l.b16 %v10469
    %v10726 = vunpack.c.l.b16 %v10470
    %v10727 = vunpack.c.l.b16 %v10471
    %v10728 = vunpack.c.l.b16 %v10472
    %v10729 = vunpack.c.l.b16 %v10473
    %v10730 = vunpack.c.l.b16 %v10474
    %v10731 = vunpack.c.l.b16 %v10475
    %v10732 = vunpack.c.l.b16 %v10476
    %v10733 = vunpack.c.l.b16 %v10477
    %v10734 = vunpack.c.l.b16 %v10478
    %v10735 = vunpack.c.l.b16 %v10479
    %v10736 = vunpack.c.l.b16 %v10480
    %v10737 = vunpack.c.l.b16 %v10481
    %v10738 = vunpack.c.l.b16 %v10482
    %v10739 = vunpack.c.l.b16 %v10483
    %v10740 = vunpack.c.l.b16 %v10484
    %v10741 = vunpack.c.l.b16 %v10485
    %v10742 = vunpack.c.l.b16 %v10486
    %v10743 = vunpack.c.l.b16 %v10487
    %v10744 = vunpack.c.l.b16 %v10488
    %v10745 = vunpack.c.l.b16 %v10489
    %v10746 = vunpack.c.l.b16 %v10490
    %v10747 = vunpack.c.l.b16 %v10491
    %v10748 = vunpack.c.l.b16 %v10492
    %v10749 = vunpack.c.l.b16 %v10493
    %v10750 = vunpack.c.l.b16 %v10494
    %v10751 = vunpack.c.l.b16 %v10495
    %v10752 = vunpack.c.l.b16 %v10496
    %v10753 = vunpack.c.l.b16 %v10497
    %v10754 = vunpack.c.l.b16 %v10498
    %v10755 = vunpack.c.l.b16 %v10499
    %v10756 = vunpack.c.l.b16 %v10500
    %v10757 = vunpack.c.l.b16 %v10501
    %v10758 = vunpack.c.l.b16 %v10502
    %v10759 = vunpack.c.l.b16 %v10503
    %v10760 = vunpack.c.l.b16 %v10504
    %v10761 = vunpack.c.l.b16 %v10505
    %v10762 = vunpack.c.l.b16 %v10506
    %v10763 = vunpack.c.l.b16 %v10507
    %v10764 = vunpack.c.l.b16 %v10508
    %v10765 = vunpack.c.l.b16 %v10509
    %v10766 = vunpack.c.l.b16 %v10510
    %v10767 = vunpack.c.l.b16 %v10511
    %v10768 = vunpack.c.l.b16 %v10512
    %v10769 = vunpack.c.l.b16 %v10513
    %v10770 = vunpack.c.l.b16 %v10514
    %v10771 = vunpack.c.l.b16 %v10515
    %v10772 = vunpack.c.l.b16 %v10516
    %v10773 = vunpack.c.l.b16 %v10517
    %v10774 = vunpack.c.l.b16 %v10518
    %v10775 = vunpack.c.l.b16 %v10519
    %v10776 = vunpack.c.l.b16 %v10520
    %v10777 = vunpack.c.l.b16 %v10521
    %v10778 = vunpack.c.l.b16 %v10522
    %v10779 = vunpack.c.l.b16 %v10523
    %v10780 = vunpack.c.l.b16 %v10524
    %v10781 = vunpack.c.l.b16 %v10525
    %v10782 = vunpack.c.l.b16 %v10526
    %v10783 = vunpack.c.l.b16 %v10527
    %v10784 = vunpack.c.l.b16 %v10528
    %v10785 = vunpack.c.l.b16 %v10529
    %v10786 = vunpack.c.l.b16 %v10530
    %v10787 = vunpack.c.l.b16 %v10531
    %v10788 = vunpack.c.l.b16 %v10532
    %v10789 = vunpack.c.l.b16 %v10533
    %v10790 = vunpack.c.l.b16 %v10534
    %v10791 = vunpack.c.l.b16 %v10535
    %v10792 = vunpack.c.l.b16 %v10536
    %v10793 = vunpack.c.l.b16 %v10537
    %v10794 = vunpack.c.l.b16 %v10538
    %v10795 = vunpack.c.l.b16 %v10539
    %v10796 = vunpack.c.l.b16 %v10540
    %v10797 = vunpack.c.l.b16 %v10541
    %v10798 = vunpack.c.l.b16 %v10542
    %v10799 = vunpack.c.l.b16 %v10543
    %v10800 = vunpack.c.l.b16 %v10544
    %v10801 = vunpack.c.l.b16 %v10545
    %v10802 = vunpack.c.l.b16 %v10546
    %v10803 = vunpack.c.l.b16 %v10547
    %v10804 = vunpack.c.l.b16 %v10548
    %v10805 = vunpack.c.l.b16 %v10549
    %v10806 = vunpack.c.l.b16 %v10550
    %v10807 = vunpack.c.l.b16 %v10551
    %v10808 = vunpack.c.l.b16 %v10552
    %v10809 = vunpack.c.l.b16 %v10553
    %v10810 = vunpack.c.l.b16 %v10554
    %v10811 = vunpack.c.l.b16 %v10555
    %v10812 = vunpack.c.l.b16 %v10556
    %v10813 = vunpack.c.l.b16 %v10557
    %v10814 = vunpack.c.l.b16 %v10558
    %v10815 = vunpack.c.l.b16 %v10559
    %v10816 = vunpack.c.l.b16 %v10560
    %v10817 = vunpack.c.l.b16 %v10561
    %v10818 = vunpack.c.l.b16 %v10562
    %v10819 = vpack.c.b16 %v10691, %v10691
    %v10820 = vpack.c.b16 %v10692, %v10692
    %v10821 = vpack.c.b16 %v10693, %v10693
    %v10822 = vpack.c.b16 %v10694, %v10694
    %v10823 = vpack.c.b16 %v10695, %v10695
    %v10824 = vpack.c.b16 %v10696, %v10696
    %v10825 = vpack.c.b16 %v10697, %v10697
    %v10826 = vpack.c.b16 %v10698, %v10698
    %v10827 = vpack.c.b16 %v10699, %v10699
    %v10828 = vpack.c.b16 %v10700, %v10700
    %v10829 = vpack.c.b16 %v10701, %v10701
    %v10830 = vpack.c.b16 %v10702, %v10702
    %v10831 = vpack.c.b16 %v10703, %v10703
    %v10832 = vpack.c.b16 %v10704, %v10704
    %v10833 = vpack.c.b16 %v10705, %v10705
    %v10834 = vpack.c.b16 %v10706, %v10706
    %v10835 = vpack.c.b16 %v10707, %v10707
    %v10836 = vpack.c.b16 %v10708, %v10708
    %v10837 = vpack.c.b16 %v10709, %v10709
    %v10838 = vpack.c.b16 %v10710, %v10710
    %v10839 = vpack.c.b16 %v10711, %v10711
    %v10840 = vpack.c.b16 %v10712, %v10712
    %v10841 = vpack.c.b16 %v10713, %v10713
    %v10842 = vpack.c.b16 %v10714, %v10714
    %v10843 = vpack.c.b16 %v10715, %v10715
    %v10844 = vpack.c.b16 %v10716, %v10716
    %v10845 = vpack.c.b16 %v10717, %v10717
    %v10846 = vpack.c.b16 %v10718, %v10718
    %v10847 = vpack.c.b16 %v10719, %v10719
    %v10848 = vpack.c.b16 %v10720, %v10720
    %v10849 = vpack.c.b16 %v10721, %v10721
    %v10850 = vpack.c.b16 %v10722, %v10722
    %v10851 = vpack.c.b16 %v10723, %v10723
    %v10852 = vpack.c.b16 %v10724, %v10724
    %v10853 = vpack.c.b16 %v10725, %v10725
    %v10854 = vpack.c.b16 %v10726, %v10726
    %v10855 = vpack.c.b16 %v10727, %v10727
    %v10856 = vpack.c.b16 %v10728, %v10728
    %v10857 = vpack.c.b16 %v10729, %v10729
    %v10858 = vpack.c.b16 %v10730, %v10730
    %v10859 = vpack.c.b16 %v10731, %v10731
    %v10860 = vpack.c.b16 %v10732, %v10732
    %v10861 = vpack.c.b16 %v10733, %v10733
    %v10862 = vpack.c.b16 %v10734, %v10734
    %v10863 = vpack.c.b16 %v10735, %v10735
    %v10864 = vpack.c.b16 %v10736, %v10736
    %v10865 = vpack.c.b16 %v10737, %v10737
    %v10866 = vpack.c.b16 %v10738, %v10738
    %v10867 = vpack.c.b16 %v10739, %v10739
    %v10868 = vpack.c.b16 %v10740, %v10740
    %v10869 = vpack.c.b16 %v10741, %v10741
    %v10870 = vpack.c.b16 %v10742, %v10742
    %v10871 = vpack.c.b16 %v10743, %v10743
    %v10872 = vpack.c.b16 %v10744, %v10744
    %v10873 = vpack.c.b16 %v10745, %v10745
    %v10874 = vpack.c.b16 %v10746, %v10746
    %v10875 = vpack.c.b16 %v10747, %v10747
    %v10876 = vpack.c.b16 %v10748, %v10748
    %v10877 = vpack.c.b16 %v10749, %v10749
    %v10878 = vpack.c.b16 %v10750, %v10750
    %v10879 = vpack.c.b16 %v10751, %v10751
    %v10880 = vpack.c.b16 %v10752, %v10752
    %v10881 = vpack.c.b16 %v10753, %v10753
    %v10882 = vpack.c.b16 %v10754, %v10754
    %v10883 = vpack.c.b16 %v10755, %v10755
    %v10884 = vpack.c.b16 %v10756, %v10756
    %v10885 = vpack.c.b16 %v10757, %v10757
    %v10886 = vpack.c.b16 %v10758, %v10758
    %v10887 = vpack.c.b16 %v10759, %v10759
    %v10888 = vpack.c.b16 %v10760, %v10760
    %v10889 = vpack.c.b16 %v10761, %v10761
    %v10890 = vpack.c.b16 %v10762, %v10762
    %v10891 = vpack.c.b16 %v10763, %v10763
    %v10892 = vpack.c.b16 %v10764, %v10764
    %v10893 = vpack.c.b16 %v10765, %v10765
    %v10894 = vpack.c.b16 %v10766, %v10766
    %v10895 = vpack.c.b16 %v10767, %v10767
    %v10896 = vpack.c.b16 %v10768, %v10768
    %v10897 = vpack.c.b16 %v10769, %v10769
    %v10898 = vpack.c.b16 %v10770, %v10770
    %v10899 = vpack.c.b16 %v10771, %v10771
    %v10900 = vpack.c.b16 %v10772, %v10772
    %v10901 = vpack.c.b16 %v10773, %v10773
    %v10902 = vpack.c.b16 %v10774, %v10774
    %v10903 = vpack.c.b16 %v10775, %v10775
    %v10904 = vpack.c.b16 %v10776, %v10776
    %v10905 = vpack.c.b16 %v10777, %v10777
    %v10906 = vpack.c.b16 %v10778, %v10778
    %v10907 = vpack.c.b16 %v10779, %v10779
    %v10908 = vpack.c.b16 %v10780, %v10780
    %v10909 = vpack.c.b16 %v10781, %v10781
    %v10910 = vpack.c.b16 %v10782, %v10782
    %v10911 = vpack.c.b16 %v10783, %v10783
    %v10912 = vpack.c.b16 %v10784, %v10784
    %v10913 = vpack.c.b16 %v10785, %v10785
    %v10914 = vpack.c.b16 %v10786, %v10786
    %v10915 = vpack.c.b16 %v10787, %v10787
    %v10916 = vpack.c.b16 %v10788, %v10788
    %v10917 = vpack.c.b16 %v10789, %v10789
    %v10918 = vpack.c.b16 %v10790, %v10790
    %v10919 = vpack.c.b16 %v10791, %v10791
    %v10920 = vpack.c.b16 %v10792, %v10792
    %v10921 = vpack.c.b16 %v10793, %v10793
    %v10922 = vpack.c.b16 %v10794, %v10794
    %v10923 = vpack.c.b16 %v10795, %v10795
    %v10924 = vpack.c.b16 %v10796, %v10796
    %v10925 = vpack.c.b16 %v10797, %v10797
    %v10926 = vpack.c.b16 %v10798, %v10798
    %v10927 = vpack.c.b16 %v10799, %v10799
    %v10928 = vpack.c.b16 %v10800, %v10800
    %v10929 = vpack.c.b16 %v10801, %v10801
    %v10930 = vpack.c.b16 %v10802, %v10802
    %v10931 = vpack.c.b16 %v10803, %v10803
    %v10932 = vpack.c.b16 %v10804, %v10804
    %v10933 = vpack.c.b16 %v10805, %v10805
    %v10934 = vpack.c.b16 %v10806, %v10806
    %v10935 = vpack.c.b16 %v10807, %v10807
    %v10936 = vpack.c.b16 %v10808, %v10808
    %v10937 = vpack.c.b16 %v10809, %v10809
    %v10938 = vpack.c.b16 %v10810, %v10810
    %v10939 = vpack.c.b16 %v10811, %v10811
    %v10940 = vpack.c.b16 %v10812, %v10812
    %v10941 = vpack.c.b16 %v10813, %v10813
    %v10942 = vpack.c.b16 %v10814, %v10814
    %v10943 = vpack.c.b16 %v10815, %v10815
    %v10944 = vpack.c.b16 %v10816, %v10816
    %v10945 = vpack.c.b16 %v10817, %v10817
    %v10946 = vpack.c.b16 %v10818, %v10818
    %v10947 = vunpack.c.l.b16 %v10819
    %v10948 = vunpack.c.l.b16 %v10820
    %v10949 = vunpack.c.l.b16 %v10821
    %v10950 = vunpack.c.l.b16 %v10822
    %v10951 = vunpack.c.l.b16 %v10823
    %v10952 = vunpack.c.l.b16 %v10824
    %v10953 = vunpack.c.l.b16 %v10825
    %v10954 = vunpack.c.l.b16 %v10826
    %v10955 = vunpack.c.l.b16 %v10827
    %v10956 = vunpack.c.l.b16 %v10828
    %v10957 = vunpack.c.l.b16 %v10829
    %v10958 = vunpack.c.l.b16 %v10830
    %v10959 = vunpack.c.l.b16 %v10831
    %v10960 = vunpack.c.l.b16 %v10832
    %v10961 = vunpack.c.l.b16 %v10833
    %v10962 = vunpack.c.l.b16 %v10834
    %v10963 = vunpack.c.l.b16 %v10835
    %v10964 = vunpack.c.l.b16 %v10836
    %v10965 = vunpack.c.l.b16 %v10837
    %v10966 = vunpack.c.l.b16 %v10838
    %v10967 = vunpack.c.l.b16 %v10839
    %v10968 = vunpack.c.l.b16 %v10840
    %v10969 = vunpack.c.l.b16 %v10841
    %v10970 = vunpack.c.l.b16 %v10842
    %v10971 = vunpack.c.l.b16 %v10843
    %v10972 = vunpack.c.l.b16 %v10844
    %v10973 = vunpack.c.l.b16 %v10845
    %v10974 = vunpack.c.l.b16 %v10846
    %v10975 = vunpack.c.l.b16 %v10847
    %v10976 = vunpack.c.l.b16 %v10848
    %v10977 = vunpack.c.l.b16 %v10849
    %v10978 = vunpack.c.l.b16 %v10850
    %v10979 = vunpack.c.l.b16 %v10851
    %v10980 = vunpack.c.l.b16 %v10852
    %v10981 = vunpack.c.l.b16 %v10853
    %v10982 = vunpack.c.l.b16 %v10854
    %v10983 = vunpack.c.l.b16 %v10855
    %v10984 = vunpack.c.l.b16 %v10856
    %v10985 = vunpack.c.l.b16 %v10857
    %v10986 = vunpack.c.l.b16 %v10858
    %v10987 = vunpack.c.l.b16 %v10859
    %v10988 = vunpack.c.l.b16 %v10860
    %v10989 = vunpack.c.l.b16 %v10861
    %v10990 = vunpack.c.l.b16 %v10862
    %v10991 = vunpack.c.l.b16 %v10863
    %v10992 = vunpack.c.l.b16 %v10864
    %v10993 = vunpack.c.l.b16 %v10865
    %v10994 = vunpack.c.l.b16 %v10866
    %v10995 = vunpack.c.l.b16 %v10867
    %v10996 = vunpack.c.l.b16 %v10868
    %v10997 = vunpack.c.l.b16 %v10869
    %v10998 = vunpack.c.l.b16 %v10870
    %v10999 = vunpack.c.l.b16 %v10871
    %v11000 = vunpack.c.l.b16 %v10872
    %v11001 = vunpack.c.l.b16 %v10873
    %v11002 = vunpack.c.l.b16 %v10874
    %v11003 = vunpack.c.l.b16 %v10875
    %v11004 = vunpack.c.l.b16 %v10876
    %v11005 = vunpack.c.l.b16 %v10877
    %v11006 = vunpack.c.l.b16 %v10878
    %v11007 = vunpack.c.l.b16 %v10879
    %v11008 = vunpack.c.l.b16 %v10880
    %v11009 = vunpack.c.l.b16 %v10881
    %v11010 = vunpack.c.l.b16 %v10882
    %v11011 = vunpack.c.l.b16 %v10883
    %v11012 = vunpack.c.l.b16 %v10884
    %v11013 = vunpack.c.l.b16 %v10885
    %v11014 = vunpack.c.l.b16 %v10886
    %v11015 = vunpack.c.l.b16 %v10887
    %v11016 = vunpack.c.l.b16 %v10888
    %v11017 = vunpack.c.l.b16 %v10889
    %v11018 = vunpack.c.l.b16 %v10890
    %v11019 = vunpack.c.l.b16 %v10891
    %v11020 = vunpack.c.l.b16 %v10892
    %v11021 = vunpack.c.l.b16 %v10893
    %v11022 = vunpack.c.l.b16 %v10894
    %v11023 = vunpack.c.l.b16 %v10895
    %v11024 = vunpack.c.l.b16 %v10896
    %v11025 = vunpack.c.l.b16 %v10897
    %v11026 = vunpack.c.l.b16 %v10898
    %v11027 = vunpack.c.l.b16 %v10899
    %v11028 = vunpack.c.l.b16 %v10900
    %v11029 = vunpack.c.l.b16 %v10901
    %v11030 = vunpack.c.l.b16 %v10902
    %v11031 = vunpack.c.l.b16 %v10903
    %v11032 = vunpack.c.l.b16 %v10904
    %v11033 = vunpack.c.l.b16 %v10905
    %v11034 = vunpack.c.l.b16 %v10906
    %v11035 = vunpack.c.l.b16 %v10907
    %v11036 = vunpack.c.l.b16 %v10908
    %v11037 = vunpack.c.l.b16 %v10909
    %v11038 = vunpack.c.l.b16 %v10910
    %v11039 = vunpack.c.l.b16 %v10911
    %v11040 = vunpack.c.l.b16 %v10912
    %v11041 = vunpack.c.l.b16 %v10913
    %v11042 = vunpack.c.l.b16 %v10914
    %v11043 = vunpack.c.l.b16 %v10915
    %v11044 = vunpack.c.l.b16 %v10916
    %v11045 = vunpack.c.l.b16 %v10917
    %v11046 = vunpack.c.l.b16 %v10918
    %v11047 = vunpack.c.l.b16 %v10919
    %v11048 = vunpack.c.l.b16 %v10920
    %v11049 = vunpack.c.l.b16 %v10921
    %v11050 = vunpack.c.l.b16 %v10922
    %v11051 = vunpack.c.l.b16 %v10923
    %v11052 = vunpack.c.l.b16 %v10924
    %v11053 = vunpack.c.l.b16 %v10925
    %v11054 = vunpack.c.l.b16 %v10926
    %v11055 = vunpack.c.l.b16 %v10927
    %v11056 = vunpack.c.l.b16 %v10928
    %v11057 = vunpack.c.l.b16 %v10929
    %v11058 = vunpack.c.l.b16 %v10930
    %v11059 = vunpack.c.l.b16 %v10931
    %v11060 = vunpack.c.l.b16 %v10932
    %v11061 = vunpack.c.l.b16 %v10933
    %v11062 = vunpack.c.l.b16 %v10934
    %v11063 = vunpack.c.l.b16 %v10935
    %v11064 = vunpack.c.l.b16 %v10936
    %v11065 = vunpack.c.l.b16 %v10937
    %v11066 = vunpack.c.l.b16 %v10938
    %v11067 = vunpack.c.l.b16 %v10939
    %v11068 = vunpack.c.l.b16 %v10940
    %v11069 = vunpack.c.l.b16 %v10941
    %v11070 = vunpack.c.l.b16 %v10942
    %v11071 = vunpack.c.l.b16 %v10943
    %v11072 = vunpack.c.l.b16 %v10944
    %v11073 = vunpack.c.l.b16 %v10945
    %v11074 = vunpack.c.l.b16 %v10946
    %v11075 = vsel %vm7603, %v10948, %v10947
    %v11076 = vsel %vm7605, %v10949, %v11075
    %v11077 = vsel %vm7607, %v10950, %v11076
    %v11078 = vsel %vm7609, %v10951, %v11077
    %v11079 = vsel %vm7611, %v10952, %v11078
    %v11080 = vsel %vm7613, %v10953, %v11079
    %v11081 = vsel %vm7615, %v10955, %v10954
    %v11082 = vsel %vm7603, %v10956, %v11081
    %v11083 = vsel %vm7605, %v10957, %v11082
    %v11084 = vsel %vm7607, %v10958, %v11083
    %v11085 = vsel %vm7609, %v10959, %v11084
    %v11086 = vsel %vm7611, %v10960, %v11085
    %v11087 = vsel %vm7613, %v10961, %v11086
    %v11088 = vsel %vm7603, %v10964, %v10963
    %v11089 = vsel %vm7605, %v10965, %v11088
    %v11090 = vsel %vm7607, %v10966, %v11089
    %v11091 = vsel %vm7609, %v10967, %v11090
    %v11092 = vsel %vm7611, %v10968, %v11091
    %v11093 = vsel %vm7613, %v10969, %v11092
    %v11094 = vsel %vm7615, %v10971, %v10970
    %v11095 = vsel %vm7603, %v10972, %v11094
    %v11096 = vsel %vm7605, %v10973, %v11095
    %v11097 = vsel %vm7607, %v10974, %v11096
    %v11098 = vsel %vm7609, %v10975, %v11097
    %v11099 = vsel %vm7611, %v10976, %v11098
    %v11100 = vsel %vm7613, %v10977, %v11099
    %v11101 = vsel %vm7603, %v10980, %v10979
    %v11102 = vsel %vm7605, %v10981, %v11101
    %v11103 = vsel %vm7607, %v10982, %v11102
    %v11104 = vsel %vm7609, %v10983, %v11103
    %v11105 = vsel %vm7611, %v10984, %v11104
    %v11106 = vsel %vm7613, %v10985, %v11105
    %v11107 = vsel %vm7615, %v10987, %v10986
    %v11108 = vsel %vm7603, %v10988, %v11107
    %v11109 = vsel %vm7605, %v10989, %v11108
    %v11110 = vsel %vm7607, %v10990, %v11109
    %v11111 = vsel %vm7609, %v10991, %v11110
    %v11112 = vsel %vm7611, %v10992, %v11111
    %v11113 = vsel %vm7613, %v10993, %v11112
    %v11114 = vsel %vm7603, %v10996, %v10995
    %v11115 = vsel %vm7605, %v10997, %v11114
    %v11116 = vsel %vm7607, %v10998, %v11115
    %v11117 = vsel %vm7609, %v10999, %v11116
    %v11118 = vsel %vm7611, %v11000, %v11117
    %v11119 = vsel %vm7613, %v11001, %v11118
    %v11120 = vsel %vm7615, %v11003, %v11002
    %v11121 = vsel %vm7603, %v11004, %v11120
    %v11122 = vsel %vm7605, %v11005, %v11121
    %v11123 = vsel %vm7607, %v11006, %v11122
    %v11124 = vsel %vm7609, %v11007, %v11123
    %v11125 = vsel %vm7611, %v11008, %v11124
    %v11126 = vsel %vm7613, %v11009, %v11125
    %v11127 = vsel %vm7603, %v11012, %v11011
    %v11128 = vsel %vm7605, %v11013, %v11127
    %v11129 = vsel %vm7607, %v11014, %v11128
    %v11130 = vsel %vm7609, %v11015, %v11129
    %v11131 = vsel %vm7611, %v11016, %v11130
    %v11132 = vsel %vm7613, %v11017, %v11131
    %v11133 = vsel %vm7615, %v11019, %v11018
    %v11134 = vsel %vm7603, %v11020, %v11133
    %v11135 = vsel %vm7605, %v11021, %v11134
    %v11136 = vsel %vm7607, %v11022, %v11135
    %v11137 = vsel %vm7609, %v11023, %v11136
    %v11138 = vsel %vm7611, %v11024, %v11137
    %v11139 = vsel %vm7613, %v11025, %v11138
    %v11140 = vsel %vm7603, %v11028, %v11027
    %v11141 = vsel %vm7605, %v11029, %v11140
    %v11142 = vsel %vm7607, %v11030, %v11141
    %v11143 = vsel %vm7609, %v11031, %v11142
    %v11144 = vsel %vm7611, %v11032, %v11143
    %v11145 = vsel %vm7613, %v11033, %v11144
    %v11146 = vsel %vm7615, %v11035, %v11034
    %v11147 = vsel %vm7603, %v11036, %v11146
    %v11148 = vsel %vm7605, %v11037, %v11147
    %v11149 = vsel %vm7607, %v11038, %v11148
    %v11150 = vsel %vm7609, %v11039, %v11149
    %v11151 = vsel %vm7611, %v11040, %v11150
    %v11152 = vsel %vm7613, %v11041, %v11151
    %v11153 = vsel %vm7603, %v11044, %v11043
    %v11154 = vsel %vm7605, %v11045, %v11153
    %v11155 = vsel %vm7607, %v11046, %v11154
    %v11156 = vsel %vm7609, %v11047, %v11155
    %v11157 = vsel %vm7611, %v11048, %v11156
    %v11158 = vsel %vm7613, %v11049, %v11157
    %v11159 = vsel %vm7615, %v11051, %v11050
    %v11160 = vsel %vm7603, %v11052, %v11159
    %v11161 = vsel %vm7605, %v11053, %v11160
    %v11162 = vsel %vm7607, %v11054, %v11161
    %v11163 = vsel %vm7609, %v11055, %v11162
    %v11164 = vsel %vm7611, %v11056, %v11163
    %v11165 = vsel %vm7613, %v11057, %v11164
    %v11166 = vsel %vm7603, %v11060, %v11059
    %v11167 = vsel %vm7605, %v11061, %v11166
    %v11168 = vsel %vm7607, %v11062, %v11167
    %v11169 = vsel %vm7609, %v11063, %v11168
    %v11170 = vsel %vm7611, %v11064, %v11169
    %v11171 = vsel %vm7613, %v11065, %v11170
    %v11172 = vsel %vm7615, %v11067, %v11066
    %v11173 = vsel %vm7603, %v11068, %v11172
    %v11174 = vsel %vm7605, %v11069, %v11173
    %v11175 = vsel %vm7607, %v11070, %v11174
    %v11176 = vsel %vm7609, %v11071, %v11175
    %v11177 = vsel %vm7611, %v11072, %v11176
    %v11178 = vsel %vm7613, %v11073, %v11177
    %v11179 = vpack.c.b16 %v11080, %v11080
    %v11180 = vpack.c.b16 %v11087, %v11087
    %v11181 = vpack.c.b16 %v10962, %v10962
    %v11182 = vpack.c.b16 %v11093, %v11093
    %v11183 = vpack.c.b16 %v11100, %v11100
    %v11184 = vpack.c.b16 %v10978, %v10978
    %v11185 = vpack.c.b16 %v11106, %v11106
    %v11186 = vpack.c.b16 %v11113, %v11113
    %v11187 = vpack.c.b16 %v10994, %v10994
    %v11188 = vpack.c.b16 %v11119, %v11119
    %v11189 = vpack.c.b16 %v11126, %v11126
    %v11190 = vpack.c.b16 %v11010, %v11010
    %v11191 = vpack.c.b16 %v11132, %v11132
    %v11192 = vpack.c.b16 %v11139, %v11139
    %v11193 = vpack.c.b16 %v11026, %v11026
    %v11194 = vpack.c.b16 %v11145, %v11145
    %v11195 = vpack.c.b16 %v11152, %v11152
    %v11196 = vpack.c.b16 %v11042, %v11042
    %v11197 = vpack.c.b16 %v11158, %v11158
    %v11198 = vpack.c.b16 %v11165, %v11165
    %v11199 = vpack.c.b16 %v11058, %v11058
    %v11200 = vpack.c.b16 %v11171, %v11171
    %v11201 = vpack.c.b16 %v11178, %v11178
    %v11202 = vpack.c.b16 %v11074, %v11074
    %vm11227 = vcmask 519168
    %vm11228 = vmand %vm11227, %vm72
    %v11229 = vld [vmem:[#allocation4] sm:$0xf]
    %v11230 = vsel %vm11228, %v11179, %v11229
    %11231 = vst [vmem:[#allocation4] sm:$0xf] %v11230
    %vm11232 = vcmask 519168
    %11233 = vst.msk [vmem:[#allocation4 + $0x4] sm:$0xf] %vm11232, %v11180
    %v11234 = vld [vmem:[#allocation4 + $0x8] sm:$0x1]
    %v11235 = vsel %vm99, %v11181, %v11234
    %11236 = vst [vmem:[#allocation4 + $0x8] sm:$0x1] %v11235
    %v11237 = vld [vmem:[#allocation4 + $0xc] sm:$0xf]
    %v11238 = vsel %vm11228, %v11182, %v11237
    %11239 = vst [vmem:[#allocation4 + $0xc] sm:$0xf] %v11238
    %11240 = vst.msk [vmem:[#allocation4 + $0x10] sm:$0xf] %vm11232, %v11183
    %v11241 = vld [vmem:[#allocation4 + $0x14] sm:$0x1]
    %v11242 = vsel %vm99, %v11184, %v11241
    %11243 = vst [vmem:[#allocation4 + $0x14] sm:$0x1] %v11242
    %v11244 = vld [vmem:[#allocation4 + $0x18] sm:$0xf]
    %v11245 = vsel %vm11228, %v11185, %v11244
    %11246 = vst [vmem:[#allocation4 + $0x18] sm:$0xf] %v11245
    %11247 = vst.msk [vmem:[#allocation4 + $0x1c] sm:$0xf] %vm11232, %v11186
    %v11248 = vld [vmem:[#allocation4 + $0x20] sm:$0x1]
    %v11249 = vsel %vm99, %v11187, %v11248
    %11250 = vst [vmem:[#allocation4 + $0x20] sm:$0x1] %v11249
    %v11251 = vld [vmem:[#allocation4 + $0x24] sm:$0xf]
    %v11252 = vsel %vm11228, %v11188, %v11251
    %11253 = vst [vmem:[#allocation4 + $0x24] sm:$0xf] %v11252
    %11254 = vst.msk [vmem:[#allocation4 + $0x28] sm:$0xf] %vm11232, %v11189
    %v11255 = vld [vmem:[#allocation4 + $0x2c] sm:$0x1]
    %v11256 = vsel %vm99, %v11190, %v11255
    %11257 = vst [vmem:[#allocation4 + $0x2c] sm:$0x1] %v11256
    %v11258 = vld [vmem:[#allocation4 + $0x30] sm:$0xf]
    %v11259 = vsel %vm11228, %v11191, %v11258
    %11260 = vst [vmem:[#allocation4 + $0x30] sm:$0xf] %v11259
    %11261 = vst.msk [vmem:[#allocation4 + $0x34] sm:$0xf] %vm11232, %v11192
    %v11262 = vld [vmem:[#allocation4 + $0x38] sm:$0x1]
    %v11263 = vsel %vm99, %v11193, %v11262
    %11264 = vst [vmem:[#allocation4 + $0x38] sm:$0x1] %v11263
    %v11265 = vld [vmem:[#allocation4 + $0x3c] sm:$0xf]
    %v11266 = vsel %vm11228, %v11194, %v11265
    %11267 = vst [vmem:[#allocation4 + $0x3c] sm:$0xf] %v11266
    %11268 = vst.msk [vmem:[#allocation4 + $0x40] sm:$0xf] %vm11232, %v11195
    %v11269 = vld [vmem:[#allocation4 + $0x44] sm:$0x1]
    %v11270 = vsel %vm99, %v11196, %v11269
    %11271 = vst [vmem:[#allocation4 + $0x44] sm:$0x1] %v11270
    %v11272 = vld [vmem:[#allocation4 + $0x48] sm:$0xf]
    %v11273 = vsel %vm11228, %v11197, %v11272
    %11274 = vst [vmem:[#allocation4 + $0x48] sm:$0xf] %v11273
    %11275 = vst.msk [vmem:[#allocation4 + $0x4c] sm:$0xf] %vm11232, %v11198
    %v11276 = vld [vmem:[#allocation4 + $0x50] sm:$0x1]
    %v11277 = vsel %vm99, %v11199, %v11276
    %11278 = vst [vmem:[#allocation4 + $0x50] sm:$0x1] %v11277
    %v11279 = vld [vmem:[#allocation4 + $0x54] sm:$0xf]
    %v11280 = vsel %vm11228, %v11200, %v11279
    %11281 = vst [vmem:[#allocation4 + $0x54] sm:$0xf] %v11280
    %11282 = vst.msk [vmem:[#allocation4 + $0x58] sm:$0xf] %vm11232, %v11201
    %v11283 = vld [vmem:[#allocation4 + $0x5c] sm:$0x1]
    %v11284 = vsel %vm99, %v11202, %v11283
    %11285 = vst [vmem:[#allocation4 + $0x5c] sm:$0x1] %v11284
    %v11286 = vld [vmem:[%s5] sm:$0xf]
    %v11287 = vld [vmem:[%s5 + $0x4] sm:$0xf]
    %v11288 = vld [vmem:[%s5 + $0x8] sm:$0xf]
    %v11289 = vld [vmem:[%s5 + $0xc] sm:$0xf]
    %v11290 = vld [vmem:[%s5 + $0x10] sm:$0xf]
    %v11291 = vld [vmem:[%s5 + $0x14] sm:$0xf]
    %v11292 = vld [vmem:[%s5 + $0x18] sm:$0xf]
    %v11293 = vld [vmem:[%s5 + $0x1c] sm:$0xf]
    %v11294 = vld [vmem:[%s5 + $0x20] sm:$0xf]
    %v11295 = vld [vmem:[%s5 + $0x24] sm:$0xf]
    %v11296 = vld [vmem:[%s5 + $0x28] sm:$0xf]
    %v11297 = vld [vmem:[%s5 + $0x2c] sm:$0xf]
    %v11298 = vld [vmem:[%s5 + $0x30] sm:$0xf]
    %v11299 = vld [vmem:[%s5 + $0x34] sm:$0xf]
    %v11300 = vld [vmem:[%s5 + $0x38] sm:$0xf]
    %v11301 = vld [vmem:[%s5 + $0x3c] sm:$0xf]
    %v11302 = vld [vmem:[%s5 + $0x40] sm:$0xf]
    %v11303 = vld [vmem:[%s5 + $0x44] sm:$0xf]
    %v11304 = vld [vmem:[%s5 + $0x48] sm:$0xf]
    %v11305 = vld [vmem:[%s5 + $0x4c] sm:$0xf]
    %v11306 = vld [vmem:[%s5 + $0x50] sm:$0xf]
    %v11307 = vld [vmem:[%s5 + $0x54] sm:$0xf]
    %v11308 = vld [vmem:[%s5 + $0x58] sm:$0xf]
    %v11309 = vld [vmem:[%s5 + $0x5c] sm:$0xf]
    %v11310 = vld [vmem:[%s6] sm:$0x1]
    %v11311 = vld [vmem:[#allocation4] sm:$0xf]
    %v11312 = vld [vmem:[#allocation4 + $0x4] sm:$0xf]
    %v11313 = vld [vmem:[#allocation4 + $0xc] sm:$0xf]
    %v11314 = vld [vmem:[#allocation4 + $0x10] sm:$0xf]
    %v11315 = vld [vmem:[#allocation4 + $0x18] sm:$0xf]
    %v11316 = vld [vmem:[#allocation4 + $0x1c] sm:$0xf]
    %v11317 = vld [vmem:[#allocation4 + $0x24] sm:$0xf]
    %v11318 = vld [vmem:[#allocation4 + $0x28] sm:$0xf]
    %v11319 = vld [vmem:[#allocation4 + $0x30] sm:$0xf]
    %v11320 = vld [vmem:[#allocation4 + $0x34] sm:$0xf]
    %v11321 = vld [vmem:[#allocation4 + $0x3c] sm:$0xf]
    %v11322 = vld [vmem:[#allocation4 + $0x40] sm:$0xf]
    %v11323 = vld [vmem:[#allocation4 + $0x48] sm:$0xf]
    %v11324 = vld [vmem:[#allocation4 + $0x4c] sm:$0xf]
    %v11325 = vld [vmem:[#allocation4 + $0x54] sm:$0xf]
    %v11326 = vld [vmem:[#allocation4 + $0x58] sm:$0xf]
    %v11327 = vld [vmem:[#allocation4 + $0x8] sm:$0x1]
    %v11328 = vld [vmem:[#allocation4 + $0x14] sm:$0x1]
    %v11329 = vld [vmem:[#allocation4 + $0x20] sm:$0x1]
    %v11330 = vld [vmem:[#allocation4 + $0x2c] sm:$0x1]
    %v11331 = vld [vmem:[#allocation4 + $0x38] sm:$0x1]
    %v11332 = vld [vmem:[#allocation4 + $0x44] sm:$0x1]
    %v11333 = vld [vmem:[#allocation4 + $0x50] sm:$0x1]
    %v11334 = vld [vmem:[#allocation4 + $0x5c] sm:$0x1]
    %v11335 = vld [vmem:[#allocation4] sm:$0xe]
    %v11336 = vld [vmem:[#allocation4 + $0xc] sm:$0xe]
    %v11337 = vld [vmem:[#allocation4 + $0x18] sm:$0xe]
    %v11338 = vld [vmem:[#allocation4 + $0x24] sm:$0xe]
    %v11339 = vld [vmem:[#allocation4 + $0x30] sm:$0xe]
    %v11340 = vld [vmem:[#allocation4 + $0x3c] sm:$0xe]
    %v11341 = vld [vmem:[#allocation4 + $0x48] sm:$0xe]
    %v11342 = vld [vmem:[#allocation4 + $0x54] sm:$0xe]
    %v11359 = vunpack.c.l.b16 %v11311
    %v11360 = vunpack.c.l.b16 %v11312
    %v11361 = vunpack.c.l.b16 %v11313
    %v11362 = vunpack.c.l.b16 %v11314
    %v11363 = vunpack.c.l.b16 %v11315
    %v11364 = vunpack.c.l.b16 %v11316
    %v11365 = vunpack.c.l.b16 %v11317
    %v11366 = vunpack.c.l.b16 %v11318
    %v11367 = vunpack.c.l.b16 %v11319
    %v11368 = vunpack.c.l.b16 %v11320
    %v11369 = vunpack.c.l.b16 %v11321
    %v11370 = vunpack.c.l.b16 %v11322
    %v11371 = vunpack.c.l.b16 %v11323
    %v11372 = vunpack.c.l.b16 %v11324
    %v11373 = vunpack.c.l.b16 %v11325
    %v11374 = vunpack.c.l.b16 %v11326
    %v11375 = vpack.c.b16 %v11360, %v11359
    %v11376 = vpack.c.b16 %v11362, %v11361
    %v11377 = vpack.c.b16 %v11364, %v11363
    %v11378 = vpack.c.b16 %v11366, %v11365
    %v11379 = vpack.c.b16 %v11368, %v11367
    %v11380 = vpack.c.b16 %v11370, %v11369
    %v11381 = vpack.c.b16 %v11372, %v11371
    %v11382 = vpack.c.b16 %v11374, %v11373
    %v11391 = vunpack.c.l.b16 %v11327
    %v11392 = vunpack.c.l.b16 %v11328
    %v11393 = vunpack.c.l.b16 %v11329
    %v11394 = vunpack.c.l.b16 %v11330
    %v11395 = vunpack.c.l.b16 %v11331
    %v11396 = vunpack.c.l.b16 %v11332
    %v11397 = vunpack.c.l.b16 %v11333
    %v11398 = vunpack.c.l.b16 %v11334
    %v11399 = vpack.c.b16 %v11391, %v11391
    %v11400 = vpack.c.b16 %v11392, %v11392
    %v11401 = vpack.c.b16 %v11393, %v11393
    %v11402 = vpack.c.b16 %v11394, %v11394
    %v11403 = vpack.c.b16 %v11395, %v11395
    %v11404 = vpack.c.b16 %v11396, %v11396
    %v11405 = vpack.c.b16 %v11397, %v11397
    %v11406 = vpack.c.b16 %v11398, %v11398
    %v11408 = vshrl.u32 %v11375, 16
    %v11410 = vshll.u32 %v11375, 16
    %v11412 = vrot.slane %v11410, 1
    %v11413 = vor.u32 %v11408, %v11412
    %v11415 = vshll.u32 %v11399, 16
    %v11417 = vrot.slane %v11415, 1
    %v11418 = vsel %vm8146, %v11413, %v11417
    %v11420 = vshrl.u32 %v11376, 16
    %v11422 = vshll.u32 %v11376, 16
    %v11424 = vrot.slane %v11422, 1
    %v11425 = vor.u32 %v11420, %v11424
    %v11427 = vshll.u32 %v11400, 16
    %v11429 = vrot.slane %v11427, 1
    %v11430 = vsel %vm8146, %v11425, %v11429
    %v11432 = vshrl.u32 %v11377, 16
    %v11434 = vshll.u32 %v11377, 16
    %v11436 = vrot.slane %v11434, 1
    %v11437 = vor.u32 %v11432, %v11436
    %v11439 = vshll.u32 %v11401, 16
    %v11441 = vrot.slane %v11439, 1
    %v11442 = vsel %vm8146, %v11437, %v11441
    %v11444 = vshrl.u32 %v11378, 16
    %v11446 = vshll.u32 %v11378, 16
    %v11448 = vrot.slane %v11446, 1
    %v11449 = vor.u32 %v11444, %v11448
    %v11451 = vshll.u32 %v11402, 16
    %v11453 = vrot.slane %v11451, 1
    %v11454 = vsel %vm8146, %v11449, %v11453
    %v11456 = vshrl.u32 %v11379, 16
    %v11458 = vshll.u32 %v11379, 16
    %v11460 = vrot.slane %v11458, 1
    %v11461 = vor.u32 %v11456, %v11460
    %v11463 = vshll.u32 %v11403, 16
    %v11465 = vrot.slane %v11463, 1
    %v11466 = vsel %vm8146, %v11461, %v11465
    %v11468 = vshrl.u32 %v11380, 16
    %v11470 = vshll.u32 %v11380, 16
    %v11472 = vrot.slane %v11470, 1
    %v11473 = vor.u32 %v11468, %v11472
    %v11475 = vshll.u32 %v11404, 16
    %v11477 = vrot.slane %v11475, 1
    %v11478 = vsel %vm8146, %v11473, %v11477
    %v11480 = vshrl.u32 %v11381, 16
    %v11482 = vshll.u32 %v11381, 16
    %v11484 = vrot.slane %v11482, 1
    %v11485 = vor.u32 %v11480, %v11484
    %v11487 = vshll.u32 %v11405, 16
    %v11489 = vrot.slane %v11487, 1
    %v11490 = vsel %vm8146, %v11485, %v11489
    %v11492 = vshrl.u32 %v11382, 16
    %v11494 = vshll.u32 %v11382, 16
    %v11496 = vrot.slane %v11494, 1
    %v11497 = vor.u32 %v11492, %v11496
    %v11499 = vshll.u32 %v11406, 16
    %v11501 = vrot.slane %v11499, 1
    %v11502 = vsel %vm8146, %v11497, %v11501
    %11503 = vrot.lane.b32.xlu0 %v11418, 64
    %v11504 = vpop.permute.xlu0 %11503
    %11505 = vrot.lane.b32.xlu0 %v11430, 64
    %v11506 = vpop.permute.xlu0 %11505
    %11507 = vrot.lane.b32.xlu0 %v11442, 64
    %v11508 = vpop.permute.xlu0 %11507
    %11509 = vrot.lane.b32.xlu0 %v11454, 64
    %v11510 = vpop.permute.xlu0 %11509
    %11511 = vrot.lane.b32.xlu0 %v11466, 64
    %v11512 = vpop.permute.xlu0 %11511
    %11513 = vrot.lane.b32.xlu0 %v11478, 64
    %v11514 = vpop.permute.xlu0 %11513
    %11515 = vrot.lane.b32.xlu0 %v11490, 64
    %v11516 = vpop.permute.xlu0 %11515
    %11517 = vrot.lane.b32.xlu0 %v11502, 64
    %v11518 = vpop.permute.xlu0 %11517
    %v11527 = vunpack.c.l.b16 %v11335
    %v11528 = vunpack.c.l.b16 %v11336
    %v11529 = vunpack.c.l.b16 %v11337
    %v11530 = vunpack.c.l.b16 %v11338
    %v11531 = vunpack.c.l.b16 %v11339
    %v11532 = vunpack.c.l.b16 %v11340
    %v11533 = vunpack.c.l.b16 %v11341
    %v11534 = vunpack.c.l.b16 %v11342
    %v11535 = vpack.c.b16 %v11360, %v11527
    %v11536 = vpack.c.b16 %v11362, %v11528
    %v11537 = vpack.c.b16 %v11364, %v11529
    %v11538 = vpack.c.b16 %v11366, %v11530
    %v11539 = vpack.c.b16 %v11368, %v11531
    %v11540 = vpack.c.b16 %v11370, %v11532
    %v11541 = vpack.c.b16 %v11372, %v11533
    %v11542 = vpack.c.b16 %v11374, %v11534
    %v11543 = vrot.slane %v11535, 1
    %v11544 = vrot.slane %v11399, 1
    %v11545 = vsel %vm8363, %v11543, %v11544
    %v11546 = vrot.slane %v11536, 1
    %v11547 = vrot.slane %v11400, 1
    %v11548 = vsel %vm8363, %v11546, %v11547
    %v11549 = vrot.slane %v11537, 1
    %v11550 = vrot.slane %v11401, 1
    %v11551 = vsel %vm8363, %v11549, %v11550
    %v11552 = vrot.slane %v11538, 1
    %v11553 = vrot.slane %v11402, 1
    %v11554 = vsel %vm8363, %v11552, %v11553
    %v11555 = vrot.slane %v11539, 1
    %v11556 = vrot.slane %v11403, 1
    %v11557 = vsel %vm8363, %v11555, %v11556
    %v11558 = vrot.slane %v11540, 1
    %v11559 = vrot.slane %v11404, 1
    %v11560 = vsel %vm8363, %v11558, %v11559
    %v11561 = vrot.slane %v11541, 1
    %v11562 = vrot.slane %v11405, 1
    %v11563 = vsel %vm8363, %v11561, %v11562
    %v11564 = vrot.slane %v11542, 1
    %v11565 = vrot.slane %v11406, 1
    %v11566 = vsel %vm8363, %v11564, %v11565
    %v11568 = vsel %vm8469, %v11375, %v11504
    %v11571 = vsel %vm8469, %v11376, %v11506
    %v11574 = vsel %vm8469, %v11377, %v11508
    %v11577 = vsel %vm8469, %v11378, %v11510
    %v11580 = vsel %vm8469, %v11379, %v11512
    %v11583 = vsel %vm8469, %v11380, %v11514
    %v11586 = vsel %vm8469, %v11381, %v11516
    %v11589 = vsel %vm8469, %v11382, %v11518
    %v11592 = vlaneseq
    %v11593 = vshrl.u32 %v11592, 7
    %v11594 = vsub.s32 0, %v11593
    %v11595 = vrot.slane %v11310, %v11594
    %v11621 = vunpack.c.l.b16 %v11286
    %v11622 = vunpack.c.l.b16 %v11287
    %v11623 = vunpack.c.l.b16 %v11288
    %v11624 = vunpack.c.l.b16 %v11289
    %v11625 = vunpack.c.l.b16 %v11290
    %v11626 = vunpack.c.l.b16 %v11291
    %v11627 = vunpack.c.l.b16 %v11292
    %v11628 = vunpack.c.l.b16 %v11293
    %v11629 = vunpack.c.l.b16 %v11294
    %v11630 = vunpack.c.l.b16 %v11295
    %v11631 = vunpack.c.l.b16 %v11296
    %v11632 = vunpack.c.l.b16 %v11297
    %v11633 = vunpack.c.l.b16 %v11298
    %v11634 = vunpack.c.l.b16 %v11299
    %v11635 = vunpack.c.l.b16 %v11300
    %v11636 = vunpack.c.l.b16 %v11301
    %v11637 = vunpack.c.l.b16 %v11302
    %v11638 = vunpack.c.l.b16 %v11303
    %v11639 = vunpack.c.l.b16 %v11304
    %v11640 = vunpack.c.l.b16 %v11305
    %v11641 = vunpack.c.l.b16 %v11306
    %v11642 = vunpack.c.l.b16 %v11307
    %v11643 = vunpack.c.l.b16 %v11308
    %v11644 = vunpack.c.l.b16 %v11309
    %v11645 = vpack.c.b16 %v11622, %v11621
    %v11646 = vpack.c.b16 %v11624, %v11623
    %v11647 = vpack.c.b16 %v11626, %v11625
    %v11648 = vpack.c.b16 %v11628, %v11627
    %v11649 = vpack.c.b16 %v11630, %v11629
    %v11650 = vpack.c.b16 %v11632, %v11631
    %v11651 = vpack.c.b16 %v11634, %v11633
    %v11652 = vpack.c.b16 %v11636, %v11635
    %v11653 = vpack.c.b16 %v11638, %v11637
    %v11654 = vpack.c.b16 %v11640, %v11639
    %v11655 = vpack.c.b16 %v11642, %v11641
    %v11656 = vpack.c.b16 %v11644, %v11643
    %v11670 = vsel %vm8469, %v11545, 0
    %v11673 = vsel %vm8469, %v11548, 0
    %v11676 = vsel %vm8469, %v11551, 0
    %v11679 = vsel %vm8469, %v11554, 0
    %v11682 = vsel %vm8469, %v11557, 0
    %v11685 = vsel %vm8469, %v11560, 0
    %v11688 = vsel %vm8469, %v11563, 0
    %v11691 = vsel %vm8469, %v11566, 0
    %11693 = vmatprep.subr.bf16.mxu0 0
    %11694 = vmatpush1.bf16.msra.mxu0 %v11645
    %11695 = vmatprep.subr.bf16.mxu0 0
    %11696 = vmatpush1.bf16.msra.mxu0 %v11646
    %11697 = vmatprep.subr.bf16.mxu0 0
    %11698 = vmatpush1.bf16.msra.mxu0 %v11647
    %11699 = vmatprep.subr.bf16.mxu0 0
    %11700 = vmatpush1.bf16.msra.mxu0 %v11648
    %11701 = vmatprep.subr.bf16.mxu0 0
    %11702 = vmatpush1.bf16.msra.mxu0 %v11649
    %11703 = vmatprep.subr.bf16.mxu0 0
    %11704 = vmatpush1.bf16.msra.mxu0 %v11650
    %11705 = vmatprep.subr.bf16.mxu0 0
    %11706 = vmatpush1.bf16.msra.mxu0 %v11651
    %11707 = vmatprep.subr.bf16.mxu0 0
    %11708 = vmatpush1.bf16.msra.mxu0 %v11652
    %11709 = vmatprep.subr.bf16.mxu0 0
    %11710 = vmatpush1.bf16.msra.mxu0 %v11653
    %11711 = vmatprep.subr.bf16.mxu0 0
    %11712 = vmatpush1.bf16.msra.mxu0 %v11654
    %11713 = vmatprep.subr.bf16.mxu0 0
    %11714 = vmatpush1.bf16.msra.mxu0 %v11655
    %11715 = vmatprep.subr.bf16.mxu0 0
    %11716 = vmatpush1.bf16.msra.mxu0 %v11656
    %11717 = vmatprep.subr.bf16.mxu0 0
    %11718 = vmatpush1.bf16.msra.mxu0 0
    %11719 = vmatprep.subr.bf16.mxu0 0
    %11720 = vmatpush1.bf16.msra.mxu0 0
    %11721 = vmatprep.subr.bf16.mxu0 0
    %11722 = vmatpush1.bf16.msra.mxu0 0
    %11723 = vmatprep.subr.bf16.mxu0 0
    %11724 = vmatpush1.bf16.msra.mxu0 0
    %11725 = vmatprep.mubr.bf16.mxu0 %v11670
    %11726 = vmatmul.mubr.bf16.gmra.mrb[0].mxu0 %v11568
    %v11727 = vpop.f32.mrb[0].mxu0
    %v11728 = vadd.f32 %v11595, %v11727
    %v11729 = vpop.f32.mrb[0].mxu0
    %v11730 = vpop.f32.mrb[0].mxu0
    %v11731 = vadd.f32 %v11595, %v11730
    %v11732 = vpop.f32.mrb[0].mxu0
    %11733 = vmatprep.mubr.bf16.mxu0 %v11673
    %11734 = vmatmul.mubr.bf16.gmra.mrb[0].mxu0 %v11571
    %v11735 = vpop.f32.mrb[0].mxu0
    %v11736 = vadd.f32 %v11595, %v11735
    %v11737 = vpop.f32.mrb[0].mxu0
    %v11738 = vpop.f32.mrb[0].mxu0
    %v11739 = vadd.f32 %v11595, %v11738
    %v11740 = vpop.f32.mrb[0].mxu0
    %11741 = vmatprep.mubr.bf16.mxu0 %v11676
    %11742 = vmatmul.mubr.bf16.gmra.mrb[0].mxu0 %v11574
    %v11743 = vpop.f32.mrb[0].mxu0
    %v11744 = vadd.f32 %v11595, %v11743
    %v11745 = vpop.f32.mrb[0].mxu0
    %v11746 = vpop.f32.mrb[0].mxu0
    %v11747 = vadd.f32 %v11595, %v11746
    %v11748 = vpop.f32.mrb[0].mxu0
    %11749 = vmatprep.mubr.bf16.mxu0 %v11679
    %11750 = vmatmul.mubr.bf16.gmra.mrb[0].mxu0 %v11577
    %v11751 = vpop.f32.mrb[0].mxu0
    %v11752 = vadd.f32 %v11595, %v11751
    %v11753 = vpop.f32.mrb[0].mxu0
    %v11754 = vpop.f32.mrb[0].mxu0
    %v11755 = vadd.f32 %v11595, %v11754
    %v11756 = vpop.f32.mrb[0].mxu0
    %11757 = vmatprep.mubr.bf16.mxu0 %v11682
    %11758 = vmatmul.mubr.bf16.gmra.mrb[0].mxu0 %v11580
    %v11759 = vpop.f32.mrb[0].mxu0
    %v11760 = vadd.f32 %v11595, %v11759
    %v11761 = vpop.f32.mrb[0].mxu0
    %v11762 = vpop.f32.mrb[0].mxu0
    %v11763 = vadd.f32 %v11595, %v11762
    %v11764 = vpop.f32.mrb[0].mxu0
    %11765 = vmatprep.mubr.bf16.mxu0 %v11685
    %11766 = vmatmul.mubr.bf16.gmra.mrb[0].mxu0 %v11583
    %v11767 = vpop.f32.mrb[0].mxu0
    %v11768 = vadd.f32 %v11595, %v11767
    %v11769 = vpop.f32.mrb[0].mxu0
    %v11770 = vpop.f32.mrb[0].mxu0
    %v11771 = vadd.f32 %v11595, %v11770
    %v11772 = vpop.f32.mrb[0].mxu0
    %11773 = vmatprep.mubr.bf16.mxu0 %v11688
    %11774 = vmatmul.mubr.bf16.gmra.mrb[0].mxu0 %v11586
    %v11775 = vpop.f32.mrb[0].mxu0
    %v11776 = vadd.f32 %v11595, %v11775
    %v11777 = vpop.f32.mrb[0].mxu0
    %v11778 = vpop.f32.mrb[0].mxu0
    %v11779 = vadd.f32 %v11595, %v11778
    %v11780 = vpop.f32.mrb[0].mxu0
    %11781 = vmatprep.mubr.bf16.mxu0 %v11691
    %11782 = vmatmul.mubr.bf16.gmra.mrb[0].mxu0 %v11589
    %v11783 = vpop.f32.mrb[0].mxu0
    %v11784 = vadd.f32 %v11595, %v11783
    %v11785 = vpop.f32.mrb[0].mxu0
    %v11786 = vpop.f32.mrb[0].mxu0
    %v11787 = vadd.f32 %v11595, %v11786
    %v11788 = vpop.f32.mrb[0].mxu0
    %11789 = vdwg.mxu0
    %vm11790 = vcmp.gt.f32.partialorder %v11728, 0.0
    %vm11791 = vcmp.gt.f32.partialorder %v11731, 0.0
    %vm11792 = vcmp.gt.f32.partialorder %v11736, 0.0
    %vm11793 = vcmp.gt.f32.partialorder %v11739, 0.0
    %vm11794 = vcmp.gt.f32.partialorder %v11744, 0.0
    %vm11795 = vcmp.gt.f32.partialorder %v11747, 0.0
    %vm11796 = vcmp.gt.f32.partialorder %v11752, 0.0
    %vm11797 = vcmp.gt.f32.partialorder %v11755, 0.0
    %vm11798 = vcmp.gt.f32.partialorder %v11760, 0.0
    %vm11799 = vcmp.gt.f32.partialorder %v11763, 0.0
    %vm11800 = vcmp.gt.f32.partialorder %v11768, 0.0
    %vm11801 = vcmp.gt.f32.partialorder %v11771, 0.0
    %vm11802 = vcmp.gt.f32.partialorder %v11776, 0.0
    %vm11803 = vcmp.gt.f32.partialorder %v11779, 0.0
    %vm11804 = vcmp.gt.f32.partialorder %v11784, 0.0
    %vm11805 = vcmp.gt.f32.partialorder %v11787, 0.0
    %v11806 = vmul.f32 %v11728, 0.01
    %v11807 = vmul.f32 %v11731, 0.01
    %v11808 = vmul.f32 %v11736, 0.01
    %v11809 = vmul.f32 %v11739, 0.01
    %v11810 = vmul.f32 %v11744, 0.01
    %v11811 = vmul.f32 %v11747, 0.01
    %v11812 = vmul.f32 %v11752, 0.01
    %v11813 = vmul.f32 %v11755, 0.01
    %v11814 = vmul.f32 %v11760, 0.01
    %v11815 = vmul.f32 %v11763, 0.01
    %v11816 = vmul.f32 %v11768, 0.01
    %v11817 = vmul.f32 %v11771, 0.01
    %v11818 = vmul.f32 %v11776, 0.01
    %v11819 = vmul.f32 %v11779, 0.01
    %v11820 = vmul.f32 %v11784, 0.01
    %v11821 = vmul.f32 %v11787, 0.01
    %v11822 = vsel %vm11790, %v11728, %v11806
    %v11823 = vsel %vm11791, %v11731, %v11807
    %v11824 = vsel %vm11792, %v11736, %v11808
    %v11825 = vsel %vm11793, %v11739, %v11809
    %v11826 = vsel %vm11794, %v11744, %v11810
    %v11827 = vsel %vm11795, %v11747, %v11811
    %v11828 = vsel %vm11796, %v11752, %v11812
    %v11829 = vsel %vm11797, %v11755, %v11813
    %v11830 = vsel %vm11798, %v11760, %v11814
    %v11831 = vsel %vm11799, %v11763, %v11815
    %v11832 = vsel %vm11800, %v11768, %v11816
    %v11833 = vsel %vm11801, %v11771, %v11817
    %v11834 = vsel %vm11802, %v11776, %v11818
    %v11835 = vsel %vm11803, %v11779, %v11819
    %v11836 = vsel %vm11804, %v11784, %v11820
    %v11837 = vsel %vm11805, %v11787, %v11821
    %v11854 = vcombine.high %v11822, %v11822
    %v11856 = vunpack.c.l.s4 1983009808
    %v11857 = vunpack.c.0.s8 %v11856
    %v11858 = vlaneseq
    %v11859 = vshrl.u32 %v11858, 7
    %v11860 = vsub.s32 %v11857, %v11859
    %v11861 = vrot.slane %v11822, %v11860
    %v11863 = vunpack.c.l.s4 1983009808
    %v11864 = vunpack.c.0.s8 %v11863
    %v11865 = vlaneseq
    %v11866 = vshrl.u32 %v11865, 7
    %v11867 = vsub.s32 %v11864, %v11866
    %v11868 = vrot.slane %v11854, %v11867
    %v11869 = vcombine.high %v11861, %v11861
    %v11870 = vcombine.high %v11868, %v11868
    %v11871 = vcombine.high %v11823, %v11823
    %v11873 = vunpack.c.l.s4 1983009808
    %v11874 = vunpack.c.0.s8 %v11873
    %v11875 = vlaneseq
    %v11876 = vshrl.u32 %v11875, 7
    %v11877 = vsub.s32 %v11874, %v11876
    %v11878 = vrot.slane %v11823, %v11877
    %v11880 = vunpack.c.l.s4 1983009808
    %v11881 = vunpack.c.0.s8 %v11880
    %v11882 = vlaneseq
    %v11883 = vshrl.u32 %v11882, 7
    %v11884 = vsub.s32 %v11881, %v11883
    %v11885 = vrot.slane %v11871, %v11884
    %v11886 = vcombine.high %v11878, %v11878
    %v11887 = vcombine.high %v11885, %v11885
    %v11888 = vcombine.high %v11824, %v11824
    %v11890 = vunpack.c.l.s4 1983009808
    %v11891 = vunpack.c.0.s8 %v11890
    %v11892 = vlaneseq
    %v11893 = vshrl.u32 %v11892, 7
    %v11894 = vsub.s32 %v11891, %v11893
    %v11895 = vrot.slane %v11824, %v11894
    %v11897 = vunpack.c.l.s4 1983009808
    %v11898 = vunpack.c.0.s8 %v11897
    %v11899 = vlaneseq
    %v11900 = vshrl.u32 %v11899, 7
    %v11901 = vsub.s32 %v11898, %v11900
    %v11902 = vrot.slane %v11888, %v11901
    %v11903 = vcombine.high %v11895, %v11895
    %v11904 = vcombine.high %v11902, %v11902
    %v11905 = vcombine.high %v11825, %v11825
    %v11907 = vunpack.c.l.s4 1983009808
    %v11908 = vunpack.c.0.s8 %v11907
    %v11909 = vlaneseq
    %v11910 = vshrl.u32 %v11909, 7
    %v11911 = vsub.s32 %v11908, %v11910
    %v11912 = vrot.slane %v11825, %v11911
    %v11914 = vunpack.c.l.s4 1983009808
    %v11915 = vunpack.c.0.s8 %v11914
    %v11916 = vlaneseq
    %v11917 = vshrl.u32 %v11916, 7
    %v11918 = vsub.s32 %v11915, %v11917
    %v11919 = vrot.slane %v11905, %v11918
    %v11920 = vcombine.high %v11912, %v11912
    %v11921 = vcombine.high %v11919, %v11919
    %v11922 = vcombine.high %v11826, %v11826
    %v11924 = vunpack.c.l.s4 1983009808
    %v11925 = vunpack.c.0.s8 %v11924
    %v11926 = vlaneseq
    %v11927 = vshrl.u32 %v11926, 7
    %v11928 = vsub.s32 %v11925, %v11927
    %v11929 = vrot.slane %v11826, %v11928
    %v11931 = vunpack.c.l.s4 1983009808
    %v11932 = vunpack.c.0.s8 %v11931
    %v11933 = vlaneseq
    %v11934 = vshrl.u32 %v11933, 7
    %v11935 = vsub.s32 %v11932, %v11934
    %v11936 = vrot.slane %v11922, %v11935
    %v11937 = vcombine.high %v11929, %v11929
    %v11938 = vcombine.high %v11936, %v11936
    %v11939 = vcombine.high %v11827, %v11827
    %v11941 = vunpack.c.l.s4 1983009808
    %v11942 = vunpack.c.0.s8 %v11941
    %v11943 = vlaneseq
    %v11944 = vshrl.u32 %v11943, 7
    %v11945 = vsub.s32 %v11942, %v11944
    %v11946 = vrot.slane %v11827, %v11945
    %v11948 = vunpack.c.l.s4 1983009808
    %v11949 = vunpack.c.0.s8 %v11948
    %v11950 = vlaneseq
    %v11951 = vshrl.u32 %v11950, 7
    %v11952 = vsub.s32 %v11949, %v11951
    %v11953 = vrot.slane %v11939, %v11952
    %v11954 = vcombine.high %v11946, %v11946
    %v11955 = vcombine.high %v11953, %v11953
    %v11956 = vcombine.high %v11828, %v11828
    %v11958 = vunpack.c.l.s4 1983009808
    %v11959 = vunpack.c.0.s8 %v11958
    %v11960 = vlaneseq
    %v11961 = vshrl.u32 %v11960, 7
    %v11962 = vsub.s32 %v11959, %v11961
    %v11963 = vrot.slane %v11828, %v11962
    %v11965 = vunpack.c.l.s4 1983009808
    %v11966 = vunpack.c.0.s8 %v11965
    %v11967 = vlaneseq
    %v11968 = vshrl.u32 %v11967, 7
    %v11969 = vsub.s32 %v11966, %v11968
    %v11970 = vrot.slane %v11956, %v11969
    %v11971 = vcombine.high %v11963, %v11963
    %v11972 = vcombine.high %v11970, %v11970
    %v11973 = vcombine.high %v11829, %v11829
    %v11975 = vunpack.c.l.s4 1983009808
    %v11976 = vunpack.c.0.s8 %v11975
    %v11977 = vlaneseq
    %v11978 = vshrl.u32 %v11977, 7
    %v11979 = vsub.s32 %v11976, %v11978
    %v11980 = vrot.slane %v11829, %v11979
    %v11982 = vunpack.c.l.s4 1983009808
    %v11983 = vunpack.c.0.s8 %v11982
    %v11984 = vlaneseq
    %v11985 = vshrl.u32 %v11984, 7
    %v11986 = vsub.s32 %v11983, %v11985
    %v11987 = vrot.slane %v11973, %v11986
    %v11988 = vcombine.high %v11980, %v11980
    %v11989 = vcombine.high %v11987, %v11987
    %v11990 = vcombine.high %v11830, %v11830
    %v11992 = vunpack.c.l.s4 1983009808
    %v11993 = vunpack.c.0.s8 %v11992
    %v11994 = vlaneseq
    %v11995 = vshrl.u32 %v11994, 7
    %v11996 = vsub.s32 %v11993, %v11995
    %v11997 = vrot.slane %v11830, %v11996
    %v11999 = vunpack.c.l.s4 1983009808
    %v12000 = vunpack.c.0.s8 %v11999
    %v12001 = vlaneseq
    %v12002 = vshrl.u32 %v12001, 7
    %v12003 = vsub.s32 %v12000, %v12002
    %v12004 = vrot.slane %v11990, %v12003
    %v12005 = vcombine.high %v11997, %v11997
    %v12006 = vcombine.high %v12004, %v12004
    %v12007 = vcombine.high %v11831, %v11831
    %v12009 = vunpack.c.l.s4 1983009808
    %v12010 = vunpack.c.0.s8 %v12009
    %v12011 = vlaneseq
    %v12012 = vshrl.u32 %v12011, 7
    %v12013 = vsub.s32 %v12010, %v12012
    %v12014 = vrot.slane %v11831, %v12013
    %v12016 = vunpack.c.l.s4 1983009808
    %v12017 = vunpack.c.0.s8 %v12016
    %v12018 = vlaneseq
    %v12019 = vshrl.u32 %v12018, 7
    %v12020 = vsub.s32 %v12017, %v12019
    %v12021 = vrot.slane %v12007, %v12020
    %v12022 = vcombine.high %v12014, %v12014
    %v12023 = vcombine.high %v12021, %v12021
    %v12024 = vcombine.high %v11832, %v11832
    %v12026 = vunpack.c.l.s4 1983009808
    %v12027 = vunpack.c.0.s8 %v12026
    %v12028 = vlaneseq
    %v12029 = vshrl.u32 %v12028, 7
    %v12030 = vsub.s32 %v12027, %v12029
    %v12031 = vrot.slane %v11832, %v12030
    %v12033 = vunpack.c.l.s4 1983009808
    %v12034 = vunpack.c.0.s8 %v12033
    %v12035 = vlaneseq
    %v12036 = vshrl.u32 %v12035, 7
    %v12037 = vsub.s32 %v12034, %v12036
    %v12038 = vrot.slane %v12024, %v12037
    %v12039 = vcombine.high %v12031, %v12031
    %v12040 = vcombine.high %v12038, %v12038
    %v12041 = vcombine.high %v11833, %v11833
    %v12043 = vunpack.c.l.s4 1983009808
    %v12044 = vunpack.c.0.s8 %v12043
    %v12045 = vlaneseq
    %v12046 = vshrl.u32 %v12045, 7
    %v12047 = vsub.s32 %v12044, %v12046
    %v12048 = vrot.slane %v11833, %v12047
    %v12050 = vunpack.c.l.s4 1983009808
    %v12051 = vunpack.c.0.s8 %v12050
    %v12052 = vlaneseq
    %v12053 = vshrl.u32 %v12052, 7
    %v12054 = vsub.s32 %v12051, %v12053
    %v12055 = vrot.slane %v12041, %v12054
    %v12056 = vcombine.high %v12048, %v12048
    %v12057 = vcombine.high %v12055, %v12055
    %v12058 = vcombine.high %v11834, %v11834
    %v12060 = vunpack.c.l.s4 1983009808
    %v12061 = vunpack.c.0.s8 %v12060
    %v12062 = vlaneseq
    %v12063 = vshrl.u32 %v12062, 7
    %v12064 = vsub.s32 %v12061, %v12063
    %v12065 = vrot.slane %v11834, %v12064
    %v12067 = vunpack.c.l.s4 1983009808
    %v12068 = vunpack.c.0.s8 %v12067
    %v12069 = vlaneseq
    %v12070 = vshrl.u32 %v12069, 7
    %v12071 = vsub.s32 %v12068, %v12070
    %v12072 = vrot.slane %v12058, %v12071
    %v12073 = vcombine.high %v12065, %v12065
    %v12074 = vcombine.high %v12072, %v12072
    %v12075 = vcombine.high %v11835, %v11835
    %v12077 = vunpack.c.l.s4 1983009808
    %v12078 = vunpack.c.0.s8 %v12077
    %v12079 = vlaneseq
    %v12080 = vshrl.u32 %v12079, 7
    %v12081 = vsub.s32 %v12078, %v12080
    %v12082 = vrot.slane %v11835, %v12081
    %v12084 = vunpack.c.l.s4 1983009808
    %v12085 = vunpack.c.0.s8 %v12084
    %v12086 = vlaneseq
    %v12087 = vshrl.u32 %v12086, 7
    %v12088 = vsub.s32 %v12085, %v12087
    %v12089 = vrot.slane %v12075, %v12088
    %v12090 = vcombine.high %v12082, %v12082
    %v12091 = vcombine.high %v12089, %v12089
    %v12092 = vcombine.high %v11836, %v11836
    %v12094 = vunpack.c.l.s4 1983009808
    %v12095 = vunpack.c.0.s8 %v12094
    %v12096 = vlaneseq
    %v12097 = vshrl.u32 %v12096, 7
    %v12098 = vsub.s32 %v12095, %v12097
    %v12099 = vrot.slane %v11836, %v12098
    %v12101 = vunpack.c.l.s4 1983009808
    %v12102 = vunpack.c.0.s8 %v12101
    %v12103 = vlaneseq
    %v12104 = vshrl.u32 %v12103, 7
    %v12105 = vsub.s32 %v12102, %v12104
    %v12106 = vrot.slane %v12092, %v12105
    %v12107 = vcombine.high %v12099, %v12099
    %v12108 = vcombine.high %v12106, %v12106
    %v12109 = vcombine.high %v11837, %v11837
    %v12111 = vunpack.c.l.s4 1983009808
    %v12112 = vunpack.c.0.s8 %v12111
    %v12113 = vlaneseq
    %v12114 = vshrl.u32 %v12113, 7
    %v12115 = vsub.s32 %v12112, %v12114
    %v12116 = vrot.slane %v11837, %v12115
    %v12118 = vunpack.c.l.s4 1983009808
    %v12119 = vunpack.c.0.s8 %v12118
    %v12120 = vlaneseq
    %v12121 = vshrl.u32 %v12120, 7
    %v12122 = vsub.s32 %v12119, %v12121
    %v12123 = vrot.slane %v12109, %v12122
    %v12124 = vcombine.high %v12116, %v12116
    %v12125 = vcombine.high %v12123, %v12123
    %vm12190 = vcmask 1041408
    %v12191 = vsel %vm12190, %v11861, -inf
    %v12192 = vrot.slane %v12191, 4
    %v12193 = vmax.f32 %v12191, %v12192
    %v12194 = vrot.slane %v12193, 2
    %v12195 = vmax.f32 %v12193, %v12194
    %v12196 = vrot.slane %v12195, 1
    %v12197 = vmax.f32 %v12195, %v12196
    %v12198 = vsel %vm12190, %v11869, -inf
    %v12199 = vrot.slane %v12198, 4
    %v12200 = vmax.f32 %v12198, %v12199
    %v12201 = vrot.slane %v12200, 2
    %v12202 = vmax.f32 %v12200, %v12201
    %v12203 = vrot.slane %v12202, 1
    %v12204 = vmax.f32 %v12202, %v12203
    %v12205 = vsel %vm12190, %v11868, -inf
    %v12206 = vrot.slane %v12205, 4
    %v12207 = vmax.f32 %v12205, %v12206
    %v12208 = vrot.slane %v12207, 2
    %v12209 = vmax.f32 %v12207, %v12208
    %v12210 = vrot.slane %v12209, 1
    %v12211 = vmax.f32 %v12209, %v12210
    %v12212 = vsel %vm12190, %v11870, -inf
    %v12213 = vrot.slane %v12212, 4
    %v12214 = vmax.f32 %v12212, %v12213
    %v12215 = vrot.slane %v12214, 2
    %v12216 = vmax.f32 %v12214, %v12215
    %v12217 = vrot.slane %v12216, 1
    %v12218 = vmax.f32 %v12216, %v12217
    %v12219 = vsel %vm12190, %v11878, -inf
    %v12220 = vrot.slane %v12219, 4
    %v12221 = vmax.f32 %v12219, %v12220
    %v12222 = vrot.slane %v12221, 2
    %v12223 = vmax.f32 %v12221, %v12222
    %v12224 = vrot.slane %v12223, 1
    %v12225 = vmax.f32 %v12223, %v12224
    %v12226 = vsel %vm12190, %v11886, -inf
    %v12227 = vrot.slane %v12226, 4
    %v12228 = vmax.f32 %v12226, %v12227
    %v12229 = vrot.slane %v12228, 2
    %v12230 = vmax.f32 %v12228, %v12229
    %v12231 = vrot.slane %v12230, 1
    %v12232 = vmax.f32 %v12230, %v12231
    %v12233 = vsel %vm12190, %v11885, -inf
    %v12234 = vrot.slane %v12233, 4
    %v12235 = vmax.f32 %v12233, %v12234
    %v12236 = vrot.slane %v12235, 2
    %v12237 = vmax.f32 %v12235, %v12236
    %v12238 = vrot.slane %v12237, 1
    %v12239 = vmax.f32 %v12237, %v12238
    %v12240 = vsel %vm12190, %v11887, -inf
    %v12241 = vrot.slane %v12240, 4
    %v12242 = vmax.f32 %v12240, %v12241
    %v12243 = vrot.slane %v12242, 2
    %v12244 = vmax.f32 %v12242, %v12243
    %v12245 = vrot.slane %v12244, 1
    %v12246 = vmax.f32 %v12244, %v12245
    %v12247 = vsel %vm12190, %v11895, -inf
    %v12248 = vrot.slane %v12247, 4
    %v12249 = vmax.f32 %v12247, %v12248
    %v12250 = vrot.slane %v12249, 2
    %v12251 = vmax.f32 %v12249, %v12250
    %v12252 = vrot.slane %v12251, 1
    %v12253 = vmax.f32 %v12251, %v12252
    %v12254 = vsel %vm12190, %v11903, -inf
    %v12255 = vrot.slane %v12254, 4
    %v12256 = vmax.f32 %v12254, %v12255
    %v12257 = vrot.slane %v12256, 2
    %v12258 = vmax.f32 %v12256, %v12257
    %v12259 = vrot.slane %v12258, 1
    %v12260 = vmax.f32 %v12258, %v12259
    %v12261 = vsel %vm12190, %v11902, -inf
    %v12262 = vrot.slane %v12261, 4
    %v12263 = vmax.f32 %v12261, %v12262
    %v12264 = vrot.slane %v12263, 2
    %v12265 = vmax.f32 %v12263, %v12264
    %v12266 = vrot.slane %v12265, 1
    %v12267 = vmax.f32 %v12265, %v12266
    %v12268 = vsel %vm12190, %v11904, -inf
    %v12269 = vrot.slane %v12268, 4
    %v12270 = vmax.f32 %v12268, %v12269
    %v12271 = vrot.slane %v12270, 2
    %v12272 = vmax.f32 %v12270, %v12271
    %v12273 = vrot.slane %v12272, 1
    %v12274 = vmax.f32 %v12272, %v12273
    %v12275 = vsel %vm12190, %v11912, -inf
    %v12276 = vrot.slane %v12275, 4
    %v12277 = vmax.f32 %v12275, %v12276
    %v12278 = vrot.slane %v12277, 2
    %v12279 = vmax.f32 %v12277, %v12278
    %v12280 = vrot.slane %v12279, 1
    %v12281 = vmax.f32 %v12279, %v12280
    %v12282 = vsel %vm12190, %v11920, -inf
    %v12283 = vrot.slane %v12282, 4
    %v12284 = vmax.f32 %v12282, %v12283
    %v12285 = vrot.slane %v12284, 2
    %v12286 = vmax.f32 %v12284, %v12285
    %v12287 = vrot.slane %v12286, 1
    %v12288 = vmax.f32 %v12286, %v12287
    %v12289 = vsel %vm12190, %v11919, -inf
    %v12290 = vrot.slane %v12289, 4
    %v12291 = vmax.f32 %v12289, %v12290
    %v12292 = vrot.slane %v12291, 2
    %v12293 = vmax.f32 %v12291, %v12292
    %v12294 = vrot.slane %v12293, 1
    %v12295 = vmax.f32 %v12293, %v12294
    %v12296 = vsel %vm12190, %v11921, -inf
    %v12297 = vrot.slane %v12296, 4
    %v12298 = vmax.f32 %v12296, %v12297
    %v12299 = vrot.slane %v12298, 2
    %v12300 = vmax.f32 %v12298, %v12299
    %v12301 = vrot.slane %v12300, 1
    %v12302 = vmax.f32 %v12300, %v12301
    %v12303 = vsel %vm12190, %v11929, -inf
    %v12304 = vrot.slane %v12303, 4
    %v12305 = vmax.f32 %v12303, %v12304
    %v12306 = vrot.slane %v12305, 2
    %v12307 = vmax.f32 %v12305, %v12306
    %v12308 = vrot.slane %v12307, 1
    %v12309 = vmax.f32 %v12307, %v12308
    %v12310 = vsel %vm12190, %v11937, -inf
    %v12311 = vrot.slane %v12310, 4
    %v12312 = vmax.f32 %v12310, %v12311
    %v12313 = vrot.slane %v12312, 2
    %v12314 = vmax.f32 %v12312, %v12313
    %v12315 = vrot.slane %v12314, 1
    %v12316 = vmax.f32 %v12314, %v12315
    %v12317 = vsel %vm12190, %v11936, -inf
    %v12318 = vrot.slane %v12317, 4
    %v12319 = vmax.f32 %v12317, %v12318
    %v12320 = vrot.slane %v12319, 2
    %v12321 = vmax.f32 %v12319, %v12320
    %v12322 = vrot.slane %v12321, 1
    %v12323 = vmax.f32 %v12321, %v12322
    %v12324 = vsel %vm12190, %v11938, -inf
    %v12325 = vrot.slane %v12324, 4
    %v12326 = vmax.f32 %v12324, %v12325
    %v12327 = vrot.slane %v12326, 2
    %v12328 = vmax.f32 %v12326, %v12327
    %v12329 = vrot.slane %v12328, 1
    %v12330 = vmax.f32 %v12328, %v12329
    %v12331 = vsel %vm12190, %v11946, -inf
    %v12332 = vrot.slane %v12331, 4
    %v12333 = vmax.f32 %v12331, %v12332
    %v12334 = vrot.slane %v12333, 2
    %v12335 = vmax.f32 %v12333, %v12334
    %v12336 = vrot.slane %v12335, 1
    %v12337 = vmax.f32 %v12335, %v12336
    %v12338 = vsel %vm12190, %v11954, -inf
    %v12339 = vrot.slane %v12338, 4
    %v12340 = vmax.f32 %v12338, %v12339
    %v12341 = vrot.slane %v12340, 2
    %v12342 = vmax.f32 %v12340, %v12341
    %v12343 = vrot.slane %v12342, 1
    %v12344 = vmax.f32 %v12342, %v12343
    %v12345 = vsel %vm12190, %v11953, -inf
    %v12346 = vrot.slane %v12345, 4
    %v12347 = vmax.f32 %v12345, %v12346
    %v12348 = vrot.slane %v12347, 2
    %v12349 = vmax.f32 %v12347, %v12348
    %v12350 = vrot.slane %v12349, 1
    %v12351 = vmax.f32 %v12349, %v12350
    %v12352 = vsel %vm12190, %v11955, -inf
    %v12353 = vrot.slane %v12352, 4
    %v12354 = vmax.f32 %v12352, %v12353
    %v12355 = vrot.slane %v12354, 2
    %v12356 = vmax.f32 %v12354, %v12355
    %v12357 = vrot.slane %v12356, 1
    %v12358 = vmax.f32 %v12356, %v12357
    %v12359 = vsel %vm12190, %v11963, -inf
    %v12360 = vrot.slane %v12359, 4
    %v12361 = vmax.f32 %v12359, %v12360
    %v12362 = vrot.slane %v12361, 2
    %v12363 = vmax.f32 %v12361, %v12362
    %v12364 = vrot.slane %v12363, 1
    %v12365 = vmax.f32 %v12363, %v12364
    %v12366 = vsel %vm12190, %v11971, -inf
    %v12367 = vrot.slane %v12366, 4
    %v12368 = vmax.f32 %v12366, %v12367
    %v12369 = vrot.slane %v12368, 2
    %v12370 = vmax.f32 %v12368, %v12369
    %v12371 = vrot.slane %v12370, 1
    %v12372 = vmax.f32 %v12370, %v12371
    %v12373 = vsel %vm12190, %v11970, -inf
    %v12374 = vrot.slane %v12373, 4
    %v12375 = vmax.f32 %v12373, %v12374
    %v12376 = vrot.slane %v12375, 2
    %v12377 = vmax.f32 %v12375, %v12376
    %v12378 = vrot.slane %v12377, 1
    %v12379 = vmax.f32 %v12377, %v12378
    %v12380 = vsel %vm12190, %v11972, -inf
    %v12381 = vrot.slane %v12380, 4
    %v12382 = vmax.f32 %v12380, %v12381
    %v12383 = vrot.slane %v12382, 2
    %v12384 = vmax.f32 %v12382, %v12383
    %v12385 = vrot.slane %v12384, 1
    %v12386 = vmax.f32 %v12384, %v12385
    %v12387 = vsel %vm12190, %v11980, -inf
    %v12388 = vrot.slane %v12387, 4
    %v12389 = vmax.f32 %v12387, %v12388
    %v12390 = vrot.slane %v12389, 2
    %v12391 = vmax.f32 %v12389, %v12390
    %v12392 = vrot.slane %v12391, 1
    %v12393 = vmax.f32 %v12391, %v12392
    %v12394 = vsel %vm12190, %v11988, -inf
    %v12395 = vrot.slane %v12394, 4
    %v12396 = vmax.f32 %v12394, %v12395
    %v12397 = vrot.slane %v12396, 2
    %v12398 = vmax.f32 %v12396, %v12397
    %v12399 = vrot.slane %v12398, 1
    %v12400 = vmax.f32 %v12398, %v12399
    %v12401 = vsel %vm12190, %v11987, -inf
    %v12402 = vrot.slane %v12401, 4
    %v12403 = vmax.f32 %v12401, %v12402
    %v12404 = vrot.slane %v12403, 2
    %v12405 = vmax.f32 %v12403, %v12404
    %v12406 = vrot.slane %v12405, 1
    %v12407 = vmax.f32 %v12405, %v12406
    %v12408 = vsel %vm12190, %v11989, -inf
    %v12409 = vrot.slane %v12408, 4
    %v12410 = vmax.f32 %v12408, %v12409
    %v12411 = vrot.slane %v12410, 2
    %v12412 = vmax.f32 %v12410, %v12411
    %v12413 = vrot.slane %v12412, 1
    %v12414 = vmax.f32 %v12412, %v12413
    %v12415 = vsel %vm12190, %v11997, -inf
    %v12416 = vrot.slane %v12415, 4
    %v12417 = vmax.f32 %v12415, %v12416
    %v12418 = vrot.slane %v12417, 2
    %v12419 = vmax.f32 %v12417, %v12418
    %v12420 = vrot.slane %v12419, 1
    %v12421 = vmax.f32 %v12419, %v12420
    %v12422 = vsel %vm12190, %v12005, -inf
    %v12423 = vrot.slane %v12422, 4
    %v12424 = vmax.f32 %v12422, %v12423
    %v12425 = vrot.slane %v12424, 2
    %v12426 = vmax.f32 %v12424, %v12425
    %v12427 = vrot.slane %v12426, 1
    %v12428 = vmax.f32 %v12426, %v12427
    %v12429 = vsel %vm12190, %v12004, -inf
    %v12430 = vrot.slane %v12429, 4
    %v12431 = vmax.f32 %v12429, %v12430
    %v12432 = vrot.slane %v12431, 2
    %v12433 = vmax.f32 %v12431, %v12432
    %v12434 = vrot.slane %v12433, 1
    %v12435 = vmax.f32 %v12433, %v12434
    %v12436 = vsel %vm12190, %v12006, -inf
    %v12437 = vrot.slane %v12436, 4
    %v12438 = vmax.f32 %v12436, %v12437
    %v12439 = vrot.slane %v12438, 2
    %v12440 = vmax.f32 %v12438, %v12439
    %v12441 = vrot.slane %v12440, 1
    %v12442 = vmax.f32 %v12440, %v12441
    %v12443 = vsel %vm12190, %v12014, -inf
    %v12444 = vrot.slane %v12443, 4
    %v12445 = vmax.f32 %v12443, %v12444
    %v12446 = vrot.slane %v12445, 2
    %v12447 = vmax.f32 %v12445, %v12446
    %v12448 = vrot.slane %v12447, 1
    %v12449 = vmax.f32 %v12447, %v12448
    %v12450 = vsel %vm12190, %v12022, -inf
    %v12451 = vrot.slane %v12450, 4
    %v12452 = vmax.f32 %v12450, %v12451
    %v12453 = vrot.slane %v12452, 2
    %v12454 = vmax.f32 %v12452, %v12453
    %v12455 = vrot.slane %v12454, 1
    %v12456 = vmax.f32 %v12454, %v12455
    %v12457 = vsel %vm12190, %v12021, -inf
    %v12458 = vrot.slane %v12457, 4
    %v12459 = vmax.f32 %v12457, %v12458
    %v12460 = vrot.slane %v12459, 2
    %v12461 = vmax.f32 %v12459, %v12460
    %v12462 = vrot.slane %v12461, 1
    %v12463 = vmax.f32 %v12461, %v12462
    %v12464 = vsel %vm12190, %v12023, -inf
    %v12465 = vrot.slane %v12464, 4
    %v12466 = vmax.f32 %v12464, %v12465
    %v12467 = vrot.slane %v12466, 2
    %v12468 = vmax.f32 %v12466, %v12467
    %v12469 = vrot.slane %v12468, 1
    %v12470 = vmax.f32 %v12468, %v12469
    %v12471 = vsel %vm12190, %v12031, -inf
    %v12472 = vrot.slane %v12471, 4
    %v12473 = vmax.f32 %v12471, %v12472
    %v12474 = vrot.slane %v12473, 2
    %v12475 = vmax.f32 %v12473, %v12474
    %v12476 = vrot.slane %v12475, 1
    %v12477 = vmax.f32 %v12475, %v12476
    %v12478 = vsel %vm12190, %v12039, -inf
    %v12479 = vrot.slane %v12478, 4
    %v12480 = vmax.f32 %v12478, %v12479
    %v12481 = vrot.slane %v12480, 2
    %v12482 = vmax.f32 %v12480, %v12481
    %v12483 = vrot.slane %v12482, 1
    %v12484 = vmax.f32 %v12482, %v12483
    %v12485 = vsel %vm12190, %v12038, -inf
    %v12486 = vrot.slane %v12485, 4
    %v12487 = vmax.f32 %v12485, %v12486
    %v12488 = vrot.slane %v12487, 2
    %v12489 = vmax.f32 %v12487, %v12488
    %v12490 = vrot.slane %v12489, 1
    %v12491 = vmax.f32 %v12489, %v12490
    %v12492 = vsel %vm12190, %v12040, -inf
    %v12493 = vrot.slane %v12492, 4
    %v12494 = vmax.f32 %v12492, %v12493
    %v12495 = vrot.slane %v12494, 2
    %v12496 = vmax.f32 %v12494, %v12495
    %v12497 = vrot.slane %v12496, 1
    %v12498 = vmax.f32 %v12496, %v12497
    %v12499 = vsel %vm12190, %v12048, -inf
    %v12500 = vrot.slane %v12499, 4
    %v12501 = vmax.f32 %v12499, %v12500
    %v12502 = vrot.slane %v12501, 2
    %v12503 = vmax.f32 %v12501, %v12502
    %v12504 = vrot.slane %v12503, 1
    %v12505 = vmax.f32 %v12503, %v12504
    %v12506 = vsel %vm12190, %v12056, -inf
    %v12507 = vrot.slane %v12506, 4
    %v12508 = vmax.f32 %v12506, %v12507
    %v12509 = vrot.slane %v12508, 2
    %v12510 = vmax.f32 %v12508, %v12509
    %v12511 = vrot.slane %v12510, 1
    %v12512 = vmax.f32 %v12510, %v12511
    %v12513 = vsel %vm12190, %v12055, -inf
    %v12514 = vrot.slane %v12513, 4
    %v12515 = vmax.f32 %v12513, %v12514
    %v12516 = vrot.slane %v12515, 2
    %v12517 = vmax.f32 %v12515, %v12516
    %v12518 = vrot.slane %v12517, 1
    %v12519 = vmax.f32 %v12517, %v12518
    %v12520 = vsel %vm12190, %v12057, -inf
    %v12521 = vrot.slane %v12520, 4
    %v12522 = vmax.f32 %v12520, %v12521
    %v12523 = vrot.slane %v12522, 2
    %v12524 = vmax.f32 %v12522, %v12523
    %v12525 = vrot.slane %v12524, 1
    %v12526 = vmax.f32 %v12524, %v12525
    %v12527 = vsel %vm12190, %v12065, -inf
    %v12528 = vrot.slane %v12527, 4
    %v12529 = vmax.f32 %v12527, %v12528
    %v12530 = vrot.slane %v12529, 2
    %v12531 = vmax.f32 %v12529, %v12530
    %v12532 = vrot.slane %v12531, 1
    %v12533 = vmax.f32 %v12531, %v12532
    %v12534 = vsel %vm12190, %v12073, -inf
    %v12535 = vrot.slane %v12534, 4
    %v12536 = vmax.f32 %v12534, %v12535
    %v12537 = vrot.slane %v12536, 2
    %v12538 = vmax.f32 %v12536, %v12537
    %v12539 = vrot.slane %v12538, 1
    %v12540 = vmax.f32 %v12538, %v12539
    %v12541 = vsel %vm12190, %v12072, -inf
    %v12542 = vrot.slane %v12541, 4
    %v12543 = vmax.f32 %v12541, %v12542
    %v12544 = vrot.slane %v12543, 2
    %v12545 = vmax.f32 %v12543, %v12544
    %v12546 = vrot.slane %v12545, 1
    %v12547 = vmax.f32 %v12545, %v12546
    %v12548 = vsel %vm12190, %v12074, -inf
    %v12549 = vrot.slane %v12548, 4
    %v12550 = vmax.f32 %v12548, %v12549
    %v12551 = vrot.slane %v12550, 2
    %v12552 = vmax.f32 %v12550, %v12551
    %v12553 = vrot.slane %v12552, 1
    %v12554 = vmax.f32 %v12552, %v12553
    %v12555 = vsel %vm12190, %v12082, -inf
    %v12556 = vrot.slane %v12555, 4
    %v12557 = vmax.f32 %v12555, %v12556
    %v12558 = vrot.slane %v12557, 2
    %v12559 = vmax.f32 %v12557, %v12558
    %v12560 = vrot.slane %v12559, 1
    %v12561 = vmax.f32 %v12559, %v12560
    %v12562 = vsel %vm12190, %v12090, -inf
    %v12563 = vrot.slane %v12562, 4
    %v12564 = vmax.f32 %v12562, %v12563
    %v12565 = vrot.slane %v12564, 2
    %v12566 = vmax.f32 %v12564, %v12565
    %v12567 = vrot.slane %v12566, 1
    %v12568 = vmax.f32 %v12566, %v12567
    %v12569 = vsel %vm12190, %v12089, -inf
    %v12570 = vrot.slane %v12569, 4
    %v12571 = vmax.f32 %v12569, %v12570
    %v12572 = vrot.slane %v12571, 2
    %v12573 = vmax.f32 %v12571, %v12572
    %v12574 = vrot.slane %v12573, 1
    %v12575 = vmax.f32 %v12573, %v12574
    %v12576 = vsel %vm12190, %v12091, -inf
    %v12577 = vrot.slane %v12576, 4
    %v12578 = vmax.f32 %v12576, %v12577
    %v12579 = vrot.slane %v12578, 2
    %v12580 = vmax.f32 %v12578, %v12579
    %v12581 = vrot.slane %v12580, 1
    %v12582 = vmax.f32 %v12580, %v12581
    %v12583 = vsel %vm12190, %v12099, -inf
    %v12584 = vrot.slane %v12583, 4
    %v12585 = vmax.f32 %v12583, %v12584
    %v12586 = vrot.slane %v12585, 2
    %v12587 = vmax.f32 %v12585, %v12586
    %v12588 = vrot.slane %v12587, 1
    %v12589 = vmax.f32 %v12587, %v12588
    %v12590 = vsel %vm12190, %v12107, -inf
    %v12591 = vrot.slane %v12590, 4
    %v12592 = vmax.f32 %v12590, %v12591
    %v12593 = vrot.slane %v12592, 2
    %v12594 = vmax.f32 %v12592, %v12593
    %v12595 = vrot.slane %v12594, 1
    %v12596 = vmax.f32 %v12594, %v12595
    %v12597 = vsel %vm12190, %v12106, -inf
    %v12598 = vrot.slane %v12597, 4
    %v12599 = vmax.f32 %v12597, %v12598
    %v12600 = vrot.slane %v12599, 2
    %v12601 = vmax.f32 %v12599, %v12600
    %v12602 = vrot.slane %v12601, 1
    %v12603 = vmax.f32 %v12601, %v12602
    %v12604 = vsel %vm12190, %v12108, -inf
    %v12605 = vrot.slane %v12604, 4
    %v12606 = vmax.f32 %v12604, %v12605
    %v12607 = vrot.slane %v12606, 2
    %v12608 = vmax.f32 %v12606, %v12607
    %v12609 = vrot.slane %v12608, 1
    %v12610 = vmax.f32 %v12608, %v12609
    %v12611 = vsel %vm12190, %v12116, -inf
    %v12612 = vrot.slane %v12611, 4
    %v12613 = vmax.f32 %v12611, %v12612
    %v12614 = vrot.slane %v12613, 2
    %v12615 = vmax.f32 %v12613, %v12614
    %v12616 = vrot.slane %v12615, 1
    %v12617 = vmax.f32 %v12615, %v12616
    %v12618 = vsel %vm12190, %v12124, -inf
    %v12619 = vrot.slane %v12618, 4
    %v12620 = vmax.f32 %v12618, %v12619
    %v12621 = vrot.slane %v12620, 2
    %v12622 = vmax.f32 %v12620, %v12621
    %v12623 = vrot.slane %v12622, 1
    %v12624 = vmax.f32 %v12622, %v12623
    %v12625 = vsel %vm12190, %v12123, -inf
    %v12626 = vrot.slane %v12625, 4
    %v12627 = vmax.f32 %v12625, %v12626
    %v12628 = vrot.slane %v12627, 2
    %v12629 = vmax.f32 %v12627, %v12628
    %v12630 = vrot.slane %v12629, 1
    %v12631 = vmax.f32 %v12629, %v12630
    %v12632 = vsel %vm12190, %v12125, -inf
    %v12633 = vrot.slane %v12632, 4
    %v12634 = vmax.f32 %v12632, %v12633
    %v12635 = vrot.slane %v12634, 2
    %v12636 = vmax.f32 %v12634, %v12635
    %v12637 = vrot.slane %v12636, 1
    %v12638 = vmax.f32 %v12636, %v12637
    %v12703 = vsel %vm7615, %v12204, %v12197
    %v12704 = vsel %vm7603, %v12211, %v12703
    %v12705 = vsel %vm7605, %v12218, %v12704
    %v12706 = vsel %vm7607, %v12225, %v12705
    %v12707 = vsel %vm7609, %v12232, %v12706
    %v12708 = vsel %vm7611, %v12239, %v12707
    %v12709 = vsel %vm7613, %v12246, %v12708
    %v12710 = vsel %vm7615, %v12260, %v12253
    %v12711 = vsel %vm7603, %v12267, %v12710
    %v12712 = vsel %vm7605, %v12274, %v12711
    %v12713 = vsel %vm7607, %v12281, %v12712
    %v12714 = vsel %vm7609, %v12288, %v12713
    %v12715 = vsel %vm7611, %v12295, %v12714
    %v12716 = vsel %vm7613, %v12302, %v12715
    %v12717 = vsel %vm7615, %v12316, %v12309
    %v12718 = vsel %vm7603, %v12323, %v12717
    %v12719 = vsel %vm7605, %v12330, %v12718
    %v12720 = vsel %vm7607, %v12337, %v12719
    %v12721 = vsel %vm7609, %v12344, %v12720
    %v12722 = vsel %vm7611, %v12351, %v12721
    %v12723 = vsel %vm7613, %v12358, %v12722
    %v12724 = vsel %vm7615, %v12372, %v12365
    %v12725 = vsel %vm7603, %v12379, %v12724
    %v12726 = vsel %vm7605, %v12386, %v12725
    %v12727 = vsel %vm7607, %v12393, %v12726
    %v12728 = vsel %vm7609, %v12400, %v12727
    %v12729 = vsel %vm7611, %v12407, %v12728
    %v12730 = vsel %vm7613, %v12414, %v12729
    %v12731 = vsel %vm7615, %v12428, %v12421
    %v12732 = vsel %vm7603, %v12435, %v12731
    %v12733 = vsel %vm7605, %v12442, %v12732
    %v12734 = vsel %vm7607, %v12449, %v12733
    %v12735 = vsel %vm7609, %v12456, %v12734
    %v12736 = vsel %vm7611, %v12463, %v12735
    %v12737 = vsel %vm7613, %v12470, %v12736
    %v12738 = vsel %vm7615, %v12484, %v12477
    %v12739 = vsel %vm7603, %v12491, %v12738
    %v12740 = vsel %vm7605, %v12498, %v12739
    %v12741 = vsel %vm7607, %v12505, %v12740
    %v12742 = vsel %vm7609, %v12512, %v12741
    %v12743 = vsel %vm7611, %v12519, %v12742
    %v12744 = vsel %vm7613, %v12526, %v12743
    %v12745 = vsel %vm7615, %v12540, %v12533
    %v12746 = vsel %vm7603, %v12547, %v12745
    %v12747 = vsel %vm7605, %v12554, %v12746
    %v12748 = vsel %vm7607, %v12561, %v12747
    %v12749 = vsel %vm7609, %v12568, %v12748
    %v12750 = vsel %vm7611, %v12575, %v12749
    %v12751 = vsel %vm7613, %v12582, %v12750
    %v12752 = vsel %vm7615, %v12596, %v12589
    %v12753 = vsel %vm7603, %v12603, %v12752
    %v12754 = vsel %vm7605, %v12610, %v12753
    %v12755 = vsel %vm7607, %v12617, %v12754
    %v12756 = vsel %vm7609, %v12624, %v12755
    %v12757 = vsel %vm7611, %v12631, %v12756
    %v12758 = vsel %vm7613, %v12638, %v12757
    %12767 = vst [vmem:[#allocation5] sm:$0xff] %v12709
    %12768 = vst [vmem:[#allocation5 + $0x8] sm:$0xff] %v12716
    %12769 = vst [vmem:[#allocation5 + $0x10] sm:$0xff] %v12723
    %12770 = vst [vmem:[#allocation5 + $0x18] sm:$0xff] %v12730
    %12771 = vst [vmem:[#allocation5 + $0x20] sm:$0xff] %v12737
    %12772 = vst [vmem:[#allocation5 + $0x28] sm:$0xff] %v12744
    %12773 = vst [vmem:[#allocation5 + $0x30] sm:$0xff] %v12751
    %12774 = vst [vmem:[#allocation5 + $0x38] sm:$0xff] %v12758
    // Predicated region
    $region30: #{tpu_custom_call.1} parent=1 // pred_check
      _
    $region31: #{tpu_custom_call.1} parent=1 // pred_check_branch
      %12776 = sbr.rel (0) target = $region33
    $region32: #{tpu_custom_call.1} parent=1 // pred_region
      %s12778 = ssub.s32 1024, 1024
      %12779 = vsyncadd [#allocation6], %s12778
      %s12780 = sshll.u32 [#allocation5], 4
      %s12781 = int_to_ptr.vmem [resolvable:$true] %s12780
      %12786 = dma.vmem_to_hbm [thread:$0]  %s12781, 1024, %s7, [#allocation6], 128, 128, 8
    $region33: #{tpu_custom_call.1} parent=1 // pred_fallthru
      _
    // Predicated region
    $region34: #{tpu_custom_call.1} parent=1 // pred_check
      _
    $region35: #{tpu_custom_call.1} parent=1 // pred_check_branch
      %12788 = sbr.rel (0) target = $region37
    $region36: #{tpu_custom_call.1} parent=1 // pred_region
      %12789 = dma.done [#allocation6], 1024
    $region37: #{tpu_custom_call.1} parent=1 // pred_fallthru
      _
    %12790 = vsyncpa [#allocation6], 1

</llo_original>
